<compile_context>
chip_gen: v6e
topology: v6e:2x2x1
jax: 0.10.0
libtpu: 0.0.40
codegen_flags: <defaults>
</compile_context>

<pallas_src>
import math
import functools

import jax
import jax.numpy as jnp
from jax.experimental import pallas as pl
from jax.experimental.pallas import tpu as pltpu


NEG_INF = -1e30  # finite "masked" value; avoids exp(-inf - -inf) NaNs on edge rows


def _pick_tile(dim, candidates):
    """Largest candidate that divides `dim`, else the full dim (always legal)."""
    for c in candidates:
        if dim % c == 0:
            return c
    return dim


# ------------------------- projection matmul -------------------------

def _linear_kernel(x_ref, w_ref, o_ref, acc_ref):
    # x: (tm, tk), w: (tk, tn) -> o: (tm, tn); accumulate over the k grid axis.
    @pl.when(pl.program_id(2) == 0)
    def _init():
        acc_ref[...] = jnp.zeros_like(acc_ref)

    acc_ref[...] += jnp.dot(x_ref[...], w_ref[...], preferred_element_type=jnp.float32)

    @pl.when(pl.program_id(2) == pl.num_programs(2) - 1)
    def _finalize():
        o_ref[...] = acc_ref[...].astype(o_ref.dtype)


def pallas_linear(x, w):
    """x: (M, K) @ w: (K, N) -> (M, N), weights stored (in, out) == torch x @ W.T."""
    M, K = x.shape
    K2, N = w.shape
    assert K == K2
    tm = _pick_tile(M, (256, 128, 64, 32, 16, 8))
    tn = _pick_tile(N, (256, 128))
    tk = _pick_tile(K, (512, 256, 128))
    grid = (M // tm, N // tn, K // tk)
    return pl.pallas_call(
        _linear_kernel,
        out_shape=jax.ShapeDtypeStruct((M, N), x.dtype),
        grid_spec=pltpu.PrefetchScalarGridSpec(
            num_scalar_prefetch=0,
            grid=grid,
            in_specs=[
                pl.BlockSpec((tm, tk), lambda i, j, k: (i, k)),
                pl.BlockSpec((tk, tn), lambda i, j, k: (k, j)),
            ],
            out_specs=pl.BlockSpec((tm, tn), lambda i, j, k: (i, j)),
            scratch_shapes=[pltpu.VMEM((tm, tn), jnp.float32)],
        ),
        compiler_params=pltpu.CompilerParams(
            dimension_semantics=("parallel", "parallel", "arbitrary")
        ),
    )(x, w)


# ------------------------- flash GQA attention -------------------------

def _gqa_flash_kernel(q_ref, k_ref, v_ref, cos_q_ref, sin_q_ref, cos_k_ref, sin_k_ref,
                      o_ref, q_scr, m_scr, l_scr, acc_scr,
                      *, scale, tq, tk, n_rep):
    """One (batch, kv-group, q-tile, kv-tile) grid step.

    q_ref   : (1, n_rep, tq, D)  all query heads of this KV group
    k/v_ref : (1, 1, tk, D)      shared K/V tile of the group
    cos/sin : (tq|tk, D)         RoPE tables for this tile's rows
                                 (sin has the rotate_half sign pre-folded)
    o_ref   : (1, n_rep, tq, D)
    """
    qi = pl.program_id(2)
    ki = pl.program_id(3)
    nk = pl.num_programs(3)
    D = q_ref.shape[-1]
    half = D // 2
    rows = n_rep * tq

    # -- once per q tile: RoPE + scale q into scratch, reset online-softmax state --
    @pl.when(ki == 0)
    def _init():
        cos = cos_q_ref[...].astype(jnp.float32)
        sin = sin_q_ref[...].astype(jnp.float32)
        for h in range(n_rep):  # static unroll, n_rep is a small compile-time int
            xh = q_ref[0, h].astype(jnp.float32)                       # (tq, D)
            xh = xh * cos + pltpu.roll(xh, half, 1) * sin              # RoPE (roll = XLU)
            q_scr[h * tq:(h + 1) * tq, :] = xh * scale                 # fold 1/sqrt(D) into q
        m_scr[...] = jnp.full_like(m_scr, NEG_INF)
        l_scr[...] = jnp.zeros_like(l_scr)
        acc_scr[...] = jnp.zeros_like(acc_scr)

    kv_start = ki * tk
    q_last = (qi + 1) * tq - 1

    # -- online-softmax update; fully-masked (above-diagonal) KV tiles are skipped --
    @pl.when(kv_start <= q_last)
    def _update():
        cos = cos_k_ref[...].astype(jnp.float32)
        sin = sin_k_ref[...].astype(jnp.float32)
        k = k_ref[0, 0].astype(jnp.float32)                            # (tk, D)
        k = k * cos + pltpu.roll(k, half, 1) * sin
        v = v_ref[0, 0]                                                # (tk, D)
        q = q_scr[...]                                                 # (rows, D) f32

        # scores: contract on D directly (no materialized k.T)
        s = jax.lax.dot_general(q, k, (((1,), (1,)), ((), ())),
                                preferred_element_type=jnp.float32)    # (rows, tk)

        # causal mask (rows are head-major: row = h*tq + t)
        q_pos = qi * tq + (jax.lax.broadcasted_iota(jnp.int32, (rows, tk), 0) % tq)
        k_pos = kv_start + jax.lax.broadcasted_iota(jnp.int32, (rows, tk), 1)
        s = jnp.where(k_pos <= q_pos, s, NEG_INF)

        m_prev = m_scr[...]
        m_new = jnp.maximum(m_prev, jnp.max(s, axis=-1, keepdims=True))
        alpha = jnp.exp(m_prev - m_new)
        p = jnp.exp(s - m_new)
        l_scr[...] = alpha * l_scr[...] + jnp.sum(p, axis=-1, keepdims=True)
        acc_scr[...] = alpha * acc_scr[...] + jnp.dot(
            p.astype(v.dtype), v, preferred_element_type=jnp.float32)
        m_scr[...] = m_new

    # -- once per q tile: normalize and write out --
    @pl.when(ki == nk - 1)
    def _finalize():
        o = acc_scr[...] * pl.reciprocal(l_scr[...], approx=False)     # (rows, D)
        for h in range(n_rep):
            o_ref[0, h] = o[h * tq:(h + 1) * tq, :].astype(o_ref.dtype)


def pallas_gqa_attention(q, k, v, cos, sin_rot, n_rep):
    """q: (B, Hq, S, D); k, v: (B, Hkv, S, D); cos/sin_rot: (S, D). Returns (B, Hq, S, D)."""
    B, Hq, S, D = q.shape
    Hkv = k.shape[1]
    assert Hq == Hkv * n_rep
    scale = 1.0 / math.sqrt(D)

    tq = _pick_tile(S, (128, 64, 32, 16, 8))
    tk = _pick_tile(S, (128, 64, 32, 16, 8))
    nq = S // tq
    nk = S // tk

    def kv_block(qi, ki):
        # clamp tiles strictly above the causal diagonal onto the previous block
        # index so no new K/V (or cos/sin) DMA is issued for skipped tiles.
        return jnp.minimum(ki, ((qi + 1) * tq - 1) // tk)

    kernel = functools.partial(_gqa_flash_kernel, scale=scale, tq=tq, tk=tk, n_rep=n_rep)

    return pl.pallas_call(
        kernel,
        out_shape=jax.ShapeDtypeStruct((B, Hq, S, D), q.dtype),
        grid_spec=pltpu.PrefetchScalarGridSpec(
            num_scalar_prefetch=0,
            grid=(B, Hkv, nq, nk),
            in_specs=[
                pl.BlockSpec((1, n_rep, tq, D), lambda b, g, qi, ki: (b, g, qi, 0)),
                pl.BlockSpec((1, 1, tk, D), lambda b, g, qi, ki: (b, g, kv_block(qi, ki), 0)),
                pl.BlockSpec((1, 1, tk, D), lambda b, g, qi, ki: (b, g, kv_block(qi, ki), 0)),
                pl.BlockSpec((tq, D), lambda b, g, qi, ki: (qi, 0)),
                pl.BlockSpec((tq, D), lambda b, g, qi, ki: (qi, 0)),
                pl.BlockSpec((tk, D), lambda b, g, qi, ki: (kv_block(qi, ki), 0)),
                pl.BlockSpec((tk, D), lambda b, g, qi, ki: (kv_block(qi, ki), 0)),
            ],
            out_specs=pl.BlockSpec((1, n_rep, tq, D), lambda b, g, qi, ki: (b, g, qi, 0)),
            scratch_shapes=[
                pltpu.VMEM((n_rep * tq, D), jnp.float32),  # RoPE'd + scaled q
                pltpu.VMEM((n_rep * tq, 1), jnp.float32),  # running max m
                pltpu.VMEM((n_rep * tq, 1), jnp.float32),  # running denom l
                pltpu.VMEM((n_rep * tq, D), jnp.float32),  # output accumulator
            ],
        ),
        compiler_params=pltpu.CompilerParams(
            dimension_semantics=("parallel", "parallel", "parallel", "arbitrary")
        ),
    )(q, k, v, cos, sin_rot, cos, sin_rot)


# ------------------------- Module wrapper -------------------------

class GQAttentionPallas:
    """JAX/Pallas port of GQAttention (eval mode, no KV cache, no bias)."""

    def __init__(self, max_seq_len, hidden_size, num_attention_heads,
                 num_key_value_heads, key, head_dim=None, dtype=jnp.float32):
        self.max_seq_len = max_seq_len
        self.hidden_size = hidden_size
        self.num_heads = num_attention_heads
        self.head_dim = hidden_size // num_attention_heads if head_dim is None else head_dim
        self.num_kv_heads = num_key_value_heads
        self.n_rep = self.num_heads // self.num_kv_heads
        self.dtype = dtype

        kq, kk, kv, ko = jax.random.split(key, 4)
        scale = 0.02
        # weights stored (in_features, out_features); equivalent to torch's x @ W.T
        self.wq = scale * jax.random.normal(kq, (hidden_size, self.num_heads * self.head_dim), dtype)
        self.wk = scale * jax.random.normal(kk, (hidden_size, self.num_kv_heads * self.head_dim), dtype)
        self.wv = scale * jax.random.normal(kv, (hidden_size, self.num_kv_heads * self.head_dim), dtype)
        self.wo = scale * jax.random.normal(ko, (self.num_heads * self.head_dim, hidden_size), dtype)

        # RotaryEmbedding caches
        D = self.head_dim
        inv_freq = 1.0 / (10000.0 ** (jnp.arange(0, D, 2, dtype=jnp.float32) / D))
        t = jnp.arange(max_seq_len, dtype=jnp.float32)[:, None]          # (L, 1)
        half_freqs = t * inv_freq[None, :]                               # (L, D/2)
        freqs = jnp.concatenate([half_freqs, half_freqs], axis=-1)       # (L, D)
        self.cos_cached = jnp.cos(freqs).astype(dtype)
        self.sin_cached = jnp.sin(freqs).astype(dtype)
        # rotate_half(x) == roll(x, D/2) * sign, sign = [-1]*D/2 ++ [+1]*D/2.
        # Fold the sign into the sin table used by the kernel (zero in-kernel cost).
        sign = jnp.concatenate([-jnp.ones((D // 2,), jnp.float32),
                                jnp.ones((D // 2,), jnp.float32)])
        self.sin_rot = (jnp.sin(freqs) * sign).astype(dtype)

    def __call__(self, hidden_states):
        B, S, _ = hidden_states.shape
        xf = hidden_states.reshape(B * S, self.hidden_size)

        q = pallas_linear(xf, self.wq).reshape(B, S, self.num_heads, self.head_dim)
        k = pallas_linear(xf, self.wk).reshape(B, S, self.num_kv_heads, self.head_dim)
        v = pallas_linear(xf, self.wv).reshape(B, S, self.num_kv_heads, self.head_dim)

        # head-major layout so per-group attention blocks have (seq, D) as the minor
        # dims (required by the (8,128) block rule). XLA fuses these transposes.
        q = q.transpose(0, 2, 1, 3)   # (B, Hq,  S, D)
        k = k.transpose(0, 2, 1, 3)   # (B, Hkv, S, D)
        v = v.transpose(0, 2, 1, 3)

        cos = self.cos_cached[:S]
        sin_rot = self.sin_rot[:S]

        out = pallas_gqa_attention(q, k, v, cos, sin_rot, self.n_rep)  # (B, Hq, S, D)

        out = out.transpose(0, 2, 1, 3).reshape(B * S, self.num_heads * self.head_dim)
        out = pallas_linear(out, self.wo).reshape(B, S, self.hidden_size)
        return out

    # Pure-JAX reference replicating the PyTorch math (for correctness check).
    def reference(self, hidden_states):
        B, S, _ = hidden_states.shape
        q = (hidden_states @ self.wq).reshape(B, S, self.num_heads, self.head_dim)
        k = (hidden_states @ self.wk).reshape(B, S, self.num_kv_heads, self.head_dim)
        v = (hidden_states @ self.wv).reshape(B, S, self.num_kv_heads, self.head_dim)

        cos = self.cos_cached[:S][None, :, None, :]   # (1, S, 1, D)
        sin = self.sin_cached[:S][None, :, None, :]

        def rotate_half(x):
            x1, x2 = jnp.split(x, 2, axis=-1)
            return jnp.concatenate([-x2, x1], axis=-1)

        q = q * cos + rotate_half(q) * sin
        k = k * cos + rotate_half(k) * sin

        k = jnp.repeat(k, self.n_rep, axis=2)
        v = jnp.repeat(v, self.n_rep, axis=2)

        q = q.transpose(0, 2, 1, 3)
        k = k.transpose(0, 2, 1, 3)
        v = v.transpose(0, 2, 1, 3)

        scores = (q @ k.transpose(0, 1, 3, 2)) / math.sqrt(self.head_dim)
        mask = jnp.tril(jnp.ones((S, S), bool))
        scores = jnp.where(mask[None, None], scores, -jnp.inf)
        probs = jax.nn.softmax(scores.astype(jnp.float32), axis=-1).astype(q.dtype)
        out = probs @ v
        out = out.transpose(0, 2, 1, 3).reshape(B, S, -1)
        return out @ self.wo


if __name__ == "__main__":
    # keep the pure-JAX reference matmuls at full f32 accuracy so it is a fair
    # yardstick for the (f32-accumulating) Pallas kernels.
    jax.config.update("jax_default_matmul_precision", "highest")

    key = jax.random.PRNGKey(0)
    k_params, k_x = jax.random.split(key)

    # small but representative: head_dim=128 (lane-aligned), 2 q tiles x 2 kv tiles
    # so the online softmax, causal-tile skip and GQA grouping are all exercised.
    B, S, hidden = 2, 256, 512
    num_heads, num_kv_heads = 4, 2
    max_seq_len = 256

    attn = GQAttentionPallas(
        max_seq_len=max_seq_len,
        hidden_size=hidden,
        num_attention_heads=num_heads,
        num_key_value_heads=num_kv_heads,
        key=k_params,
    )

    x = jax.random.normal(k_x, (B, S, hidden), jnp.float32)

    out = jax.block_until_ready(attn(x))
    ref = attn.reference(x)

    assert out.shape == (B, S, hidden)
    assert jnp.allclose(out, ref, rtol=1e-3, atol=1e-3), "mismatch vs pure-JAX reference"

    print("KERNEL_OK")
</pallas_src>

<mosaic_0001>
module attributes {stable_mosaic.version = 11 : i64} {
  func.func @_linear_kernel(%arg0: i32, %arg1: i32, %arg2: i32, %arg3: memref<256x512xf32, #tpu.memory_space<vmem>>, %arg4: memref<512x256xf32, #tpu.memory_space<vmem>>, %arg5: memref<256x256xf32, #tpu.memory_space<vmem>>, %arg6: memref<256x256xf32, #tpu.memory_space<vmem>>) attributes {dimension_semantics = [#tpu.dimension_semantics<parallel>, #tpu.dimension_semantics<parallel>, #tpu.dimension_semantics<arbitrary>], iteration_bounds = array<i64: 2, 2, 1>, scalar_prefetch = 0 : i64, scratch_operands = 1 : i64, tpu.core_type = #tpu.core_type<tc>, window_params = [{transform_indices = @transform_0, window_bounds = array<i64: 256, 512>}, {transform_indices = @transform_1, window_bounds = array<i64: 512, 256>}, {transform_indices = @transform_2, window_bounds = array<i64: 256, 256>}]} {
    %c0_i32 = arith.constant 0 : i32
    %0 = arith.cmpi eq, %arg2, %c0_i32 : i32
    %1 = arith.extui %0 : i1 to i32
    %c0_i32_0 = arith.constant 0 : i32
    %2 = arith.cmpi ne, %1, %c0_i32_0 : i32
    scf.if %2 {
      %cst_10 = arith.constant 0.000000e+00 : f32
      %12 = vector.broadcast %cst_10 : f32 to vector<256x256xf32>
      %c0_11 = arith.constant 0 : index
      %c0_12 = arith.constant 0 : index
      %13 = vector.load %arg6[%c0_11, %c0_12] : memref<256x256xf32, #tpu.memory_space<vmem>>, vector<256x256xf32>
      tpu.vector_store %arg6[%c0_11, %c0_12], %12 {strides = array<i32>} : memref<256x256xf32, #tpu.memory_space<vmem>>, vector<256x256xf32>,
    } else {
    }
    %c0 = arith.constant 0 : index
    %c0_1 = arith.constant 0 : index
    %3 = vector.load %arg6[%c0, %c0_1] : memref<256x256xf32, #tpu.memory_space<vmem>>, vector<256x256xf32>
    %c0_2 = arith.constant 0 : index
    %c0_3 = arith.constant 0 : index
    %4 = vector.load %arg3[%c0_2, %c0_3] : memref<256x512xf32, #tpu.memory_space<vmem>>, vector<256x512xf32>
    %c0_4 = arith.constant 0 : index
    %c0_5 = arith.constant 0 : index
    %5 = vector.load %arg4[%c0_4, %c0_5] : memref<512x256xf32, #tpu.memory_space<vmem>>, vector<512x256xf32>
    %cst = arith.constant dense<0.000000e+00> : vector<256x256xf32>
    %6 = tpu.matmul %4, %5, %cst {dimension_numbers = #tpu.dot_dimension_numbers<[1], [0], [0], [1], [0, 0, 1, 1], [], []>, precision = #tpu.contract_precision<fp32>} : vector<256x512xf32>, vector<512x256xf32>, vector<256x256xf32> -> vector<256x256xf32>
    %7 = arith.addf %3, %6 : vector<256x256xf32>
    %c0_6 = arith.constant 0 : index
    %c0_7 = arith.constant 0 : index
    %8 = vector.load %arg6[%c0_6, %c0_7] : memref<256x256xf32, #tpu.memory_space<vmem>>, vector<256x256xf32>
    tpu.vector_store %arg6[%c0_6, %c0_7], %7 {strides = array<i32>} : memref<256x256xf32, #tpu.memory_space<vmem>>, vector<256x256xf32>,
    %c0_i32_8 = arith.constant 0 : i32
    %9 = arith.cmpi eq, %arg2, %c0_i32_8 : i32
    %10 = arith.extui %9 : i1 to i32
    %c0_i32_9 = arith.constant 0 : i32
    %11 = arith.cmpi ne, %10, %c0_i32_9 : i32
    scf.if %11 {
      %c0_10 = arith.constant 0 : index
      %c0_11 = arith.constant 0 : index
      %12 = vector.load %arg6[%c0_10, %c0_11] : memref<256x256xf32, #tpu.memory_space<vmem>>, vector<256x256xf32>
      %c0_12 = arith.constant 0 : index
      %c0_13 = arith.constant 0 : index
      %13 = vector.load %arg5[%c0_12, %c0_13] : memref<256x256xf32, #tpu.memory_space<vmem>>, vector<256x256xf32>
      tpu.vector_store %arg5[%c0_12, %c0_13], %12 {strides = array<i32>} : memref<256x256xf32, #tpu.memory_space<vmem>>, vector<256x256xf32>,
    } else {
    }
    return
  }
  func.func @transform_0(%arg0: i32, %arg1: i32, %arg2: i32) -> (i32, i32) {
    %c0_i32 = arith.constant 0 : i32
    return %arg0, %arg2 : i32, i32
  }
  func.func @transform_1(%arg0: i32, %arg1: i32, %arg2: i32) -> (i32, i32) {
    %c0_i32 = arith.constant 0 : i32
    return %arg2, %arg1 : i32, i32
  }
  func.func @transform_2(%arg0: i32, %arg1: i32, %arg2: i32) -> (i32, i32) {
    %c0_i32 = arith.constant 0 : i32
    return %arg0, %arg1 : i32, i32
  }
}

</mosaic_0001>

<llo_original>
// kernel: tpu_custom_call.1
$region0: #{tpu_custom_call.1}
  #allocation0 [shape = 'u32[]', space=smem, size = 0x4, offset = 0x4, fixed_abs, tag = 'smem constant byte address 0x4 - core index']
  #allocation1 [shape = 'u32[144,128]{1,0:T(1,128)}', space=vmem, size = 0x12000, scoped, tag = 'internal scratch']
  #allocation2 [shape = 'f32[256,256]{1,0:T(8,128)}', space=vmem, size = 0x40000, scoped, tag = 'scratch operand']
  %s0 = inlined_call_operand.hbm [shape: f32[512,512], index: 0, kind: input, shape index: {}]
  %s1 = inlined_call_operand.hbm [shape: f32[512,512], index: 1, kind: input, shape index: {}]
  %s2 = inlined_call_operand.hbm [shape: f32[512,512], index: 2, kind: output, shape index: {}]
  %s3 = sld [smem:[#allocation0]]
  $region57: #{tpu_custom_call.1} parent=0
    _
  %s5 = ssub.s32 1, %s3
  %s6 = scalar_select 0, %s5, %s3
  $region1: #{tpu_custom_call.1} parent=0
    #allocation3 [shape = 'u8[1048576]{0}', space=vmem, size = 0x100000, scoped, tag = 'input window, operand 0']
    #allocation4 [shape = 's32[2]{0}', space=sflag, size = 0x8, scoped, tag = 'scoped memory for tpu_custom_call.1']
    #allocation5 [shape = 's32[2]{0}', space=sflag, size = 0x8, scoped, tag = 'scoped memory for tpu_custom_call.1']
    #allocation6 [shape = 'u8[1048576]{0}', space=vmem, size = 0x100000, scoped, tag = 'input window, operand 1']
    #allocation7 [shape = 's32[2]{0}', space=sflag, size = 0x8, scoped, tag = 'scoped memory for tpu_custom_call.1']
    #allocation8 [shape = 'u8[524288]{0}', space=vmem, size = 0x80000, scoped, tag = 'output window, operand 0']
    %7 = vsyncpa [#allocation4], 0
    %s8 = scalar_lea.sflag [#allocation4], 1
    %9 = vsyncpa %s8, 0
    %10 = vsyncpa [#allocation7], 0
    %s11 = scalar_lea.sflag [#allocation7], 1
    %12 = vsyncpa %s11, 0
    %13 = vsyncpa [#allocation5], 0
    %s14 = scalar_lea.sflag [#allocation5], 1
    %15 = vsyncpa %s14, 0
    loop: start=0, step=1, limit=6
    $region2: #{tpu_custom_call.1} parent=1 // loop_pre_header
      _
    $region3: #{tpu_custom_call.1} parent=1 // loop_header
      %s17 = sphi 0, %s21
      %p18 = scmp.ge.s32.totalorder %s17, 6
      %s24 = sphi 0, %s43
      %s25 = sphi 0, %s39
      %s26 = sphi 0, %s35
      %s27 = sphi 0, %s24
      %s28 = sphi 0, %s25
      %s29 = sphi 0, %s26
      %s30 = sphi 0, %s27
      %s31 = sphi 0, %s28
      %s32 = sphi 0, %s29
      %s48 = sphi 0, %s50
      %s51 = sphi 0, %s48
      %s52 = sphi 0, %s51
      %s68 = sphi 0, %s52
      %s76 = sphi 0, %s78
      %s79 = sphi 0, %s76
      %s80 = sphi 0, %s79
      %s96 = sphi 0, %s80
      %s104 = sphi 0, %s106
      %s107 = sphi 0, %s104
      %s108 = sphi 0, %s107
      %s124 = sphi 0, %s108
    $region4: #{tpu_custom_call.1} parent=1 // loop_header_branch
      %20 = sbr.rel (%p18) target = $region8
    $region5: #{tpu_custom_call.1} parent=1 // loop_body
      %s22 = ssub.s32 %s17, 1
      %s23 = ssub.s32 %s17, 2
      %s33 = sadd.s32 1, %s26
      %p34 = scmp.ge.s32.totalorder %s33, 1
      %s35 = scalar_select %p34, 0, %s33
      %s36 = sadd.s32 1, %s25
      %s37 = scalar_select %p34, %s36, %s25
      %p38 = scmp.ge.s32.totalorder %s37, 2
      %s39 = scalar_select %p38, 0, %s37
      %s40 = sadd.s32 1, %s24
      %s41 = scalar_select %p38, %s40, %s24
      %p42 = scmp.ge.s32.totalorder %s41, 2
      %s43 = scalar_select %p42, 0, %s41
      %s44 = ssub.s32 %s24, %s43
      %s45 = ssub.s32 %s26, %s35
      %s46 = sor.u32 %s44, %s45
      %p47 = scmp.eq.s32.totalorder %s46, 0
      %s49 = sadd.s32 %s48, 1
      %s50 = scalar_select %p47, %s48, %s49
      %p53 = pneg %p47
      %p54 = scmp.eq.s32.totalorder %s17, 3
      %p55 = por %p53, %p54
      %p56 = scmp.ne.s32.totalorder %s48, %s51
      %p57 = scmp.eq.s32.totalorder %s17, 0
      %p58 = por %p56, %p57
      %p59 = scmp.ne.s32.totalorder %s48, %s51
      %p60 = scmp.eq.s32.totalorder %s22, 3
      %p61 = por %p59, %p60
      %p62 = scmp.ne.s32.totalorder %s51, %s52
      %p63 = scmp.eq.s32.totalorder %s22, 0
      %p64 = por %p62, %p63
      %p65 = scmp.ne.s32.totalorder %s51, %s52
      %p66 = scmp.eq.s32.totalorder %s23, 3
      %p67 = por %p65, %p66
      %p69 = scmp.ne.s32.totalorder %s52, %s68
      %p70 = scmp.eq.s32.totalorder %s23, 0
      %p71 = por %p69, %p70
      %s72 = ssub.s32 %s26, %s35
      %s73 = ssub.s32 %s25, %s39
      %s74 = sor.u32 %s72, %s73
      %p75 = scmp.eq.s32.totalorder %s74, 0
      %s77 = sadd.s32 %s76, 1
      %s78 = scalar_select %p75, %s76, %s77
      %p81 = pneg %p75
      %p82 = scmp.eq.s32.totalorder %s17, 3
      %p83 = por %p81, %p82
      %p84 = scmp.ne.s32.totalorder %s76, %s79
      %p85 = scmp.eq.s32.totalorder %s17, 0
      %p86 = por %p84, %p85
      %p87 = scmp.ne.s32.totalorder %s76, %s79
      %p88 = scmp.eq.s32.totalorder %s22, 3
      %p89 = por %p87, %p88
      %p90 = scmp.ne.s32.totalorder %s79, %s80
      %p91 = scmp.eq.s32.totalorder %s22, 0
      %p92 = por %p90, %p91
      %p93 = scmp.ne.s32.totalorder %s79, %s80
      %p94 = scmp.eq.s32.totalorder %s23, 3
      %p95 = por %p93, %p94
      %p97 = scmp.ne.s32.totalorder %s80, %s96
      %p98 = scmp.eq.s32.totalorder %s23, 0
      %p99 = por %p97, %p98
      %s100 = ssub.s32 %s24, %s43
      %s101 = ssub.s32 %s25, %s39
      %s102 = sor.u32 %s100, %s101
      %p103 = scmp.eq.s32.totalorder %s102, 0
      %s105 = sadd.s32 %s104, 1
      %s106 = scalar_select %p103, %s104, %s105
      %p109 = pneg %p103
      %p110 = scmp.eq.s32.totalorder %s17, 3
      %p111 = por %p109, %p110
      %p112 = scmp.ne.s32.totalorder %s104, %s107
      %p113 = scmp.eq.s32.totalorder %s17, 0
      %p114 = por %p112, %p113
      %p115 = scmp.ne.s32.totalorder %s104, %s107
      %p116 = scmp.eq.s32.totalorder %s22, 3
      %p117 = por %p115, %p116
      %p118 = scmp.ne.s32.totalorder %s107, %s108
      %p119 = scmp.eq.s32.totalorder %s22, 0
      %p120 = por %p118, %p119
      %p121 = scmp.ne.s32.totalorder %s107, %s108
      %p122 = scmp.eq.s32.totalorder %s23, 3
      %p123 = por %p121, %p122
      %p125 = scmp.ne.s32.totalorder %s108, %s124
      %p126 = scmp.eq.s32.totalorder %s23, 0
      %p127 = por %p125, %p126
      %p128 = scmp.le.s32.totalorder 1, %s17
      %p129 = scmp.lt.s32.totalorder %s17, 5
      %p130 = pnand %p128, %p129
      %p131 = pneg %p130
      // Predicated region
      $region9: #{tpu_custom_call.1} parent=5 // pred_check
        _
      $region10: #{tpu_custom_call.1} parent=5 // pred_check_branch
        %133 = sbr.rel (%p130) target = $region12
      $region11: #{tpu_custom_call.1} parent=5 // pred_region
        %s134 = ssub.s32 %s17, 1
      $region12: #{tpu_custom_call.1} parent=5 // pred_fallthru
        _
      %p135 = scmp.lt.s32.totalorder %s17, 4
      // Predicated region
      $region13: #{tpu_custom_call.1} parent=5 // pred_check
        %p136 = pneg %p135
      $region14: #{tpu_custom_call.1} parent=5 // pred_check_branch
        %138 = sbr.rel (%p136) target = $region16
      $region15: #{tpu_custom_call.1} parent=5 // pred_region
        // Predicated region
        $region17: #{tpu_custom_call.1} parent=15 // pred_check
          %p139 = pneg %p58
        $region18: #{tpu_custom_call.1} parent=15 // pred_check_branch
          %141 = sbr.rel (%p139) target = $region20
        $region19: #{tpu_custom_call.1} parent=15 // pred_region
          %s142 = sand.u32 %s48, 1
          %s143 = scalar_lea.sflag [#allocation4], %s142
          %s144 = sand.u32 %s48, 1
          %s145 = smul.addr %s144, 1024
          %s146 = scalar_lea.vmem [#allocation3], %s145
          %s147 = smul.u32 32, %s24
          %s148 = smul.u32 4, %s26
          %s150 = ssub.s32 16384, 16384
          %151 = vsyncadd %s143, %s150
          %s152 = smul.addr %s147, 4
          %s153 = sadd.s32 %s148, %s152
          %s154 = smul.addr %s153, 128
          %s155 = scalar_lea.hbm %s0, %s154
          %s156 = sshll.u32 %s146, 4
          %s157 = int_to_ptr.vmem [resolvable:$true] %s156
          %162 = dma.hbm_to_vmem [thread:$0]  %s155, 16384, %s157, %s143, 512, 512, 32
        $region20: #{tpu_custom_call.1} parent=15 // pred_fallthru
          _
        // Predicated region
        $region21: #{tpu_custom_call.1} parent=15 // pred_check
          %p163 = pneg %p86
        $region22: #{tpu_custom_call.1} parent=15 // pred_check_branch
          %165 = sbr.rel (%p163) target = $region24
        $region23: #{tpu_custom_call.1} parent=15 // pred_region
          %s166 = sand.u32 %s76, 1
          %s167 = scalar_lea.sflag [#allocation7], %s166
          %s168 = sand.u32 %s76, 1
          %s169 = smul.addr %s168, 1024
          %s170 = scalar_lea.vmem [#allocation6], %s169
          %s171 = smul.u32 64, %s26
          %s172 = smul.u32 2, %s25
          %s174 = ssub.s32 16384, 16384
          %175 = vsyncadd %s167, %s174
          %s176 = smul.addr %s171, 4
          %s177 = sadd.s32 %s172, %s176
          %s178 = smul.addr %s177, 128
          %s179 = scalar_lea.hbm %s1, %s178
          %s180 = sshll.u32 %s170, 4
          %s181 = int_to_ptr.vmem [resolvable:$true] %s180
          %186 = dma.hbm_to_vmem [thread:$0]  %s179, 16384, %s181, %s167, 512, 256, 16
        $region24: #{tpu_custom_call.1} parent=15 // pred_fallthru
          _
      $region16: #{tpu_custom_call.1} parent=5 // pred_fallthru
        _
      %p187 = scmp.le.s32.totalorder 1, %s17
      %p188 = scmp.lt.s32.totalorder %s17, 5
      %p189 = pnand %p187, %p188
      %p190 = pneg %p189
      // Predicated region
      $region25: #{tpu_custom_call.1} parent=5 // pred_check
        _
      $region26: #{tpu_custom_call.1} parent=5 // pred_check_branch
        %192 = sbr.rel (%p189) target = $region28
      $region27: #{tpu_custom_call.1} parent=5 // pred_region
        %s193 = ssub.s32 %s17, 1
        %s194 = sand.u32 %s51, 1
        %s195 = scalar_lea.sflag [#allocation4], %s194
        %s196 = sand.u32 %s51, 1
        %s197 = smul.addr %s196, 1024
        %s198 = scalar_lea.vmem [#allocation3], %s197
        // Predicated region
        $region29: #{tpu_custom_call.1} parent=27 // pred_check
          %p199 = pneg %p64
        $region30: #{tpu_custom_call.1} parent=27 // pred_check_branch
          %201 = sbr.rel (%p199) target = $region32
        $region31: #{tpu_custom_call.1} parent=27 // pred_region
          %202 = dma.done %s195, 16384
        $region32: #{tpu_custom_call.1} parent=27 // pred_fallthru
          _
        %s203 = sand.u32 %s79, 1
        %s204 = scalar_lea.sflag [#allocation7], %s203
        %s205 = sand.u32 %s79, 1
        %s206 = smul.addr %s205, 1024
        %s207 = scalar_lea.vmem [#allocation6], %s206
        // Predicated region
        $region33: #{tpu_custom_call.1} parent=27 // pred_check
          %p208 = pneg %p92
        $region34: #{tpu_custom_call.1} parent=27 // pred_check_branch
          %210 = sbr.rel (%p208) target = $region36
        $region35: #{tpu_custom_call.1} parent=27 // pred_region
          %211 = dma.done %s204, 16384
        $region36: #{tpu_custom_call.1} parent=27 // pred_fallthru
          _
        %s212 = sand.u32 %s51, 1
        %s213 = scalar_lea.sflag [#allocation4], %s212
        %s214 = sand.u32 %s51, 1
        %s215 = smul.addr %s214, 1024
        %s216 = scalar_lea.vmem [#allocation3], %s215
        %p217 = pneg %p64
        %p218 = pneg %p61
        %s219 = sand.u32 %s79, 1
        %s220 = scalar_lea.sflag [#allocation7], %s219
        %s221 = sand.u32 %s79, 1
        %s222 = smul.addr %s221, 1024
        %s223 = scalar_lea.vmem [#allocation6], %s222
        %p224 = pneg %p92
        %p225 = pneg %p89
        %p226 = pneg %p120
        %p227 = pneg %p117
        %s228 = sand.u32 %s107, 1
        %s229 = scalar_lea.sflag [#allocation5], %s228
        %s230 = sand.u32 %s107, 1
        %s231 = smul.addr %s230, 512
        %s232 = scalar_lea.vmem [#allocation8], %s231
        %s233 = smul.u32 32, %s27
        %s234 = smul.u32 4, %s29
        %s235 = smul.u32 64, %s29
        %s236 = smul.u32 2, %s28
        %s237 = smul.u32 32, %s27
        %s238 = smul.u32 2, %s28
        %p239 = scmp.eq.s32.totalorder %s29, 0
        // Predicated region
        $region37: #{tpu_custom_call.1} parent=27 // pred_check
          %p240 = pneg %p239
        $region38: #{tpu_custom_call.1} parent=27 // pred_check_branch
          %242 = sbr.rel (%p240) target = $region40
        $region39: #{tpu_custom_call.1} parent=27 // pred_region
          %243 = vst [vmem:[#allocation2] sm:$0xff] 0.0
          %244 = vst [vmem:[#allocation2 + $0x8] sm:$0xff] 0.0
          %245 = vst [vmem:[#allocation2 + $0x10] sm:$0xff] 0.0
          %246 = vst [vmem:[#allocation2 + $0x18] sm:$0xff] 0.0
          %247 = vst [vmem:[#allocation2 + $0x20] sm:$0xff] 0.0
          %248 = vst [vmem:[#allocation2 + $0x28] sm:$0xff] 0.0
          %249 = vst [vmem:[#allocation2 + $0x30] sm:$0xff] 0.0
          %250 = vst [vmem:[#allocation2 + $0x38] sm:$0xff] 0.0
          %251 = vst [vmem:[#allocation2 + $0x40] sm:$0xff] 0.0
          %252 = vst [vmem:[#allocation2 + $0x48] sm:$0xff] 0.0
          %253 = vst [vmem:[#allocation2 + $0x50] sm:$0xff] 0.0
          %254 = vst [vmem:[#allocation2 + $0x58] sm:$0xff] 0.0
          %255 = vst [vmem:[#allocation2 + $0x60] sm:$0xff] 0.0
          %256 = vst [vmem:[#allocation2 + $0x68] sm:$0xff] 0.0
          %257 = vst [vmem:[#allocation2 + $0x70] sm:$0xff] 0.0
          %258 = vst [vmem:[#allocation2 + $0x78] sm:$0xff] 0.0
          %259 = vst [vmem:[#allocation2 + $0x80] sm:$0xff] 0.0
          %260 = vst [vmem:[#allocation2 + $0x88] sm:$0xff] 0.0
          %261 = vst [vmem:[#allocation2 + $0x90] sm:$0xff] 0.0
          %262 = vst [vmem:[#allocation2 + $0x98] sm:$0xff] 0.0
          %263 = vst [vmem:[#allocation2 + $0xa0] sm:$0xff] 0.0
          %264 = vst [vmem:[#allocation2 + $0xa8] sm:$0xff] 0.0
          %265 = vst [vmem:[#allocation2 + $0xb0] sm:$0xff] 0.0
          %266 = vst [vmem:[#allocation2 + $0xb8] sm:$0xff] 0.0
          %267 = vst [vmem:[#allocation2 + $0xc0] sm:$0xff] 0.0
          %268 = vst [vmem:[#allocation2 + $0xc8] sm:$0xff] 0.0
          %269 = vst [vmem:[#allocation2 + $0xd0] sm:$0xff] 0.0
          %270 = vst [vmem:[#allocation2 + $0xd8] sm:$0xff] 0.0
          %271 = vst [vmem:[#allocation2 + $0xe0] sm:$0xff] 0.0
          %272 = vst [vmem:[#allocation2 + $0xe8] sm:$0xff] 0.0
          %273 = vst [vmem:[#allocation2 + $0xf0] sm:$0xff] 0.0
          %274 = vst [vmem:[#allocation2 + $0xf8] sm:$0xff] 0.0
          %275 = vst [vmem:[#allocation2 + $0x100] sm:$0xff] 0.0
          %276 = vst [vmem:[#allocation2 + $0x108] sm:$0xff] 0.0
          %277 = vst [vmem:[#allocation2 + $0x110] sm:$0xff] 0.0
          %278 = vst [vmem:[#allocation2 + $0x118] sm:$0xff] 0.0
          %279 = vst [vmem:[#allocation2 + $0x120] sm:$0xff] 0.0
          %280 = vst [vmem:[#allocation2 + $0x128] sm:$0xff] 0.0
          %281 = vst [vmem:[#allocation2 + $0x130] sm:$0xff] 0.0
          %282 = vst [vmem:[#allocation2 + $0x138] sm:$0xff] 0.0
          %283 = vst [vmem:[#allocation2 + $0x140] sm:$0xff] 0.0
          %284 = vst [vmem:[#allocation2 + $0x148] sm:$0xff] 0.0
          %285 = vst [vmem:[#allocation2 + $0x150] sm:$0xff] 0.0
          %286 = vst [vmem:[#allocation2 + $0x158] sm:$0xff] 0.0
          %287 = vst [vmem:[#allocation2 + $0x160] sm:$0xff] 0.0
          %288 = vst [vmem:[#allocation2 + $0x168] sm:$0xff] 0.0
          %289 = vst [vmem:[#allocation2 + $0x170] sm:$0xff] 0.0
          %290 = vst [vmem:[#allocation2 + $0x178] sm:$0xff] 0.0
          %291 = vst [vmem:[#allocation2 + $0x180] sm:$0xff] 0.0
          %292 = vst [vmem:[#allocation2 + $0x188] sm:$0xff] 0.0
          %293 = vst [vmem:[#allocation2 + $0x190] sm:$0xff] 0.0
          %294 = vst [vmem:[#allocation2 + $0x198] sm:$0xff] 0.0
          %295 = vst [vmem:[#allocation2 + $0x1a0] sm:$0xff] 0.0
          %296 = vst [vmem:[#allocation2 + $0x1a8] sm:$0xff] 0.0
          %297 = vst [vmem:[#allocation2 + $0x1b0] sm:$0xff] 0.0
          %298 = vst [vmem:[#allocation2 + $0x1b8] sm:$0xff] 0.0
          %299 = vst [vmem:[#allocation2 + $0x1c0] sm:$0xff] 0.0
          %300 = vst [vmem:[#allocation2 + $0x1c8] sm:$0xff] 0.0
          %301 = vst [vmem:[#allocation2 + $0x1d0] sm:$0xff] 0.0
          %302 = vst [vmem:[#allocation2 + $0x1d8] sm:$0xff] 0.0
          %303 = vst [vmem:[#allocation2 + $0x1e0] sm:$0xff] 0.0
          %304 = vst [vmem:[#allocation2 + $0x1e8] sm:$0xff] 0.0
          %305 = vst [vmem:[#allocation2 + $0x1f0] sm:$0xff] 0.0
          %306 = vst [vmem:[#allocation2 + $0x1f8] sm:$0xff] 0.0
        $region40: #{tpu_custom_call.1} parent=27 // pred_fallthru
          _
        %v307 = vld [vmem:[#allocation2] sm:$0xff]
        %v308 = vld [vmem:[#allocation2 + $0x8] sm:$0xff]
        %v309 = vld [vmem:[#allocation2 + $0x10] sm:$0xff]
        %v310 = vld [vmem:[#allocation2 + $0x18] sm:$0xff]
        %v311 = vld [vmem:[#allocation2 + $0x20] sm:$0xff]
        %v312 = vld [vmem:[#allocation2 + $0x28] sm:$0xff]
        %v313 = vld [vmem:[#allocation2 + $0x30] sm:$0xff]
        %v314 = vld [vmem:[#allocation2 + $0x38] sm:$0xff]
        %v315 = vld [vmem:[#allocation2 + $0x40] sm:$0xff]
        %v316 = vld [vmem:[#allocation2 + $0x48] sm:$0xff]
        %v317 = vld [vmem:[#allocation2 + $0x50] sm:$0xff]
        %v318 = vld [vmem:[#allocation2 + $0x58] sm:$0xff]
        %v319 = vld [vmem:[#allocation2 + $0x60] sm:$0xff]
        %v320 = vld [vmem:[#allocation2 + $0x68] sm:$0xff]
        %v321 = vld [vmem:[#allocation2 + $0x70] sm:$0xff]
        %v322 = vld [vmem:[#allocation2 + $0x78] sm:$0xff]
        %v323 = vld [vmem:[#allocation2 + $0x80] sm:$0xff]
        %v324 = vld [vmem:[#allocation2 + $0x88] sm:$0xff]
        %v325 = vld [vmem:[#allocation2 + $0x90] sm:$0xff]
        %v326 = vld [vmem:[#allocation2 + $0x98] sm:$0xff]
        %v327 = vld [vmem:[#allocation2 + $0xa0] sm:$0xff]
        %v328 = vld [vmem:[#allocation2 + $0xa8] sm:$0xff]
        %v329 = vld [vmem:[#allocation2 + $0xb0] sm:$0xff]
        %v330 = vld [vmem:[#allocation2 + $0xb8] sm:$0xff]
        %v331 = vld [vmem:[#allocation2 + $0xc0] sm:$0xff]
        %v332 = vld [vmem:[#allocation2 + $0xc8] sm:$0xff]
        %v333 = vld [vmem:[#allocation2 + $0xd0] sm:$0xff]
        %v334 = vld [vmem:[#allocation2 + $0xd8] sm:$0xff]
        %v335 = vld [vmem:[#allocation2 + $0xe0] sm:$0xff]
        %v336 = vld [vmem:[#allocation2 + $0xe8] sm:$0xff]
        %v337 = vld [vmem:[#allocation2 + $0xf0] sm:$0xff]
        %v338 = vld [vmem:[#allocation2 + $0xf8] sm:$0xff]
        %v339 = vld [vmem:[#allocation2 + $0x100] sm:$0xff]
        %v340 = vld [vmem:[#allocation2 + $0x108] sm:$0xff]
        %v341 = vld [vmem:[#allocation2 + $0x110] sm:$0xff]
        %v342 = vld [vmem:[#allocation2 + $0x118] sm:$0xff]
        %v343 = vld [vmem:[#allocation2 + $0x120] sm:$0xff]
        %v344 = vld [vmem:[#allocation2 + $0x128] sm:$0xff]
        %v345 = vld [vmem:[#allocation2 + $0x130] sm:$0xff]
        %v346 = vld [vmem:[#allocation2 + $0x138] sm:$0xff]
        %v347 = vld [vmem:[#allocation2 + $0x140] sm:$0xff]
        %v348 = vld [vmem:[#allocation2 + $0x148] sm:$0xff]
        %v349 = vld [vmem:[#allocation2 + $0x150] sm:$0xff]
        %v350 = vld [vmem:[#allocation2 + $0x158] sm:$0xff]
        %v351 = vld [vmem:[#allocation2 + $0x160] sm:$0xff]
        %v352 = vld [vmem:[#allocation2 + $0x168] sm:$0xff]
        %v353 = vld [vmem:[#allocation2 + $0x170] sm:$0xff]
        %v354 = vld [vmem:[#allocation2 + $0x178] sm:$0xff]
        %v355 = vld [vmem:[#allocation2 + $0x180] sm:$0xff]
        %v356 = vld [vmem:[#allocation2 + $0x188] sm:$0xff]
        %v357 = vld [vmem:[#allocation2 + $0x190] sm:$0xff]
        %v358 = vld [vmem:[#allocation2 + $0x198] sm:$0xff]
        %v359 = vld [vmem:[#allocation2 + $0x1a0] sm:$0xff]
        %v360 = vld [vmem:[#allocation2 + $0x1a8] sm:$0xff]
        %v361 = vld [vmem:[#allocation2 + $0x1b0] sm:$0xff]
        %v362 = vld [vmem:[#allocation2 + $0x1b8] sm:$0xff]
        %v363 = vld [vmem:[#allocation2 + $0x1c0] sm:$0xff]
        %v364 = vld [vmem:[#allocation2 + $0x1c8] sm:$0xff]
        %v365 = vld [vmem:[#allocation2 + $0x1d0] sm:$0xff]
        %v366 = vld [vmem:[#allocation2 + $0x1d8] sm:$0xff]
        %v367 = vld [vmem:[#allocation2 + $0x1e0] sm:$0xff]
        %v368 = vld [vmem:[#allocation2 + $0x1e8] sm:$0xff]
        %v369 = vld [vmem:[#allocation2 + $0x1f0] sm:$0xff]
        %v370 = vld [vmem:[#allocation2 + $0x1f8] sm:$0xff]
        %v371 = vld [vmem:[%s198] sm:$0xff]
        %v372 = vld [vmem:[%s198 + $0x8] sm:$0xff]
        %v373 = vld [vmem:[%s198 + $0x10] sm:$0xff]
        %v374 = vld [vmem:[%s198 + $0x18] sm:$0xff]
        %v375 = vld [vmem:[%s198 + $0x20] sm:$0xff]
        %v376 = vld [vmem:[%s198 + $0x28] sm:$0xff]
        %v377 = vld [vmem:[%s198 + $0x30] sm:$0xff]
        %v378 = vld [vmem:[%s198 + $0x38] sm:$0xff]
        %v379 = vld [vmem:[%s198 + $0x40] sm:$0xff]
        %v380 = vld [vmem:[%s198 + $0x48] sm:$0xff]
        %v381 = vld [vmem:[%s198 + $0x50] sm:$0xff]
        %v382 = vld [vmem:[%s198 + $0x58] sm:$0xff]
        %v383 = vld [vmem:[%s198 + $0x60] sm:$0xff]
        %v384 = vld [vmem:[%s198 + $0x68] sm:$0xff]
        %v385 = vld [vmem:[%s198 + $0x70] sm:$0xff]
        %v386 = vld [vmem:[%s198 + $0x78] sm:$0xff]
        %v387 = vld [vmem:[%s198 + $0x80] sm:$0xff]
        %v388 = vld [vmem:[%s198 + $0x88] sm:$0xff]
        %v389 = vld [vmem:[%s198 + $0x90] sm:$0xff]
        %v390 = vld [vmem:[%s198 + $0x98] sm:$0xff]
        %v391 = vld [vmem:[%s198 + $0xa0] sm:$0xff]
        %v392 = vld [vmem:[%s198 + $0xa8] sm:$0xff]
        %v393 = vld [vmem:[%s198 + $0xb0] sm:$0xff]
        %v394 = vld [vmem:[%s198 + $0xb8] sm:$0xff]
        %v395 = vld [vmem:[%s198 + $0xc0] sm:$0xff]
        %v396 = vld [vmem:[%s198 + $0xc8] sm:$0xff]
        %v397 = vld [vmem:[%s198 + $0xd0] sm:$0xff]
        %v398 = vld [vmem:[%s198 + $0xd8] sm:$0xff]
        %v399 = vld [vmem:[%s198 + $0xe0] sm:$0xff]
        %v400 = vld [vmem:[%s198 + $0xe8] sm:$0xff]
        %v401 = vld [vmem:[%s198 + $0xf0] sm:$0xff]
        %v402 = vld [vmem:[%s198 + $0xf8] sm:$0xff]
        %v403 = vld [vmem:[%s198 + $0x100] sm:$0xff]
        %v404 = vld [vmem:[%s198 + $0x108] sm:$0xff]
        %v405 = vld [vmem:[%s198 + $0x110] sm:$0xff]
        %v406 = vld [vmem:[%s198 + $0x118] sm:$0xff]
        %v407 = vld [vmem:[%s198 + $0x120] sm:$0xff]
        %v408 = vld [vmem:[%s198 + $0x128] sm:$0xff]
        %v409 = vld [vmem:[%s198 + $0x130] sm:$0xff]
        %v410 = vld [vmem:[%s198 + $0x138] sm:$0xff]
        %v411 = vld [vmem:[%s198 + $0x140] sm:$0xff]
        %v412 = vld [vmem:[%s198 + $0x148] sm:$0xff]
        %v413 = vld [vmem:[%s198 + $0x150] sm:$0xff]
        %v414 = vld [vmem:[%s198 + $0x158] sm:$0xff]
        %v415 = vld [vmem:[%s198 + $0x160] sm:$0xff]
        %v416 = vld [vmem:[%s198 + $0x168] sm:$0xff]
        %v417 = vld [vmem:[%s198 + $0x170] sm:$0xff]
        %v418 = vld [vmem:[%s198 + $0x178] sm:$0xff]
        %v419 = vld [vmem:[%s198 + $0x180] sm:$0xff]
        %v420 = vld [vmem:[%s198 + $0x188] sm:$0xff]
        %v421 = vld [vmem:[%s198 + $0x190] sm:$0xff]
        %v422 = vld [vmem:[%s198 + $0x198] sm:$0xff]
        %v423 = vld [vmem:[%s198 + $0x1a0] sm:$0xff]
        %v424 = vld [vmem:[%s198 + $0x1a8] sm:$0xff]
        %v425 = vld [vmem:[%s198 + $0x1b0] sm:$0xff]
        %v426 = vld [vmem:[%s198 + $0x1b8] sm:$0xff]
        %v427 = vld [vmem:[%s198 + $0x1c0] sm:$0xff]
        %v428 = vld [vmem:[%s198 + $0x1c8] sm:$0xff]
        %v429 = vld [vmem:[%s198 + $0x1d0] sm:$0xff]
        %v430 = vld [vmem:[%s198 + $0x1d8] sm:$0xff]
        %v431 = vld [vmem:[%s198 + $0x1e0] sm:$0xff]
        %v432 = vld [vmem:[%s198 + $0x1e8] sm:$0xff]
        %v433 = vld [vmem:[%s198 + $0x1f0] sm:$0xff]
        %v434 = vld [vmem:[%s198 + $0x1f8] sm:$0xff]
        %v435 = vld [vmem:[%s198 + $0x200] sm:$0xff]
        %v436 = vld [vmem:[%s198 + $0x208] sm:$0xff]
        %v437 = vld [vmem:[%s198 + $0x210] sm:$0xff]
        %v438 = vld [vmem:[%s198 + $0x218] sm:$0xff]
        %v439 = vld [vmem:[%s198 + $0x220] sm:$0xff]
        %v440 = vld [vmem:[%s198 + $0x228] sm:$0xff]
        %v441 = vld [vmem:[%s198 + $0x230] sm:$0xff]
        %v442 = vld [vmem:[%s198 + $0x238] sm:$0xff]
        %v443 = vld [vmem:[%s198 + $0x240] sm:$0xff]
        %v444 = vld [vmem:[%s198 + $0x248] sm:$0xff]
        %v445 = vld [vmem:[%s198 + $0x250] sm:$0xff]
        %v446 = vld [vmem:[%s198 + $0x258] sm:$0xff]
        %v447 = vld [vmem:[%s198 + $0x260] sm:$0xff]
        %v448 = vld [vmem:[%s198 + $0x268] sm:$0xff]
        %v449 = vld [vmem:[%s198 + $0x270] sm:$0xff]
        %v450 = vld [vmem:[%s198 + $0x278] sm:$0xff]
        %v451 = vld [vmem:[%s198 + $0x280] sm:$0xff]
        %v452 = vld [vmem:[%s198 + $0x288] sm:$0xff]
        %v453 = vld [vmem:[%s198 + $0x290] sm:$0xff]
        %v454 = vld [vmem:[%s198 + $0x298] sm:$0xff]
        %v455 = vld [vmem:[%s198 + $0x2a0] sm:$0xff]
        %v456 = vld [vmem:[%s198 + $0x2a8] sm:$0xff]
        %v457 = vld [vmem:[%s198 + $0x2b0] sm:$0xff]
        %v458 = vld [vmem:[%s198 + $0x2b8] sm:$0xff]
        %v459 = vld [vmem:[%s198 + $0x2c0] sm:$0xff]
        %v460 = vld [vmem:[%s198 + $0x2c8] sm:$0xff]
        %v461 = vld [vmem:[%s198 + $0x2d0] sm:$0xff]
        %v462 = vld [vmem:[%s198 + $0x2d8] sm:$0xff]
        %v463 = vld [vmem:[%s198 + $0x2e0] sm:$0xff]
        %v464 = vld [vmem:[%s198 + $0x2e8] sm:$0xff]
        %v465 = vld [vmem:[%s198 + $0x2f0] sm:$0xff]
        %v466 = vld [vmem:[%s198 + $0x2f8] sm:$0xff]
        %v467 = vld [vmem:[%s198 + $0x300] sm:$0xff]
        %v468 = vld [vmem:[%s198 + $0x308] sm:$0xff]
        %v469 = vld [vmem:[%s198 + $0x310] sm:$0xff]
        %v470 = vld [vmem:[%s198 + $0x318] sm:$0xff]
        %v471 = vld [vmem:[%s198 + $0x320] sm:$0xff]
        %v472 = vld [vmem:[%s198 + $0x328] sm:$0xff]
        %v473 = vld [vmem:[%s198 + $0x330] sm:$0xff]
        %v474 = vld [vmem:[%s198 + $0x338] sm:$0xff]
        %v475 = vld [vmem:[%s198 + $0x340] sm:$0xff]
        %v476 = vld [vmem:[%s198 + $0x348] sm:$0xff]
        %v477 = vld [vmem:[%s198 + $0x350] sm:$0xff]
        %v478 = vld [vmem:[%s198 + $0x358] sm:$0xff]
        %v479 = vld [vmem:[%s198 + $0x360] sm:$0xff]
        %v480 = vld [vmem:[%s198 + $0x368] sm:$0xff]
        %v481 = vld [vmem:[%s198 + $0x370] sm:$0xff]
        %v482 = vld [vmem:[%s198 + $0x378] sm:$0xff]
        %v483 = vld [vmem:[%s198 + $0x380] sm:$0xff]
        %v484 = vld [vmem:[%s198 + $0x388] sm:$0xff]
        %v485 = vld [vmem:[%s198 + $0x390] sm:$0xff]
        %v486 = vld [vmem:[%s198 + $0x398] sm:$0xff]
        %v487 = vld [vmem:[%s198 + $0x3a0] sm:$0xff]
        %v488 = vld [vmem:[%s198 + $0x3a8] sm:$0xff]
        %v489 = vld [vmem:[%s198 + $0x3b0] sm:$0xff]
        %v490 = vld [vmem:[%s198 + $0x3b8] sm:$0xff]
        %v491 = vld [vmem:[%s198 + $0x3c0] sm:$0xff]
        %v492 = vld [vmem:[%s198 + $0x3c8] sm:$0xff]
        %v493 = vld [vmem:[%s198 + $0x3d0] sm:$0xff]
        %v494 = vld [vmem:[%s198 + $0x3d8] sm:$0xff]
        %v495 = vld [vmem:[%s198 + $0x3e0] sm:$0xff]
        %v496 = vld [vmem:[%s198 + $0x3e8] sm:$0xff]
        %v497 = vld [vmem:[%s198 + $0x3f0] sm:$0xff]
        %v498 = vld [vmem:[%s198 + $0x3f8] sm:$0xff]
        %v499 = vld [vmem:[%s207] sm:$0xff]
        %v500 = vld [vmem:[%s207 + $0x8] sm:$0xff]
        %v501 = vld [vmem:[%s207 + $0x10] sm:$0xff]
        %v502 = vld [vmem:[%s207 + $0x18] sm:$0xff]
        %v503 = vld [vmem:[%s207 + $0x20] sm:$0xff]
        %v504 = vld [vmem:[%s207 + $0x28] sm:$0xff]
        %v505 = vld [vmem:[%s207 + $0x30] sm:$0xff]
        %v506 = vld [vmem:[%s207 + $0x38] sm:$0xff]
        %v507 = vld [vmem:[%s207 + $0x40] sm:$0xff]
        %v508 = vld [vmem:[%s207 + $0x48] sm:$0xff]
        %v509 = vld [vmem:[%s207 + $0x50] sm:$0xff]
        %v510 = vld [vmem:[%s207 + $0x58] sm:$0xff]
        %v511 = vld [vmem:[%s207 + $0x60] sm:$0xff]
        %v512 = vld [vmem:[%s207 + $0x68] sm:$0xff]
        %v513 = vld [vmem:[%s207 + $0x70] sm:$0xff]
        %v514 = vld [vmem:[%s207 + $0x78] sm:$0xff]
        %v515 = vld [vmem:[%s207 + $0x80] sm:$0xff]
        %v516 = vld [vmem:[%s207 + $0x88] sm:$0xff]
        %v517 = vld [vmem:[%s207 + $0x90] sm:$0xff]
        %v518 = vld [vmem:[%s207 + $0x98] sm:$0xff]
        %v519 = vld [vmem:[%s207 + $0xa0] sm:$0xff]
        %v520 = vld [vmem:[%s207 + $0xa8] sm:$0xff]
        %v521 = vld [vmem:[%s207 + $0xb0] sm:$0xff]
        %v522 = vld [vmem:[%s207 + $0xb8] sm:$0xff]
        %v523 = vld [vmem:[%s207 + $0xc0] sm:$0xff]
        %v524 = vld [vmem:[%s207 + $0xc8] sm:$0xff]
        %v525 = vld [vmem:[%s207 + $0xd0] sm:$0xff]
        %v526 = vld [vmem:[%s207 + $0xd8] sm:$0xff]
        %v527 = vld [vmem:[%s207 + $0xe0] sm:$0xff]
        %v528 = vld [vmem:[%s207 + $0xe8] sm:$0xff]
        %v529 = vld [vmem:[%s207 + $0xf0] sm:$0xff]
        %v530 = vld [vmem:[%s207 + $0xf8] sm:$0xff]
        %v531 = vld [vmem:[%s207 + $0x100] sm:$0xff]
        %v532 = vld [vmem:[%s207 + $0x108] sm:$0xff]
        %v533 = vld [vmem:[%s207 + $0x110] sm:$0xff]
        %v534 = vld [vmem:[%s207 + $0x118] sm:$0xff]
        %v535 = vld [vmem:[%s207 + $0x120] sm:$0xff]
        %v536 = vld [vmem:[%s207 + $0x128] sm:$0xff]
        %v537 = vld [vmem:[%s207 + $0x130] sm:$0xff]
        %v538 = vld [vmem:[%s207 + $0x138] sm:$0xff]
        %v539 = vld [vmem:[%s207 + $0x140] sm:$0xff]
        %v540 = vld [vmem:[%s207 + $0x148] sm:$0xff]
        %v541 = vld [vmem:[%s207 + $0x150] sm:$0xff]
        %v542 = vld [vmem:[%s207 + $0x158] sm:$0xff]
        %v543 = vld [vmem:[%s207 + $0x160] sm:$0xff]
        %v544 = vld [vmem:[%s207 + $0x168] sm:$0xff]
        %v545 = vld [vmem:[%s207 + $0x170] sm:$0xff]
        %v546 = vld [vmem:[%s207 + $0x178] sm:$0xff]
        %v547 = vld [vmem:[%s207 + $0x180] sm:$0xff]
        %v548 = vld [vmem:[%s207 + $0x188] sm:$0xff]
        %v549 = vld [vmem:[%s207 + $0x190] sm:$0xff]
        %v550 = vld [vmem:[%s207 + $0x198] sm:$0xff]
        %v551 = vld [vmem:[%s207 + $0x1a0] sm:$0xff]
        %v552 = vld [vmem:[%s207 + $0x1a8] sm:$0xff]
        %v553 = vld [vmem:[%s207 + $0x1b0] sm:$0xff]
        %v554 = vld [vmem:[%s207 + $0x1b8] sm:$0xff]
        %v555 = vld [vmem:[%s207 + $0x1c0] sm:$0xff]
        %v556 = vld [vmem:[%s207 + $0x1c8] sm:$0xff]
        %v557 = vld [vmem:[%s207 + $0x1d0] sm:$0xff]
        %v558 = vld [vmem:[%s207 + $0x1d8] sm:$0xff]
        %v559 = vld [vmem:[%s207 + $0x1e0] sm:$0xff]
        %v560 = vld [vmem:[%s207 + $0x1e8] sm:$0xff]
        %v561 = vld [vmem:[%s207 + $0x1f0] sm:$0xff]
        %v562 = vld [vmem:[%s207 + $0x1f8] sm:$0xff]
        %v563 = vld [vmem:[%s207 + $0x200] sm:$0xff]
        %v564 = vld [vmem:[%s207 + $0x208] sm:$0xff]
        %v565 = vld [vmem:[%s207 + $0x210] sm:$0xff]
        %v566 = vld [vmem:[%s207 + $0x218] sm:$0xff]
        %v567 = vld [vmem:[%s207 + $0x220] sm:$0xff]
        %v568 = vld [vmem:[%s207 + $0x228] sm:$0xff]
        %v569 = vld [vmem:[%s207 + $0x230] sm:$0xff]
        %v570 = vld [vmem:[%s207 + $0x238] sm:$0xff]
        %v571 = vld [vmem:[%s207 + $0x240] sm:$0xff]
        %v572 = vld [vmem:[%s207 + $0x248] sm:$0xff]
        %v573 = vld [vmem:[%s207 + $0x250] sm:$0xff]
        %v574 = vld [vmem:[%s207 + $0x258] sm:$0xff]
        %v575 = vld [vmem:[%s207 + $0x260] sm:$0xff]
        %v576 = vld [vmem:[%s207 + $0x268] sm:$0xff]
        %v577 = vld [vmem:[%s207 + $0x270] sm:$0xff]
        %v578 = vld [vmem:[%s207 + $0x278] sm:$0xff]
        %v579 = vld [vmem:[%s207 + $0x280] sm:$0xff]
        %v580 = vld [vmem:[%s207 + $0x288] sm:$0xff]
        %v581 = vld [vmem:[%s207 + $0x290] sm:$0xff]
        %v582 = vld [vmem:[%s207 + $0x298] sm:$0xff]
        %v583 = vld [vmem:[%s207 + $0x2a0] sm:$0xff]
        %v584 = vld [vmem:[%s207 + $0x2a8] sm:$0xff]
        %v585 = vld [vmem:[%s207 + $0x2b0] sm:$0xff]
        %v586 = vld [vmem:[%s207 + $0x2b8] sm:$0xff]
        %v587 = vld [vmem:[%s207 + $0x2c0] sm:$0xff]
        %v588 = vld [vmem:[%s207 + $0x2c8] sm:$0xff]
        %v589 = vld [vmem:[%s207 + $0x2d0] sm:$0xff]
        %v590 = vld [vmem:[%s207 + $0x2d8] sm:$0xff]
        %v591 = vld [vmem:[%s207 + $0x2e0] sm:$0xff]
        %v592 = vld [vmem:[%s207 + $0x2e8] sm:$0xff]
        %v593 = vld [vmem:[%s207 + $0x2f0] sm:$0xff]
        %v594 = vld [vmem:[%s207 + $0x2f8] sm:$0xff]
        %v595 = vld [vmem:[%s207 + $0x300] sm:$0xff]
        %v596 = vld [vmem:[%s207 + $0x308] sm:$0xff]
        %v597 = vld [vmem:[%s207 + $0x310] sm:$0xff]
        %v598 = vld [vmem:[%s207 + $0x318] sm:$0xff]
        %v599 = vld [vmem:[%s207 + $0x320] sm:$0xff]
        %v600 = vld [vmem:[%s207 + $0x328] sm:$0xff]
        %v601 = vld [vmem:[%s207 + $0x330] sm:$0xff]
        %v602 = vld [vmem:[%s207 + $0x338] sm:$0xff]
        %v603 = vld [vmem:[%s207 + $0x340] sm:$0xff]
        %v604 = vld [vmem:[%s207 + $0x348] sm:$0xff]
        %v605 = vld [vmem:[%s207 + $0x350] sm:$0xff]
        %v606 = vld [vmem:[%s207 + $0x358] sm:$0xff]
        %v607 = vld [vmem:[%s207 + $0x360] sm:$0xff]
        %v608 = vld [vmem:[%s207 + $0x368] sm:$0xff]
        %v609 = vld [vmem:[%s207 + $0x370] sm:$0xff]
        %v610 = vld [vmem:[%s207 + $0x378] sm:$0xff]
        %v611 = vld [vmem:[%s207 + $0x380] sm:$0xff]
        %v612 = vld [vmem:[%s207 + $0x388] sm:$0xff]
        %v613 = vld [vmem:[%s207 + $0x390] sm:$0xff]
        %v614 = vld [vmem:[%s207 + $0x398] sm:$0xff]
        %v615 = vld [vmem:[%s207 + $0x3a0] sm:$0xff]
        %v616 = vld [vmem:[%s207 + $0x3a8] sm:$0xff]
        %v617 = vld [vmem:[%s207 + $0x3b0] sm:$0xff]
        %v618 = vld [vmem:[%s207 + $0x3b8] sm:$0xff]
        %v619 = vld [vmem:[%s207 + $0x3c0] sm:$0xff]
        %v620 = vld [vmem:[%s207 + $0x3c8] sm:$0xff]
        %v621 = vld [vmem:[%s207 + $0x3d0] sm:$0xff]
        %v622 = vld [vmem:[%s207 + $0x3d8] sm:$0xff]
        %v623 = vld [vmem:[%s207 + $0x3e0] sm:$0xff]
        %v624 = vld [vmem:[%s207 + $0x3e8] sm:$0xff]
        %v625 = vld [vmem:[%s207 + $0x3f0] sm:$0xff]
        %v626 = vld [vmem:[%s207 + $0x3f8] sm:$0xff]
        %v627 = vand.u32 %v530, 4294901760
        %628 = vmatprep.subr.mxu0 %v627
        %v629 = vand.u32 %v529, 4294901760
        %630 = vmatpush1.msra.mxu0 %v629
        %v631 = vand.u32 %v528, 4294901760
        %632 = vmatprep.subr.mxu0 %v631
        %v633 = vand.u32 %v527, 4294901760
        %634 = vmatpush1.msra.mxu0 %v633
        %v635 = vand.u32 %v526, 4294901760
        %636 = vmatprep.subr.mxu0 %v635
        %v637 = vand.u32 %v525, 4294901760
        %638 = vmatpush1.msra.mxu0 %v637
        %v639 = vand.u32 %v524, 4294901760
        %640 = vmatprep.subr.mxu0 %v639
        %v641 = vand.u32 %v523, 4294901760
        %642 = vmatpush1.msra.mxu0 %v641
        %v643 = vand.u32 %v522, 4294901760
        %644 = vmatprep.subr.mxu0 %v643
        %v645 = vand.u32 %v521, 4294901760
        %646 = vmatpush1.msra.mxu0 %v645
        %v647 = vand.u32 %v520, 4294901760
        %648 = vmatprep.subr.mxu0 %v647
        %v649 = vand.u32 %v519, 4294901760
        %650 = vmatpush1.msra.mxu0 %v649
        %v651 = vand.u32 %v518, 4294901760
        %652 = vmatprep.subr.mxu0 %v651
        %v653 = vand.u32 %v517, 4294901760
        %654 = vmatpush1.msra.mxu0 %v653
        %v655 = vand.u32 %v516, 4294901760
        %656 = vmatprep.subr.mxu0 %v655
        %v657 = vand.u32 %v515, 4294901760
        %658 = vmatpush1.msra.mxu0 %v657
        %v659 = vand.u32 %v514, 4294901760
        %660 = vmatprep.subr.mxu0 %v659
        %v661 = vand.u32 %v513, 4294901760
        %662 = vmatpush1.msra.mxu0 %v661
        %v663 = vand.u32 %v512, 4294901760
        %664 = vmatprep.subr.mxu0 %v663
        %v665 = vand.u32 %v511, 4294901760
        %666 = vmatpush1.msra.mxu0 %v665
        %v667 = vand.u32 %v510, 4294901760
        %668 = vmatprep.subr.mxu0 %v667
        %v669 = vand.u32 %v509, 4294901760
        %670 = vmatpush1.msra.mxu0 %v669
        %v671 = vand.u32 %v508, 4294901760
        %672 = vmatprep.subr.mxu0 %v671
        %v673 = vand.u32 %v507, 4294901760
        %674 = vmatpush1.msra.mxu0 %v673
        %v675 = vand.u32 %v506, 4294901760
        %676 = vmatprep.subr.mxu0 %v675
        %v677 = vand.u32 %v505, 4294901760
        %678 = vmatpush1.msra.mxu0 %v677
        %v679 = vand.u32 %v504, 4294901760
        %680 = vmatprep.subr.mxu0 %v679
        %v681 = vand.u32 %v503, 4294901760
        %682 = vmatpush1.msra.mxu0 %v681
        %v683 = vand.u32 %v502, 4294901760
        %684 = vmatprep.subr.mxu0 %v683
        %v685 = vand.u32 %v501, 4294901760
        %686 = vmatpush1.msra.mxu0 %v685
        %v687 = vand.u32 %v500, 4294901760
        %688 = vmatprep.subr.mxu0 %v687
        %v689 = vand.u32 %v499, 4294901760
        %690 = vmatpush1.msra.mxu0 %v689
        %v691 = vand.u32 %v562, 4294901760
        %692 = vmatprep.subr.mxu0 %v691
        %v693 = vand.u32 %v561, 4294901760
        %694 = vmatpush2.msra.mxu0 %v693
        %v695 = vand.u32 %v560, 4294901760
        %696 = vmatprep.subr.mxu0 %v695
        %v697 = vand.u32 %v559, 4294901760
        %698 = vmatpush2.msra.mxu0 %v697
        %v699 = vand.u32 %v558, 4294901760
        %700 = vmatprep.subr.mxu0 %v699
        %v701 = vand.u32 %v557, 4294901760
        %702 = vmatpush2.msra.mxu0 %v701
        %v703 = vand.u32 %v556, 4294901760
        %704 = vmatprep.subr.mxu0 %v703
        %v705 = vand.u32 %v555, 4294901760
        %706 = vmatpush2.msra.mxu0 %v705
        %v707 = vand.u32 %v554, 4294901760
        %708 = vmatprep.subr.mxu0 %v707
        %v709 = vand.u32 %v553, 4294901760
        %710 = vmatpush2.msra.mxu0 %v709
        %v711 = vand.u32 %v552, 4294901760
        %712 = vmatprep.subr.mxu0 %v711
        %v713 = vand.u32 %v551, 4294901760
        %714 = vmatpush2.msra.mxu0 %v713
        %v715 = vand.u32 %v550, 4294901760
        %716 = vmatprep.subr.mxu0 %v715
        %v717 = vand.u32 %v549, 4294901760
        %718 = vmatpush2.msra.mxu0 %v717
        %v719 = vand.u32 %v548, 4294901760
        %720 = vmatprep.subr.mxu0 %v719
        %v721 = vand.u32 %v547, 4294901760
        %722 = vmatpush2.msra.mxu0 %v721
        %v723 = vand.u32 %v546, 4294901760
        %724 = vmatprep.subr.mxu0 %v723
        %v725 = vand.u32 %v545, 4294901760
        %726 = vmatpush2.msra.mxu0 %v725
        %v727 = vand.u32 %v544, 4294901760
        %728 = vmatprep.subr.mxu0 %v727
        %v729 = vand.u32 %v543, 4294901760
        %730 = vmatpush2.msra.mxu0 %v729
        %v731 = vand.u32 %v542, 4294901760
        %732 = vmatprep.subr.mxu0 %v731
        %v733 = vand.u32 %v541, 4294901760
        %734 = vmatpush2.msra.mxu0 %v733
        %v735 = vand.u32 %v540, 4294901760
        %736 = vmatprep.subr.mxu0 %v735
        %v737 = vand.u32 %v539, 4294901760
        %738 = vmatpush2.msra.mxu0 %v737
        %v739 = vand.u32 %v538, 4294901760
        %740 = vmatprep.subr.mxu0 %v739
        %v741 = vand.u32 %v537, 4294901760
        %742 = vmatpush2.msra.mxu0 %v741
        %v743 = vand.u32 %v536, 4294901760
        %744 = vmatprep.subr.mxu0 %v743
        %v745 = vand.u32 %v535, 4294901760
        %746 = vmatpush2.msra.mxu0 %v745
        %v747 = vand.u32 %v534, 4294901760
        %748 = vmatprep.subr.mxu0 %v747
        %v749 = vand.u32 %v533, 4294901760
        %750 = vmatpush2.msra.mxu0 %v749
        %v751 = vand.u32 %v532, 4294901760
        %752 = vmatprep.subr.mxu0 %v751
        %v753 = vand.u32 %v531, 4294901760
        %754 = vmatpush2.msra.mxu0 %v753
        %v755 = vand.u32 %v372, 4294901760
        %v756 = vsub.f32 %v372, %v755
        %v757 = vand.u32 %v756, 4294901760
        %v758 = vsub.f32 %v756, %v757
        %v759 = vand.u32 %v758, 4294901760
        %760 = vmatprep.mubr.f32.mxu0 %v759
        %v761 = vand.u32 %v371, 4294901760
        %v762 = vsub.f32 %v371, %v761
        %v763 = vand.u32 %v762, 4294901760
        %v764 = vsub.f32 %v762, %v763
        %v765 = vand.u32 %v764, 4294901760
        %766 = vmatmul.mubr.f32.gmra.mxu0 %v765
        %v767 = vpop.f32.mrf.mxu0
        %v768 = vadd.f32 0.0, %v767
        %v769 = vpop.f32.mrf.mxu0
        %v770 = vadd.f32 0.0, %v769
        %v771 = vand.u32 %v376, 4294901760
        %v772 = vsub.f32 %v376, %v771
        %v773 = vand.u32 %v772, 4294901760
        %v774 = vsub.f32 %v772, %v773
        %v775 = vand.u32 %v774, 4294901760
        %776 = vmatprep.mubr.f32.mxu0 %v775
        %v777 = vand.u32 %v375, 4294901760
        %v778 = vsub.f32 %v375, %v777
        %v779 = vand.u32 %v778, 4294901760
        %v780 = vsub.f32 %v778, %v779
        %v781 = vand.u32 %v780, 4294901760
        %782 = vmatmul.mubr.f32.gmra.mxu0 %v781
        %v783 = vpop.f32.mrf.mxu0
        %v784 = vadd.f32 0.0, %v783
        %v785 = vpop.f32.mrf.mxu0
        %v786 = vadd.f32 0.0, %v785
        %v787 = vand.u32 %v380, 4294901760
        %v788 = vsub.f32 %v380, %v787
        %v789 = vand.u32 %v788, 4294901760
        %v790 = vsub.f32 %v788, %v789
        %v791 = vand.u32 %v790, 4294901760
        %792 = vmatprep.mubr.f32.mxu0 %v791
        %v793 = vand.u32 %v379, 4294901760
        %v794 = vsub.f32 %v379, %v793
        %v795 = vand.u32 %v794, 4294901760
        %v796 = vsub.f32 %v794, %v795
        %v797 = vand.u32 %v796, 4294901760
        %798 = vmatmul.mubr.f32.gmra.mxu0 %v797
        %v799 = vpop.f32.mrf.mxu0
        %v800 = vadd.f32 0.0, %v799
        %v801 = vpop.f32.mrf.mxu0
        %v802 = vadd.f32 0.0, %v801
        %v803 = vand.u32 %v384, 4294901760
        %v804 = vsub.f32 %v384, %v803
        %v805 = vand.u32 %v804, 4294901760
        %v806 = vsub.f32 %v804, %v805
        %v807 = vand.u32 %v806, 4294901760
        %808 = vmatprep.mubr.f32.mxu0 %v807
        %v809 = vand.u32 %v383, 4294901760
        %v810 = vsub.f32 %v383, %v809
        %v811 = vand.u32 %v810, 4294901760
        %v812 = vsub.f32 %v810, %v811
        %v813 = vand.u32 %v812, 4294901760
        %814 = vmatmul.mubr.f32.gmra.mxu0 %v813
        %v815 = vpop.f32.mrf.mxu0
        %v816 = vadd.f32 0.0, %v815
        %v817 = vpop.f32.mrf.mxu0
        %v818 = vadd.f32 0.0, %v817
        %v819 = vand.u32 %v388, 4294901760
        %v820 = vsub.f32 %v388, %v819
        %v821 = vand.u32 %v820, 4294901760
        %v822 = vsub.f32 %v820, %v821
        %v823 = vand.u32 %v822, 4294901760
        %824 = vmatprep.mubr.f32.mxu0 %v823
        %v825 = vand.u32 %v387, 4294901760
        %v826 = vsub.f32 %v387, %v825
        %v827 = vand.u32 %v826, 4294901760
        %v828 = vsub.f32 %v826, %v827
        %v829 = vand.u32 %v828, 4294901760
        %830 = vmatmul.mubr.f32.gmra.mxu0 %v829
        %v831 = vpop.f32.mrf.mxu0
        %v832 = vadd.f32 0.0, %v831
        %v833 = vpop.f32.mrf.mxu0
        %v834 = vadd.f32 0.0, %v833
        %v835 = vand.u32 %v392, 4294901760
        %v836 = vsub.f32 %v392, %v835
        %v837 = vand.u32 %v836, 4294901760
        %v838 = vsub.f32 %v836, %v837
        %v839 = vand.u32 %v838, 4294901760
        %840 = vmatprep.mubr.f32.mxu0 %v839
        %v841 = vand.u32 %v391, 4294901760
        %v842 = vsub.f32 %v391, %v841
        %v843 = vand.u32 %v842, 4294901760
        %v844 = vsub.f32 %v842, %v843
        %v845 = vand.u32 %v844, 4294901760
        %846 = vmatmul.mubr.f32.gmra.mxu0 %v845
        %v847 = vpop.f32.mrf.mxu0
        %v848 = vadd.f32 0.0, %v847
        %v849 = vpop.f32.mrf.mxu0
        %v850 = vadd.f32 0.0, %v849
        %v851 = vand.u32 %v396, 4294901760
        %v852 = vsub.f32 %v396, %v851
        %v853 = vand.u32 %v852, 4294901760
        %v854 = vsub.f32 %v852, %v853
        %v855 = vand.u32 %v854, 4294901760
        %856 = vmatprep.mubr.f32.mxu0 %v855
        %v857 = vand.u32 %v395, 4294901760
        %v858 = vsub.f32 %v395, %v857
        %v859 = vand.u32 %v858, 4294901760
        %v860 = vsub.f32 %v858, %v859
        %v861 = vand.u32 %v860, 4294901760
        %862 = vmatmul.mubr.f32.gmra.mxu0 %v861
        %v863 = vpop.f32.mrf.mxu0
        %v864 = vadd.f32 0.0, %v863
        %v865 = vpop.f32.mrf.mxu0
        %v866 = vadd.f32 0.0, %v865
        %v867 = vand.u32 %v400, 4294901760
        %v868 = vsub.f32 %v400, %v867
        %v869 = vand.u32 %v868, 4294901760
        %v870 = vsub.f32 %v868, %v869
        %v871 = vand.u32 %v870, 4294901760
        %872 = vmatprep.mubr.f32.mxu0 %v871
        %v873 = vand.u32 %v399, 4294901760
        %v874 = vsub.f32 %v399, %v873
        %v875 = vand.u32 %v874, 4294901760
        %v876 = vsub.f32 %v874, %v875
        %v877 = vand.u32 %v876, 4294901760
        %878 = vmatmul.mubr.f32.gmra.mxu0 %v877
        %v879 = vpop.f32.mrf.mxu0
        %v880 = vadd.f32 0.0, %v879
        %v881 = vpop.f32.mrf.mxu0
        %v882 = vadd.f32 0.0, %v881
        %v883 = vand.u32 %v404, 4294901760
        %v884 = vsub.f32 %v404, %v883
        %v885 = vand.u32 %v884, 4294901760
        %v886 = vsub.f32 %v884, %v885
        %v887 = vand.u32 %v886, 4294901760
        %888 = vmatprep.mubr.f32.mxu0 %v887
        %v889 = vand.u32 %v403, 4294901760
        %v890 = vsub.f32 %v403, %v889
        %v891 = vand.u32 %v890, 4294901760
        %v892 = vsub.f32 %v890, %v891
        %v893 = vand.u32 %v892, 4294901760
        %894 = vmatmul.mubr.f32.gmra.mxu0 %v893
        %v895 = vpop.f32.mrf.mxu0
        %v896 = vadd.f32 0.0, %v895
        %v897 = vpop.f32.mrf.mxu0
        %v898 = vadd.f32 0.0, %v897
        %v899 = vand.u32 %v408, 4294901760
        %v900 = vsub.f32 %v408, %v899
        %v901 = vand.u32 %v900, 4294901760
        %v902 = vsub.f32 %v900, %v901
        %v903 = vand.u32 %v902, 4294901760
        %904 = vmatprep.mubr.f32.mxu0 %v903
        %v905 = vand.u32 %v407, 4294901760
        %v906 = vsub.f32 %v407, %v905
        %v907 = vand.u32 %v906, 4294901760
        %v908 = vsub.f32 %v906, %v907
        %v909 = vand.u32 %v908, 4294901760
        %910 = vmatmul.mubr.f32.gmra.mxu0 %v909
        %v911 = vpop.f32.mrf.mxu0
        %v912 = vadd.f32 0.0, %v911
        %v913 = vpop.f32.mrf.mxu0
        %v914 = vadd.f32 0.0, %v913
        %v915 = vand.u32 %v412, 4294901760
        %v916 = vsub.f32 %v412, %v915
        %v917 = vand.u32 %v916, 4294901760
        %v918 = vsub.f32 %v916, %v917
        %v919 = vand.u32 %v918, 4294901760
        %920 = vmatprep.mubr.f32.mxu0 %v919
        %v921 = vand.u32 %v411, 4294901760
        %v922 = vsub.f32 %v411, %v921
        %v923 = vand.u32 %v922, 4294901760
        %v924 = vsub.f32 %v922, %v923
        %v925 = vand.u32 %v924, 4294901760
        %926 = vmatmul.mubr.f32.gmra.mxu0 %v925
        %v927 = vpop.f32.mrf.mxu0
        %v928 = vadd.f32 0.0, %v927
        %v929 = vpop.f32.mrf.mxu0
        %v930 = vadd.f32 0.0, %v929
        %v931 = vand.u32 %v416, 4294901760
        %v932 = vsub.f32 %v416, %v931
        %v933 = vand.u32 %v932, 4294901760
        %v934 = vsub.f32 %v932, %v933
        %v935 = vand.u32 %v934, 4294901760
        %936 = vmatprep.mubr.f32.mxu0 %v935
        %v937 = vand.u32 %v415, 4294901760
        %v938 = vsub.f32 %v415, %v937
        %v939 = vand.u32 %v938, 4294901760
        %v940 = vsub.f32 %v938, %v939
        %v941 = vand.u32 %v940, 4294901760
        %942 = vmatmul.mubr.f32.gmra.mxu0 %v941
        %v943 = vpop.f32.mrf.mxu0
        %v944 = vadd.f32 0.0, %v943
        %v945 = vpop.f32.mrf.mxu0
        %v946 = vadd.f32 0.0, %v945
        %v947 = vand.u32 %v420, 4294901760
        %v948 = vsub.f32 %v420, %v947
        %v949 = vand.u32 %v948, 4294901760
        %v950 = vsub.f32 %v948, %v949
        %v951 = vand.u32 %v950, 4294901760
        %952 = vmatprep.mubr.f32.mxu0 %v951
        %v953 = vand.u32 %v419, 4294901760
        %v954 = vsub.f32 %v419, %v953
        %v955 = vand.u32 %v954, 4294901760
        %v956 = vsub.f32 %v954, %v955
        %v957 = vand.u32 %v956, 4294901760
        %958 = vmatmul.mubr.f32.gmra.mxu0 %v957
        %v959 = vpop.f32.mrf.mxu0
        %v960 = vadd.f32 0.0, %v959
        %v961 = vpop.f32.mrf.mxu0
        %v962 = vadd.f32 0.0, %v961
        %v963 = vand.u32 %v424, 4294901760
        %v964 = vsub.f32 %v424, %v963
        %v965 = vand.u32 %v964, 4294901760
        %v966 = vsub.f32 %v964, %v965
        %v967 = vand.u32 %v966, 4294901760
        %968 = vmatprep.mubr.f32.mxu0 %v967
        %v969 = vand.u32 %v423, 4294901760
        %v970 = vsub.f32 %v423, %v969
        %v971 = vand.u32 %v970, 4294901760
        %v972 = vsub.f32 %v970, %v971
        %v973 = vand.u32 %v972, 4294901760
        %974 = vmatmul.mubr.f32.gmra.mxu0 %v973
        %v975 = vpop.f32.mrf.mxu0
        %v976 = vadd.f32 0.0, %v975
        %v977 = vpop.f32.mrf.mxu0
        %v978 = vadd.f32 0.0, %v977
        %v979 = vand.u32 %v428, 4294901760
        %v980 = vsub.f32 %v428, %v979
        %v981 = vand.u32 %v980, 4294901760
        %v982 = vsub.f32 %v980, %v981
        %v983 = vand.u32 %v982, 4294901760
        %984 = vmatprep.mubr.f32.mxu0 %v983
        %v985 = vand.u32 %v427, 4294901760
        %v986 = vsub.f32 %v427, %v985
        %v987 = vand.u32 %v986, 4294901760
        %v988 = vsub.f32 %v986, %v987
        %v989 = vand.u32 %v988, 4294901760
        %990 = vmatmul.mubr.f32.gmra.mxu0 %v989
        %v991 = vpop.f32.mrf.mxu0
        %v992 = vadd.f32 0.0, %v991
        %v993 = vpop.f32.mrf.mxu0
        %v994 = vadd.f32 0.0, %v993
        %v995 = vand.u32 %v432, 4294901760
        %v996 = vsub.f32 %v432, %v995
        %v997 = vand.u32 %v996, 4294901760
        %v998 = vsub.f32 %v996, %v997
        %v999 = vand.u32 %v998, 4294901760
        %1000 = vmatprep.mubr.f32.mxu0 %v999
        %v1001 = vand.u32 %v431, 4294901760
        %v1002 = vsub.f32 %v431, %v1001
        %v1003 = vand.u32 %v1002, 4294901760
        %v1004 = vsub.f32 %v1002, %v1003
        %v1005 = vand.u32 %v1004, 4294901760
        %1006 = vmatmul.mubr.f32.gmra.mxu0 %v1005
        %v1007 = vpop.f32.mrf.mxu0
        %v1008 = vadd.f32 0.0, %v1007
        %v1009 = vpop.f32.mrf.mxu0
        %v1010 = vadd.f32 0.0, %v1009
        %v1011 = vand.u32 %v436, 4294901760
        %v1012 = vsub.f32 %v436, %v1011
        %v1013 = vand.u32 %v1012, 4294901760
        %v1014 = vsub.f32 %v1012, %v1013
        %v1015 = vand.u32 %v1014, 4294901760
        %1016 = vmatprep.mubr.f32.mxu0 %v1015
        %v1017 = vand.u32 %v435, 4294901760
        %v1018 = vsub.f32 %v435, %v1017
        %v1019 = vand.u32 %v1018, 4294901760
        %v1020 = vsub.f32 %v1018, %v1019
        %v1021 = vand.u32 %v1020, 4294901760
        %1022 = vmatmul.mubr.f32.gmra.mxu0 %v1021
        %v1023 = vpop.f32.mrf.mxu0
        %v1024 = vadd.f32 0.0, %v1023
        %v1025 = vpop.f32.mrf.mxu0
        %v1026 = vadd.f32 0.0, %v1025
        %v1027 = vand.u32 %v440, 4294901760
        %v1028 = vsub.f32 %v440, %v1027
        %v1029 = vand.u32 %v1028, 4294901760
        %v1030 = vsub.f32 %v1028, %v1029
        %v1031 = vand.u32 %v1030, 4294901760
        %1032 = vmatprep.mubr.f32.mxu0 %v1031
        %v1033 = vand.u32 %v439, 4294901760
        %v1034 = vsub.f32 %v439, %v1033
        %v1035 = vand.u32 %v1034, 4294901760
        %v1036 = vsub.f32 %v1034, %v1035
        %v1037 = vand.u32 %v1036, 4294901760
        %1038 = vmatmul.mubr.f32.gmra.mxu0 %v1037
        %v1039 = vpop.f32.mrf.mxu0
        %v1040 = vadd.f32 0.0, %v1039
        %v1041 = vpop.f32.mrf.mxu0
        %v1042 = vadd.f32 0.0, %v1041
        %v1043 = vand.u32 %v444, 4294901760
        %v1044 = vsub.f32 %v444, %v1043
        %v1045 = vand.u32 %v1044, 4294901760
        %v1046 = vsub.f32 %v1044, %v1045
        %v1047 = vand.u32 %v1046, 4294901760
        %1048 = vmatprep.mubr.f32.mxu0 %v1047
        %v1049 = vand.u32 %v443, 4294901760
        %v1050 = vsub.f32 %v443, %v1049
        %v1051 = vand.u32 %v1050, 4294901760
        %v1052 = vsub.f32 %v1050, %v1051
        %v1053 = vand.u32 %v1052, 4294901760
        %1054 = vmatmul.mubr.f32.gmra.mxu0 %v1053
        %v1055 = vpop.f32.mrf.mxu0
        %v1056 = vadd.f32 0.0, %v1055
        %v1057 = vpop.f32.mrf.mxu0
        %v1058 = vadd.f32 0.0, %v1057
        %v1059 = vand.u32 %v448, 4294901760
        %v1060 = vsub.f32 %v448, %v1059
        %v1061 = vand.u32 %v1060, 4294901760
        %v1062 = vsub.f32 %v1060, %v1061
        %v1063 = vand.u32 %v1062, 4294901760
        %1064 = vmatprep.mubr.f32.mxu0 %v1063
        %v1065 = vand.u32 %v447, 4294901760
        %v1066 = vsub.f32 %v447, %v1065
        %v1067 = vand.u32 %v1066, 4294901760
        %v1068 = vsub.f32 %v1066, %v1067
        %v1069 = vand.u32 %v1068, 4294901760
        %1070 = vmatmul.mubr.f32.gmra.mxu0 %v1069
        %v1071 = vpop.f32.mrf.mxu0
        %v1072 = vadd.f32 0.0, %v1071
        %v1073 = vpop.f32.mrf.mxu0
        %v1074 = vadd.f32 0.0, %v1073
        %v1075 = vand.u32 %v452, 4294901760
        %v1076 = vsub.f32 %v452, %v1075
        %v1077 = vand.u32 %v1076, 4294901760
        %v1078 = vsub.f32 %v1076, %v1077
        %v1079 = vand.u32 %v1078, 4294901760
        %1080 = vmatprep.mubr.f32.mxu0 %v1079
        %v1081 = vand.u32 %v451, 4294901760
        %v1082 = vsub.f32 %v451, %v1081
        %v1083 = vand.u32 %v1082, 4294901760
        %v1084 = vsub.f32 %v1082, %v1083
        %v1085 = vand.u32 %v1084, 4294901760
        %1086 = vmatmul.mubr.f32.gmra.mxu0 %v1085
        %v1087 = vpop.f32.mrf.mxu0
        %v1088 = vadd.f32 0.0, %v1087
        %v1089 = vpop.f32.mrf.mxu0
        %v1090 = vadd.f32 0.0, %v1089
        %v1091 = vand.u32 %v456, 4294901760
        %v1092 = vsub.f32 %v456, %v1091
        %v1093 = vand.u32 %v1092, 4294901760
        %v1094 = vsub.f32 %v1092, %v1093
        %v1095 = vand.u32 %v1094, 4294901760
        %1096 = vmatprep.mubr.f32.mxu0 %v1095
        %v1097 = vand.u32 %v455, 4294901760
        %v1098 = vsub.f32 %v455, %v1097
        %v1099 = vand.u32 %v1098, 4294901760
        %v1100 = vsub.f32 %v1098, %v1099
        %v1101 = vand.u32 %v1100, 4294901760
        %1102 = vmatmul.mubr.f32.gmra.mxu0 %v1101
        %v1103 = vpop.f32.mrf.mxu0
        %v1104 = vadd.f32 0.0, %v1103
        %v1105 = vpop.f32.mrf.mxu0
        %v1106 = vadd.f32 0.0, %v1105
        %v1107 = vand.u32 %v460, 4294901760
        %v1108 = vsub.f32 %v460, %v1107
        %v1109 = vand.u32 %v1108, 4294901760
        %v1110 = vsub.f32 %v1108, %v1109
        %v1111 = vand.u32 %v1110, 4294901760
        %1112 = vmatprep.mubr.f32.mxu0 %v1111
        %v1113 = vand.u32 %v459, 4294901760
        %v1114 = vsub.f32 %v459, %v1113
        %v1115 = vand.u32 %v1114, 4294901760
        %v1116 = vsub.f32 %v1114, %v1115
        %v1117 = vand.u32 %v1116, 4294901760
        %1118 = vmatmul.mubr.f32.gmra.mxu0 %v1117
        %v1119 = vpop.f32.mrf.mxu0
        %v1120 = vadd.f32 0.0, %v1119
        %v1121 = vpop.f32.mrf.mxu0
        %v1122 = vadd.f32 0.0, %v1121
        %v1123 = vand.u32 %v464, 4294901760
        %v1124 = vsub.f32 %v464, %v1123
        %v1125 = vand.u32 %v1124, 4294901760
        %v1126 = vsub.f32 %v1124, %v1125
        %v1127 = vand.u32 %v1126, 4294901760
        %1128 = vmatprep.mubr.f32.mxu0 %v1127
        %v1129 = vand.u32 %v463, 4294901760
        %v1130 = vsub.f32 %v463, %v1129
        %v1131 = vand.u32 %v1130, 4294901760
        %v1132 = vsub.f32 %v1130, %v1131
        %v1133 = vand.u32 %v1132, 4294901760
        %1134 = vmatmul.mubr.f32.gmra.mxu0 %v1133
        %v1135 = vpop.f32.mrf.mxu0
        %v1136 = vadd.f32 0.0, %v1135
        %v1137 = vpop.f32.mrf.mxu0
        %v1138 = vadd.f32 0.0, %v1137
        %v1139 = vand.u32 %v468, 4294901760
        %v1140 = vsub.f32 %v468, %v1139
        %v1141 = vand.u32 %v1140, 4294901760
        %v1142 = vsub.f32 %v1140, %v1141
        %v1143 = vand.u32 %v1142, 4294901760
        %1144 = vmatprep.mubr.f32.mxu0 %v1143
        %v1145 = vand.u32 %v467, 4294901760
        %v1146 = vsub.f32 %v467, %v1145
        %v1147 = vand.u32 %v1146, 4294901760
        %v1148 = vsub.f32 %v1146, %v1147
        %v1149 = vand.u32 %v1148, 4294901760
        %1150 = vmatmul.mubr.f32.gmra.mxu0 %v1149
        %v1151 = vpop.f32.mrf.mxu0
        %v1152 = vadd.f32 0.0, %v1151
        %v1153 = vpop.f32.mrf.mxu0
        %v1154 = vadd.f32 0.0, %v1153
        %v1155 = vand.u32 %v472, 4294901760
        %v1156 = vsub.f32 %v472, %v1155
        %v1157 = vand.u32 %v1156, 4294901760
        %v1158 = vsub.f32 %v1156, %v1157
        %v1159 = vand.u32 %v1158, 4294901760
        %1160 = vmatprep.mubr.f32.mxu0 %v1159
        %v1161 = vand.u32 %v471, 4294901760
        %v1162 = vsub.f32 %v471, %v1161
        %v1163 = vand.u32 %v1162, 4294901760
        %v1164 = vsub.f32 %v1162, %v1163
        %v1165 = vand.u32 %v1164, 4294901760
        %1166 = vmatmul.mubr.f32.gmra.mxu0 %v1165
        %v1167 = vpop.f32.mrf.mxu0
        %v1168 = vadd.f32 0.0, %v1167
        %v1169 = vpop.f32.mrf.mxu0
        %v1170 = vadd.f32 0.0, %v1169
        %v1171 = vand.u32 %v476, 4294901760
        %v1172 = vsub.f32 %v476, %v1171
        %v1173 = vand.u32 %v1172, 4294901760
        %v1174 = vsub.f32 %v1172, %v1173
        %v1175 = vand.u32 %v1174, 4294901760
        %1176 = vmatprep.mubr.f32.mxu0 %v1175
        %v1177 = vand.u32 %v475, 4294901760
        %v1178 = vsub.f32 %v475, %v1177
        %v1179 = vand.u32 %v1178, 4294901760
        %v1180 = vsub.f32 %v1178, %v1179
        %v1181 = vand.u32 %v1180, 4294901760
        %1182 = vmatmul.mubr.f32.gmra.mxu0 %v1181
        %v1183 = vpop.f32.mrf.mxu0
        %v1184 = vadd.f32 0.0, %v1183
        %v1185 = vpop.f32.mrf.mxu0
        %v1186 = vadd.f32 0.0, %v1185
        %v1187 = vand.u32 %v480, 4294901760
        %v1188 = vsub.f32 %v480, %v1187
        %v1189 = vand.u32 %v1188, 4294901760
        %v1190 = vsub.f32 %v1188, %v1189
        %v1191 = vand.u32 %v1190, 4294901760
        %1192 = vmatprep.mubr.f32.mxu0 %v1191
        %v1193 = vand.u32 %v479, 4294901760
        %v1194 = vsub.f32 %v479, %v1193
        %v1195 = vand.u32 %v1194, 4294901760
        %v1196 = vsub.f32 %v1194, %v1195
        %v1197 = vand.u32 %v1196, 4294901760
        %1198 = vmatmul.mubr.f32.gmra.mxu0 %v1197
        %v1199 = vpop.f32.mrf.mxu0
        %v1200 = vadd.f32 0.0, %v1199
        %v1201 = vpop.f32.mrf.mxu0
        %v1202 = vadd.f32 0.0, %v1201
        %v1203 = vand.u32 %v484, 4294901760
        %v1204 = vsub.f32 %v484, %v1203
        %v1205 = vand.u32 %v1204, 4294901760
        %v1206 = vsub.f32 %v1204, %v1205
        %v1207 = vand.u32 %v1206, 4294901760
        %1208 = vmatprep.mubr.f32.mxu0 %v1207
        %v1209 = vand.u32 %v483, 4294901760
        %v1210 = vsub.f32 %v483, %v1209
        %v1211 = vand.u32 %v1210, 4294901760
        %v1212 = vsub.f32 %v1210, %v1211
        %v1213 = vand.u32 %v1212, 4294901760
        %1214 = vmatmul.mubr.f32.gmra.mxu0 %v1213
        %v1215 = vpop.f32.mrf.mxu0
        %v1216 = vadd.f32 0.0, %v1215
        %v1217 = vpop.f32.mrf.mxu0
        %v1218 = vadd.f32 0.0, %v1217
        %v1219 = vand.u32 %v488, 4294901760
        %v1220 = vsub.f32 %v488, %v1219
        %v1221 = vand.u32 %v1220, 4294901760
        %v1222 = vsub.f32 %v1220, %v1221
        %v1223 = vand.u32 %v1222, 4294901760
        %1224 = vmatprep.mubr.f32.mxu0 %v1223
        %v1225 = vand.u32 %v487, 4294901760
        %v1226 = vsub.f32 %v487, %v1225
        %v1227 = vand.u32 %v1226, 4294901760
        %v1228 = vsub.f32 %v1226, %v1227
        %v1229 = vand.u32 %v1228, 4294901760
        %1230 = vmatmul.mubr.f32.gmra.mxu0 %v1229
        %v1231 = vpop.f32.mrf.mxu0
        %v1232 = vadd.f32 0.0, %v1231
        %v1233 = vpop.f32.mrf.mxu0
        %v1234 = vadd.f32 0.0, %v1233
        %v1235 = vand.u32 %v492, 4294901760
        %v1236 = vsub.f32 %v492, %v1235
        %v1237 = vand.u32 %v1236, 4294901760
        %v1238 = vsub.f32 %v1236, %v1237
        %v1239 = vand.u32 %v1238, 4294901760
        %1240 = vmatprep.mubr.f32.mxu0 %v1239
        %v1241 = vand.u32 %v491, 4294901760
        %v1242 = vsub.f32 %v491, %v1241
        %v1243 = vand.u32 %v1242, 4294901760
        %v1244 = vsub.f32 %v1242, %v1243
        %v1245 = vand.u32 %v1244, 4294901760
        %1246 = vmatmul.mubr.f32.gmra.mxu0 %v1245
        %v1247 = vpop.f32.mrf.mxu0
        %v1248 = vadd.f32 0.0, %v1247
        %v1249 = vpop.f32.mrf.mxu0
        %v1250 = vadd.f32 0.0, %v1249
        %v1251 = vand.u32 %v496, 4294901760
        %v1252 = vsub.f32 %v496, %v1251
        %v1253 = vand.u32 %v1252, 4294901760
        %v1254 = vsub.f32 %v1252, %v1253
        %v1255 = vand.u32 %v1254, 4294901760
        %1256 = vmatprep.mubr.f32.mxu0 %v1255
        %v1257 = vand.u32 %v495, 4294901760
        %v1258 = vsub.f32 %v495, %v1257
        %v1259 = vand.u32 %v1258, 4294901760
        %v1260 = vsub.f32 %v1258, %v1259
        %v1261 = vand.u32 %v1260, 4294901760
        %1262 = vmatmul.mubr.f32.gmra.mxu0 %v1261
        %v1263 = vpop.f32.mrf.mxu0
        %v1264 = vadd.f32 0.0, %v1263
        %v1265 = vpop.f32.mrf.mxu0
        %v1266 = vadd.f32 0.0, %v1265
        %1267 = vdwg.mxu0
        %v1268 = vand.u32 %v530, 4294901760
        %v1269 = vsub.f32 %v530, %v1268
        %v1270 = vand.u32 %v1269, 4294901760
        %v1271 = vsub.f32 %v1269, %v1270
        %v1272 = vand.u32 %v1271, 4294901760
        %1273 = vmatprep.subr.mxu0 %v1272
        %v1274 = vand.u32 %v529, 4294901760
        %v1275 = vsub.f32 %v529, %v1274
        %v1276 = vand.u32 %v1275, 4294901760
        %v1277 = vsub.f32 %v1275, %v1276
        %v1278 = vand.u32 %v1277, 4294901760
        %1279 = vmatpush1.msra.mxu0 %v1278
        %v1280 = vand.u32 %v528, 4294901760
        %v1281 = vsub.f32 %v528, %v1280
        %v1282 = vand.u32 %v1281, 4294901760
        %v1283 = vsub.f32 %v1281, %v1282
        %v1284 = vand.u32 %v1283, 4294901760
        %1285 = vmatprep.subr.mxu0 %v1284
        %v1286 = vand.u32 %v527, 4294901760
        %v1287 = vsub.f32 %v527, %v1286
        %v1288 = vand.u32 %v1287, 4294901760
        %v1289 = vsub.f32 %v1287, %v1288
        %v1290 = vand.u32 %v1289, 4294901760
        %1291 = vmatpush1.msra.mxu0 %v1290
        %v1292 = vand.u32 %v526, 4294901760
        %v1293 = vsub.f32 %v526, %v1292
        %v1294 = vand.u32 %v1293, 4294901760
        %v1295 = vsub.f32 %v1293, %v1294
        %v1296 = vand.u32 %v1295, 4294901760
        %1297 = vmatprep.subr.mxu0 %v1296
        %v1298 = vand.u32 %v525, 4294901760
        %v1299 = vsub.f32 %v525, %v1298
        %v1300 = vand.u32 %v1299, 4294901760
        %v1301 = vsub.f32 %v1299, %v1300
        %v1302 = vand.u32 %v1301, 4294901760
        %1303 = vmatpush1.msra.mxu0 %v1302
        %v1304 = vand.u32 %v524, 4294901760
        %v1305 = vsub.f32 %v524, %v1304
        %v1306 = vand.u32 %v1305, 4294901760
        %v1307 = vsub.f32 %v1305, %v1306
        %v1308 = vand.u32 %v1307, 4294901760
        %1309 = vmatprep.subr.mxu0 %v1308
        %v1310 = vand.u32 %v523, 4294901760
        %v1311 = vsub.f32 %v523, %v1310
        %v1312 = vand.u32 %v1311, 4294901760
        %v1313 = vsub.f32 %v1311, %v1312
        %v1314 = vand.u32 %v1313, 4294901760
        %1315 = vmatpush1.msra.mxu0 %v1314
        %v1316 = vand.u32 %v522, 4294901760
        %v1317 = vsub.f32 %v522, %v1316
        %v1318 = vand.u32 %v1317, 4294901760
        %v1319 = vsub.f32 %v1317, %v1318
        %v1320 = vand.u32 %v1319, 4294901760
        %1321 = vmatprep.subr.mxu0 %v1320
        %v1322 = vand.u32 %v521, 4294901760
        %v1323 = vsub.f32 %v521, %v1322
        %v1324 = vand.u32 %v1323, 4294901760
        %v1325 = vsub.f32 %v1323, %v1324
        %v1326 = vand.u32 %v1325, 4294901760
        %1327 = vmatpush1.msra.mxu0 %v1326
        %v1328 = vand.u32 %v520, 4294901760
        %v1329 = vsub.f32 %v520, %v1328
        %v1330 = vand.u32 %v1329, 4294901760
        %v1331 = vsub.f32 %v1329, %v1330
        %v1332 = vand.u32 %v1331, 4294901760
        %1333 = vmatprep.subr.mxu0 %v1332
        %v1334 = vand.u32 %v519, 4294901760
        %v1335 = vsub.f32 %v519, %v1334
        %v1336 = vand.u32 %v1335, 4294901760
        %v1337 = vsub.f32 %v1335, %v1336
        %v1338 = vand.u32 %v1337, 4294901760
        %1339 = vmatpush1.msra.mxu0 %v1338
        %v1340 = vand.u32 %v518, 4294901760
        %v1341 = vsub.f32 %v518, %v1340
        %v1342 = vand.u32 %v1341, 4294901760
        %v1343 = vsub.f32 %v1341, %v1342
        %v1344 = vand.u32 %v1343, 4294901760
        %1345 = vmatprep.subr.mxu0 %v1344
        %v1346 = vand.u32 %v517, 4294901760
        %v1347 = vsub.f32 %v517, %v1346
        %v1348 = vand.u32 %v1347, 4294901760
        %v1349 = vsub.f32 %v1347, %v1348
        %v1350 = vand.u32 %v1349, 4294901760
        %1351 = vmatpush1.msra.mxu0 %v1350
        %v1352 = vand.u32 %v516, 4294901760
        %v1353 = vsub.f32 %v516, %v1352
        %v1354 = vand.u32 %v1353, 4294901760
        %v1355 = vsub.f32 %v1353, %v1354
        %v1356 = vand.u32 %v1355, 4294901760
        %1357 = vmatprep.subr.mxu0 %v1356
        %v1358 = vand.u32 %v515, 4294901760
        %v1359 = vsub.f32 %v515, %v1358
        %v1360 = vand.u32 %v1359, 4294901760
        %v1361 = vsub.f32 %v1359, %v1360
        %v1362 = vand.u32 %v1361, 4294901760
        %1363 = vmatpush1.msra.mxu0 %v1362
        %v1364 = vand.u32 %v514, 4294901760
        %v1365 = vsub.f32 %v514, %v1364
        %v1366 = vand.u32 %v1365, 4294901760
        %v1367 = vsub.f32 %v1365, %v1366
        %v1368 = vand.u32 %v1367, 4294901760
        %1369 = vmatprep.subr.mxu0 %v1368
        %v1370 = vand.u32 %v513, 4294901760
        %v1371 = vsub.f32 %v513, %v1370
        %v1372 = vand.u32 %v1371, 4294901760
        %v1373 = vsub.f32 %v1371, %v1372
        %v1374 = vand.u32 %v1373, 4294901760
        %1375 = vmatpush1.msra.mxu0 %v1374
        %v1376 = vand.u32 %v512, 4294901760
        %v1377 = vsub.f32 %v512, %v1376
        %v1378 = vand.u32 %v1377, 4294901760
        %v1379 = vsub.f32 %v1377, %v1378
        %v1380 = vand.u32 %v1379, 4294901760
        %1381 = vmatprep.subr.mxu0 %v1380
        %v1382 = vand.u32 %v511, 4294901760
        %v1383 = vsub.f32 %v511, %v1382
        %v1384 = vand.u32 %v1383, 4294901760
        %v1385 = vsub.f32 %v1383, %v1384
        %v1386 = vand.u32 %v1385, 4294901760
        %1387 = vmatpush1.msra.mxu0 %v1386
        %v1388 = vand.u32 %v510, 4294901760
        %v1389 = vsub.f32 %v510, %v1388
        %v1390 = vand.u32 %v1389, 4294901760
        %v1391 = vsub.f32 %v1389, %v1390
        %v1392 = vand.u32 %v1391, 4294901760
        %1393 = vmatprep.subr.mxu0 %v1392
        %v1394 = vand.u32 %v509, 4294901760
        %v1395 = vsub.f32 %v509, %v1394
        %v1396 = vand.u32 %v1395, 4294901760
        %v1397 = vsub.f32 %v1395, %v1396
        %v1398 = vand.u32 %v1397, 4294901760
        %1399 = vmatpush1.msra.mxu0 %v1398
        %v1400 = vand.u32 %v508, 4294901760
        %v1401 = vsub.f32 %v508, %v1400
        %v1402 = vand.u32 %v1401, 4294901760
        %v1403 = vsub.f32 %v1401, %v1402
        %v1404 = vand.u32 %v1403, 4294901760
        %1405 = vmatprep.subr.mxu0 %v1404
        %v1406 = vand.u32 %v507, 4294901760
        %v1407 = vsub.f32 %v507, %v1406
        %v1408 = vand.u32 %v1407, 4294901760
        %v1409 = vsub.f32 %v1407, %v1408
        %v1410 = vand.u32 %v1409, 4294901760
        %1411 = vmatpush1.msra.mxu0 %v1410
        %v1412 = vand.u32 %v506, 4294901760
        %v1413 = vsub.f32 %v506, %v1412
        %v1414 = vand.u32 %v1413, 4294901760
        %v1415 = vsub.f32 %v1413, %v1414
        %v1416 = vand.u32 %v1415, 4294901760
        %1417 = vmatprep.subr.mxu0 %v1416
        %v1418 = vand.u32 %v505, 4294901760
        %v1419 = vsub.f32 %v505, %v1418
        %v1420 = vand.u32 %v1419, 4294901760
        %v1421 = vsub.f32 %v1419, %v1420
        %v1422 = vand.u32 %v1421, 4294901760
        %1423 = vmatpush1.msra.mxu0 %v1422
        %v1424 = vand.u32 %v504, 4294901760
        %v1425 = vsub.f32 %v504, %v1424
        %v1426 = vand.u32 %v1425, 4294901760
        %v1427 = vsub.f32 %v1425, %v1426
        %v1428 = vand.u32 %v1427, 4294901760
        %1429 = vmatprep.subr.mxu0 %v1428
        %v1430 = vand.u32 %v503, 4294901760
        %v1431 = vsub.f32 %v503, %v1430
        %v1432 = vand.u32 %v1431, 4294901760
        %v1433 = vsub.f32 %v1431, %v1432
        %v1434 = vand.u32 %v1433, 4294901760
        %1435 = vmatpush1.msra.mxu0 %v1434
        %v1436 = vand.u32 %v502, 4294901760
        %v1437 = vsub.f32 %v502, %v1436
        %v1438 = vand.u32 %v1437, 4294901760
        %v1439 = vsub.f32 %v1437, %v1438
        %v1440 = vand.u32 %v1439, 4294901760
        %1441 = vmatprep.subr.mxu0 %v1440
        %v1442 = vand.u32 %v501, 4294901760
        %v1443 = vsub.f32 %v501, %v1442
        %v1444 = vand.u32 %v1443, 4294901760
        %v1445 = vsub.f32 %v1443, %v1444
        %v1446 = vand.u32 %v1445, 4294901760
        %1447 = vmatpush1.msra.mxu0 %v1446
        %v1448 = vand.u32 %v500, 4294901760
        %v1449 = vsub.f32 %v500, %v1448
        %v1450 = vand.u32 %v1449, 4294901760
        %v1451 = vsub.f32 %v1449, %v1450
        %v1452 = vand.u32 %v1451, 4294901760
        %1453 = vmatprep.subr.mxu0 %v1452
        %v1454 = vand.u32 %v499, 4294901760
        %v1455 = vsub.f32 %v499, %v1454
        %v1456 = vand.u32 %v1455, 4294901760
        %v1457 = vsub.f32 %v1455, %v1456
        %v1458 = vand.u32 %v1457, 4294901760
        %1459 = vmatpush1.msra.mxu0 %v1458
        %v1460 = vand.u32 %v562, 4294901760
        %v1461 = vsub.f32 %v562, %v1460
        %v1462 = vand.u32 %v1461, 4294901760
        %v1463 = vsub.f32 %v1461, %v1462
        %v1464 = vand.u32 %v1463, 4294901760
        %1465 = vmatprep.subr.mxu0 %v1464
        %v1466 = vand.u32 %v561, 4294901760
        %v1467 = vsub.f32 %v561, %v1466
        %v1468 = vand.u32 %v1467, 4294901760
        %v1469 = vsub.f32 %v1467, %v1468
        %v1470 = vand.u32 %v1469, 4294901760
        %1471 = vmatpush2.msra.mxu0 %v1470
        %v1472 = vand.u32 %v560, 4294901760
        %v1473 = vsub.f32 %v560, %v1472
        %v1474 = vand.u32 %v1473, 4294901760
        %v1475 = vsub.f32 %v1473, %v1474
        %v1476 = vand.u32 %v1475, 4294901760
        %1477 = vmatprep.subr.mxu0 %v1476
        %v1478 = vand.u32 %v559, 4294901760
        %v1479 = vsub.f32 %v559, %v1478
        %v1480 = vand.u32 %v1479, 4294901760
        %v1481 = vsub.f32 %v1479, %v1480
        %v1482 = vand.u32 %v1481, 4294901760
        %1483 = vmatpush2.msra.mxu0 %v1482
        %v1484 = vand.u32 %v558, 4294901760
        %v1485 = vsub.f32 %v558, %v1484
        %v1486 = vand.u32 %v1485, 4294901760
        %v1487 = vsub.f32 %v1485, %v1486
        %v1488 = vand.u32 %v1487, 4294901760
        %1489 = vmatprep.subr.mxu0 %v1488
        %v1490 = vand.u32 %v557, 4294901760
        %v1491 = vsub.f32 %v557, %v1490
        %v1492 = vand.u32 %v1491, 4294901760
        %v1493 = vsub.f32 %v1491, %v1492
        %v1494 = vand.u32 %v1493, 4294901760
        %1495 = vmatpush2.msra.mxu0 %v1494
        %v1496 = vand.u32 %v556, 4294901760
        %v1497 = vsub.f32 %v556, %v1496
        %v1498 = vand.u32 %v1497, 4294901760
        %v1499 = vsub.f32 %v1497, %v1498
        %v1500 = vand.u32 %v1499, 4294901760
        %1501 = vmatprep.subr.mxu0 %v1500
        %v1502 = vand.u32 %v555, 4294901760
        %v1503 = vsub.f32 %v555, %v1502
        %v1504 = vand.u32 %v1503, 4294901760
        %v1505 = vsub.f32 %v1503, %v1504
        %v1506 = vand.u32 %v1505, 4294901760
        %1507 = vmatpush2.msra.mxu0 %v1506
        %v1508 = vand.u32 %v554, 4294901760
        %v1509 = vsub.f32 %v554, %v1508
        %v1510 = vand.u32 %v1509, 4294901760
        %v1511 = vsub.f32 %v1509, %v1510
        %v1512 = vand.u32 %v1511, 4294901760
        %1513 = vmatprep.subr.mxu0 %v1512
        %v1514 = vand.u32 %v553, 4294901760
        %v1515 = vsub.f32 %v553, %v1514
        %v1516 = vand.u32 %v1515, 4294901760
        %v1517 = vsub.f32 %v1515, %v1516
        %v1518 = vand.u32 %v1517, 4294901760
        %1519 = vmatpush2.msra.mxu0 %v1518
        %v1520 = vand.u32 %v552, 4294901760
        %v1521 = vsub.f32 %v552, %v1520
        %v1522 = vand.u32 %v1521, 4294901760
        %v1523 = vsub.f32 %v1521, %v1522
        %v1524 = vand.u32 %v1523, 4294901760
        %1525 = vmatprep.subr.mxu0 %v1524
        %v1526 = vand.u32 %v551, 4294901760
        %v1527 = vsub.f32 %v551, %v1526
        %v1528 = vand.u32 %v1527, 4294901760
        %v1529 = vsub.f32 %v1527, %v1528
        %v1530 = vand.u32 %v1529, 4294901760
        %1531 = vmatpush2.msra.mxu0 %v1530
        %v1532 = vand.u32 %v550, 4294901760
        %v1533 = vsub.f32 %v550, %v1532
        %v1534 = vand.u32 %v1533, 4294901760
        %v1535 = vsub.f32 %v1533, %v1534
        %v1536 = vand.u32 %v1535, 4294901760
        %1537 = vmatprep.subr.mxu0 %v1536
        %v1538 = vand.u32 %v549, 4294901760
        %v1539 = vsub.f32 %v549, %v1538
        %v1540 = vand.u32 %v1539, 4294901760
        %v1541 = vsub.f32 %v1539, %v1540
        %v1542 = vand.u32 %v1541, 4294901760
        %1543 = vmatpush2.msra.mxu0 %v1542
        %v1544 = vand.u32 %v548, 4294901760
        %v1545 = vsub.f32 %v548, %v1544
        %v1546 = vand.u32 %v1545, 4294901760
        %v1547 = vsub.f32 %v1545, %v1546
        %v1548 = vand.u32 %v1547, 4294901760
        %1549 = vmatprep.subr.mxu0 %v1548
        %v1550 = vand.u32 %v547, 4294901760
        %v1551 = vsub.f32 %v547, %v1550
        %v1552 = vand.u32 %v1551, 4294901760
        %v1553 = vsub.f32 %v1551, %v1552
        %v1554 = vand.u32 %v1553, 4294901760
        %1555 = vmatpush2.msra.mxu0 %v1554
        %v1556 = vand.u32 %v546, 4294901760
        %v1557 = vsub.f32 %v546, %v1556
        %v1558 = vand.u32 %v1557, 4294901760
        %v1559 = vsub.f32 %v1557, %v1558
        %v1560 = vand.u32 %v1559, 4294901760
        %1561 = vmatprep.subr.mxu0 %v1560
        %v1562 = vand.u32 %v545, 4294901760
        %v1563 = vsub.f32 %v545, %v1562
        %v1564 = vand.u32 %v1563, 4294901760
        %v1565 = vsub.f32 %v1563, %v1564
        %v1566 = vand.u32 %v1565, 4294901760
        %1567 = vmatpush2.msra.mxu0 %v1566
        %v1568 = vand.u32 %v544, 4294901760
        %v1569 = vsub.f32 %v544, %v1568
        %v1570 = vand.u32 %v1569, 4294901760
        %v1571 = vsub.f32 %v1569, %v1570
        %v1572 = vand.u32 %v1571, 4294901760
        %1573 = vmatprep.subr.mxu0 %v1572
        %v1574 = vand.u32 %v543, 4294901760
        %v1575 = vsub.f32 %v543, %v1574
        %v1576 = vand.u32 %v1575, 4294901760
        %v1577 = vsub.f32 %v1575, %v1576
        %v1578 = vand.u32 %v1577, 4294901760
        %1579 = vmatpush2.msra.mxu0 %v1578
        %v1580 = vand.u32 %v542, 4294901760
        %v1581 = vsub.f32 %v542, %v1580
        %v1582 = vand.u32 %v1581, 4294901760
        %v1583 = vsub.f32 %v1581, %v1582
        %v1584 = vand.u32 %v1583, 4294901760
        %1585 = vmatprep.subr.mxu0 %v1584
        %v1586 = vand.u32 %v541, 4294901760
        %v1587 = vsub.f32 %v541, %v1586
        %v1588 = vand.u32 %v1587, 4294901760
        %v1589 = vsub.f32 %v1587, %v1588
        %v1590 = vand.u32 %v1589, 4294901760
        %1591 = vmatpush2.msra.mxu0 %v1590
        %v1592 = vand.u32 %v540, 4294901760
        %v1593 = vsub.f32 %v540, %v1592
        %v1594 = vand.u32 %v1593, 4294901760
        %v1595 = vsub.f32 %v1593, %v1594
        %v1596 = vand.u32 %v1595, 4294901760
        %1597 = vmatprep.subr.mxu0 %v1596
        %v1598 = vand.u32 %v539, 4294901760
        %v1599 = vsub.f32 %v539, %v1598
        %v1600 = vand.u32 %v1599, 4294901760
        %v1601 = vsub.f32 %v1599, %v1600
        %v1602 = vand.u32 %v1601, 4294901760
        %1603 = vmatpush2.msra.mxu0 %v1602
        %v1604 = vand.u32 %v538, 4294901760
        %v1605 = vsub.f32 %v538, %v1604
        %v1606 = vand.u32 %v1605, 4294901760
        %v1607 = vsub.f32 %v1605, %v1606
        %v1608 = vand.u32 %v1607, 4294901760
        %1609 = vmatprep.subr.mxu0 %v1608
        %v1610 = vand.u32 %v537, 4294901760
        %v1611 = vsub.f32 %v537, %v1610
        %v1612 = vand.u32 %v1611, 4294901760
        %v1613 = vsub.f32 %v1611, %v1612
        %v1614 = vand.u32 %v1613, 4294901760
        %1615 = vmatpush2.msra.mxu0 %v1614
        %v1616 = vand.u32 %v536, 4294901760
        %v1617 = vsub.f32 %v536, %v1616
        %v1618 = vand.u32 %v1617, 4294901760
        %v1619 = vsub.f32 %v1617, %v1618
        %v1620 = vand.u32 %v1619, 4294901760
        %1621 = vmatprep.subr.mxu0 %v1620
        %v1622 = vand.u32 %v535, 4294901760
        %v1623 = vsub.f32 %v535, %v1622
        %v1624 = vand.u32 %v1623, 4294901760
        %v1625 = vsub.f32 %v1623, %v1624
        %v1626 = vand.u32 %v1625, 4294901760
        %1627 = vmatpush2.msra.mxu0 %v1626
        %v1628 = vand.u32 %v534, 4294901760
        %v1629 = vsub.f32 %v534, %v1628
        %v1630 = vand.u32 %v1629, 4294901760
        %v1631 = vsub.f32 %v1629, %v1630
        %v1632 = vand.u32 %v1631, 4294901760
        %1633 = vmatprep.subr.mxu0 %v1632
        %v1634 = vand.u32 %v533, 4294901760
        %v1635 = vsub.f32 %v533, %v1634
        %v1636 = vand.u32 %v1635, 4294901760
        %v1637 = vsub.f32 %v1635, %v1636
        %v1638 = vand.u32 %v1637, 4294901760
        %1639 = vmatpush2.msra.mxu0 %v1638
        %v1640 = vand.u32 %v532, 4294901760
        %v1641 = vsub.f32 %v532, %v1640
        %v1642 = vand.u32 %v1641, 4294901760
        %v1643 = vsub.f32 %v1641, %v1642
        %v1644 = vand.u32 %v1643, 4294901760
        %1645 = vmatprep.subr.mxu0 %v1644
        %v1646 = vand.u32 %v531, 4294901760
        %v1647 = vsub.f32 %v531, %v1646
        %v1648 = vand.u32 %v1647, 4294901760
        %v1649 = vsub.f32 %v1647, %v1648
        %v1650 = vand.u32 %v1649, 4294901760
        %1651 = vmatpush2.msra.mxu0 %v1650
        %v1652 = vand.u32 %v372, 4294901760
        %1653 = vmatprep.mubr.f32.mxu0 %v1652
        %v1654 = vand.u32 %v371, 4294901760
        %1655 = vmatmul.mubr.f32.gmra.mxu0 %v1654
        %v1656 = vpop.f32.mrf.mxu0
        %v1657 = vadd.f32 %v768, %v1656
        %v1658 = vpop.f32.mrf.mxu0
        %v1659 = vadd.f32 %v770, %v1658
        %v1660 = vand.u32 %v376, 4294901760
        %1661 = vmatprep.mubr.f32.mxu0 %v1660
        %v1662 = vand.u32 %v375, 4294901760
        %1663 = vmatmul.mubr.f32.gmra.mxu0 %v1662
        %v1664 = vpop.f32.mrf.mxu0
        %v1665 = vadd.f32 %v784, %v1664
        %v1666 = vpop.f32.mrf.mxu0
        %v1667 = vadd.f32 %v786, %v1666
        %v1668 = vand.u32 %v380, 4294901760
        %1669 = vmatprep.mubr.f32.mxu0 %v1668
        %v1670 = vand.u32 %v379, 4294901760
        %1671 = vmatmul.mubr.f32.gmra.mxu0 %v1670
        %v1672 = vpop.f32.mrf.mxu0
        %v1673 = vadd.f32 %v800, %v1672
        %v1674 = vpop.f32.mrf.mxu0
        %v1675 = vadd.f32 %v802, %v1674
        %v1676 = vand.u32 %v384, 4294901760
        %1677 = vmatprep.mubr.f32.mxu0 %v1676
        %v1678 = vand.u32 %v383, 4294901760
        %1679 = vmatmul.mubr.f32.gmra.mxu0 %v1678
        %v1680 = vpop.f32.mrf.mxu0
        %v1681 = vadd.f32 %v816, %v1680
        %v1682 = vpop.f32.mrf.mxu0
        %v1683 = vadd.f32 %v818, %v1682
        %v1684 = vand.u32 %v388, 4294901760
        %1685 = vmatprep.mubr.f32.mxu0 %v1684
        %v1686 = vand.u32 %v387, 4294901760
        %1687 = vmatmul.mubr.f32.gmra.mxu0 %v1686
        %v1688 = vpop.f32.mrf.mxu0
        %v1689 = vadd.f32 %v832, %v1688
        %v1690 = vpop.f32.mrf.mxu0
        %v1691 = vadd.f32 %v834, %v1690
        %v1692 = vand.u32 %v392, 4294901760
        %1693 = vmatprep.mubr.f32.mxu0 %v1692
        %v1694 = vand.u32 %v391, 4294901760
        %1695 = vmatmul.mubr.f32.gmra.mxu0 %v1694
        %v1696 = vpop.f32.mrf.mxu0
        %v1697 = vadd.f32 %v848, %v1696
        %v1698 = vpop.f32.mrf.mxu0
        %v1699 = vadd.f32 %v850, %v1698
        %v1700 = vand.u32 %v396, 4294901760
        %1701 = vmatprep.mubr.f32.mxu0 %v1700
        %v1702 = vand.u32 %v395, 4294901760
        %1703 = vmatmul.mubr.f32.gmra.mxu0 %v1702
        %v1704 = vpop.f32.mrf.mxu0
        %v1705 = vadd.f32 %v864, %v1704
        %v1706 = vpop.f32.mrf.mxu0
        %v1707 = vadd.f32 %v866, %v1706
        %v1708 = vand.u32 %v400, 4294901760
        %1709 = vmatprep.mubr.f32.mxu0 %v1708
        %v1710 = vand.u32 %v399, 4294901760
        %1711 = vmatmul.mubr.f32.gmra.mxu0 %v1710
        %v1712 = vpop.f32.mrf.mxu0
        %v1713 = vadd.f32 %v880, %v1712
        %v1714 = vpop.f32.mrf.mxu0
        %v1715 = vadd.f32 %v882, %v1714
        %v1716 = vand.u32 %v404, 4294901760
        %1717 = vmatprep.mubr.f32.mxu0 %v1716
        %v1718 = vand.u32 %v403, 4294901760
        %1719 = vmatmul.mubr.f32.gmra.mxu0 %v1718
        %v1720 = vpop.f32.mrf.mxu0
        %v1721 = vadd.f32 %v896, %v1720
        %v1722 = vpop.f32.mrf.mxu0
        %v1723 = vadd.f32 %v898, %v1722
        %v1724 = vand.u32 %v408, 4294901760
        %1725 = vmatprep.mubr.f32.mxu0 %v1724
        %v1726 = vand.u32 %v407, 4294901760
        %1727 = vmatmul.mubr.f32.gmra.mxu0 %v1726
        %v1728 = vpop.f32.mrf.mxu0
        %v1729 = vadd.f32 %v912, %v1728
        %v1730 = vpop.f32.mrf.mxu0
        %v1731 = vadd.f32 %v914, %v1730
        %v1732 = vand.u32 %v412, 4294901760
        %1733 = vmatprep.mubr.f32.mxu0 %v1732
        %v1734 = vand.u32 %v411, 4294901760
        %1735 = vmatmul.mubr.f32.gmra.mxu0 %v1734
        %v1736 = vpop.f32.mrf.mxu0
        %v1737 = vadd.f32 %v928, %v1736
        %v1738 = vpop.f32.mrf.mxu0
        %v1739 = vadd.f32 %v930, %v1738
        %v1740 = vand.u32 %v416, 4294901760
        %1741 = vmatprep.mubr.f32.mxu0 %v1740
        %v1742 = vand.u32 %v415, 4294901760
        %1743 = vmatmul.mubr.f32.gmra.mxu0 %v1742
        %v1744 = vpop.f32.mrf.mxu0
        %v1745 = vadd.f32 %v944, %v1744
        %v1746 = vpop.f32.mrf.mxu0
        %v1747 = vadd.f32 %v946, %v1746
        %v1748 = vand.u32 %v420, 4294901760
        %1749 = vmatprep.mubr.f32.mxu0 %v1748
        %v1750 = vand.u32 %v419, 4294901760
        %1751 = vmatmul.mubr.f32.gmra.mxu0 %v1750
        %v1752 = vpop.f32.mrf.mxu0
        %v1753 = vadd.f32 %v960, %v1752
        %v1754 = vpop.f32.mrf.mxu0
        %v1755 = vadd.f32 %v962, %v1754
        %v1756 = vand.u32 %v424, 4294901760
        %1757 = vmatprep.mubr.f32.mxu0 %v1756
        %v1758 = vand.u32 %v423, 4294901760
        %1759 = vmatmul.mubr.f32.gmra.mxu0 %v1758
        %v1760 = vpop.f32.mrf.mxu0
        %v1761 = vadd.f32 %v976, %v1760
        %v1762 = vpop.f32.mrf.mxu0
        %v1763 = vadd.f32 %v978, %v1762
        %v1764 = vand.u32 %v428, 4294901760
        %1765 = vmatprep.mubr.f32.mxu0 %v1764
        %v1766 = vand.u32 %v427, 4294901760
        %1767 = vmatmul.mubr.f32.gmra.mxu0 %v1766
        %v1768 = vpop.f32.mrf.mxu0
        %v1769 = vadd.f32 %v992, %v1768
        %v1770 = vpop.f32.mrf.mxu0
        %v1771 = vadd.f32 %v994, %v1770
        %v1772 = vand.u32 %v432, 4294901760
        %1773 = vmatprep.mubr.f32.mxu0 %v1772
        %v1774 = vand.u32 %v431, 4294901760
        %1775 = vmatmul.mubr.f32.gmra.mxu0 %v1774
        %v1776 = vpop.f32.mrf.mxu0
        %v1777 = vadd.f32 %v1008, %v1776
        %v1778 = vpop.f32.mrf.mxu0
        %v1779 = vadd.f32 %v1010, %v1778
        %v1780 = vand.u32 %v436, 4294901760
        %1781 = vmatprep.mubr.f32.mxu0 %v1780
        %v1782 = vand.u32 %v435, 4294901760
        %1783 = vmatmul.mubr.f32.gmra.mxu0 %v1782
        %v1784 = vpop.f32.mrf.mxu0
        %v1785 = vadd.f32 %v1024, %v1784
        %v1786 = vpop.f32.mrf.mxu0
        %v1787 = vadd.f32 %v1026, %v1786
        %v1788 = vand.u32 %v440, 4294901760
        %1789 = vmatprep.mubr.f32.mxu0 %v1788
        %v1790 = vand.u32 %v439, 4294901760
        %1791 = vmatmul.mubr.f32.gmra.mxu0 %v1790
        %v1792 = vpop.f32.mrf.mxu0
        %v1793 = vadd.f32 %v1040, %v1792
        %v1794 = vpop.f32.mrf.mxu0
        %v1795 = vadd.f32 %v1042, %v1794
        %v1796 = vand.u32 %v444, 4294901760
        %1797 = vmatprep.mubr.f32.mxu0 %v1796
        %v1798 = vand.u32 %v443, 4294901760
        %1799 = vmatmul.mubr.f32.gmra.mxu0 %v1798
        %v1800 = vpop.f32.mrf.mxu0
        %v1801 = vadd.f32 %v1056, %v1800
        %v1802 = vpop.f32.mrf.mxu0
        %v1803 = vadd.f32 %v1058, %v1802
        %v1804 = vand.u32 %v448, 4294901760
        %1805 = vmatprep.mubr.f32.mxu0 %v1804
        %v1806 = vand.u32 %v447, 4294901760
        %1807 = vmatmul.mubr.f32.gmra.mxu0 %v1806
        %v1808 = vpop.f32.mrf.mxu0
        %v1809 = vadd.f32 %v1072, %v1808
        %v1810 = vpop.f32.mrf.mxu0
        %v1811 = vadd.f32 %v1074, %v1810
        %v1812 = vand.u32 %v452, 4294901760
        %1813 = vmatprep.mubr.f32.mxu0 %v1812
        %v1814 = vand.u32 %v451, 4294901760
        %1815 = vmatmul.mubr.f32.gmra.mxu0 %v1814
        %v1816 = vpop.f32.mrf.mxu0
        %v1817 = vadd.f32 %v1088, %v1816
        %v1818 = vpop.f32.mrf.mxu0
        %v1819 = vadd.f32 %v1090, %v1818
        %v1820 = vand.u32 %v456, 4294901760
        %1821 = vmatprep.mubr.f32.mxu0 %v1820
        %v1822 = vand.u32 %v455, 4294901760
        %1823 = vmatmul.mubr.f32.gmra.mxu0 %v1822
        %v1824 = vpop.f32.mrf.mxu0
        %v1825 = vadd.f32 %v1104, %v1824
        %v1826 = vpop.f32.mrf.mxu0
        %v1827 = vadd.f32 %v1106, %v1826
        %v1828 = vand.u32 %v460, 4294901760
        %1829 = vmatprep.mubr.f32.mxu0 %v1828
        %v1830 = vand.u32 %v459, 4294901760
        %1831 = vmatmul.mubr.f32.gmra.mxu0 %v1830
        %v1832 = vpop.f32.mrf.mxu0
        %v1833 = vadd.f32 %v1120, %v1832
        %v1834 = vpop.f32.mrf.mxu0
        %v1835 = vadd.f32 %v1122, %v1834
        %v1836 = vand.u32 %v464, 4294901760
        %1837 = vmatprep.mubr.f32.mxu0 %v1836
        %v1838 = vand.u32 %v463, 4294901760
        %1839 = vmatmul.mubr.f32.gmra.mxu0 %v1838
        %v1840 = vpop.f32.mrf.mxu0
        %v1841 = vadd.f32 %v1136, %v1840
        %v1842 = vpop.f32.mrf.mxu0
        %v1843 = vadd.f32 %v1138, %v1842
        %v1844 = vand.u32 %v468, 4294901760
        %1845 = vmatprep.mubr.f32.mxu0 %v1844
        %v1846 = vand.u32 %v467, 4294901760
        %1847 = vmatmul.mubr.f32.gmra.mxu0 %v1846
        %v1848 = vpop.f32.mrf.mxu0
        %v1849 = vadd.f32 %v1152, %v1848
        %v1850 = vpop.f32.mrf.mxu0
        %v1851 = vadd.f32 %v1154, %v1850
        %v1852 = vand.u32 %v472, 4294901760
        %1853 = vmatprep.mubr.f32.mxu0 %v1852
        %v1854 = vand.u32 %v471, 4294901760
        %1855 = vmatmul.mubr.f32.gmra.mxu0 %v1854
        %v1856 = vpop.f32.mrf.mxu0
        %v1857 = vadd.f32 %v1168, %v1856
        %v1858 = vpop.f32.mrf.mxu0
        %v1859 = vadd.f32 %v1170, %v1858
        %v1860 = vand.u32 %v476, 4294901760
        %1861 = vmatprep.mubr.f32.mxu0 %v1860
        %v1862 = vand.u32 %v475, 4294901760
        %1863 = vmatmul.mubr.f32.gmra.mxu0 %v1862
        %v1864 = vpop.f32.mrf.mxu0
        %v1865 = vadd.f32 %v1184, %v1864
        %v1866 = vpop.f32.mrf.mxu0
        %v1867 = vadd.f32 %v1186, %v1866
        %v1868 = vand.u32 %v480, 4294901760
        %1869 = vmatprep.mubr.f32.mxu0 %v1868
        %v1870 = vand.u32 %v479, 4294901760
        %1871 = vmatmul.mubr.f32.gmra.mxu0 %v1870
        %v1872 = vpop.f32.mrf.mxu0
        %v1873 = vadd.f32 %v1200, %v1872
        %v1874 = vpop.f32.mrf.mxu0
        %v1875 = vadd.f32 %v1202, %v1874
        %v1876 = vand.u32 %v484, 4294901760
        %1877 = vmatprep.mubr.f32.mxu0 %v1876
        %v1878 = vand.u32 %v483, 4294901760
        %1879 = vmatmul.mubr.f32.gmra.mxu0 %v1878
        %v1880 = vpop.f32.mrf.mxu0
        %v1881 = vadd.f32 %v1216, %v1880
        %v1882 = vpop.f32.mrf.mxu0
        %v1883 = vadd.f32 %v1218, %v1882
        %v1884 = vand.u32 %v488, 4294901760
        %1885 = vmatprep.mubr.f32.mxu0 %v1884
        %v1886 = vand.u32 %v487, 4294901760
        %1887 = vmatmul.mubr.f32.gmra.mxu0 %v1886
        %v1888 = vpop.f32.mrf.mxu0
        %v1889 = vadd.f32 %v1232, %v1888
        %v1890 = vpop.f32.mrf.mxu0
        %v1891 = vadd.f32 %v1234, %v1890
        %v1892 = vand.u32 %v492, 4294901760
        %1893 = vmatprep.mubr.f32.mxu0 %v1892
        %v1894 = vand.u32 %v491, 4294901760
        %1895 = vmatmul.mubr.f32.gmra.mxu0 %v1894
        %v1896 = vpop.f32.mrf.mxu0
        %v1897 = vadd.f32 %v1248, %v1896
        %v1898 = vpop.f32.mrf.mxu0
        %v1899 = vadd.f32 %v1250, %v1898
        %v1900 = vand.u32 %v496, 4294901760
        %1901 = vmatprep.mubr.f32.mxu0 %v1900
        %v1902 = vand.u32 %v495, 4294901760
        %1903 = vmatmul.mubr.f32.gmra.mxu0 %v1902
        %v1904 = vpop.f32.mrf.mxu0
        %v1905 = vadd.f32 %v1264, %v1904
        %v1906 = vpop.f32.mrf.mxu0
        %v1907 = vadd.f32 %v1266, %v1906
        %1908 = vdwg.mxu0
        %v1909 = vand.u32 %v530, 4294901760
        %v1910 = vsub.f32 %v530, %v1909
        %1911 = vmatprep.subr.mxu0 %v1910
        %v1912 = vand.u32 %v529, 4294901760
        %v1913 = vsub.f32 %v529, %v1912
        %1914 = vmatpush1.msra.mxu0 %v1913
        %v1915 = vand.u32 %v528, 4294901760
        %v1916 = vsub.f32 %v528, %v1915
        %1917 = vmatprep.subr.mxu0 %v1916
        %v1918 = vand.u32 %v527, 4294901760
        %v1919 = vsub.f32 %v527, %v1918
        %1920 = vmatpush1.msra.mxu0 %v1919
        %v1921 = vand.u32 %v526, 4294901760
        %v1922 = vsub.f32 %v526, %v1921
        %1923 = vmatprep.subr.mxu0 %v1922
        %v1924 = vand.u32 %v525, 4294901760
        %v1925 = vsub.f32 %v525, %v1924
        %1926 = vmatpush1.msra.mxu0 %v1925
        %v1927 = vand.u32 %v524, 4294901760
        %v1928 = vsub.f32 %v524, %v1927
        %1929 = vmatprep.subr.mxu0 %v1928
        %v1930 = vand.u32 %v523, 4294901760
        %v1931 = vsub.f32 %v523, %v1930
        %1932 = vmatpush1.msra.mxu0 %v1931
        %v1933 = vand.u32 %v522, 4294901760
        %v1934 = vsub.f32 %v522, %v1933
        %1935 = vmatprep.subr.mxu0 %v1934
        %v1936 = vand.u32 %v521, 4294901760
        %v1937 = vsub.f32 %v521, %v1936
        %1938 = vmatpush1.msra.mxu0 %v1937
        %v1939 = vand.u32 %v520, 4294901760
        %v1940 = vsub.f32 %v520, %v1939
        %1941 = vmatprep.subr.mxu0 %v1940
        %v1942 = vand.u32 %v519, 4294901760
        %v1943 = vsub.f32 %v519, %v1942
        %1944 = vmatpush1.msra.mxu0 %v1943
        %v1945 = vand.u32 %v518, 4294901760
        %v1946 = vsub.f32 %v518, %v1945
        %1947 = vmatprep.subr.mxu0 %v1946
        %v1948 = vand.u32 %v517, 4294901760
        %v1949 = vsub.f32 %v517, %v1948
        %1950 = vmatpush1.msra.mxu0 %v1949
        %v1951 = vand.u32 %v516, 4294901760
        %v1952 = vsub.f32 %v516, %v1951
        %1953 = vmatprep.subr.mxu0 %v1952
        %v1954 = vand.u32 %v515, 4294901760
        %v1955 = vsub.f32 %v515, %v1954
        %1956 = vmatpush1.msra.mxu0 %v1955
        %v1957 = vand.u32 %v514, 4294901760
        %v1958 = vsub.f32 %v514, %v1957
        %1959 = vmatprep.subr.mxu0 %v1958
        %v1960 = vand.u32 %v513, 4294901760
        %v1961 = vsub.f32 %v513, %v1960
        %1962 = vmatpush1.msra.mxu0 %v1961
        %v1963 = vand.u32 %v512, 4294901760
        %v1964 = vsub.f32 %v512, %v1963
        %1965 = vmatprep.subr.mxu0 %v1964
        %v1966 = vand.u32 %v511, 4294901760
        %v1967 = vsub.f32 %v511, %v1966
        %1968 = vmatpush1.msra.mxu0 %v1967
        %v1969 = vand.u32 %v510, 4294901760
        %v1970 = vsub.f32 %v510, %v1969
        %1971 = vmatprep.subr.mxu0 %v1970
        %v1972 = vand.u32 %v509, 4294901760
        %v1973 = vsub.f32 %v509, %v1972
        %1974 = vmatpush1.msra.mxu0 %v1973
        %v1975 = vand.u32 %v508, 4294901760
        %v1976 = vsub.f32 %v508, %v1975
        %1977 = vmatprep.subr.mxu0 %v1976
        %v1978 = vand.u32 %v507, 4294901760
        %v1979 = vsub.f32 %v507, %v1978
        %1980 = vmatpush1.msra.mxu0 %v1979
        %v1981 = vand.u32 %v506, 4294901760
        %v1982 = vsub.f32 %v506, %v1981
        %1983 = vmatprep.subr.mxu0 %v1982
        %v1984 = vand.u32 %v505, 4294901760
        %v1985 = vsub.f32 %v505, %v1984
        %1986 = vmatpush1.msra.mxu0 %v1985
        %v1987 = vand.u32 %v504, 4294901760
        %v1988 = vsub.f32 %v504, %v1987
        %1989 = vmatprep.subr.mxu0 %v1988
        %v1990 = vand.u32 %v503, 4294901760
        %v1991 = vsub.f32 %v503, %v1990
        %1992 = vmatpush1.msra.mxu0 %v1991
        %v1993 = vand.u32 %v502, 4294901760
        %v1994 = vsub.f32 %v502, %v1993
        %1995 = vmatprep.subr.mxu0 %v1994
        %v1996 = vand.u32 %v501, 4294901760
        %v1997 = vsub.f32 %v501, %v1996
        %1998 = vmatpush1.msra.mxu0 %v1997
        %v1999 = vand.u32 %v500, 4294901760
        %v2000 = vsub.f32 %v500, %v1999
        %2001 = vmatprep.subr.mxu0 %v2000
        %v2002 = vand.u32 %v499, 4294901760
        %v2003 = vsub.f32 %v499, %v2002
        %2004 = vmatpush1.msra.mxu0 %v2003
        %v2005 = vand.u32 %v562, 4294901760
        %v2006 = vsub.f32 %v562, %v2005
        %2007 = vmatprep.subr.mxu0 %v2006
        %v2008 = vand.u32 %v561, 4294901760
        %v2009 = vsub.f32 %v561, %v2008
        %2010 = vmatpush2.msra.mxu0 %v2009
        %v2011 = vand.u32 %v560, 4294901760
        %v2012 = vsub.f32 %v560, %v2011
        %2013 = vmatprep.subr.mxu0 %v2012
        %v2014 = vand.u32 %v559, 4294901760
        %v2015 = vsub.f32 %v559, %v2014
        %2016 = vmatpush2.msra.mxu0 %v2015
        %v2017 = vand.u32 %v558, 4294901760
        %v2018 = vsub.f32 %v558, %v2017
        %2019 = vmatprep.subr.mxu0 %v2018
        %v2020 = vand.u32 %v557, 4294901760
        %v2021 = vsub.f32 %v557, %v2020
        %2022 = vmatpush2.msra.mxu0 %v2021
        %v2023 = vand.u32 %v556, 4294901760
        %v2024 = vsub.f32 %v556, %v2023
        %2025 = vmatprep.subr.mxu0 %v2024
        %v2026 = vand.u32 %v555, 4294901760
        %v2027 = vsub.f32 %v555, %v2026
        %2028 = vmatpush2.msra.mxu0 %v2027
        %v2029 = vand.u32 %v554, 4294901760
        %v2030 = vsub.f32 %v554, %v2029
        %2031 = vmatprep.subr.mxu0 %v2030
        %v2032 = vand.u32 %v553, 4294901760
        %v2033 = vsub.f32 %v553, %v2032
        %2034 = vmatpush2.msra.mxu0 %v2033
        %v2035 = vand.u32 %v552, 4294901760
        %v2036 = vsub.f32 %v552, %v2035
        %2037 = vmatprep.subr.mxu0 %v2036
        %v2038 = vand.u32 %v551, 4294901760
        %v2039 = vsub.f32 %v551, %v2038
        %2040 = vmatpush2.msra.mxu0 %v2039
        %v2041 = vand.u32 %v550, 4294901760
        %v2042 = vsub.f32 %v550, %v2041
        %2043 = vmatprep.subr.mxu0 %v2042
        %v2044 = vand.u32 %v549, 4294901760
        %v2045 = vsub.f32 %v549, %v2044
        %2046 = vmatpush2.msra.mxu0 %v2045
        %v2047 = vand.u32 %v548, 4294901760
        %v2048 = vsub.f32 %v548, %v2047
        %2049 = vmatprep.subr.mxu0 %v2048
        %v2050 = vand.u32 %v547, 4294901760
        %v2051 = vsub.f32 %v547, %v2050
        %2052 = vmatpush2.msra.mxu0 %v2051
        %v2053 = vand.u32 %v546, 4294901760
        %v2054 = vsub.f32 %v546, %v2053
        %2055 = vmatprep.subr.mxu0 %v2054
        %v2056 = vand.u32 %v545, 4294901760
        %v2057 = vsub.f32 %v545, %v2056
        %2058 = vmatpush2.msra.mxu0 %v2057
        %v2059 = vand.u32 %v544, 4294901760
        %v2060 = vsub.f32 %v544, %v2059
        %2061 = vmatprep.subr.mxu0 %v2060
        %v2062 = vand.u32 %v543, 4294901760
        %v2063 = vsub.f32 %v543, %v2062
        %2064 = vmatpush2.msra.mxu0 %v2063
        %v2065 = vand.u32 %v542, 4294901760
        %v2066 = vsub.f32 %v542, %v2065
        %2067 = vmatprep.subr.mxu0 %v2066
        %v2068 = vand.u32 %v541, 4294901760
        %v2069 = vsub.f32 %v541, %v2068
        %2070 = vmatpush2.msra.mxu0 %v2069
        %v2071 = vand.u32 %v540, 4294901760
        %v2072 = vsub.f32 %v540, %v2071
        %2073 = vmatprep.subr.mxu0 %v2072
        %v2074 = vand.u32 %v539, 4294901760
        %v2075 = vsub.f32 %v539, %v2074
        %2076 = vmatpush2.msra.mxu0 %v2075
        %v2077 = vand.u32 %v538, 4294901760
        %v2078 = vsub.f32 %v538, %v2077
        %2079 = vmatprep.subr.mxu0 %v2078
        %v2080 = vand.u32 %v537, 4294901760
        %v2081 = vsub.f32 %v537, %v2080
        %2082 = vmatpush2.msra.mxu0 %v2081
        %v2083 = vand.u32 %v536, 4294901760
        %v2084 = vsub.f32 %v536, %v2083
        %2085 = vmatprep.subr.mxu0 %v2084
        %v2086 = vand.u32 %v535, 4294901760
        %v2087 = vsub.f32 %v535, %v2086
        %2088 = vmatpush2.msra.mxu0 %v2087
        %v2089 = vand.u32 %v534, 4294901760
        %v2090 = vsub.f32 %v534, %v2089
        %2091 = vmatprep.subr.mxu0 %v2090
        %v2092 = vand.u32 %v533, 4294901760
        %v2093 = vsub.f32 %v533, %v2092
        %2094 = vmatpush2.msra.mxu0 %v2093
        %v2095 = vand.u32 %v532, 4294901760
        %v2096 = vsub.f32 %v532, %v2095
        %2097 = vmatprep.subr.mxu0 %v2096
        %v2098 = vand.u32 %v531, 4294901760
        %v2099 = vsub.f32 %v531, %v2098
        %2100 = vmatpush2.msra.mxu0 %v2099
        %v2101 = vand.u32 %v372, 4294901760
        %v2102 = vsub.f32 %v372, %v2101
        %2103 = vmatprep.mubr.f32.mxu0 %v2102
        %v2104 = vand.u32 %v371, 4294901760
        %v2105 = vsub.f32 %v371, %v2104
        %2106 = vmatmul.mubr.f32.gmra.mxu0 %v2105
        %v2107 = vpop.f32.mrf.mxu0
        %v2108 = vadd.f32 %v1657, %v2107
        %v2109 = vpop.f32.mrf.mxu0
        %v2110 = vadd.f32 %v1659, %v2109
        %v2111 = vand.u32 %v376, 4294901760
        %v2112 = vsub.f32 %v376, %v2111
        %2113 = vmatprep.mubr.f32.mxu0 %v2112
        %v2114 = vand.u32 %v375, 4294901760
        %v2115 = vsub.f32 %v375, %v2114
        %2116 = vmatmul.mubr.f32.gmra.mxu0 %v2115
        %v2117 = vpop.f32.mrf.mxu0
        %v2118 = vadd.f32 %v1665, %v2117
        %v2119 = vpop.f32.mrf.mxu0
        %v2120 = vadd.f32 %v1667, %v2119
        %v2121 = vand.u32 %v380, 4294901760
        %v2122 = vsub.f32 %v380, %v2121
        %2123 = vmatprep.mubr.f32.mxu0 %v2122
        %v2124 = vand.u32 %v379, 4294901760
        %v2125 = vsub.f32 %v379, %v2124
        %2126 = vmatmul.mubr.f32.gmra.mxu0 %v2125
        %v2127 = vpop.f32.mrf.mxu0
        %v2128 = vadd.f32 %v1673, %v2127
        %v2129 = vpop.f32.mrf.mxu0
        %v2130 = vadd.f32 %v1675, %v2129
        %v2131 = vand.u32 %v384, 4294901760
        %v2132 = vsub.f32 %v384, %v2131
        %2133 = vmatprep.mubr.f32.mxu0 %v2132
        %v2134 = vand.u32 %v383, 4294901760
        %v2135 = vsub.f32 %v383, %v2134
        %2136 = vmatmul.mubr.f32.gmra.mxu0 %v2135
        %v2137 = vpop.f32.mrf.mxu0
        %v2138 = vadd.f32 %v1681, %v2137
        %v2139 = vpop.f32.mrf.mxu0
        %v2140 = vadd.f32 %v1683, %v2139
        %v2141 = vand.u32 %v388, 4294901760
        %v2142 = vsub.f32 %v388, %v2141
        %2143 = vmatprep.mubr.f32.mxu0 %v2142
        %v2144 = vand.u32 %v387, 4294901760
        %v2145 = vsub.f32 %v387, %v2144
        %2146 = vmatmul.mubr.f32.gmra.mxu0 %v2145
        %v2147 = vpop.f32.mrf.mxu0
        %v2148 = vadd.f32 %v1689, %v2147
        %v2149 = vpop.f32.mrf.mxu0
        %v2150 = vadd.f32 %v1691, %v2149
        %v2151 = vand.u32 %v392, 4294901760
        %v2152 = vsub.f32 %v392, %v2151
        %2153 = vmatprep.mubr.f32.mxu0 %v2152
        %v2154 = vand.u32 %v391, 4294901760
        %v2155 = vsub.f32 %v391, %v2154
        %2156 = vmatmul.mubr.f32.gmra.mxu0 %v2155
        %v2157 = vpop.f32.mrf.mxu0
        %v2158 = vadd.f32 %v1697, %v2157
        %v2159 = vpop.f32.mrf.mxu0
        %v2160 = vadd.f32 %v1699, %v2159
        %v2161 = vand.u32 %v396, 4294901760
        %v2162 = vsub.f32 %v396, %v2161
        %2163 = vmatprep.mubr.f32.mxu0 %v2162
        %v2164 = vand.u32 %v395, 4294901760
        %v2165 = vsub.f32 %v395, %v2164
        %2166 = vmatmul.mubr.f32.gmra.mxu0 %v2165
        %v2167 = vpop.f32.mrf.mxu0
        %v2168 = vadd.f32 %v1705, %v2167
        %v2169 = vpop.f32.mrf.mxu0
        %v2170 = vadd.f32 %v1707, %v2169
        %v2171 = vand.u32 %v400, 4294901760
        %v2172 = vsub.f32 %v400, %v2171
        %2173 = vmatprep.mubr.f32.mxu0 %v2172
        %v2174 = vand.u32 %v399, 4294901760
        %v2175 = vsub.f32 %v399, %v2174
        %2176 = vmatmul.mubr.f32.gmra.mxu0 %v2175
        %v2177 = vpop.f32.mrf.mxu0
        %v2178 = vadd.f32 %v1713, %v2177
        %v2179 = vpop.f32.mrf.mxu0
        %v2180 = vadd.f32 %v1715, %v2179
        %v2181 = vand.u32 %v404, 4294901760
        %v2182 = vsub.f32 %v404, %v2181
        %2183 = vmatprep.mubr.f32.mxu0 %v2182
        %v2184 = vand.u32 %v403, 4294901760
        %v2185 = vsub.f32 %v403, %v2184
        %2186 = vmatmul.mubr.f32.gmra.mxu0 %v2185
        %v2187 = vpop.f32.mrf.mxu0
        %v2188 = vadd.f32 %v1721, %v2187
        %v2189 = vpop.f32.mrf.mxu0
        %v2190 = vadd.f32 %v1723, %v2189
        %v2191 = vand.u32 %v408, 4294901760
        %v2192 = vsub.f32 %v408, %v2191
        %2193 = vmatprep.mubr.f32.mxu0 %v2192
        %v2194 = vand.u32 %v407, 4294901760
        %v2195 = vsub.f32 %v407, %v2194
        %2196 = vmatmul.mubr.f32.gmra.mxu0 %v2195
        %v2197 = vpop.f32.mrf.mxu0
        %v2198 = vadd.f32 %v1729, %v2197
        %v2199 = vpop.f32.mrf.mxu0
        %v2200 = vadd.f32 %v1731, %v2199
        %v2201 = vand.u32 %v412, 4294901760
        %v2202 = vsub.f32 %v412, %v2201
        %2203 = vmatprep.mubr.f32.mxu0 %v2202
        %v2204 = vand.u32 %v411, 4294901760
        %v2205 = vsub.f32 %v411, %v2204
        %2206 = vmatmul.mubr.f32.gmra.mxu0 %v2205
        %v2207 = vpop.f32.mrf.mxu0
        %v2208 = vadd.f32 %v1737, %v2207
        %v2209 = vpop.f32.mrf.mxu0
        %v2210 = vadd.f32 %v1739, %v2209
        %v2211 = vand.u32 %v416, 4294901760
        %v2212 = vsub.f32 %v416, %v2211
        %2213 = vmatprep.mubr.f32.mxu0 %v2212
        %v2214 = vand.u32 %v415, 4294901760
        %v2215 = vsub.f32 %v415, %v2214
        %2216 = vmatmul.mubr.f32.gmra.mxu0 %v2215
        %v2217 = vpop.f32.mrf.mxu0
        %v2218 = vadd.f32 %v1745, %v2217
        %v2219 = vpop.f32.mrf.mxu0
        %v2220 = vadd.f32 %v1747, %v2219
        %v2221 = vand.u32 %v420, 4294901760
        %v2222 = vsub.f32 %v420, %v2221
        %2223 = vmatprep.mubr.f32.mxu0 %v2222
        %v2224 = vand.u32 %v419, 4294901760
        %v2225 = vsub.f32 %v419, %v2224
        %2226 = vmatmul.mubr.f32.gmra.mxu0 %v2225
        %v2227 = vpop.f32.mrf.mxu0
        %v2228 = vadd.f32 %v1753, %v2227
        %v2229 = vpop.f32.mrf.mxu0
        %v2230 = vadd.f32 %v1755, %v2229
        %v2231 = vand.u32 %v424, 4294901760
        %v2232 = vsub.f32 %v424, %v2231
        %2233 = vmatprep.mubr.f32.mxu0 %v2232
        %v2234 = vand.u32 %v423, 4294901760
        %v2235 = vsub.f32 %v423, %v2234
        %2236 = vmatmul.mubr.f32.gmra.mxu0 %v2235
        %v2237 = vpop.f32.mrf.mxu0
        %v2238 = vadd.f32 %v1761, %v2237
        %v2239 = vpop.f32.mrf.mxu0
        %v2240 = vadd.f32 %v1763, %v2239
        %v2241 = vand.u32 %v428, 4294901760
        %v2242 = vsub.f32 %v428, %v2241
        %2243 = vmatprep.mubr.f32.mxu0 %v2242
        %v2244 = vand.u32 %v427, 4294901760
        %v2245 = vsub.f32 %v427, %v2244
        %2246 = vmatmul.mubr.f32.gmra.mxu0 %v2245
        %v2247 = vpop.f32.mrf.mxu0
        %v2248 = vadd.f32 %v1769, %v2247
        %v2249 = vpop.f32.mrf.mxu0
        %v2250 = vadd.f32 %v1771, %v2249
        %v2251 = vand.u32 %v432, 4294901760
        %v2252 = vsub.f32 %v432, %v2251
        %2253 = vmatprep.mubr.f32.mxu0 %v2252
        %v2254 = vand.u32 %v431, 4294901760
        %v2255 = vsub.f32 %v431, %v2254
        %2256 = vmatmul.mubr.f32.gmra.mxu0 %v2255
        %v2257 = vpop.f32.mrf.mxu0
        %v2258 = vadd.f32 %v1777, %v2257
        %v2259 = vpop.f32.mrf.mxu0
        %v2260 = vadd.f32 %v1779, %v2259
        %v2261 = vand.u32 %v436, 4294901760
        %v2262 = vsub.f32 %v436, %v2261
        %2263 = vmatprep.mubr.f32.mxu0 %v2262
        %v2264 = vand.u32 %v435, 4294901760
        %v2265 = vsub.f32 %v435, %v2264
        %2266 = vmatmul.mubr.f32.gmra.mxu0 %v2265
        %v2267 = vpop.f32.mrf.mxu0
        %v2268 = vadd.f32 %v1785, %v2267
        %v2269 = vpop.f32.mrf.mxu0
        %v2270 = vadd.f32 %v1787, %v2269
        %v2271 = vand.u32 %v440, 4294901760
        %v2272 = vsub.f32 %v440, %v2271
        %2273 = vmatprep.mubr.f32.mxu0 %v2272
        %v2274 = vand.u32 %v439, 4294901760
        %v2275 = vsub.f32 %v439, %v2274
        %2276 = vmatmul.mubr.f32.gmra.mxu0 %v2275
        %v2277 = vpop.f32.mrf.mxu0
        %v2278 = vadd.f32 %v1793, %v2277
        %v2279 = vpop.f32.mrf.mxu0
        %v2280 = vadd.f32 %v1795, %v2279
        %v2281 = vand.u32 %v444, 4294901760
        %v2282 = vsub.f32 %v444, %v2281
        %2283 = vmatprep.mubr.f32.mxu0 %v2282
        %v2284 = vand.u32 %v443, 4294901760
        %v2285 = vsub.f32 %v443, %v2284
        %2286 = vmatmul.mubr.f32.gmra.mxu0 %v2285
        %v2287 = vpop.f32.mrf.mxu0
        %v2288 = vadd.f32 %v1801, %v2287
        %v2289 = vpop.f32.mrf.mxu0
        %v2290 = vadd.f32 %v1803, %v2289
        %v2291 = vand.u32 %v448, 4294901760
        %v2292 = vsub.f32 %v448, %v2291
        %2293 = vmatprep.mubr.f32.mxu0 %v2292
        %v2294 = vand.u32 %v447, 4294901760
        %v2295 = vsub.f32 %v447, %v2294
        %2296 = vmatmul.mubr.f32.gmra.mxu0 %v2295
        %v2297 = vpop.f32.mrf.mxu0
        %v2298 = vadd.f32 %v1809, %v2297
        %v2299 = vpop.f32.mrf.mxu0
        %v2300 = vadd.f32 %v1811, %v2299
        %v2301 = vand.u32 %v452, 4294901760
        %v2302 = vsub.f32 %v452, %v2301
        %2303 = vmatprep.mubr.f32.mxu0 %v2302
        %v2304 = vand.u32 %v451, 4294901760
        %v2305 = vsub.f32 %v451, %v2304
        %2306 = vmatmul.mubr.f32.gmra.mxu0 %v2305
        %v2307 = vpop.f32.mrf.mxu0
        %v2308 = vadd.f32 %v1817, %v2307
        %v2309 = vpop.f32.mrf.mxu0
        %v2310 = vadd.f32 %v1819, %v2309
        %v2311 = vand.u32 %v456, 4294901760
        %v2312 = vsub.f32 %v456, %v2311
        %2313 = vmatprep.mubr.f32.mxu0 %v2312
        %v2314 = vand.u32 %v455, 4294901760
        %v2315 = vsub.f32 %v455, %v2314
        %2316 = vmatmul.mubr.f32.gmra.mxu0 %v2315
        %v2317 = vpop.f32.mrf.mxu0
        %v2318 = vadd.f32 %v1825, %v2317
        %v2319 = vpop.f32.mrf.mxu0
        %v2320 = vadd.f32 %v1827, %v2319
        %v2321 = vand.u32 %v460, 4294901760
        %v2322 = vsub.f32 %v460, %v2321
        %2323 = vmatprep.mubr.f32.mxu0 %v2322
        %v2324 = vand.u32 %v459, 4294901760
        %v2325 = vsub.f32 %v459, %v2324
        %2326 = vmatmul.mubr.f32.gmra.mxu0 %v2325
        %v2327 = vpop.f32.mrf.mxu0
        %v2328 = vadd.f32 %v1833, %v2327
        %v2329 = vpop.f32.mrf.mxu0
        %v2330 = vadd.f32 %v1835, %v2329
        %v2331 = vand.u32 %v464, 4294901760
        %v2332 = vsub.f32 %v464, %v2331
        %2333 = vmatprep.mubr.f32.mxu0 %v2332
        %v2334 = vand.u32 %v463, 4294901760
        %v2335 = vsub.f32 %v463, %v2334
        %2336 = vmatmul.mubr.f32.gmra.mxu0 %v2335
        %v2337 = vpop.f32.mrf.mxu0
        %v2338 = vadd.f32 %v1841, %v2337
        %v2339 = vpop.f32.mrf.mxu0
        %v2340 = vadd.f32 %v1843, %v2339
        %v2341 = vand.u32 %v468, 4294901760
        %v2342 = vsub.f32 %v468, %v2341
        %2343 = vmatprep.mubr.f32.mxu0 %v2342
        %v2344 = vand.u32 %v467, 4294901760
        %v2345 = vsub.f32 %v467, %v2344
        %2346 = vmatmul.mubr.f32.gmra.mxu0 %v2345
        %v2347 = vpop.f32.mrf.mxu0
        %v2348 = vadd.f32 %v1849, %v2347
        %v2349 = vpop.f32.mrf.mxu0
        %v2350 = vadd.f32 %v1851, %v2349
        %v2351 = vand.u32 %v472, 4294901760
        %v2352 = vsub.f32 %v472, %v2351
        %2353 = vmatprep.mubr.f32.mxu0 %v2352
        %v2354 = vand.u32 %v471, 4294901760
        %v2355 = vsub.f32 %v471, %v2354
        %2356 = vmatmul.mubr.f32.gmra.mxu0 %v2355
        %v2357 = vpop.f32.mrf.mxu0
        %v2358 = vadd.f32 %v1857, %v2357
        %v2359 = vpop.f32.mrf.mxu0
        %v2360 = vadd.f32 %v1859, %v2359
        %v2361 = vand.u32 %v476, 4294901760
        %v2362 = vsub.f32 %v476, %v2361
        %2363 = vmatprep.mubr.f32.mxu0 %v2362
        %v2364 = vand.u32 %v475, 4294901760
        %v2365 = vsub.f32 %v475, %v2364
        %2366 = vmatmul.mubr.f32.gmra.mxu0 %v2365
        %v2367 = vpop.f32.mrf.mxu0
        %v2368 = vadd.f32 %v1865, %v2367
        %v2369 = vpop.f32.mrf.mxu0
        %v2370 = vadd.f32 %v1867, %v2369
        %v2371 = vand.u32 %v480, 4294901760
        %v2372 = vsub.f32 %v480, %v2371
        %2373 = vmatprep.mubr.f32.mxu0 %v2372
        %v2374 = vand.u32 %v479, 4294901760
        %v2375 = vsub.f32 %v479, %v2374
        %2376 = vmatmul.mubr.f32.gmra.mxu0 %v2375
        %v2377 = vpop.f32.mrf.mxu0
        %v2378 = vadd.f32 %v1873, %v2377
        %v2379 = vpop.f32.mrf.mxu0
        %v2380 = vadd.f32 %v1875, %v2379
        %v2381 = vand.u32 %v484, 4294901760
        %v2382 = vsub.f32 %v484, %v2381
        %2383 = vmatprep.mubr.f32.mxu0 %v2382
        %v2384 = vand.u32 %v483, 4294901760
        %v2385 = vsub.f32 %v483, %v2384
        %2386 = vmatmul.mubr.f32.gmra.mxu0 %v2385
        %v2387 = vpop.f32.mrf.mxu0
        %v2388 = vadd.f32 %v1881, %v2387
        %v2389 = vpop.f32.mrf.mxu0
        %v2390 = vadd.f32 %v1883, %v2389
        %v2391 = vand.u32 %v488, 4294901760
        %v2392 = vsub.f32 %v488, %v2391
        %2393 = vmatprep.mubr.f32.mxu0 %v2392
        %v2394 = vand.u32 %v487, 4294901760
        %v2395 = vsub.f32 %v487, %v2394
        %2396 = vmatmul.mubr.f32.gmra.mxu0 %v2395
        %v2397 = vpop.f32.mrf.mxu0
        %v2398 = vadd.f32 %v1889, %v2397
        %v2399 = vpop.f32.mrf.mxu0
        %v2400 = vadd.f32 %v1891, %v2399
        %v2401 = vand.u32 %v492, 4294901760
        %v2402 = vsub.f32 %v492, %v2401
        %2403 = vmatprep.mubr.f32.mxu0 %v2402
        %v2404 = vand.u32 %v491, 4294901760
        %v2405 = vsub.f32 %v491, %v2404
        %2406 = vmatmul.mubr.f32.gmra.mxu0 %v2405
        %v2407 = vpop.f32.mrf.mxu0
        %v2408 = vadd.f32 %v1897, %v2407
        %v2409 = vpop.f32.mrf.mxu0
        %v2410 = vadd.f32 %v1899, %v2409
        %v2411 = vand.u32 %v496, 4294901760
        %v2412 = vsub.f32 %v496, %v2411
        %2413 = vmatprep.mubr.f32.mxu0 %v2412
        %v2414 = vand.u32 %v495, 4294901760
        %v2415 = vsub.f32 %v495, %v2414
        %2416 = vmatmul.mubr.f32.gmra.mxu0 %v2415
        %v2417 = vpop.f32.mrf.mxu0
        %v2418 = vadd.f32 %v1905, %v2417
        %v2419 = vpop.f32.mrf.mxu0
        %v2420 = vadd.f32 %v1907, %v2419
        %2421 = vdwg.mxu0
        %v2422 = vand.u32 %v530, 4294901760
        %2423 = vmatprep.subr.mxu0 %v2422
        %v2424 = vand.u32 %v529, 4294901760
        %2425 = vmatpush1.msra.mxu0 %v2424
        %v2426 = vand.u32 %v528, 4294901760
        %2427 = vmatprep.subr.mxu0 %v2426
        %v2428 = vand.u32 %v527, 4294901760
        %2429 = vmatpush1.msra.mxu0 %v2428
        %v2430 = vand.u32 %v526, 4294901760
        %2431 = vmatprep.subr.mxu0 %v2430
        %v2432 = vand.u32 %v525, 4294901760
        %2433 = vmatpush1.msra.mxu0 %v2432
        %v2434 = vand.u32 %v524, 4294901760
        %2435 = vmatprep.subr.mxu0 %v2434
        %v2436 = vand.u32 %v523, 4294901760
        %2437 = vmatpush1.msra.mxu0 %v2436
        %v2438 = vand.u32 %v522, 4294901760
        %2439 = vmatprep.subr.mxu0 %v2438
        %v2440 = vand.u32 %v521, 4294901760
        %2441 = vmatpush1.msra.mxu0 %v2440
        %v2442 = vand.u32 %v520, 4294901760
        %2443 = vmatprep.subr.mxu0 %v2442
        %v2444 = vand.u32 %v519, 4294901760
        %2445 = vmatpush1.msra.mxu0 %v2444
        %v2446 = vand.u32 %v518, 4294901760
        %2447 = vmatprep.subr.mxu0 %v2446
        %v2448 = vand.u32 %v517, 4294901760
        %2449 = vmatpush1.msra.mxu0 %v2448
        %v2450 = vand.u32 %v516, 4294901760
        %2451 = vmatprep.subr.mxu0 %v2450
        %v2452 = vand.u32 %v515, 4294901760
        %2453 = vmatpush1.msra.mxu0 %v2452
        %v2454 = vand.u32 %v514, 4294901760
        %2455 = vmatprep.subr.mxu0 %v2454
        %v2456 = vand.u32 %v513, 4294901760
        %2457 = vmatpush1.msra.mxu0 %v2456
        %v2458 = vand.u32 %v512, 4294901760
        %2459 = vmatprep.subr.mxu0 %v2458
        %v2460 = vand.u32 %v511, 4294901760
        %2461 = vmatpush1.msra.mxu0 %v2460
        %v2462 = vand.u32 %v510, 4294901760
        %2463 = vmatprep.subr.mxu0 %v2462
        %v2464 = vand.u32 %v509, 4294901760
        %2465 = vmatpush1.msra.mxu0 %v2464
        %v2466 = vand.u32 %v508, 4294901760
        %2467 = vmatprep.subr.mxu0 %v2466
        %v2468 = vand.u32 %v507, 4294901760
        %2469 = vmatpush1.msra.mxu0 %v2468
        %v2470 = vand.u32 %v506, 4294901760
        %2471 = vmatprep.subr.mxu0 %v2470
        %v2472 = vand.u32 %v505, 4294901760
        %2473 = vmatpush1.msra.mxu0 %v2472
        %v2474 = vand.u32 %v504, 4294901760
        %2475 = vmatprep.subr.mxu0 %v2474
        %v2476 = vand.u32 %v503, 4294901760
        %2477 = vmatpush1.msra.mxu0 %v2476
        %v2478 = vand.u32 %v502, 4294901760
        %2479 = vmatprep.subr.mxu0 %v2478
        %v2480 = vand.u32 %v501, 4294901760
        %2481 = vmatpush1.msra.mxu0 %v2480
        %v2482 = vand.u32 %v500, 4294901760
        %2483 = vmatprep.subr.mxu0 %v2482
        %v2484 = vand.u32 %v499, 4294901760
        %2485 = vmatpush1.msra.mxu0 %v2484
        %v2486 = vand.u32 %v562, 4294901760
        %2487 = vmatprep.subr.mxu0 %v2486
        %v2488 = vand.u32 %v561, 4294901760
        %2489 = vmatpush2.msra.mxu0 %v2488
        %v2490 = vand.u32 %v560, 4294901760
        %2491 = vmatprep.subr.mxu0 %v2490
        %v2492 = vand.u32 %v559, 4294901760
        %2493 = vmatpush2.msra.mxu0 %v2492
        %v2494 = vand.u32 %v558, 4294901760
        %2495 = vmatprep.subr.mxu0 %v2494
        %v2496 = vand.u32 %v557, 4294901760
        %2497 = vmatpush2.msra.mxu0 %v2496
        %v2498 = vand.u32 %v556, 4294901760
        %2499 = vmatprep.subr.mxu0 %v2498
        %v2500 = vand.u32 %v555, 4294901760
        %2501 = vmatpush2.msra.mxu0 %v2500
        %v2502 = vand.u32 %v554, 4294901760
        %2503 = vmatprep.subr.mxu0 %v2502
        %v2504 = vand.u32 %v553, 4294901760
        %2505 = vmatpush2.msra.mxu0 %v2504
        %v2506 = vand.u32 %v552, 4294901760
        %2507 = vmatprep.subr.mxu0 %v2506
        %v2508 = vand.u32 %v551, 4294901760
        %2509 = vmatpush2.msra.mxu0 %v2508
        %v2510 = vand.u32 %v550, 4294901760
        %2511 = vmatprep.subr.mxu0 %v2510
        %v2512 = vand.u32 %v549, 4294901760
        %2513 = vmatpush2.msra.mxu0 %v2512
        %v2514 = vand.u32 %v548, 4294901760
        %2515 = vmatprep.subr.mxu0 %v2514
        %v2516 = vand.u32 %v547, 4294901760
        %2517 = vmatpush2.msra.mxu0 %v2516
        %v2518 = vand.u32 %v546, 4294901760
        %2519 = vmatprep.subr.mxu0 %v2518
        %v2520 = vand.u32 %v545, 4294901760
        %2521 = vmatpush2.msra.mxu0 %v2520
        %v2522 = vand.u32 %v544, 4294901760
        %2523 = vmatprep.subr.mxu0 %v2522
        %v2524 = vand.u32 %v543, 4294901760
        %2525 = vmatpush2.msra.mxu0 %v2524
        %v2526 = vand.u32 %v542, 4294901760
        %2527 = vmatprep.subr.mxu0 %v2526
        %v2528 = vand.u32 %v541, 4294901760
        %2529 = vmatpush2.msra.mxu0 %v2528
        %v2530 = vand.u32 %v540, 4294901760
        %2531 = vmatprep.subr.mxu0 %v2530
        %v2532 = vand.u32 %v539, 4294901760
        %2533 = vmatpush2.msra.mxu0 %v2532
        %v2534 = vand.u32 %v538, 4294901760
        %2535 = vmatprep.subr.mxu0 %v2534
        %v2536 = vand.u32 %v537, 4294901760
        %2537 = vmatpush2.msra.mxu0 %v2536
        %v2538 = vand.u32 %v536, 4294901760
        %2539 = vmatprep.subr.mxu0 %v2538
        %v2540 = vand.u32 %v535, 4294901760
        %2541 = vmatpush2.msra.mxu0 %v2540
        %v2542 = vand.u32 %v534, 4294901760
        %2543 = vmatprep.subr.mxu0 %v2542
        %v2544 = vand.u32 %v533, 4294901760
        %2545 = vmatpush2.msra.mxu0 %v2544
        %v2546 = vand.u32 %v532, 4294901760
        %2547 = vmatprep.subr.mxu0 %v2546
        %v2548 = vand.u32 %v531, 4294901760
        %2549 = vmatpush2.msra.mxu0 %v2548
        %v2550 = vand.u32 %v372, 4294901760
        %v2551 = vsub.f32 %v372, %v2550
        %v2552 = vand.u32 %v2551, 4294901760
        %2553 = vmatprep.mubr.f32.mxu0 %v2552
        %v2554 = vand.u32 %v371, 4294901760
        %v2555 = vsub.f32 %v371, %v2554
        %v2556 = vand.u32 %v2555, 4294901760
        %2557 = vmatmul.mubr.f32.gmra.mxu0 %v2556
        %v2558 = vpop.f32.mrf.mxu0
        %v2559 = vadd.f32 %v2108, %v2558
        %v2560 = vpop.f32.mrf.mxu0
        %v2561 = vadd.f32 %v2110, %v2560
        %v2562 = vand.u32 %v376, 4294901760
        %v2563 = vsub.f32 %v376, %v2562
        %v2564 = vand.u32 %v2563, 4294901760
        %2565 = vmatprep.mubr.f32.mxu0 %v2564
        %v2566 = vand.u32 %v375, 4294901760
        %v2567 = vsub.f32 %v375, %v2566
        %v2568 = vand.u32 %v2567, 4294901760
        %2569 = vmatmul.mubr.f32.gmra.mxu0 %v2568
        %v2570 = vpop.f32.mrf.mxu0
        %v2571 = vadd.f32 %v2118, %v2570
        %v2572 = vpop.f32.mrf.mxu0
        %v2573 = vadd.f32 %v2120, %v2572
        %v2574 = vand.u32 %v380, 4294901760
        %v2575 = vsub.f32 %v380, %v2574
        %v2576 = vand.u32 %v2575, 4294901760
        %2577 = vmatprep.mubr.f32.mxu0 %v2576
        %v2578 = vand.u32 %v379, 4294901760
        %v2579 = vsub.f32 %v379, %v2578
        %v2580 = vand.u32 %v2579, 4294901760
        %2581 = vmatmul.mubr.f32.gmra.mxu0 %v2580
        %v2582 = vpop.f32.mrf.mxu0
        %v2583 = vadd.f32 %v2128, %v2582
        %v2584 = vpop.f32.mrf.mxu0
        %v2585 = vadd.f32 %v2130, %v2584
        %v2586 = vand.u32 %v384, 4294901760
        %v2587 = vsub.f32 %v384, %v2586
        %v2588 = vand.u32 %v2587, 4294901760
        %2589 = vmatprep.mubr.f32.mxu0 %v2588
        %v2590 = vand.u32 %v383, 4294901760
        %v2591 = vsub.f32 %v383, %v2590
        %v2592 = vand.u32 %v2591, 4294901760
        %2593 = vmatmul.mubr.f32.gmra.mxu0 %v2592
        %v2594 = vpop.f32.mrf.mxu0
        %v2595 = vadd.f32 %v2138, %v2594
        %v2596 = vpop.f32.mrf.mxu0
        %v2597 = vadd.f32 %v2140, %v2596
        %v2598 = vand.u32 %v388, 4294901760
        %v2599 = vsub.f32 %v388, %v2598
        %v2600 = vand.u32 %v2599, 4294901760
        %2601 = vmatprep.mubr.f32.mxu0 %v2600
        %v2602 = vand.u32 %v387, 4294901760
        %v2603 = vsub.f32 %v387, %v2602
        %v2604 = vand.u32 %v2603, 4294901760
        %2605 = vmatmul.mubr.f32.gmra.mxu0 %v2604
        %v2606 = vpop.f32.mrf.mxu0
        %v2607 = vadd.f32 %v2148, %v2606
        %v2608 = vpop.f32.mrf.mxu0
        %v2609 = vadd.f32 %v2150, %v2608
        %v2610 = vand.u32 %v392, 4294901760
        %v2611 = vsub.f32 %v392, %v2610
        %v2612 = vand.u32 %v2611, 4294901760
        %2613 = vmatprep.mubr.f32.mxu0 %v2612
        %v2614 = vand.u32 %v391, 4294901760
        %v2615 = vsub.f32 %v391, %v2614
        %v2616 = vand.u32 %v2615, 4294901760
        %2617 = vmatmul.mubr.f32.gmra.mxu0 %v2616
        %v2618 = vpop.f32.mrf.mxu0
        %v2619 = vadd.f32 %v2158, %v2618
        %v2620 = vpop.f32.mrf.mxu0
        %v2621 = vadd.f32 %v2160, %v2620
        %v2622 = vand.u32 %v396, 4294901760
        %v2623 = vsub.f32 %v396, %v2622
        %v2624 = vand.u32 %v2623, 4294901760
        %2625 = vmatprep.mubr.f32.mxu0 %v2624
        %v2626 = vand.u32 %v395, 4294901760
        %v2627 = vsub.f32 %v395, %v2626
        %v2628 = vand.u32 %v2627, 4294901760
        %2629 = vmatmul.mubr.f32.gmra.mxu0 %v2628
        %v2630 = vpop.f32.mrf.mxu0
        %v2631 = vadd.f32 %v2168, %v2630
        %v2632 = vpop.f32.mrf.mxu0
        %v2633 = vadd.f32 %v2170, %v2632
        %v2634 = vand.u32 %v400, 4294901760
        %v2635 = vsub.f32 %v400, %v2634
        %v2636 = vand.u32 %v2635, 4294901760
        %2637 = vmatprep.mubr.f32.mxu0 %v2636
        %v2638 = vand.u32 %v399, 4294901760
        %v2639 = vsub.f32 %v399, %v2638
        %v2640 = vand.u32 %v2639, 4294901760
        %2641 = vmatmul.mubr.f32.gmra.mxu0 %v2640
        %v2642 = vpop.f32.mrf.mxu0
        %v2643 = vadd.f32 %v2178, %v2642
        %v2644 = vpop.f32.mrf.mxu0
        %v2645 = vadd.f32 %v2180, %v2644
        %v2646 = vand.u32 %v404, 4294901760
        %v2647 = vsub.f32 %v404, %v2646
        %v2648 = vand.u32 %v2647, 4294901760
        %2649 = vmatprep.mubr.f32.mxu0 %v2648
        %v2650 = vand.u32 %v403, 4294901760
        %v2651 = vsub.f32 %v403, %v2650
        %v2652 = vand.u32 %v2651, 4294901760
        %2653 = vmatmul.mubr.f32.gmra.mxu0 %v2652
        %v2654 = vpop.f32.mrf.mxu0
        %v2655 = vadd.f32 %v2188, %v2654
        %v2656 = vpop.f32.mrf.mxu0
        %v2657 = vadd.f32 %v2190, %v2656
        %v2658 = vand.u32 %v408, 4294901760
        %v2659 = vsub.f32 %v408, %v2658
        %v2660 = vand.u32 %v2659, 4294901760
        %2661 = vmatprep.mubr.f32.mxu0 %v2660
        %v2662 = vand.u32 %v407, 4294901760
        %v2663 = vsub.f32 %v407, %v2662
        %v2664 = vand.u32 %v2663, 4294901760
        %2665 = vmatmul.mubr.f32.gmra.mxu0 %v2664
        %v2666 = vpop.f32.mrf.mxu0
        %v2667 = vadd.f32 %v2198, %v2666
        %v2668 = vpop.f32.mrf.mxu0
        %v2669 = vadd.f32 %v2200, %v2668
        %v2670 = vand.u32 %v412, 4294901760
        %v2671 = vsub.f32 %v412, %v2670
        %v2672 = vand.u32 %v2671, 4294901760
        %2673 = vmatprep.mubr.f32.mxu0 %v2672
        %v2674 = vand.u32 %v411, 4294901760
        %v2675 = vsub.f32 %v411, %v2674
        %v2676 = vand.u32 %v2675, 4294901760
        %2677 = vmatmul.mubr.f32.gmra.mxu0 %v2676
        %v2678 = vpop.f32.mrf.mxu0
        %v2679 = vadd.f32 %v2208, %v2678
        %v2680 = vpop.f32.mrf.mxu0
        %v2681 = vadd.f32 %v2210, %v2680
        %v2682 = vand.u32 %v416, 4294901760
        %v2683 = vsub.f32 %v416, %v2682
        %v2684 = vand.u32 %v2683, 4294901760
        %2685 = vmatprep.mubr.f32.mxu0 %v2684
        %v2686 = vand.u32 %v415, 4294901760
        %v2687 = vsub.f32 %v415, %v2686
        %v2688 = vand.u32 %v2687, 4294901760
        %2689 = vmatmul.mubr.f32.gmra.mxu0 %v2688
        %v2690 = vpop.f32.mrf.mxu0
        %v2691 = vadd.f32 %v2218, %v2690
        %v2692 = vpop.f32.mrf.mxu0
        %v2693 = vadd.f32 %v2220, %v2692
        %v2694 = vand.u32 %v420, 4294901760
        %v2695 = vsub.f32 %v420, %v2694
        %v2696 = vand.u32 %v2695, 4294901760
        %2697 = vmatprep.mubr.f32.mxu0 %v2696
        %v2698 = vand.u32 %v419, 4294901760
        %v2699 = vsub.f32 %v419, %v2698
        %v2700 = vand.u32 %v2699, 4294901760
        %2701 = vmatmul.mubr.f32.gmra.mxu0 %v2700
        %v2702 = vpop.f32.mrf.mxu0
        %v2703 = vadd.f32 %v2228, %v2702
        %v2704 = vpop.f32.mrf.mxu0
        %v2705 = vadd.f32 %v2230, %v2704
        %v2706 = vand.u32 %v424, 4294901760
        %v2707 = vsub.f32 %v424, %v2706
        %v2708 = vand.u32 %v2707, 4294901760
        %2709 = vmatprep.mubr.f32.mxu0 %v2708
        %v2710 = vand.u32 %v423, 4294901760
        %v2711 = vsub.f32 %v423, %v2710
        %v2712 = vand.u32 %v2711, 4294901760
        %2713 = vmatmul.mubr.f32.gmra.mxu0 %v2712
        %v2714 = vpop.f32.mrf.mxu0
        %v2715 = vadd.f32 %v2238, %v2714
        %v2716 = vpop.f32.mrf.mxu0
        %v2717 = vadd.f32 %v2240, %v2716
        %v2718 = vand.u32 %v428, 4294901760
        %v2719 = vsub.f32 %v428, %v2718
        %v2720 = vand.u32 %v2719, 4294901760
        %2721 = vmatprep.mubr.f32.mxu0 %v2720
        %v2722 = vand.u32 %v427, 4294901760
        %v2723 = vsub.f32 %v427, %v2722
        %v2724 = vand.u32 %v2723, 4294901760
        %2725 = vmatmul.mubr.f32.gmra.mxu0 %v2724
        %v2726 = vpop.f32.mrf.mxu0
        %v2727 = vadd.f32 %v2248, %v2726
        %v2728 = vpop.f32.mrf.mxu0
        %v2729 = vadd.f32 %v2250, %v2728
        %v2730 = vand.u32 %v432, 4294901760
        %v2731 = vsub.f32 %v432, %v2730
        %v2732 = vand.u32 %v2731, 4294901760
        %2733 = vmatprep.mubr.f32.mxu0 %v2732
        %v2734 = vand.u32 %v431, 4294901760
        %v2735 = vsub.f32 %v431, %v2734
        %v2736 = vand.u32 %v2735, 4294901760
        %2737 = vmatmul.mubr.f32.gmra.mxu0 %v2736
        %v2738 = vpop.f32.mrf.mxu0
        %v2739 = vadd.f32 %v2258, %v2738
        %v2740 = vpop.f32.mrf.mxu0
        %v2741 = vadd.f32 %v2260, %v2740
        %v2742 = vand.u32 %v436, 4294901760
        %v2743 = vsub.f32 %v436, %v2742
        %v2744 = vand.u32 %v2743, 4294901760
        %2745 = vmatprep.mubr.f32.mxu0 %v2744
        %v2746 = vand.u32 %v435, 4294901760
        %v2747 = vsub.f32 %v435, %v2746
        %v2748 = vand.u32 %v2747, 4294901760
        %2749 = vmatmul.mubr.f32.gmra.mxu0 %v2748
        %v2750 = vpop.f32.mrf.mxu0
        %v2751 = vadd.f32 %v2268, %v2750
        %v2752 = vpop.f32.mrf.mxu0
        %v2753 = vadd.f32 %v2270, %v2752
        %v2754 = vand.u32 %v440, 4294901760
        %v2755 = vsub.f32 %v440, %v2754
        %v2756 = vand.u32 %v2755, 4294901760
        %2757 = vmatprep.mubr.f32.mxu0 %v2756
        %v2758 = vand.u32 %v439, 4294901760
        %v2759 = vsub.f32 %v439, %v2758
        %v2760 = vand.u32 %v2759, 4294901760
        %2761 = vmatmul.mubr.f32.gmra.mxu0 %v2760
        %v2762 = vpop.f32.mrf.mxu0
        %v2763 = vadd.f32 %v2278, %v2762
        %v2764 = vpop.f32.mrf.mxu0
        %v2765 = vadd.f32 %v2280, %v2764
        %v2766 = vand.u32 %v444, 4294901760
        %v2767 = vsub.f32 %v444, %v2766
        %v2768 = vand.u32 %v2767, 4294901760
        %2769 = vmatprep.mubr.f32.mxu0 %v2768
        %v2770 = vand.u32 %v443, 4294901760
        %v2771 = vsub.f32 %v443, %v2770
        %v2772 = vand.u32 %v2771, 4294901760
        %2773 = vmatmul.mubr.f32.gmra.mxu0 %v2772
        %v2774 = vpop.f32.mrf.mxu0
        %v2775 = vadd.f32 %v2288, %v2774
        %v2776 = vpop.f32.mrf.mxu0
        %v2777 = vadd.f32 %v2290, %v2776
        %v2778 = vand.u32 %v448, 4294901760
        %v2779 = vsub.f32 %v448, %v2778
        %v2780 = vand.u32 %v2779, 4294901760
        %2781 = vmatprep.mubr.f32.mxu0 %v2780
        %v2782 = vand.u32 %v447, 4294901760
        %v2783 = vsub.f32 %v447, %v2782
        %v2784 = vand.u32 %v2783, 4294901760
        %2785 = vmatmul.mubr.f32.gmra.mxu0 %v2784
        %v2786 = vpop.f32.mrf.mxu0
        %v2787 = vadd.f32 %v2298, %v2786
        %v2788 = vpop.f32.mrf.mxu0
        %v2789 = vadd.f32 %v2300, %v2788
        %v2790 = vand.u32 %v452, 4294901760
        %v2791 = vsub.f32 %v452, %v2790
        %v2792 = vand.u32 %v2791, 4294901760
        %2793 = vmatprep.mubr.f32.mxu0 %v2792
        %v2794 = vand.u32 %v451, 4294901760
        %v2795 = vsub.f32 %v451, %v2794
        %v2796 = vand.u32 %v2795, 4294901760
        %2797 = vmatmul.mubr.f32.gmra.mxu0 %v2796
        %v2798 = vpop.f32.mrf.mxu0
        %v2799 = vadd.f32 %v2308, %v2798
        %v2800 = vpop.f32.mrf.mxu0
        %v2801 = vadd.f32 %v2310, %v2800
        %v2802 = vand.u32 %v456, 4294901760
        %v2803 = vsub.f32 %v456, %v2802
        %v2804 = vand.u32 %v2803, 4294901760
        %2805 = vmatprep.mubr.f32.mxu0 %v2804
        %v2806 = vand.u32 %v455, 4294901760
        %v2807 = vsub.f32 %v455, %v2806
        %v2808 = vand.u32 %v2807, 4294901760
        %2809 = vmatmul.mubr.f32.gmra.mxu0 %v2808
        %v2810 = vpop.f32.mrf.mxu0
        %v2811 = vadd.f32 %v2318, %v2810
        %v2812 = vpop.f32.mrf.mxu0
        %v2813 = vadd.f32 %v2320, %v2812
        %v2814 = vand.u32 %v460, 4294901760
        %v2815 = vsub.f32 %v460, %v2814
        %v2816 = vand.u32 %v2815, 4294901760
        %2817 = vmatprep.mubr.f32.mxu0 %v2816
        %v2818 = vand.u32 %v459, 4294901760
        %v2819 = vsub.f32 %v459, %v2818
        %v2820 = vand.u32 %v2819, 4294901760
        %2821 = vmatmul.mubr.f32.gmra.mxu0 %v2820
        %v2822 = vpop.f32.mrf.mxu0
        %v2823 = vadd.f32 %v2328, %v2822
        %v2824 = vpop.f32.mrf.mxu0
        %v2825 = vadd.f32 %v2330, %v2824
        %v2826 = vand.u32 %v464, 4294901760
        %v2827 = vsub.f32 %v464, %v2826
        %v2828 = vand.u32 %v2827, 4294901760
        %2829 = vmatprep.mubr.f32.mxu0 %v2828
        %v2830 = vand.u32 %v463, 4294901760
        %v2831 = vsub.f32 %v463, %v2830
        %v2832 = vand.u32 %v2831, 4294901760
        %2833 = vmatmul.mubr.f32.gmra.mxu0 %v2832
        %v2834 = vpop.f32.mrf.mxu0
        %v2835 = vadd.f32 %v2338, %v2834
        %v2836 = vpop.f32.mrf.mxu0
        %v2837 = vadd.f32 %v2340, %v2836
        %v2838 = vand.u32 %v468, 4294901760
        %v2839 = vsub.f32 %v468, %v2838
        %v2840 = vand.u32 %v2839, 4294901760
        %2841 = vmatprep.mubr.f32.mxu0 %v2840
        %v2842 = vand.u32 %v467, 4294901760
        %v2843 = vsub.f32 %v467, %v2842
        %v2844 = vand.u32 %v2843, 4294901760
        %2845 = vmatmul.mubr.f32.gmra.mxu0 %v2844
        %v2846 = vpop.f32.mrf.mxu0
        %v2847 = vadd.f32 %v2348, %v2846
        %v2848 = vpop.f32.mrf.mxu0
        %v2849 = vadd.f32 %v2350, %v2848
        %v2850 = vand.u32 %v472, 4294901760
        %v2851 = vsub.f32 %v472, %v2850
        %v2852 = vand.u32 %v2851, 4294901760
        %2853 = vmatprep.mubr.f32.mxu0 %v2852
        %v2854 = vand.u32 %v471, 4294901760
        %v2855 = vsub.f32 %v471, %v2854
        %v2856 = vand.u32 %v2855, 4294901760
        %2857 = vmatmul.mubr.f32.gmra.mxu0 %v2856
        %v2858 = vpop.f32.mrf.mxu0
        %v2859 = vadd.f32 %v2358, %v2858
        %v2860 = vpop.f32.mrf.mxu0
        %v2861 = vadd.f32 %v2360, %v2860
        %v2862 = vand.u32 %v476, 4294901760
        %v2863 = vsub.f32 %v476, %v2862
        %v2864 = vand.u32 %v2863, 4294901760
        %2865 = vmatprep.mubr.f32.mxu0 %v2864
        %v2866 = vand.u32 %v475, 4294901760
        %v2867 = vsub.f32 %v475, %v2866
        %v2868 = vand.u32 %v2867, 4294901760
        %2869 = vmatmul.mubr.f32.gmra.mxu0 %v2868
        %v2870 = vpop.f32.mrf.mxu0
        %v2871 = vadd.f32 %v2368, %v2870
        %v2872 = vpop.f32.mrf.mxu0
        %v2873 = vadd.f32 %v2370, %v2872
        %v2874 = vand.u32 %v480, 4294901760
        %v2875 = vsub.f32 %v480, %v2874
        %v2876 = vand.u32 %v2875, 4294901760
        %2877 = vmatprep.mubr.f32.mxu0 %v2876
        %v2878 = vand.u32 %v479, 4294901760
        %v2879 = vsub.f32 %v479, %v2878
        %v2880 = vand.u32 %v2879, 4294901760
        %2881 = vmatmul.mubr.f32.gmra.mxu0 %v2880
        %v2882 = vpop.f32.mrf.mxu0
        %v2883 = vadd.f32 %v2378, %v2882
        %v2884 = vpop.f32.mrf.mxu0
        %v2885 = vadd.f32 %v2380, %v2884
        %v2886 = vand.u32 %v484, 4294901760
        %v2887 = vsub.f32 %v484, %v2886
        %v2888 = vand.u32 %v2887, 4294901760
        %2889 = vmatprep.mubr.f32.mxu0 %v2888
        %v2890 = vand.u32 %v483, 4294901760
        %v2891 = vsub.f32 %v483, %v2890
        %v2892 = vand.u32 %v2891, 4294901760
        %2893 = vmatmul.mubr.f32.gmra.mxu0 %v2892
        %v2894 = vpop.f32.mrf.mxu0
        %v2895 = vadd.f32 %v2388, %v2894
        %v2896 = vpop.f32.mrf.mxu0
        %v2897 = vadd.f32 %v2390, %v2896
        %v2898 = vand.u32 %v488, 4294901760
        %v2899 = vsub.f32 %v488, %v2898
        %v2900 = vand.u32 %v2899, 4294901760
        %2901 = vmatprep.mubr.f32.mxu0 %v2900
        %v2902 = vand.u32 %v487, 4294901760
        %v2903 = vsub.f32 %v487, %v2902
        %v2904 = vand.u32 %v2903, 4294901760
        %2905 = vmatmul.mubr.f32.gmra.mxu0 %v2904
        %v2906 = vpop.f32.mrf.mxu0
        %v2907 = vadd.f32 %v2398, %v2906
        %v2908 = vpop.f32.mrf.mxu0
        %v2909 = vadd.f32 %v2400, %v2908
        %v2910 = vand.u32 %v492, 4294901760
        %v2911 = vsub.f32 %v492, %v2910
        %v2912 = vand.u32 %v2911, 4294901760
        %2913 = vmatprep.mubr.f32.mxu0 %v2912
        %v2914 = vand.u32 %v491, 4294901760
        %v2915 = vsub.f32 %v491, %v2914
        %v2916 = vand.u32 %v2915, 4294901760
        %2917 = vmatmul.mubr.f32.gmra.mxu0 %v2916
        %v2918 = vpop.f32.mrf.mxu0
        %v2919 = vadd.f32 %v2408, %v2918
        %v2920 = vpop.f32.mrf.mxu0
        %v2921 = vadd.f32 %v2410, %v2920
        %v2922 = vand.u32 %v496, 4294901760
        %v2923 = vsub.f32 %v496, %v2922
        %v2924 = vand.u32 %v2923, 4294901760
        %2925 = vmatprep.mubr.f32.mxu0 %v2924
        %v2926 = vand.u32 %v495, 4294901760
        %v2927 = vsub.f32 %v495, %v2926
        %v2928 = vand.u32 %v2927, 4294901760
        %2929 = vmatmul.mubr.f32.gmra.mxu0 %v2928
        %v2930 = vpop.f32.mrf.mxu0
        %v2931 = vadd.f32 %v2418, %v2930
        %v2932 = vpop.f32.mrf.mxu0
        %v2933 = vadd.f32 %v2420, %v2932
        %2934 = vdwg.mxu0
        %v2935 = vand.u32 %v530, 4294901760
        %v2936 = vsub.f32 %v530, %v2935
        %v2937 = vand.u32 %v2936, 4294901760
        %2938 = vmatprep.subr.mxu0 %v2937
        %v2939 = vand.u32 %v529, 4294901760
        %v2940 = vsub.f32 %v529, %v2939
        %v2941 = vand.u32 %v2940, 4294901760
        %2942 = vmatpush1.msra.mxu0 %v2941
        %v2943 = vand.u32 %v528, 4294901760
        %v2944 = vsub.f32 %v528, %v2943
        %v2945 = vand.u32 %v2944, 4294901760
        %2946 = vmatprep.subr.mxu0 %v2945
        %v2947 = vand.u32 %v527, 4294901760
        %v2948 = vsub.f32 %v527, %v2947
        %v2949 = vand.u32 %v2948, 4294901760
        %2950 = vmatpush1.msra.mxu0 %v2949
        %v2951 = vand.u32 %v526, 4294901760
        %v2952 = vsub.f32 %v526, %v2951
        %v2953 = vand.u32 %v2952, 4294901760
        %2954 = vmatprep.subr.mxu0 %v2953
        %v2955 = vand.u32 %v525, 4294901760
        %v2956 = vsub.f32 %v525, %v2955
        %v2957 = vand.u32 %v2956, 4294901760
        %2958 = vmatpush1.msra.mxu0 %v2957
        %v2959 = vand.u32 %v524, 4294901760
        %v2960 = vsub.f32 %v524, %v2959
        %v2961 = vand.u32 %v2960, 4294901760
        %2962 = vmatprep.subr.mxu0 %v2961
        %v2963 = vand.u32 %v523, 4294901760
        %v2964 = vsub.f32 %v523, %v2963
        %v2965 = vand.u32 %v2964, 4294901760
        %2966 = vmatpush1.msra.mxu0 %v2965
        %v2967 = vand.u32 %v522, 4294901760
        %v2968 = vsub.f32 %v522, %v2967
        %v2969 = vand.u32 %v2968, 4294901760
        %2970 = vmatprep.subr.mxu0 %v2969
        %v2971 = vand.u32 %v521, 4294901760
        %v2972 = vsub.f32 %v521, %v2971
        %v2973 = vand.u32 %v2972, 4294901760
        %2974 = vmatpush1.msra.mxu0 %v2973
        %v2975 = vand.u32 %v520, 4294901760
        %v2976 = vsub.f32 %v520, %v2975
        %v2977 = vand.u32 %v2976, 4294901760
        %2978 = vmatprep.subr.mxu0 %v2977
        %v2979 = vand.u32 %v519, 4294901760
        %v2980 = vsub.f32 %v519, %v2979
        %v2981 = vand.u32 %v2980, 4294901760
        %2982 = vmatpush1.msra.mxu0 %v2981
        %v2983 = vand.u32 %v518, 4294901760
        %v2984 = vsub.f32 %v518, %v2983
        %v2985 = vand.u32 %v2984, 4294901760
        %2986 = vmatprep.subr.mxu0 %v2985
        %v2987 = vand.u32 %v517, 4294901760
        %v2988 = vsub.f32 %v517, %v2987
        %v2989 = vand.u32 %v2988, 4294901760
        %2990 = vmatpush1.msra.mxu0 %v2989
        %v2991 = vand.u32 %v516, 4294901760
        %v2992 = vsub.f32 %v516, %v2991
        %v2993 = vand.u32 %v2992, 4294901760
        %2994 = vmatprep.subr.mxu0 %v2993
        %v2995 = vand.u32 %v515, 4294901760
        %v2996 = vsub.f32 %v515, %v2995
        %v2997 = vand.u32 %v2996, 4294901760
        %2998 = vmatpush1.msra.mxu0 %v2997
        %v2999 = vand.u32 %v514, 4294901760
        %v3000 = vsub.f32 %v514, %v2999
        %v3001 = vand.u32 %v3000, 4294901760
        %3002 = vmatprep.subr.mxu0 %v3001
        %v3003 = vand.u32 %v513, 4294901760
        %v3004 = vsub.f32 %v513, %v3003
        %v3005 = vand.u32 %v3004, 4294901760
        %3006 = vmatpush1.msra.mxu0 %v3005
        %v3007 = vand.u32 %v512, 4294901760
        %v3008 = vsub.f32 %v512, %v3007
        %v3009 = vand.u32 %v3008, 4294901760
        %3010 = vmatprep.subr.mxu0 %v3009
        %v3011 = vand.u32 %v511, 4294901760
        %v3012 = vsub.f32 %v511, %v3011
        %v3013 = vand.u32 %v3012, 4294901760
        %3014 = vmatpush1.msra.mxu0 %v3013
        %v3015 = vand.u32 %v510, 4294901760
        %v3016 = vsub.f32 %v510, %v3015
        %v3017 = vand.u32 %v3016, 4294901760
        %3018 = vmatprep.subr.mxu0 %v3017
        %v3019 = vand.u32 %v509, 4294901760
        %v3020 = vsub.f32 %v509, %v3019
        %v3021 = vand.u32 %v3020, 4294901760
        %3022 = vmatpush1.msra.mxu0 %v3021
        %v3023 = vand.u32 %v508, 4294901760
        %v3024 = vsub.f32 %v508, %v3023
        %v3025 = vand.u32 %v3024, 4294901760
        %3026 = vmatprep.subr.mxu0 %v3025
        %v3027 = vand.u32 %v507, 4294901760
        %v3028 = vsub.f32 %v507, %v3027
        %v3029 = vand.u32 %v3028, 4294901760
        %3030 = vmatpush1.msra.mxu0 %v3029
        %v3031 = vand.u32 %v506, 4294901760
        %v3032 = vsub.f32 %v506, %v3031
        %v3033 = vand.u32 %v3032, 4294901760
        %3034 = vmatprep.subr.mxu0 %v3033
        %v3035 = vand.u32 %v505, 4294901760
        %v3036 = vsub.f32 %v505, %v3035
        %v3037 = vand.u32 %v3036, 4294901760
        %3038 = vmatpush1.msra.mxu0 %v3037
        %v3039 = vand.u32 %v504, 4294901760
        %v3040 = vsub.f32 %v504, %v3039
        %v3041 = vand.u32 %v3040, 4294901760
        %3042 = vmatprep.subr.mxu0 %v3041
        %v3043 = vand.u32 %v503, 4294901760
        %v3044 = vsub.f32 %v503, %v3043
        %v3045 = vand.u32 %v3044, 4294901760
        %3046 = vmatpush1.msra.mxu0 %v3045
        %v3047 = vand.u32 %v502, 4294901760
        %v3048 = vsub.f32 %v502, %v3047
        %v3049 = vand.u32 %v3048, 4294901760
        %3050 = vmatprep.subr.mxu0 %v3049
        %v3051 = vand.u32 %v501, 4294901760
        %v3052 = vsub.f32 %v501, %v3051
        %v3053 = vand.u32 %v3052, 4294901760
        %3054 = vmatpush1.msra.mxu0 %v3053
        %v3055 = vand.u32 %v500, 4294901760
        %v3056 = vsub.f32 %v500, %v3055
        %v3057 = vand.u32 %v3056, 4294901760
        %3058 = vmatprep.subr.mxu0 %v3057
        %v3059 = vand.u32 %v499, 4294901760
        %v3060 = vsub.f32 %v499, %v3059
        %v3061 = vand.u32 %v3060, 4294901760
        %3062 = vmatpush1.msra.mxu0 %v3061
        %v3063 = vand.u32 %v562, 4294901760
        %v3064 = vsub.f32 %v562, %v3063
        %v3065 = vand.u32 %v3064, 4294901760
        %3066 = vmatprep.subr.mxu0 %v3065
        %v3067 = vand.u32 %v561, 4294901760
        %v3068 = vsub.f32 %v561, %v3067
        %v3069 = vand.u32 %v3068, 4294901760
        %3070 = vmatpush2.msra.mxu0 %v3069
        %v3071 = vand.u32 %v560, 4294901760
        %v3072 = vsub.f32 %v560, %v3071
        %v3073 = vand.u32 %v3072, 4294901760
        %3074 = vmatprep.subr.mxu0 %v3073
        %v3075 = vand.u32 %v559, 4294901760
        %v3076 = vsub.f32 %v559, %v3075
        %v3077 = vand.u32 %v3076, 4294901760
        %3078 = vmatpush2.msra.mxu0 %v3077
        %v3079 = vand.u32 %v558, 4294901760
        %v3080 = vsub.f32 %v558, %v3079
        %v3081 = vand.u32 %v3080, 4294901760
        %3082 = vmatprep.subr.mxu0 %v3081
        %v3083 = vand.u32 %v557, 4294901760
        %v3084 = vsub.f32 %v557, %v3083
        %v3085 = vand.u32 %v3084, 4294901760
        %3086 = vmatpush2.msra.mxu0 %v3085
        %v3087 = vand.u32 %v556, 4294901760
        %v3088 = vsub.f32 %v556, %v3087
        %v3089 = vand.u32 %v3088, 4294901760
        %3090 = vmatprep.subr.mxu0 %v3089
        %v3091 = vand.u32 %v555, 4294901760
        %v3092 = vsub.f32 %v555, %v3091
        %v3093 = vand.u32 %v3092, 4294901760
        %3094 = vmatpush2.msra.mxu0 %v3093
        %v3095 = vand.u32 %v554, 4294901760
        %v3096 = vsub.f32 %v554, %v3095
        %v3097 = vand.u32 %v3096, 4294901760
        %3098 = vmatprep.subr.mxu0 %v3097
        %v3099 = vand.u32 %v553, 4294901760
        %v3100 = vsub.f32 %v553, %v3099
        %v3101 = vand.u32 %v3100, 4294901760
        %3102 = vmatpush2.msra.mxu0 %v3101
        %v3103 = vand.u32 %v552, 4294901760
        %v3104 = vsub.f32 %v552, %v3103
        %v3105 = vand.u32 %v3104, 4294901760
        %3106 = vmatprep.subr.mxu0 %v3105
        %v3107 = vand.u32 %v551, 4294901760
        %v3108 = vsub.f32 %v551, %v3107
        %v3109 = vand.u32 %v3108, 4294901760
        %3110 = vmatpush2.msra.mxu0 %v3109
        %v3111 = vand.u32 %v550, 4294901760
        %v3112 = vsub.f32 %v550, %v3111
        %v3113 = vand.u32 %v3112, 4294901760
        %3114 = vmatprep.subr.mxu0 %v3113
        %v3115 = vand.u32 %v549, 4294901760
        %v3116 = vsub.f32 %v549, %v3115
        %v3117 = vand.u32 %v3116, 4294901760
        %3118 = vmatpush2.msra.mxu0 %v3117
        %v3119 = vand.u32 %v548, 4294901760
        %v3120 = vsub.f32 %v548, %v3119
        %v3121 = vand.u32 %v3120, 4294901760
        %3122 = vmatprep.subr.mxu0 %v3121
        %v3123 = vand.u32 %v547, 4294901760
        %v3124 = vsub.f32 %v547, %v3123
        %v3125 = vand.u32 %v3124, 4294901760
        %3126 = vmatpush2.msra.mxu0 %v3125
        %v3127 = vand.u32 %v546, 4294901760
        %v3128 = vsub.f32 %v546, %v3127
        %v3129 = vand.u32 %v3128, 4294901760
        %3130 = vmatprep.subr.mxu0 %v3129
        %v3131 = vand.u32 %v545, 4294901760
        %v3132 = vsub.f32 %v545, %v3131
        %v3133 = vand.u32 %v3132, 4294901760
        %3134 = vmatpush2.msra.mxu0 %v3133
        %v3135 = vand.u32 %v544, 4294901760
        %v3136 = vsub.f32 %v544, %v3135
        %v3137 = vand.u32 %v3136, 4294901760
        %3138 = vmatprep.subr.mxu0 %v3137
        %v3139 = vand.u32 %v543, 4294901760
        %v3140 = vsub.f32 %v543, %v3139
        %v3141 = vand.u32 %v3140, 4294901760
        %3142 = vmatpush2.msra.mxu0 %v3141
        %v3143 = vand.u32 %v542, 4294901760
        %v3144 = vsub.f32 %v542, %v3143
        %v3145 = vand.u32 %v3144, 4294901760
        %3146 = vmatprep.subr.mxu0 %v3145
        %v3147 = vand.u32 %v541, 4294901760
        %v3148 = vsub.f32 %v541, %v3147
        %v3149 = vand.u32 %v3148, 4294901760
        %3150 = vmatpush2.msra.mxu0 %v3149
        %v3151 = vand.u32 %v540, 4294901760
        %v3152 = vsub.f32 %v540, %v3151
        %v3153 = vand.u32 %v3152, 4294901760
        %3154 = vmatprep.subr.mxu0 %v3153
        %v3155 = vand.u32 %v539, 4294901760
        %v3156 = vsub.f32 %v539, %v3155
        %v3157 = vand.u32 %v3156, 4294901760
        %3158 = vmatpush2.msra.mxu0 %v3157
        %v3159 = vand.u32 %v538, 4294901760
        %v3160 = vsub.f32 %v538, %v3159
        %v3161 = vand.u32 %v3160, 4294901760
        %3162 = vmatprep.subr.mxu0 %v3161
        %v3163 = vand.u32 %v537, 4294901760
        %v3164 = vsub.f32 %v537, %v3163
        %v3165 = vand.u32 %v3164, 4294901760
        %3166 = vmatpush2.msra.mxu0 %v3165
        %v3167 = vand.u32 %v536, 4294901760
        %v3168 = vsub.f32 %v536, %v3167
        %v3169 = vand.u32 %v3168, 4294901760
        %3170 = vmatprep.subr.mxu0 %v3169
        %v3171 = vand.u32 %v535, 4294901760
        %v3172 = vsub.f32 %v535, %v3171
        %v3173 = vand.u32 %v3172, 4294901760
        %3174 = vmatpush2.msra.mxu0 %v3173
        %v3175 = vand.u32 %v534, 4294901760
        %v3176 = vsub.f32 %v534, %v3175
        %v3177 = vand.u32 %v3176, 4294901760
        %3178 = vmatprep.subr.mxu0 %v3177
        %v3179 = vand.u32 %v533, 4294901760
        %v3180 = vsub.f32 %v533, %v3179
        %v3181 = vand.u32 %v3180, 4294901760
        %3182 = vmatpush2.msra.mxu0 %v3181
        %v3183 = vand.u32 %v532, 4294901760
        %v3184 = vsub.f32 %v532, %v3183
        %v3185 = vand.u32 %v3184, 4294901760
        %3186 = vmatprep.subr.mxu0 %v3185
        %v3187 = vand.u32 %v531, 4294901760
        %v3188 = vsub.f32 %v531, %v3187
        %v3189 = vand.u32 %v3188, 4294901760
        %3190 = vmatpush2.msra.mxu0 %v3189
        %v3191 = vand.u32 %v372, 4294901760
        %3192 = vmatprep.mubr.f32.mxu0 %v3191
        %v3193 = vand.u32 %v371, 4294901760
        %3194 = vmatmul.mubr.f32.gmra.mxu0 %v3193
        %v3195 = vpop.f32.mrf.mxu0
        %v3196 = vadd.f32 %v2559, %v3195
        %v3197 = vpop.f32.mrf.mxu0
        %v3198 = vadd.f32 %v2561, %v3197
        %v3199 = vand.u32 %v376, 4294901760
        %3200 = vmatprep.mubr.f32.mxu0 %v3199
        %v3201 = vand.u32 %v375, 4294901760
        %3202 = vmatmul.mubr.f32.gmra.mxu0 %v3201
        %v3203 = vpop.f32.mrf.mxu0
        %v3204 = vadd.f32 %v2571, %v3203
        %v3205 = vpop.f32.mrf.mxu0
        %v3206 = vadd.f32 %v2573, %v3205
        %v3207 = vand.u32 %v380, 4294901760
        %3208 = vmatprep.mubr.f32.mxu0 %v3207
        %v3209 = vand.u32 %v379, 4294901760
        %3210 = vmatmul.mubr.f32.gmra.mxu0 %v3209
        %v3211 = vpop.f32.mrf.mxu0
        %v3212 = vadd.f32 %v2583, %v3211
        %v3213 = vpop.f32.mrf.mxu0
        %v3214 = vadd.f32 %v2585, %v3213
        %v3215 = vand.u32 %v384, 4294901760
        %3216 = vmatprep.mubr.f32.mxu0 %v3215
        %v3217 = vand.u32 %v383, 4294901760
        %3218 = vmatmul.mubr.f32.gmra.mxu0 %v3217
        %v3219 = vpop.f32.mrf.mxu0
        %v3220 = vadd.f32 %v2595, %v3219
        %v3221 = vpop.f32.mrf.mxu0
        %v3222 = vadd.f32 %v2597, %v3221
        %v3223 = vand.u32 %v388, 4294901760
        %3224 = vmatprep.mubr.f32.mxu0 %v3223
        %v3225 = vand.u32 %v387, 4294901760
        %3226 = vmatmul.mubr.f32.gmra.mxu0 %v3225
        %v3227 = vpop.f32.mrf.mxu0
        %v3228 = vadd.f32 %v2607, %v3227
        %v3229 = vpop.f32.mrf.mxu0
        %v3230 = vadd.f32 %v2609, %v3229
        %v3231 = vand.u32 %v392, 4294901760
        %3232 = vmatprep.mubr.f32.mxu0 %v3231
        %v3233 = vand.u32 %v391, 4294901760
        %3234 = vmatmul.mubr.f32.gmra.mxu0 %v3233
        %v3235 = vpop.f32.mrf.mxu0
        %v3236 = vadd.f32 %v2619, %v3235
        %v3237 = vpop.f32.mrf.mxu0
        %v3238 = vadd.f32 %v2621, %v3237
        %v3239 = vand.u32 %v396, 4294901760
        %3240 = vmatprep.mubr.f32.mxu0 %v3239
        %v3241 = vand.u32 %v395, 4294901760
        %3242 = vmatmul.mubr.f32.gmra.mxu0 %v3241
        %v3243 = vpop.f32.mrf.mxu0
        %v3244 = vadd.f32 %v2631, %v3243
        %v3245 = vpop.f32.mrf.mxu0
        %v3246 = vadd.f32 %v2633, %v3245
        %v3247 = vand.u32 %v400, 4294901760
        %3248 = vmatprep.mubr.f32.mxu0 %v3247
        %v3249 = vand.u32 %v399, 4294901760
        %3250 = vmatmul.mubr.f32.gmra.mxu0 %v3249
        %v3251 = vpop.f32.mrf.mxu0
        %v3252 = vadd.f32 %v2643, %v3251
        %v3253 = vpop.f32.mrf.mxu0
        %v3254 = vadd.f32 %v2645, %v3253
        %v3255 = vand.u32 %v404, 4294901760
        %3256 = vmatprep.mubr.f32.mxu0 %v3255
        %v3257 = vand.u32 %v403, 4294901760
        %3258 = vmatmul.mubr.f32.gmra.mxu0 %v3257
        %v3259 = vpop.f32.mrf.mxu0
        %v3260 = vadd.f32 %v2655, %v3259
        %v3261 = vpop.f32.mrf.mxu0
        %v3262 = vadd.f32 %v2657, %v3261
        %v3263 = vand.u32 %v408, 4294901760
        %3264 = vmatprep.mubr.f32.mxu0 %v3263
        %v3265 = vand.u32 %v407, 4294901760
        %3266 = vmatmul.mubr.f32.gmra.mxu0 %v3265
        %v3267 = vpop.f32.mrf.mxu0
        %v3268 = vadd.f32 %v2667, %v3267
        %v3269 = vpop.f32.mrf.mxu0
        %v3270 = vadd.f32 %v2669, %v3269
        %v3271 = vand.u32 %v412, 4294901760
        %3272 = vmatprep.mubr.f32.mxu0 %v3271
        %v3273 = vand.u32 %v411, 4294901760
        %3274 = vmatmul.mubr.f32.gmra.mxu0 %v3273
        %v3275 = vpop.f32.mrf.mxu0
        %v3276 = vadd.f32 %v2679, %v3275
        %v3277 = vpop.f32.mrf.mxu0
        %v3278 = vadd.f32 %v2681, %v3277
        %v3279 = vand.u32 %v416, 4294901760
        %3280 = vmatprep.mubr.f32.mxu0 %v3279
        %v3281 = vand.u32 %v415, 4294901760
        %3282 = vmatmul.mubr.f32.gmra.mxu0 %v3281
        %v3283 = vpop.f32.mrf.mxu0
        %v3284 = vadd.f32 %v2691, %v3283
        %v3285 = vpop.f32.mrf.mxu0
        %v3286 = vadd.f32 %v2693, %v3285
        %v3287 = vand.u32 %v420, 4294901760
        %3288 = vmatprep.mubr.f32.mxu0 %v3287
        %v3289 = vand.u32 %v419, 4294901760
        %3290 = vmatmul.mubr.f32.gmra.mxu0 %v3289
        %v3291 = vpop.f32.mrf.mxu0
        %v3292 = vadd.f32 %v2703, %v3291
        %v3293 = vpop.f32.mrf.mxu0
        %v3294 = vadd.f32 %v2705, %v3293
        %v3295 = vand.u32 %v424, 4294901760
        %3296 = vmatprep.mubr.f32.mxu0 %v3295
        %v3297 = vand.u32 %v423, 4294901760
        %3298 = vmatmul.mubr.f32.gmra.mxu0 %v3297
        %v3299 = vpop.f32.mrf.mxu0
        %v3300 = vadd.f32 %v2715, %v3299
        %v3301 = vpop.f32.mrf.mxu0
        %v3302 = vadd.f32 %v2717, %v3301
        %v3303 = vand.u32 %v428, 4294901760
        %3304 = vmatprep.mubr.f32.mxu0 %v3303
        %v3305 = vand.u32 %v427, 4294901760
        %3306 = vmatmul.mubr.f32.gmra.mxu0 %v3305
        %v3307 = vpop.f32.mrf.mxu0
        %v3308 = vadd.f32 %v2727, %v3307
        %v3309 = vpop.f32.mrf.mxu0
        %v3310 = vadd.f32 %v2729, %v3309
        %v3311 = vand.u32 %v432, 4294901760
        %3312 = vmatprep.mubr.f32.mxu0 %v3311
        %v3313 = vand.u32 %v431, 4294901760
        %3314 = vmatmul.mubr.f32.gmra.mxu0 %v3313
        %v3315 = vpop.f32.mrf.mxu0
        %v3316 = vadd.f32 %v2739, %v3315
        %v3317 = vpop.f32.mrf.mxu0
        %v3318 = vadd.f32 %v2741, %v3317
        %v3319 = vand.u32 %v436, 4294901760
        %3320 = vmatprep.mubr.f32.mxu0 %v3319
        %v3321 = vand.u32 %v435, 4294901760
        %3322 = vmatmul.mubr.f32.gmra.mxu0 %v3321
        %v3323 = vpop.f32.mrf.mxu0
        %v3324 = vadd.f32 %v2751, %v3323
        %v3325 = vpop.f32.mrf.mxu0
        %v3326 = vadd.f32 %v2753, %v3325
        %v3327 = vand.u32 %v440, 4294901760
        %3328 = vmatprep.mubr.f32.mxu0 %v3327
        %v3329 = vand.u32 %v439, 4294901760
        %3330 = vmatmul.mubr.f32.gmra.mxu0 %v3329
        %v3331 = vpop.f32.mrf.mxu0
        %v3332 = vadd.f32 %v2763, %v3331
        %v3333 = vpop.f32.mrf.mxu0
        %v3334 = vadd.f32 %v2765, %v3333
        %v3335 = vand.u32 %v444, 4294901760
        %3336 = vmatprep.mubr.f32.mxu0 %v3335
        %v3337 = vand.u32 %v443, 4294901760
        %3338 = vmatmul.mubr.f32.gmra.mxu0 %v3337
        %v3339 = vpop.f32.mrf.mxu0
        %v3340 = vadd.f32 %v2775, %v3339
        %v3341 = vpop.f32.mrf.mxu0
        %v3342 = vadd.f32 %v2777, %v3341
        %v3343 = vand.u32 %v448, 4294901760
        %3344 = vmatprep.mubr.f32.mxu0 %v3343
        %v3345 = vand.u32 %v447, 4294901760
        %3346 = vmatmul.mubr.f32.gmra.mxu0 %v3345
        %v3347 = vpop.f32.mrf.mxu0
        %v3348 = vadd.f32 %v2787, %v3347
        %v3349 = vpop.f32.mrf.mxu0
        %v3350 = vadd.f32 %v2789, %v3349
        %v3351 = vand.u32 %v452, 4294901760
        %3352 = vmatprep.mubr.f32.mxu0 %v3351
        %v3353 = vand.u32 %v451, 4294901760
        %3354 = vmatmul.mubr.f32.gmra.mxu0 %v3353
        %v3355 = vpop.f32.mrf.mxu0
        %v3356 = vadd.f32 %v2799, %v3355
        %v3357 = vpop.f32.mrf.mxu0
        %v3358 = vadd.f32 %v2801, %v3357
        %v3359 = vand.u32 %v456, 4294901760
        %3360 = vmatprep.mubr.f32.mxu0 %v3359
        %v3361 = vand.u32 %v455, 4294901760
        %3362 = vmatmul.mubr.f32.gmra.mxu0 %v3361
        %v3363 = vpop.f32.mrf.mxu0
        %v3364 = vadd.f32 %v2811, %v3363
        %v3365 = vpop.f32.mrf.mxu0
        %v3366 = vadd.f32 %v2813, %v3365
        %v3367 = vand.u32 %v460, 4294901760
        %3368 = vmatprep.mubr.f32.mxu0 %v3367
        %v3369 = vand.u32 %v459, 4294901760
        %3370 = vmatmul.mubr.f32.gmra.mxu0 %v3369
        %v3371 = vpop.f32.mrf.mxu0
        %v3372 = vadd.f32 %v2823, %v3371
        %v3373 = vpop.f32.mrf.mxu0
        %v3374 = vadd.f32 %v2825, %v3373
        %v3375 = vand.u32 %v464, 4294901760
        %3376 = vmatprep.mubr.f32.mxu0 %v3375
        %v3377 = vand.u32 %v463, 4294901760
        %3378 = vmatmul.mubr.f32.gmra.mxu0 %v3377
        %v3379 = vpop.f32.mrf.mxu0
        %v3380 = vadd.f32 %v2835, %v3379
        %v3381 = vpop.f32.mrf.mxu0
        %v3382 = vadd.f32 %v2837, %v3381
        %v3383 = vand.u32 %v468, 4294901760
        %3384 = vmatprep.mubr.f32.mxu0 %v3383
        %v3385 = vand.u32 %v467, 4294901760
        %3386 = vmatmul.mubr.f32.gmra.mxu0 %v3385
        %v3387 = vpop.f32.mrf.mxu0
        %v3388 = vadd.f32 %v2847, %v3387
        %v3389 = vpop.f32.mrf.mxu0
        %v3390 = vadd.f32 %v2849, %v3389
        %v3391 = vand.u32 %v472, 4294901760
        %3392 = vmatprep.mubr.f32.mxu0 %v3391
        %v3393 = vand.u32 %v471, 4294901760
        %3394 = vmatmul.mubr.f32.gmra.mxu0 %v3393
        %v3395 = vpop.f32.mrf.mxu0
        %v3396 = vadd.f32 %v2859, %v3395
        %v3397 = vpop.f32.mrf.mxu0
        %v3398 = vadd.f32 %v2861, %v3397
        %v3399 = vand.u32 %v476, 4294901760
        %3400 = vmatprep.mubr.f32.mxu0 %v3399
        %v3401 = vand.u32 %v475, 4294901760
        %3402 = vmatmul.mubr.f32.gmra.mxu0 %v3401
        %v3403 = vpop.f32.mrf.mxu0
        %v3404 = vadd.f32 %v2871, %v3403
        %v3405 = vpop.f32.mrf.mxu0
        %v3406 = vadd.f32 %v2873, %v3405
        %v3407 = vand.u32 %v480, 4294901760
        %3408 = vmatprep.mubr.f32.mxu0 %v3407
        %v3409 = vand.u32 %v479, 4294901760
        %3410 = vmatmul.mubr.f32.gmra.mxu0 %v3409
        %v3411 = vpop.f32.mrf.mxu0
        %v3412 = vadd.f32 %v2883, %v3411
        %v3413 = vpop.f32.mrf.mxu0
        %v3414 = vadd.f32 %v2885, %v3413
        %v3415 = vand.u32 %v484, 4294901760
        %3416 = vmatprep.mubr.f32.mxu0 %v3415
        %v3417 = vand.u32 %v483, 4294901760
        %3418 = vmatmul.mubr.f32.gmra.mxu0 %v3417
        %v3419 = vpop.f32.mrf.mxu0
        %v3420 = vadd.f32 %v2895, %v3419
        %v3421 = vpop.f32.mrf.mxu0
        %v3422 = vadd.f32 %v2897, %v3421
        %v3423 = vand.u32 %v488, 4294901760
        %3424 = vmatprep.mubr.f32.mxu0 %v3423
        %v3425 = vand.u32 %v487, 4294901760
        %3426 = vmatmul.mubr.f32.gmra.mxu0 %v3425
        %v3427 = vpop.f32.mrf.mxu0
        %v3428 = vadd.f32 %v2907, %v3427
        %v3429 = vpop.f32.mrf.mxu0
        %v3430 = vadd.f32 %v2909, %v3429
        %v3431 = vand.u32 %v492, 4294901760
        %3432 = vmatprep.mubr.f32.mxu0 %v3431
        %v3433 = vand.u32 %v491, 4294901760
        %3434 = vmatmul.mubr.f32.gmra.mxu0 %v3433
        %v3435 = vpop.f32.mrf.mxu0
        %v3436 = vadd.f32 %v2919, %v3435
        %v3437 = vpop.f32.mrf.mxu0
        %v3438 = vadd.f32 %v2921, %v3437
        %v3439 = vand.u32 %v496, 4294901760
        %3440 = vmatprep.mubr.f32.mxu0 %v3439
        %v3441 = vand.u32 %v495, 4294901760
        %3442 = vmatmul.mubr.f32.gmra.mxu0 %v3441
        %v3443 = vpop.f32.mrf.mxu0
        %v3444 = vadd.f32 %v2931, %v3443
        %v3445 = vpop.f32.mrf.mxu0
        %v3446 = vadd.f32 %v2933, %v3445
        %3447 = vdwg.mxu0
        %v3448 = vand.u32 %v530, 4294901760
        %3449 = vmatprep.subr.mxu0 %v3448
        %v3450 = vand.u32 %v529, 4294901760
        %3451 = vmatpush1.msra.mxu0 %v3450
        %v3452 = vand.u32 %v528, 4294901760
        %3453 = vmatprep.subr.mxu0 %v3452
        %v3454 = vand.u32 %v527, 4294901760
        %3455 = vmatpush1.msra.mxu0 %v3454
        %v3456 = vand.u32 %v526, 4294901760
        %3457 = vmatprep.subr.mxu0 %v3456
        %v3458 = vand.u32 %v525, 4294901760
        %3459 = vmatpush1.msra.mxu0 %v3458
        %v3460 = vand.u32 %v524, 4294901760
        %3461 = vmatprep.subr.mxu0 %v3460
        %v3462 = vand.u32 %v523, 4294901760
        %3463 = vmatpush1.msra.mxu0 %v3462
        %v3464 = vand.u32 %v522, 4294901760
        %3465 = vmatprep.subr.mxu0 %v3464
        %v3466 = vand.u32 %v521, 4294901760
        %3467 = vmatpush1.msra.mxu0 %v3466
        %v3468 = vand.u32 %v520, 4294901760
        %3469 = vmatprep.subr.mxu0 %v3468
        %v3470 = vand.u32 %v519, 4294901760
        %3471 = vmatpush1.msra.mxu0 %v3470
        %v3472 = vand.u32 %v518, 4294901760
        %3473 = vmatprep.subr.mxu0 %v3472
        %v3474 = vand.u32 %v517, 4294901760
        %3475 = vmatpush1.msra.mxu0 %v3474
        %v3476 = vand.u32 %v516, 4294901760
        %3477 = vmatprep.subr.mxu0 %v3476
        %v3478 = vand.u32 %v515, 4294901760
        %3479 = vmatpush1.msra.mxu0 %v3478
        %v3480 = vand.u32 %v514, 4294901760
        %3481 = vmatprep.subr.mxu0 %v3480
        %v3482 = vand.u32 %v513, 4294901760
        %3483 = vmatpush1.msra.mxu0 %v3482
        %v3484 = vand.u32 %v512, 4294901760
        %3485 = vmatprep.subr.mxu0 %v3484
        %v3486 = vand.u32 %v511, 4294901760
        %3487 = vmatpush1.msra.mxu0 %v3486
        %v3488 = vand.u32 %v510, 4294901760
        %3489 = vmatprep.subr.mxu0 %v3488
        %v3490 = vand.u32 %v509, 4294901760
        %3491 = vmatpush1.msra.mxu0 %v3490
        %v3492 = vand.u32 %v508, 4294901760
        %3493 = vmatprep.subr.mxu0 %v3492
        %v3494 = vand.u32 %v507, 4294901760
        %3495 = vmatpush1.msra.mxu0 %v3494
        %v3496 = vand.u32 %v506, 4294901760
        %3497 = vmatprep.subr.mxu0 %v3496
        %v3498 = vand.u32 %v505, 4294901760
        %3499 = vmatpush1.msra.mxu0 %v3498
        %v3500 = vand.u32 %v504, 4294901760
        %3501 = vmatprep.subr.mxu0 %v3500
        %v3502 = vand.u32 %v503, 4294901760
        %3503 = vmatpush1.msra.mxu0 %v3502
        %v3504 = vand.u32 %v502, 4294901760
        %3505 = vmatprep.subr.mxu0 %v3504
        %v3506 = vand.u32 %v501, 4294901760
        %3507 = vmatpush1.msra.mxu0 %v3506
        %v3508 = vand.u32 %v500, 4294901760
        %3509 = vmatprep.subr.mxu0 %v3508
        %v3510 = vand.u32 %v499, 4294901760
        %3511 = vmatpush1.msra.mxu0 %v3510
        %v3512 = vand.u32 %v562, 4294901760
        %3513 = vmatprep.subr.mxu0 %v3512
        %v3514 = vand.u32 %v561, 4294901760
        %3515 = vmatpush2.msra.mxu0 %v3514
        %v3516 = vand.u32 %v560, 4294901760
        %3517 = vmatprep.subr.mxu0 %v3516
        %v3518 = vand.u32 %v559, 4294901760
        %3519 = vmatpush2.msra.mxu0 %v3518
        %v3520 = vand.u32 %v558, 4294901760
        %3521 = vmatprep.subr.mxu0 %v3520
        %v3522 = vand.u32 %v557, 4294901760
        %3523 = vmatpush2.msra.mxu0 %v3522
        %v3524 = vand.u32 %v556, 4294901760
        %3525 = vmatprep.subr.mxu0 %v3524
        %v3526 = vand.u32 %v555, 4294901760
        %3527 = vmatpush2.msra.mxu0 %v3526
        %v3528 = vand.u32 %v554, 4294901760
        %3529 = vmatprep.subr.mxu0 %v3528
        %v3530 = vand.u32 %v553, 4294901760
        %3531 = vmatpush2.msra.mxu0 %v3530
        %v3532 = vand.u32 %v552, 4294901760
        %3533 = vmatprep.subr.mxu0 %v3532
        %v3534 = vand.u32 %v551, 4294901760
        %3535 = vmatpush2.msra.mxu0 %v3534
        %v3536 = vand.u32 %v550, 4294901760
        %3537 = vmatprep.subr.mxu0 %v3536
        %v3538 = vand.u32 %v549, 4294901760
        %3539 = vmatpush2.msra.mxu0 %v3538
        %v3540 = vand.u32 %v548, 4294901760
        %3541 = vmatprep.subr.mxu0 %v3540
        %v3542 = vand.u32 %v547, 4294901760
        %3543 = vmatpush2.msra.mxu0 %v3542
        %v3544 = vand.u32 %v546, 4294901760
        %3545 = vmatprep.subr.mxu0 %v3544
        %v3546 = vand.u32 %v545, 4294901760
        %3547 = vmatpush2.msra.mxu0 %v3546
        %v3548 = vand.u32 %v544, 4294901760
        %3549 = vmatprep.subr.mxu0 %v3548
        %v3550 = vand.u32 %v543, 4294901760
        %3551 = vmatpush2.msra.mxu0 %v3550
        %v3552 = vand.u32 %v542, 4294901760
        %3553 = vmatprep.subr.mxu0 %v3552
        %v3554 = vand.u32 %v541, 4294901760
        %3555 = vmatpush2.msra.mxu0 %v3554
        %v3556 = vand.u32 %v540, 4294901760
        %3557 = vmatprep.subr.mxu0 %v3556
        %v3558 = vand.u32 %v539, 4294901760
        %3559 = vmatpush2.msra.mxu0 %v3558
        %v3560 = vand.u32 %v538, 4294901760
        %3561 = vmatprep.subr.mxu0 %v3560
        %v3562 = vand.u32 %v537, 4294901760
        %3563 = vmatpush2.msra.mxu0 %v3562
        %v3564 = vand.u32 %v536, 4294901760
        %3565 = vmatprep.subr.mxu0 %v3564
        %v3566 = vand.u32 %v535, 4294901760
        %3567 = vmatpush2.msra.mxu0 %v3566
        %v3568 = vand.u32 %v534, 4294901760
        %3569 = vmatprep.subr.mxu0 %v3568
        %v3570 = vand.u32 %v533, 4294901760
        %3571 = vmatpush2.msra.mxu0 %v3570
        %v3572 = vand.u32 %v532, 4294901760
        %3573 = vmatprep.subr.mxu0 %v3572
        %v3574 = vand.u32 %v531, 4294901760
        %3575 = vmatpush2.msra.mxu0 %v3574
        %v3576 = vand.u32 %v372, 4294901760
        %3577 = vmatprep.mubr.f32.mxu0 %v3576
        %v3578 = vand.u32 %v371, 4294901760
        %3579 = vmatmul.mubr.f32.gmra.mxu0 %v3578
        %v3580 = vpop.f32.mrf.mxu0
        %v3581 = vadd.f32 %v3196, %v3580
        %v3582 = vpop.f32.mrf.mxu0
        %v3583 = vadd.f32 %v3198, %v3582
        %v3584 = vand.u32 %v376, 4294901760
        %3585 = vmatprep.mubr.f32.mxu0 %v3584
        %v3586 = vand.u32 %v375, 4294901760
        %3587 = vmatmul.mubr.f32.gmra.mxu0 %v3586
        %v3588 = vpop.f32.mrf.mxu0
        %v3589 = vadd.f32 %v3204, %v3588
        %v3590 = vpop.f32.mrf.mxu0
        %v3591 = vadd.f32 %v3206, %v3590
        %v3592 = vand.u32 %v380, 4294901760
        %3593 = vmatprep.mubr.f32.mxu0 %v3592
        %v3594 = vand.u32 %v379, 4294901760
        %3595 = vmatmul.mubr.f32.gmra.mxu0 %v3594
        %v3596 = vpop.f32.mrf.mxu0
        %v3597 = vadd.f32 %v3212, %v3596
        %v3598 = vpop.f32.mrf.mxu0
        %v3599 = vadd.f32 %v3214, %v3598
        %v3600 = vand.u32 %v384, 4294901760
        %3601 = vmatprep.mubr.f32.mxu0 %v3600
        %v3602 = vand.u32 %v383, 4294901760
        %3603 = vmatmul.mubr.f32.gmra.mxu0 %v3602
        %v3604 = vpop.f32.mrf.mxu0
        %v3605 = vadd.f32 %v3220, %v3604
        %v3606 = vpop.f32.mrf.mxu0
        %v3607 = vadd.f32 %v3222, %v3606
        %v3608 = vand.u32 %v388, 4294901760
        %3609 = vmatprep.mubr.f32.mxu0 %v3608
        %v3610 = vand.u32 %v387, 4294901760
        %3611 = vmatmul.mubr.f32.gmra.mxu0 %v3610
        %v3612 = vpop.f32.mrf.mxu0
        %v3613 = vadd.f32 %v3228, %v3612
        %v3614 = vpop.f32.mrf.mxu0
        %v3615 = vadd.f32 %v3230, %v3614
        %v3616 = vand.u32 %v392, 4294901760
        %3617 = vmatprep.mubr.f32.mxu0 %v3616
        %v3618 = vand.u32 %v391, 4294901760
        %3619 = vmatmul.mubr.f32.gmra.mxu0 %v3618
        %v3620 = vpop.f32.mrf.mxu0
        %v3621 = vadd.f32 %v3236, %v3620
        %v3622 = vpop.f32.mrf.mxu0
        %v3623 = vadd.f32 %v3238, %v3622
        %v3624 = vand.u32 %v396, 4294901760
        %3625 = vmatprep.mubr.f32.mxu0 %v3624
        %v3626 = vand.u32 %v395, 4294901760
        %3627 = vmatmul.mubr.f32.gmra.mxu0 %v3626
        %v3628 = vpop.f32.mrf.mxu0
        %v3629 = vadd.f32 %v3244, %v3628
        %v3630 = vpop.f32.mrf.mxu0
        %v3631 = vadd.f32 %v3246, %v3630
        %v3632 = vand.u32 %v400, 4294901760
        %3633 = vmatprep.mubr.f32.mxu0 %v3632
        %v3634 = vand.u32 %v399, 4294901760
        %3635 = vmatmul.mubr.f32.gmra.mxu0 %v3634
        %v3636 = vpop.f32.mrf.mxu0
        %v3637 = vadd.f32 %v3252, %v3636
        %v3638 = vpop.f32.mrf.mxu0
        %v3639 = vadd.f32 %v3254, %v3638
        %v3640 = vand.u32 %v404, 4294901760
        %3641 = vmatprep.mubr.f32.mxu0 %v3640
        %v3642 = vand.u32 %v403, 4294901760
        %3643 = vmatmul.mubr.f32.gmra.mxu0 %v3642
        %v3644 = vpop.f32.mrf.mxu0
        %v3645 = vadd.f32 %v3260, %v3644
        %v3646 = vpop.f32.mrf.mxu0
        %v3647 = vadd.f32 %v3262, %v3646
        %v3648 = vand.u32 %v408, 4294901760
        %3649 = vmatprep.mubr.f32.mxu0 %v3648
        %v3650 = vand.u32 %v407, 4294901760
        %3651 = vmatmul.mubr.f32.gmra.mxu0 %v3650
        %v3652 = vpop.f32.mrf.mxu0
        %v3653 = vadd.f32 %v3268, %v3652
        %v3654 = vpop.f32.mrf.mxu0
        %v3655 = vadd.f32 %v3270, %v3654
        %v3656 = vand.u32 %v412, 4294901760
        %3657 = vmatprep.mubr.f32.mxu0 %v3656
        %v3658 = vand.u32 %v411, 4294901760
        %3659 = vmatmul.mubr.f32.gmra.mxu0 %v3658
        %v3660 = vpop.f32.mrf.mxu0
        %v3661 = vadd.f32 %v3276, %v3660
        %v3662 = vpop.f32.mrf.mxu0
        %v3663 = vadd.f32 %v3278, %v3662
        %v3664 = vand.u32 %v416, 4294901760
        %3665 = vmatprep.mubr.f32.mxu0 %v3664
        %v3666 = vand.u32 %v415, 4294901760
        %3667 = vmatmul.mubr.f32.gmra.mxu0 %v3666
        %v3668 = vpop.f32.mrf.mxu0
        %v3669 = vadd.f32 %v3284, %v3668
        %v3670 = vpop.f32.mrf.mxu0
        %v3671 = vadd.f32 %v3286, %v3670
        %v3672 = vand.u32 %v420, 4294901760
        %3673 = vmatprep.mubr.f32.mxu0 %v3672
        %v3674 = vand.u32 %v419, 4294901760
        %3675 = vmatmul.mubr.f32.gmra.mxu0 %v3674
        %v3676 = vpop.f32.mrf.mxu0
        %v3677 = vadd.f32 %v3292, %v3676
        %v3678 = vpop.f32.mrf.mxu0
        %v3679 = vadd.f32 %v3294, %v3678
        %v3680 = vand.u32 %v424, 4294901760
        %3681 = vmatprep.mubr.f32.mxu0 %v3680
        %v3682 = vand.u32 %v423, 4294901760
        %3683 = vmatmul.mubr.f32.gmra.mxu0 %v3682
        %v3684 = vpop.f32.mrf.mxu0
        %v3685 = vadd.f32 %v3300, %v3684
        %v3686 = vpop.f32.mrf.mxu0
        %v3687 = vadd.f32 %v3302, %v3686
        %v3688 = vand.u32 %v428, 4294901760
        %3689 = vmatprep.mubr.f32.mxu0 %v3688
        %v3690 = vand.u32 %v427, 4294901760
        %3691 = vmatmul.mubr.f32.gmra.mxu0 %v3690
        %v3692 = vpop.f32.mrf.mxu0
        %v3693 = vadd.f32 %v3308, %v3692
        %v3694 = vpop.f32.mrf.mxu0
        %v3695 = vadd.f32 %v3310, %v3694
        %v3696 = vand.u32 %v432, 4294901760
        %3697 = vmatprep.mubr.f32.mxu0 %v3696
        %v3698 = vand.u32 %v431, 4294901760
        %3699 = vmatmul.mubr.f32.gmra.mxu0 %v3698
        %v3700 = vpop.f32.mrf.mxu0
        %v3701 = vadd.f32 %v3316, %v3700
        %v3702 = vpop.f32.mrf.mxu0
        %v3703 = vadd.f32 %v3318, %v3702
        %v3704 = vand.u32 %v436, 4294901760
        %3705 = vmatprep.mubr.f32.mxu0 %v3704
        %v3706 = vand.u32 %v435, 4294901760
        %3707 = vmatmul.mubr.f32.gmra.mxu0 %v3706
        %v3708 = vpop.f32.mrf.mxu0
        %v3709 = vadd.f32 %v3324, %v3708
        %v3710 = vpop.f32.mrf.mxu0
        %v3711 = vadd.f32 %v3326, %v3710
        %v3712 = vand.u32 %v440, 4294901760
        %3713 = vmatprep.mubr.f32.mxu0 %v3712
        %v3714 = vand.u32 %v439, 4294901760
        %3715 = vmatmul.mubr.f32.gmra.mxu0 %v3714
        %v3716 = vpop.f32.mrf.mxu0
        %v3717 = vadd.f32 %v3332, %v3716
        %v3718 = vpop.f32.mrf.mxu0
        %v3719 = vadd.f32 %v3334, %v3718
        %v3720 = vand.u32 %v444, 4294901760
        %3721 = vmatprep.mubr.f32.mxu0 %v3720
        %v3722 = vand.u32 %v443, 4294901760
        %3723 = vmatmul.mubr.f32.gmra.mxu0 %v3722
        %v3724 = vpop.f32.mrf.mxu0
        %v3725 = vadd.f32 %v3340, %v3724
        %v3726 = vpop.f32.mrf.mxu0
        %v3727 = vadd.f32 %v3342, %v3726
        %v3728 = vand.u32 %v448, 4294901760
        %3729 = vmatprep.mubr.f32.mxu0 %v3728
        %v3730 = vand.u32 %v447, 4294901760
        %3731 = vmatmul.mubr.f32.gmra.mxu0 %v3730
        %v3732 = vpop.f32.mrf.mxu0
        %v3733 = vadd.f32 %v3348, %v3732
        %v3734 = vpop.f32.mrf.mxu0
        %v3735 = vadd.f32 %v3350, %v3734
        %v3736 = vand.u32 %v452, 4294901760
        %3737 = vmatprep.mubr.f32.mxu0 %v3736
        %v3738 = vand.u32 %v451, 4294901760
        %3739 = vmatmul.mubr.f32.gmra.mxu0 %v3738
        %v3740 = vpop.f32.mrf.mxu0
        %v3741 = vadd.f32 %v3356, %v3740
        %v3742 = vpop.f32.mrf.mxu0
        %v3743 = vadd.f32 %v3358, %v3742
        %v3744 = vand.u32 %v456, 4294901760
        %3745 = vmatprep.mubr.f32.mxu0 %v3744
        %v3746 = vand.u32 %v455, 4294901760
        %3747 = vmatmul.mubr.f32.gmra.mxu0 %v3746
        %v3748 = vpop.f32.mrf.mxu0
        %v3749 = vadd.f32 %v3364, %v3748
        %v3750 = vpop.f32.mrf.mxu0
        %v3751 = vadd.f32 %v3366, %v3750
        %v3752 = vand.u32 %v460, 4294901760
        %3753 = vmatprep.mubr.f32.mxu0 %v3752
        %v3754 = vand.u32 %v459, 4294901760
        %3755 = vmatmul.mubr.f32.gmra.mxu0 %v3754
        %v3756 = vpop.f32.mrf.mxu0
        %v3757 = vadd.f32 %v3372, %v3756
        %v3758 = vpop.f32.mrf.mxu0
        %v3759 = vadd.f32 %v3374, %v3758
        %v3760 = vand.u32 %v464, 4294901760
        %3761 = vmatprep.mubr.f32.mxu0 %v3760
        %v3762 = vand.u32 %v463, 4294901760
        %3763 = vmatmul.mubr.f32.gmra.mxu0 %v3762
        %v3764 = vpop.f32.mrf.mxu0
        %v3765 = vadd.f32 %v3380, %v3764
        %v3766 = vpop.f32.mrf.mxu0
        %v3767 = vadd.f32 %v3382, %v3766
        %v3768 = vand.u32 %v468, 4294901760
        %3769 = vmatprep.mubr.f32.mxu0 %v3768
        %v3770 = vand.u32 %v467, 4294901760
        %3771 = vmatmul.mubr.f32.gmra.mxu0 %v3770
        %v3772 = vpop.f32.mrf.mxu0
        %v3773 = vadd.f32 %v3388, %v3772
        %v3774 = vpop.f32.mrf.mxu0
        %v3775 = vadd.f32 %v3390, %v3774
        %v3776 = vand.u32 %v472, 4294901760
        %3777 = vmatprep.mubr.f32.mxu0 %v3776
        %v3778 = vand.u32 %v471, 4294901760
        %3779 = vmatmul.mubr.f32.gmra.mxu0 %v3778
        %v3780 = vpop.f32.mrf.mxu0
        %v3781 = vadd.f32 %v3396, %v3780
        %v3782 = vpop.f32.mrf.mxu0
        %v3783 = vadd.f32 %v3398, %v3782
        %v3784 = vand.u32 %v476, 4294901760
        %3785 = vmatprep.mubr.f32.mxu0 %v3784
        %v3786 = vand.u32 %v475, 4294901760
        %3787 = vmatmul.mubr.f32.gmra.mxu0 %v3786
        %v3788 = vpop.f32.mrf.mxu0
        %v3789 = vadd.f32 %v3404, %v3788
        %v3790 = vpop.f32.mrf.mxu0
        %v3791 = vadd.f32 %v3406, %v3790
        %v3792 = vand.u32 %v480, 4294901760
        %3793 = vmatprep.mubr.f32.mxu0 %v3792
        %v3794 = vand.u32 %v479, 4294901760
        %3795 = vmatmul.mubr.f32.gmra.mxu0 %v3794
        %v3796 = vpop.f32.mrf.mxu0
        %v3797 = vadd.f32 %v3412, %v3796
        %v3798 = vpop.f32.mrf.mxu0
        %v3799 = vadd.f32 %v3414, %v3798
        %v3800 = vand.u32 %v484, 4294901760
        %3801 = vmatprep.mubr.f32.mxu0 %v3800
        %v3802 = vand.u32 %v483, 4294901760
        %3803 = vmatmul.mubr.f32.gmra.mxu0 %v3802
        %v3804 = vpop.f32.mrf.mxu0
        %v3805 = vadd.f32 %v3420, %v3804
        %v3806 = vpop.f32.mrf.mxu0
        %v3807 = vadd.f32 %v3422, %v3806
        %v3808 = vand.u32 %v488, 4294901760
        %3809 = vmatprep.mubr.f32.mxu0 %v3808
        %v3810 = vand.u32 %v487, 4294901760
        %3811 = vmatmul.mubr.f32.gmra.mxu0 %v3810
        %v3812 = vpop.f32.mrf.mxu0
        %v3813 = vadd.f32 %v3428, %v3812
        %v3814 = vpop.f32.mrf.mxu0
        %v3815 = vadd.f32 %v3430, %v3814
        %v3816 = vand.u32 %v492, 4294901760
        %3817 = vmatprep.mubr.f32.mxu0 %v3816
        %v3818 = vand.u32 %v491, 4294901760
        %3819 = vmatmul.mubr.f32.gmra.mxu0 %v3818
        %v3820 = vpop.f32.mrf.mxu0
        %v3821 = vadd.f32 %v3436, %v3820
        %v3822 = vpop.f32.mrf.mxu0
        %v3823 = vadd.f32 %v3438, %v3822
        %v3824 = vand.u32 %v496, 4294901760
        %3825 = vmatprep.mubr.f32.mxu0 %v3824
        %v3826 = vand.u32 %v495, 4294901760
        %3827 = vmatmul.mubr.f32.gmra.mxu0 %v3826
        %v3828 = vpop.f32.mrf.mxu0
        %v3829 = vadd.f32 %v3444, %v3828
        %v3830 = vpop.f32.mrf.mxu0
        %v3831 = vadd.f32 %v3446, %v3830
        %3832 = vdwg.mxu0
        %v3833 = vand.u32 %v594, 4294901760
        %3834 = vmatprep.subr.mxu0 %v3833
        %v3835 = vand.u32 %v593, 4294901760
        %3836 = vmatpush1.msra.mxu0 %v3835
        %v3837 = vand.u32 %v592, 4294901760
        %3838 = vmatprep.subr.mxu0 %v3837
        %v3839 = vand.u32 %v591, 4294901760
        %3840 = vmatpush1.msra.mxu0 %v3839
        %v3841 = vand.u32 %v590, 4294901760
        %3842 = vmatprep.subr.mxu0 %v3841
        %v3843 = vand.u32 %v589, 4294901760
        %3844 = vmatpush1.msra.mxu0 %v3843
        %v3845 = vand.u32 %v588, 4294901760
        %3846 = vmatprep.subr.mxu0 %v3845
        %v3847 = vand.u32 %v587, 4294901760
        %3848 = vmatpush1.msra.mxu0 %v3847
        %v3849 = vand.u32 %v586, 4294901760
        %3850 = vmatprep.subr.mxu0 %v3849
        %v3851 = vand.u32 %v585, 4294901760
        %3852 = vmatpush1.msra.mxu0 %v3851
        %v3853 = vand.u32 %v584, 4294901760
        %3854 = vmatprep.subr.mxu0 %v3853
        %v3855 = vand.u32 %v583, 4294901760
        %3856 = vmatpush1.msra.mxu0 %v3855
        %v3857 = vand.u32 %v582, 4294901760
        %3858 = vmatprep.subr.mxu0 %v3857
        %v3859 = vand.u32 %v581, 4294901760
        %3860 = vmatpush1.msra.mxu0 %v3859
        %v3861 = vand.u32 %v580, 4294901760
        %3862 = vmatprep.subr.mxu0 %v3861
        %v3863 = vand.u32 %v579, 4294901760
        %3864 = vmatpush1.msra.mxu0 %v3863
        %v3865 = vand.u32 %v578, 4294901760
        %3866 = vmatprep.subr.mxu0 %v3865
        %v3867 = vand.u32 %v577, 4294901760
        %3868 = vmatpush1.msra.mxu0 %v3867
        %v3869 = vand.u32 %v576, 4294901760
        %3870 = vmatprep.subr.mxu0 %v3869
        %v3871 = vand.u32 %v575, 4294901760
        %3872 = vmatpush1.msra.mxu0 %v3871
        %v3873 = vand.u32 %v574, 4294901760
        %3874 = vmatprep.subr.mxu0 %v3873
        %v3875 = vand.u32 %v573, 4294901760
        %3876 = vmatpush1.msra.mxu0 %v3875
        %v3877 = vand.u32 %v572, 4294901760
        %3878 = vmatprep.subr.mxu0 %v3877
        %v3879 = vand.u32 %v571, 4294901760
        %3880 = vmatpush1.msra.mxu0 %v3879
        %v3881 = vand.u32 %v570, 4294901760
        %3882 = vmatprep.subr.mxu0 %v3881
        %v3883 = vand.u32 %v569, 4294901760
        %3884 = vmatpush1.msra.mxu0 %v3883
        %v3885 = vand.u32 %v568, 4294901760
        %3886 = vmatprep.subr.mxu0 %v3885
        %v3887 = vand.u32 %v567, 4294901760
        %3888 = vmatpush1.msra.mxu0 %v3887
        %v3889 = vand.u32 %v566, 4294901760
        %3890 = vmatprep.subr.mxu0 %v3889
        %v3891 = vand.u32 %v565, 4294901760
        %3892 = vmatpush1.msra.mxu0 %v3891
        %v3893 = vand.u32 %v564, 4294901760
        %3894 = vmatprep.subr.mxu0 %v3893
        %v3895 = vand.u32 %v563, 4294901760
        %3896 = vmatpush1.msra.mxu0 %v3895
        %v3897 = vand.u32 %v626, 4294901760
        %3898 = vmatprep.subr.mxu0 %v3897
        %v3899 = vand.u32 %v625, 4294901760
        %3900 = vmatpush2.msra.mxu0 %v3899
        %v3901 = vand.u32 %v624, 4294901760
        %3902 = vmatprep.subr.mxu0 %v3901
        %v3903 = vand.u32 %v623, 4294901760
        %3904 = vmatpush2.msra.mxu0 %v3903
        %v3905 = vand.u32 %v622, 4294901760
        %3906 = vmatprep.subr.mxu0 %v3905
        %v3907 = vand.u32 %v621, 4294901760
        %3908 = vmatpush2.msra.mxu0 %v3907
        %v3909 = vand.u32 %v620, 4294901760
        %3910 = vmatprep.subr.mxu0 %v3909
        %v3911 = vand.u32 %v619, 4294901760
        %3912 = vmatpush2.msra.mxu0 %v3911
        %v3913 = vand.u32 %v618, 4294901760
        %3914 = vmatprep.subr.mxu0 %v3913
        %v3915 = vand.u32 %v617, 4294901760
        %3916 = vmatpush2.msra.mxu0 %v3915
        %v3917 = vand.u32 %v616, 4294901760
        %3918 = vmatprep.subr.mxu0 %v3917
        %v3919 = vand.u32 %v615, 4294901760
        %3920 = vmatpush2.msra.mxu0 %v3919
        %v3921 = vand.u32 %v614, 4294901760
        %3922 = vmatprep.subr.mxu0 %v3921
        %v3923 = vand.u32 %v613, 4294901760
        %3924 = vmatpush2.msra.mxu0 %v3923
        %v3925 = vand.u32 %v612, 4294901760
        %3926 = vmatprep.subr.mxu0 %v3925
        %v3927 = vand.u32 %v611, 4294901760
        %3928 = vmatpush2.msra.mxu0 %v3927
        %v3929 = vand.u32 %v610, 4294901760
        %3930 = vmatprep.subr.mxu0 %v3929
        %v3931 = vand.u32 %v609, 4294901760
        %3932 = vmatpush2.msra.mxu0 %v3931
        %v3933 = vand.u32 %v608, 4294901760
        %3934 = vmatprep.subr.mxu0 %v3933
        %v3935 = vand.u32 %v607, 4294901760
        %3936 = vmatpush2.msra.mxu0 %v3935
        %v3937 = vand.u32 %v606, 4294901760
        %3938 = vmatprep.subr.mxu0 %v3937
        %v3939 = vand.u32 %v605, 4294901760
        %3940 = vmatpush2.msra.mxu0 %v3939
        %v3941 = vand.u32 %v604, 4294901760
        %3942 = vmatprep.subr.mxu0 %v3941
        %v3943 = vand.u32 %v603, 4294901760
        %3944 = vmatpush2.msra.mxu0 %v3943
        %v3945 = vand.u32 %v602, 4294901760
        %3946 = vmatprep.subr.mxu0 %v3945
        %v3947 = vand.u32 %v601, 4294901760
        %3948 = vmatpush2.msra.mxu0 %v3947
        %v3949 = vand.u32 %v600, 4294901760
        %3950 = vmatprep.subr.mxu0 %v3949
        %v3951 = vand.u32 %v599, 4294901760
        %3952 = vmatpush2.msra.mxu0 %v3951
        %v3953 = vand.u32 %v598, 4294901760
        %3954 = vmatprep.subr.mxu0 %v3953
        %v3955 = vand.u32 %v597, 4294901760
        %3956 = vmatpush2.msra.mxu0 %v3955
        %v3957 = vand.u32 %v596, 4294901760
        %3958 = vmatprep.subr.mxu0 %v3957
        %v3959 = vand.u32 %v595, 4294901760
        %3960 = vmatpush2.msra.mxu0 %v3959
        %v3961 = vand.u32 %v374, 4294901760
        %v3962 = vsub.f32 %v374, %v3961
        %v3963 = vand.u32 %v3962, 4294901760
        %v3964 = vsub.f32 %v3962, %v3963
        %v3965 = vand.u32 %v3964, 4294901760
        %3966 = vmatprep.mubr.f32.mxu0 %v3965
        %v3967 = vand.u32 %v373, 4294901760
        %v3968 = vsub.f32 %v373, %v3967
        %v3969 = vand.u32 %v3968, 4294901760
        %v3970 = vsub.f32 %v3968, %v3969
        %v3971 = vand.u32 %v3970, 4294901760
        %3972 = vmatmul.mubr.f32.gmra.mxu0 %v3971
        %v3973 = vpop.f32.mrf.mxu0
        %v3974 = vadd.f32 %v3581, %v3973
        %v3975 = vpop.f32.mrf.mxu0
        %v3976 = vadd.f32 %v3583, %v3975
        %v3977 = vand.u32 %v378, 4294901760
        %v3978 = vsub.f32 %v378, %v3977
        %v3979 = vand.u32 %v3978, 4294901760
        %v3980 = vsub.f32 %v3978, %v3979
        %v3981 = vand.u32 %v3980, 4294901760
        %3982 = vmatprep.mubr.f32.mxu0 %v3981
        %v3983 = vand.u32 %v377, 4294901760
        %v3984 = vsub.f32 %v377, %v3983
        %v3985 = vand.u32 %v3984, 4294901760
        %v3986 = vsub.f32 %v3984, %v3985
        %v3987 = vand.u32 %v3986, 4294901760
        %3988 = vmatmul.mubr.f32.gmra.mxu0 %v3987
        %v3989 = vpop.f32.mrf.mxu0
        %v3990 = vadd.f32 %v3589, %v3989
        %v3991 = vpop.f32.mrf.mxu0
        %v3992 = vadd.f32 %v3591, %v3991
        %v3993 = vand.u32 %v382, 4294901760
        %v3994 = vsub.f32 %v382, %v3993
        %v3995 = vand.u32 %v3994, 4294901760
        %v3996 = vsub.f32 %v3994, %v3995
        %v3997 = vand.u32 %v3996, 4294901760
        %3998 = vmatprep.mubr.f32.mxu0 %v3997
        %v3999 = vand.u32 %v381, 4294901760
        %v4000 = vsub.f32 %v381, %v3999
        %v4001 = vand.u32 %v4000, 4294901760
        %v4002 = vsub.f32 %v4000, %v4001
        %v4003 = vand.u32 %v4002, 4294901760
        %4004 = vmatmul.mubr.f32.gmra.mxu0 %v4003
        %v4005 = vpop.f32.mrf.mxu0
        %v4006 = vadd.f32 %v3597, %v4005
        %v4007 = vpop.f32.mrf.mxu0
        %v4008 = vadd.f32 %v3599, %v4007
        %v4009 = vand.u32 %v386, 4294901760
        %v4010 = vsub.f32 %v386, %v4009
        %v4011 = vand.u32 %v4010, 4294901760
        %v4012 = vsub.f32 %v4010, %v4011
        %v4013 = vand.u32 %v4012, 4294901760
        %4014 = vmatprep.mubr.f32.mxu0 %v4013
        %v4015 = vand.u32 %v385, 4294901760
        %v4016 = vsub.f32 %v385, %v4015
        %v4017 = vand.u32 %v4016, 4294901760
        %v4018 = vsub.f32 %v4016, %v4017
        %v4019 = vand.u32 %v4018, 4294901760
        %4020 = vmatmul.mubr.f32.gmra.mxu0 %v4019
        %v4021 = vpop.f32.mrf.mxu0
        %v4022 = vadd.f32 %v3605, %v4021
        %v4023 = vpop.f32.mrf.mxu0
        %v4024 = vadd.f32 %v3607, %v4023
        %v4025 = vand.u32 %v390, 4294901760
        %v4026 = vsub.f32 %v390, %v4025
        %v4027 = vand.u32 %v4026, 4294901760
        %v4028 = vsub.f32 %v4026, %v4027
        %v4029 = vand.u32 %v4028, 4294901760
        %4030 = vmatprep.mubr.f32.mxu0 %v4029
        %v4031 = vand.u32 %v389, 4294901760
        %v4032 = vsub.f32 %v389, %v4031
        %v4033 = vand.u32 %v4032, 4294901760
        %v4034 = vsub.f32 %v4032, %v4033
        %v4035 = vand.u32 %v4034, 4294901760
        %4036 = vmatmul.mubr.f32.gmra.mxu0 %v4035
        %v4037 = vpop.f32.mrf.mxu0
        %v4038 = vadd.f32 %v3613, %v4037
        %v4039 = vpop.f32.mrf.mxu0
        %v4040 = vadd.f32 %v3615, %v4039
        %v4041 = vand.u32 %v394, 4294901760
        %v4042 = vsub.f32 %v394, %v4041
        %v4043 = vand.u32 %v4042, 4294901760
        %v4044 = vsub.f32 %v4042, %v4043
        %v4045 = vand.u32 %v4044, 4294901760
        %4046 = vmatprep.mubr.f32.mxu0 %v4045
        %v4047 = vand.u32 %v393, 4294901760
        %v4048 = vsub.f32 %v393, %v4047
        %v4049 = vand.u32 %v4048, 4294901760
        %v4050 = vsub.f32 %v4048, %v4049
        %v4051 = vand.u32 %v4050, 4294901760
        %4052 = vmatmul.mubr.f32.gmra.mxu0 %v4051
        %v4053 = vpop.f32.mrf.mxu0
        %v4054 = vadd.f32 %v3621, %v4053
        %v4055 = vpop.f32.mrf.mxu0
        %v4056 = vadd.f32 %v3623, %v4055
        %v4057 = vand.u32 %v398, 4294901760
        %v4058 = vsub.f32 %v398, %v4057
        %v4059 = vand.u32 %v4058, 4294901760
        %v4060 = vsub.f32 %v4058, %v4059
        %v4061 = vand.u32 %v4060, 4294901760
        %4062 = vmatprep.mubr.f32.mxu0 %v4061
        %v4063 = vand.u32 %v397, 4294901760
        %v4064 = vsub.f32 %v397, %v4063
        %v4065 = vand.u32 %v4064, 4294901760
        %v4066 = vsub.f32 %v4064, %v4065
        %v4067 = vand.u32 %v4066, 4294901760
        %4068 = vmatmul.mubr.f32.gmra.mxu0 %v4067
        %v4069 = vpop.f32.mrf.mxu0
        %v4070 = vadd.f32 %v3629, %v4069
        %v4071 = vpop.f32.mrf.mxu0
        %v4072 = vadd.f32 %v3631, %v4071
        %v4073 = vand.u32 %v402, 4294901760
        %v4074 = vsub.f32 %v402, %v4073
        %v4075 = vand.u32 %v4074, 4294901760
        %v4076 = vsub.f32 %v4074, %v4075
        %v4077 = vand.u32 %v4076, 4294901760
        %4078 = vmatprep.mubr.f32.mxu0 %v4077
        %v4079 = vand.u32 %v401, 4294901760
        %v4080 = vsub.f32 %v401, %v4079
        %v4081 = vand.u32 %v4080, 4294901760
        %v4082 = vsub.f32 %v4080, %v4081
        %v4083 = vand.u32 %v4082, 4294901760
        %4084 = vmatmul.mubr.f32.gmra.mxu0 %v4083
        %v4085 = vpop.f32.mrf.mxu0
        %v4086 = vadd.f32 %v3637, %v4085
        %v4087 = vpop.f32.mrf.mxu0
        %v4088 = vadd.f32 %v3639, %v4087
        %v4089 = vand.u32 %v406, 4294901760
        %v4090 = vsub.f32 %v406, %v4089
        %v4091 = vand.u32 %v4090, 4294901760
        %v4092 = vsub.f32 %v4090, %v4091
        %v4093 = vand.u32 %v4092, 4294901760
        %4094 = vmatprep.mubr.f32.mxu0 %v4093
        %v4095 = vand.u32 %v405, 4294901760
        %v4096 = vsub.f32 %v405, %v4095
        %v4097 = vand.u32 %v4096, 4294901760
        %v4098 = vsub.f32 %v4096, %v4097
        %v4099 = vand.u32 %v4098, 4294901760
        %4100 = vmatmul.mubr.f32.gmra.mxu0 %v4099
        %v4101 = vpop.f32.mrf.mxu0
        %v4102 = vadd.f32 %v3645, %v4101
        %v4103 = vpop.f32.mrf.mxu0
        %v4104 = vadd.f32 %v3647, %v4103
        %v4105 = vand.u32 %v410, 4294901760
        %v4106 = vsub.f32 %v410, %v4105
        %v4107 = vand.u32 %v4106, 4294901760
        %v4108 = vsub.f32 %v4106, %v4107
        %v4109 = vand.u32 %v4108, 4294901760
        %4110 = vmatprep.mubr.f32.mxu0 %v4109
        %v4111 = vand.u32 %v409, 4294901760
        %v4112 = vsub.f32 %v409, %v4111
        %v4113 = vand.u32 %v4112, 4294901760
        %v4114 = vsub.f32 %v4112, %v4113
        %v4115 = vand.u32 %v4114, 4294901760
        %4116 = vmatmul.mubr.f32.gmra.mxu0 %v4115
        %v4117 = vpop.f32.mrf.mxu0
        %v4118 = vadd.f32 %v3653, %v4117
        %v4119 = vpop.f32.mrf.mxu0
        %v4120 = vadd.f32 %v3655, %v4119
        %v4121 = vand.u32 %v414, 4294901760
        %v4122 = vsub.f32 %v414, %v4121
        %v4123 = vand.u32 %v4122, 4294901760
        %v4124 = vsub.f32 %v4122, %v4123
        %v4125 = vand.u32 %v4124, 4294901760
        %4126 = vmatprep.mubr.f32.mxu0 %v4125
        %v4127 = vand.u32 %v413, 4294901760
        %v4128 = vsub.f32 %v413, %v4127
        %v4129 = vand.u32 %v4128, 4294901760
        %v4130 = vsub.f32 %v4128, %v4129
        %v4131 = vand.u32 %v4130, 4294901760
        %4132 = vmatmul.mubr.f32.gmra.mxu0 %v4131
        %v4133 = vpop.f32.mrf.mxu0
        %v4134 = vadd.f32 %v3661, %v4133
        %v4135 = vpop.f32.mrf.mxu0
        %v4136 = vadd.f32 %v3663, %v4135
        %v4137 = vand.u32 %v418, 4294901760
        %v4138 = vsub.f32 %v418, %v4137
        %v4139 = vand.u32 %v4138, 4294901760
        %v4140 = vsub.f32 %v4138, %v4139
        %v4141 = vand.u32 %v4140, 4294901760
        %4142 = vmatprep.mubr.f32.mxu0 %v4141
        %v4143 = vand.u32 %v417, 4294901760
        %v4144 = vsub.f32 %v417, %v4143
        %v4145 = vand.u32 %v4144, 4294901760
        %v4146 = vsub.f32 %v4144, %v4145
        %v4147 = vand.u32 %v4146, 4294901760
        %4148 = vmatmul.mubr.f32.gmra.mxu0 %v4147
        %v4149 = vpop.f32.mrf.mxu0
        %v4150 = vadd.f32 %v3669, %v4149
        %v4151 = vpop.f32.mrf.mxu0
        %v4152 = vadd.f32 %v3671, %v4151
        %v4153 = vand.u32 %v422, 4294901760
        %v4154 = vsub.f32 %v422, %v4153
        %v4155 = vand.u32 %v4154, 4294901760
        %v4156 = vsub.f32 %v4154, %v4155
        %v4157 = vand.u32 %v4156, 4294901760
        %4158 = vmatprep.mubr.f32.mxu0 %v4157
        %v4159 = vand.u32 %v421, 4294901760
        %v4160 = vsub.f32 %v421, %v4159
        %v4161 = vand.u32 %v4160, 4294901760
        %v4162 = vsub.f32 %v4160, %v4161
        %v4163 = vand.u32 %v4162, 4294901760
        %4164 = vmatmul.mubr.f32.gmra.mxu0 %v4163
        %v4165 = vpop.f32.mrf.mxu0
        %v4166 = vadd.f32 %v3677, %v4165
        %v4167 = vpop.f32.mrf.mxu0
        %v4168 = vadd.f32 %v3679, %v4167
        %v4169 = vand.u32 %v426, 4294901760
        %v4170 = vsub.f32 %v426, %v4169
        %v4171 = vand.u32 %v4170, 4294901760
        %v4172 = vsub.f32 %v4170, %v4171
        %v4173 = vand.u32 %v4172, 4294901760
        %4174 = vmatprep.mubr.f32.mxu0 %v4173
        %v4175 = vand.u32 %v425, 4294901760
        %v4176 = vsub.f32 %v425, %v4175
        %v4177 = vand.u32 %v4176, 4294901760
        %v4178 = vsub.f32 %v4176, %v4177
        %v4179 = vand.u32 %v4178, 4294901760
        %4180 = vmatmul.mubr.f32.gmra.mxu0 %v4179
        %v4181 = vpop.f32.mrf.mxu0
        %v4182 = vadd.f32 %v3685, %v4181
        %v4183 = vpop.f32.mrf.mxu0
        %v4184 = vadd.f32 %v3687, %v4183
        %v4185 = vand.u32 %v430, 4294901760
        %v4186 = vsub.f32 %v430, %v4185
        %v4187 = vand.u32 %v4186, 4294901760
        %v4188 = vsub.f32 %v4186, %v4187
        %v4189 = vand.u32 %v4188, 4294901760
        %4190 = vmatprep.mubr.f32.mxu0 %v4189
        %v4191 = vand.u32 %v429, 4294901760
        %v4192 = vsub.f32 %v429, %v4191
        %v4193 = vand.u32 %v4192, 4294901760
        %v4194 = vsub.f32 %v4192, %v4193
        %v4195 = vand.u32 %v4194, 4294901760
        %4196 = vmatmul.mubr.f32.gmra.mxu0 %v4195
        %v4197 = vpop.f32.mrf.mxu0
        %v4198 = vadd.f32 %v3693, %v4197
        %v4199 = vpop.f32.mrf.mxu0
        %v4200 = vadd.f32 %v3695, %v4199
        %v4201 = vand.u32 %v434, 4294901760
        %v4202 = vsub.f32 %v434, %v4201
        %v4203 = vand.u32 %v4202, 4294901760
        %v4204 = vsub.f32 %v4202, %v4203
        %v4205 = vand.u32 %v4204, 4294901760
        %4206 = vmatprep.mubr.f32.mxu0 %v4205
        %v4207 = vand.u32 %v433, 4294901760
        %v4208 = vsub.f32 %v433, %v4207
        %v4209 = vand.u32 %v4208, 4294901760
        %v4210 = vsub.f32 %v4208, %v4209
        %v4211 = vand.u32 %v4210, 4294901760
        %4212 = vmatmul.mubr.f32.gmra.mxu0 %v4211
        %v4213 = vpop.f32.mrf.mxu0
        %v4214 = vadd.f32 %v3701, %v4213
        %v4215 = vpop.f32.mrf.mxu0
        %v4216 = vadd.f32 %v3703, %v4215
        %v4217 = vand.u32 %v438, 4294901760
        %v4218 = vsub.f32 %v438, %v4217
        %v4219 = vand.u32 %v4218, 4294901760
        %v4220 = vsub.f32 %v4218, %v4219
        %v4221 = vand.u32 %v4220, 4294901760
        %4222 = vmatprep.mubr.f32.mxu0 %v4221
        %v4223 = vand.u32 %v437, 4294901760
        %v4224 = vsub.f32 %v437, %v4223
        %v4225 = vand.u32 %v4224, 4294901760
        %v4226 = vsub.f32 %v4224, %v4225
        %v4227 = vand.u32 %v4226, 4294901760
        %4228 = vmatmul.mubr.f32.gmra.mxu0 %v4227
        %v4229 = vpop.f32.mrf.mxu0
        %v4230 = vadd.f32 %v3709, %v4229
        %v4231 = vpop.f32.mrf.mxu0
        %v4232 = vadd.f32 %v3711, %v4231
        %v4233 = vand.u32 %v442, 4294901760
        %v4234 = vsub.f32 %v442, %v4233
        %v4235 = vand.u32 %v4234, 4294901760
        %v4236 = vsub.f32 %v4234, %v4235
        %v4237 = vand.u32 %v4236, 4294901760
        %4238 = vmatprep.mubr.f32.mxu0 %v4237
        %v4239 = vand.u32 %v441, 4294901760
        %v4240 = vsub.f32 %v441, %v4239
        %v4241 = vand.u32 %v4240, 4294901760
        %v4242 = vsub.f32 %v4240, %v4241
        %v4243 = vand.u32 %v4242, 4294901760
        %4244 = vmatmul.mubr.f32.gmra.mxu0 %v4243
        %v4245 = vpop.f32.mrf.mxu0
        %v4246 = vadd.f32 %v3717, %v4245
        %v4247 = vpop.f32.mrf.mxu0
        %v4248 = vadd.f32 %v3719, %v4247
        %v4249 = vand.u32 %v446, 4294901760
        %v4250 = vsub.f32 %v446, %v4249
        %v4251 = vand.u32 %v4250, 4294901760
        %v4252 = vsub.f32 %v4250, %v4251
        %v4253 = vand.u32 %v4252, 4294901760
        %4254 = vmatprep.mubr.f32.mxu0 %v4253
        %v4255 = vand.u32 %v445, 4294901760
        %v4256 = vsub.f32 %v445, %v4255
        %v4257 = vand.u32 %v4256, 4294901760
        %v4258 = vsub.f32 %v4256, %v4257
        %v4259 = vand.u32 %v4258, 4294901760
        %4260 = vmatmul.mubr.f32.gmra.mxu0 %v4259
        %v4261 = vpop.f32.mrf.mxu0
        %v4262 = vadd.f32 %v3725, %v4261
        %v4263 = vpop.f32.mrf.mxu0
        %v4264 = vadd.f32 %v3727, %v4263
        %v4265 = vand.u32 %v450, 4294901760
        %v4266 = vsub.f32 %v450, %v4265
        %v4267 = vand.u32 %v4266, 4294901760
        %v4268 = vsub.f32 %v4266, %v4267
        %v4269 = vand.u32 %v4268, 4294901760
        %4270 = vmatprep.mubr.f32.mxu0 %v4269
        %v4271 = vand.u32 %v449, 4294901760
        %v4272 = vsub.f32 %v449, %v4271
        %v4273 = vand.u32 %v4272, 4294901760
        %v4274 = vsub.f32 %v4272, %v4273
        %v4275 = vand.u32 %v4274, 4294901760
        %4276 = vmatmul.mubr.f32.gmra.mxu0 %v4275
        %v4277 = vpop.f32.mrf.mxu0
        %v4278 = vadd.f32 %v3733, %v4277
        %v4279 = vpop.f32.mrf.mxu0
        %v4280 = vadd.f32 %v3735, %v4279
        %v4281 = vand.u32 %v454, 4294901760
        %v4282 = vsub.f32 %v454, %v4281
        %v4283 = vand.u32 %v4282, 4294901760
        %v4284 = vsub.f32 %v4282, %v4283
        %v4285 = vand.u32 %v4284, 4294901760
        %4286 = vmatprep.mubr.f32.mxu0 %v4285
        %v4287 = vand.u32 %v453, 4294901760
        %v4288 = vsub.f32 %v453, %v4287
        %v4289 = vand.u32 %v4288, 4294901760
        %v4290 = vsub.f32 %v4288, %v4289
        %v4291 = vand.u32 %v4290, 4294901760
        %4292 = vmatmul.mubr.f32.gmra.mxu0 %v4291
        %v4293 = vpop.f32.mrf.mxu0
        %v4294 = vadd.f32 %v3741, %v4293
        %v4295 = vpop.f32.mrf.mxu0
        %v4296 = vadd.f32 %v3743, %v4295
        %v4297 = vand.u32 %v458, 4294901760
        %v4298 = vsub.f32 %v458, %v4297
        %v4299 = vand.u32 %v4298, 4294901760
        %v4300 = vsub.f32 %v4298, %v4299
        %v4301 = vand.u32 %v4300, 4294901760
        %4302 = vmatprep.mubr.f32.mxu0 %v4301
        %v4303 = vand.u32 %v457, 4294901760
        %v4304 = vsub.f32 %v457, %v4303
        %v4305 = vand.u32 %v4304, 4294901760
        %v4306 = vsub.f32 %v4304, %v4305
        %v4307 = vand.u32 %v4306, 4294901760
        %4308 = vmatmul.mubr.f32.gmra.mxu0 %v4307
        %v4309 = vpop.f32.mrf.mxu0
        %v4310 = vadd.f32 %v3749, %v4309
        %v4311 = vpop.f32.mrf.mxu0
        %v4312 = vadd.f32 %v3751, %v4311
        %v4313 = vand.u32 %v462, 4294901760
        %v4314 = vsub.f32 %v462, %v4313
        %v4315 = vand.u32 %v4314, 4294901760
        %v4316 = vsub.f32 %v4314, %v4315
        %v4317 = vand.u32 %v4316, 4294901760
        %4318 = vmatprep.mubr.f32.mxu0 %v4317
        %v4319 = vand.u32 %v461, 4294901760
        %v4320 = vsub.f32 %v461, %v4319
        %v4321 = vand.u32 %v4320, 4294901760
        %v4322 = vsub.f32 %v4320, %v4321
        %v4323 = vand.u32 %v4322, 4294901760
        %4324 = vmatmul.mubr.f32.gmra.mxu0 %v4323
        %v4325 = vpop.f32.mrf.mxu0
        %v4326 = vadd.f32 %v3757, %v4325
        %v4327 = vpop.f32.mrf.mxu0
        %v4328 = vadd.f32 %v3759, %v4327
        %v4329 = vand.u32 %v466, 4294901760
        %v4330 = vsub.f32 %v466, %v4329
        %v4331 = vand.u32 %v4330, 4294901760
        %v4332 = vsub.f32 %v4330, %v4331
        %v4333 = vand.u32 %v4332, 4294901760
        %4334 = vmatprep.mubr.f32.mxu0 %v4333
        %v4335 = vand.u32 %v465, 4294901760
        %v4336 = vsub.f32 %v465, %v4335
        %v4337 = vand.u32 %v4336, 4294901760
        %v4338 = vsub.f32 %v4336, %v4337
        %v4339 = vand.u32 %v4338, 4294901760
        %4340 = vmatmul.mubr.f32.gmra.mxu0 %v4339
        %v4341 = vpop.f32.mrf.mxu0
        %v4342 = vadd.f32 %v3765, %v4341
        %v4343 = vpop.f32.mrf.mxu0
        %v4344 = vadd.f32 %v3767, %v4343
        %v4345 = vand.u32 %v470, 4294901760
        %v4346 = vsub.f32 %v470, %v4345
        %v4347 = vand.u32 %v4346, 4294901760
        %v4348 = vsub.f32 %v4346, %v4347
        %v4349 = vand.u32 %v4348, 4294901760
        %4350 = vmatprep.mubr.f32.mxu0 %v4349
        %v4351 = vand.u32 %v469, 4294901760
        %v4352 = vsub.f32 %v469, %v4351
        %v4353 = vand.u32 %v4352, 4294901760
        %v4354 = vsub.f32 %v4352, %v4353
        %v4355 = vand.u32 %v4354, 4294901760
        %4356 = vmatmul.mubr.f32.gmra.mxu0 %v4355
        %v4357 = vpop.f32.mrf.mxu0
        %v4358 = vadd.f32 %v3773, %v4357
        %v4359 = vpop.f32.mrf.mxu0
        %v4360 = vadd.f32 %v3775, %v4359
        %v4361 = vand.u32 %v474, 4294901760
        %v4362 = vsub.f32 %v474, %v4361
        %v4363 = vand.u32 %v4362, 4294901760
        %v4364 = vsub.f32 %v4362, %v4363
        %v4365 = vand.u32 %v4364, 4294901760
        %4366 = vmatprep.mubr.f32.mxu0 %v4365
        %v4367 = vand.u32 %v473, 4294901760
        %v4368 = vsub.f32 %v473, %v4367
        %v4369 = vand.u32 %v4368, 4294901760
        %v4370 = vsub.f32 %v4368, %v4369
        %v4371 = vand.u32 %v4370, 4294901760
        %4372 = vmatmul.mubr.f32.gmra.mxu0 %v4371
        %v4373 = vpop.f32.mrf.mxu0
        %v4374 = vadd.f32 %v3781, %v4373
        %v4375 = vpop.f32.mrf.mxu0
        %v4376 = vadd.f32 %v3783, %v4375
        %v4377 = vand.u32 %v478, 4294901760
        %v4378 = vsub.f32 %v478, %v4377
        %v4379 = vand.u32 %v4378, 4294901760
        %v4380 = vsub.f32 %v4378, %v4379
        %v4381 = vand.u32 %v4380, 4294901760
        %4382 = vmatprep.mubr.f32.mxu0 %v4381
        %v4383 = vand.u32 %v477, 4294901760
        %v4384 = vsub.f32 %v477, %v4383
        %v4385 = vand.u32 %v4384, 4294901760
        %v4386 = vsub.f32 %v4384, %v4385
        %v4387 = vand.u32 %v4386, 4294901760
        %4388 = vmatmul.mubr.f32.gmra.mxu0 %v4387
        %v4389 = vpop.f32.mrf.mxu0
        %v4390 = vadd.f32 %v3789, %v4389
        %v4391 = vpop.f32.mrf.mxu0
        %v4392 = vadd.f32 %v3791, %v4391
        %v4393 = vand.u32 %v482, 4294901760
        %v4394 = vsub.f32 %v482, %v4393
        %v4395 = vand.u32 %v4394, 4294901760
        %v4396 = vsub.f32 %v4394, %v4395
        %v4397 = vand.u32 %v4396, 4294901760
        %4398 = vmatprep.mubr.f32.mxu0 %v4397
        %v4399 = vand.u32 %v481, 4294901760
        %v4400 = vsub.f32 %v481, %v4399
        %v4401 = vand.u32 %v4400, 4294901760
        %v4402 = vsub.f32 %v4400, %v4401
        %v4403 = vand.u32 %v4402, 4294901760
        %4404 = vmatmul.mubr.f32.gmra.mxu0 %v4403
        %v4405 = vpop.f32.mrf.mxu0
        %v4406 = vadd.f32 %v3797, %v4405
        %v4407 = vpop.f32.mrf.mxu0
        %v4408 = vadd.f32 %v3799, %v4407
        %v4409 = vand.u32 %v486, 4294901760
        %v4410 = vsub.f32 %v486, %v4409
        %v4411 = vand.u32 %v4410, 4294901760
        %v4412 = vsub.f32 %v4410, %v4411
        %v4413 = vand.u32 %v4412, 4294901760
        %4414 = vmatprep.mubr.f32.mxu0 %v4413
        %v4415 = vand.u32 %v485, 4294901760
        %v4416 = vsub.f32 %v485, %v4415
        %v4417 = vand.u32 %v4416, 4294901760
        %v4418 = vsub.f32 %v4416, %v4417
        %v4419 = vand.u32 %v4418, 4294901760
        %4420 = vmatmul.mubr.f32.gmra.mxu0 %v4419
        %v4421 = vpop.f32.mrf.mxu0
        %v4422 = vadd.f32 %v3805, %v4421
        %v4423 = vpop.f32.mrf.mxu0
        %v4424 = vadd.f32 %v3807, %v4423
        %v4425 = vand.u32 %v490, 4294901760
        %v4426 = vsub.f32 %v490, %v4425
        %v4427 = vand.u32 %v4426, 4294901760
        %v4428 = vsub.f32 %v4426, %v4427
        %v4429 = vand.u32 %v4428, 4294901760
        %4430 = vmatprep.mubr.f32.mxu0 %v4429
        %v4431 = vand.u32 %v489, 4294901760
        %v4432 = vsub.f32 %v489, %v4431
        %v4433 = vand.u32 %v4432, 4294901760
        %v4434 = vsub.f32 %v4432, %v4433
        %v4435 = vand.u32 %v4434, 4294901760
        %4436 = vmatmul.mubr.f32.gmra.mxu0 %v4435
        %v4437 = vpop.f32.mrf.mxu0
        %v4438 = vadd.f32 %v3813, %v4437
        %v4439 = vpop.f32.mrf.mxu0
        %v4440 = vadd.f32 %v3815, %v4439
        %v4441 = vand.u32 %v494, 4294901760
        %v4442 = vsub.f32 %v494, %v4441
        %v4443 = vand.u32 %v4442, 4294901760
        %v4444 = vsub.f32 %v4442, %v4443
        %v4445 = vand.u32 %v4444, 4294901760
        %4446 = vmatprep.mubr.f32.mxu0 %v4445
        %v4447 = vand.u32 %v493, 4294901760
        %v4448 = vsub.f32 %v493, %v4447
        %v4449 = vand.u32 %v4448, 4294901760
        %v4450 = vsub.f32 %v4448, %v4449
        %v4451 = vand.u32 %v4450, 4294901760
        %4452 = vmatmul.mubr.f32.gmra.mxu0 %v4451
        %v4453 = vpop.f32.mrf.mxu0
        %v4454 = vadd.f32 %v3821, %v4453
        %v4455 = vpop.f32.mrf.mxu0
        %v4456 = vadd.f32 %v3823, %v4455
        %v4457 = vand.u32 %v498, 4294901760
        %v4458 = vsub.f32 %v498, %v4457
        %v4459 = vand.u32 %v4458, 4294901760
        %v4460 = vsub.f32 %v4458, %v4459
        %v4461 = vand.u32 %v4460, 4294901760
        %4462 = vmatprep.mubr.f32.mxu0 %v4461
        %v4463 = vand.u32 %v497, 4294901760
        %v4464 = vsub.f32 %v497, %v4463
        %v4465 = vand.u32 %v4464, 4294901760
        %v4466 = vsub.f32 %v4464, %v4465
        %v4467 = vand.u32 %v4466, 4294901760
        %4468 = vmatmul.mubr.f32.gmra.mxu0 %v4467
        %v4469 = vpop.f32.mrf.mxu0
        %v4470 = vadd.f32 %v3829, %v4469
        %v4471 = vpop.f32.mrf.mxu0
        %v4472 = vadd.f32 %v3831, %v4471
        %4473 = vdwg.mxu0
        %v4474 = vand.u32 %v594, 4294901760
        %v4475 = vsub.f32 %v594, %v4474
        %v4476 = vand.u32 %v4475, 4294901760
        %v4477 = vsub.f32 %v4475, %v4476
        %v4478 = vand.u32 %v4477, 4294901760
        %4479 = vmatprep.subr.mxu0 %v4478
        %v4480 = vand.u32 %v593, 4294901760
        %v4481 = vsub.f32 %v593, %v4480
        %v4482 = vand.u32 %v4481, 4294901760
        %v4483 = vsub.f32 %v4481, %v4482
        %v4484 = vand.u32 %v4483, 4294901760
        %4485 = vmatpush1.msra.mxu0 %v4484
        %v4486 = vand.u32 %v592, 4294901760
        %v4487 = vsub.f32 %v592, %v4486
        %v4488 = vand.u32 %v4487, 4294901760
        %v4489 = vsub.f32 %v4487, %v4488
        %v4490 = vand.u32 %v4489, 4294901760
        %4491 = vmatprep.subr.mxu0 %v4490
        %v4492 = vand.u32 %v591, 4294901760
        %v4493 = vsub.f32 %v591, %v4492
        %v4494 = vand.u32 %v4493, 4294901760
        %v4495 = vsub.f32 %v4493, %v4494
        %v4496 = vand.u32 %v4495, 4294901760
        %4497 = vmatpush1.msra.mxu0 %v4496
        %v4498 = vand.u32 %v590, 4294901760
        %v4499 = vsub.f32 %v590, %v4498
        %v4500 = vand.u32 %v4499, 4294901760
        %v4501 = vsub.f32 %v4499, %v4500
        %v4502 = vand.u32 %v4501, 4294901760
        %4503 = vmatprep.subr.mxu0 %v4502
        %v4504 = vand.u32 %v589, 4294901760
        %v4505 = vsub.f32 %v589, %v4504
        %v4506 = vand.u32 %v4505, 4294901760
        %v4507 = vsub.f32 %v4505, %v4506
        %v4508 = vand.u32 %v4507, 4294901760
        %4509 = vmatpush1.msra.mxu0 %v4508
        %v4510 = vand.u32 %v588, 4294901760
        %v4511 = vsub.f32 %v588, %v4510
        %v4512 = vand.u32 %v4511, 4294901760
        %v4513 = vsub.f32 %v4511, %v4512
        %v4514 = vand.u32 %v4513, 4294901760
        %4515 = vmatprep.subr.mxu0 %v4514
        %v4516 = vand.u32 %v587, 4294901760
        %v4517 = vsub.f32 %v587, %v4516
        %v4518 = vand.u32 %v4517, 4294901760
        %v4519 = vsub.f32 %v4517, %v4518
        %v4520 = vand.u32 %v4519, 4294901760
        %4521 = vmatpush1.msra.mxu0 %v4520
        %v4522 = vand.u32 %v586, 4294901760
        %v4523 = vsub.f32 %v586, %v4522
        %v4524 = vand.u32 %v4523, 4294901760
        %v4525 = vsub.f32 %v4523, %v4524
        %v4526 = vand.u32 %v4525, 4294901760
        %4527 = vmatprep.subr.mxu0 %v4526
        %v4528 = vand.u32 %v585, 4294901760
        %v4529 = vsub.f32 %v585, %v4528
        %v4530 = vand.u32 %v4529, 4294901760
        %v4531 = vsub.f32 %v4529, %v4530
        %v4532 = vand.u32 %v4531, 4294901760
        %4533 = vmatpush1.msra.mxu0 %v4532
        %v4534 = vand.u32 %v584, 4294901760
        %v4535 = vsub.f32 %v584, %v4534
        %v4536 = vand.u32 %v4535, 4294901760
        %v4537 = vsub.f32 %v4535, %v4536
        %v4538 = vand.u32 %v4537, 4294901760
        %4539 = vmatprep.subr.mxu0 %v4538
        %v4540 = vand.u32 %v583, 4294901760
        %v4541 = vsub.f32 %v583, %v4540
        %v4542 = vand.u32 %v4541, 4294901760
        %v4543 = vsub.f32 %v4541, %v4542
        %v4544 = vand.u32 %v4543, 4294901760
        %4545 = vmatpush1.msra.mxu0 %v4544
        %v4546 = vand.u32 %v582, 4294901760
        %v4547 = vsub.f32 %v582, %v4546
        %v4548 = vand.u32 %v4547, 4294901760
        %v4549 = vsub.f32 %v4547, %v4548
        %v4550 = vand.u32 %v4549, 4294901760
        %4551 = vmatprep.subr.mxu0 %v4550
        %v4552 = vand.u32 %v581, 4294901760
        %v4553 = vsub.f32 %v581, %v4552
        %v4554 = vand.u32 %v4553, 4294901760
        %v4555 = vsub.f32 %v4553, %v4554
        %v4556 = vand.u32 %v4555, 4294901760
        %4557 = vmatpush1.msra.mxu0 %v4556
        %v4558 = vand.u32 %v580, 4294901760
        %v4559 = vsub.f32 %v580, %v4558
        %v4560 = vand.u32 %v4559, 4294901760
        %v4561 = vsub.f32 %v4559, %v4560
        %v4562 = vand.u32 %v4561, 4294901760
        %4563 = vmatprep.subr.mxu0 %v4562
        %v4564 = vand.u32 %v579, 4294901760
        %v4565 = vsub.f32 %v579, %v4564
        %v4566 = vand.u32 %v4565, 4294901760
        %v4567 = vsub.f32 %v4565, %v4566
        %v4568 = vand.u32 %v4567, 4294901760
        %4569 = vmatpush1.msra.mxu0 %v4568
        %v4570 = vand.u32 %v578, 4294901760
        %v4571 = vsub.f32 %v578, %v4570
        %v4572 = vand.u32 %v4571, 4294901760
        %v4573 = vsub.f32 %v4571, %v4572
        %v4574 = vand.u32 %v4573, 4294901760
        %4575 = vmatprep.subr.mxu0 %v4574
        %v4576 = vand.u32 %v577, 4294901760
        %v4577 = vsub.f32 %v577, %v4576
        %v4578 = vand.u32 %v4577, 4294901760
        %v4579 = vsub.f32 %v4577, %v4578
        %v4580 = vand.u32 %v4579, 4294901760
        %4581 = vmatpush1.msra.mxu0 %v4580
        %v4582 = vand.u32 %v576, 4294901760
        %v4583 = vsub.f32 %v576, %v4582
        %v4584 = vand.u32 %v4583, 4294901760
        %v4585 = vsub.f32 %v4583, %v4584
        %v4586 = vand.u32 %v4585, 4294901760
        %4587 = vmatprep.subr.mxu0 %v4586
        %v4588 = vand.u32 %v575, 4294901760
        %v4589 = vsub.f32 %v575, %v4588
        %v4590 = vand.u32 %v4589, 4294901760
        %v4591 = vsub.f32 %v4589, %v4590
        %v4592 = vand.u32 %v4591, 4294901760
        %4593 = vmatpush1.msra.mxu0 %v4592
        %v4594 = vand.u32 %v574, 4294901760
        %v4595 = vsub.f32 %v574, %v4594
        %v4596 = vand.u32 %v4595, 4294901760
        %v4597 = vsub.f32 %v4595, %v4596
        %v4598 = vand.u32 %v4597, 4294901760
        %4599 = vmatprep.subr.mxu0 %v4598
        %v4600 = vand.u32 %v573, 4294901760
        %v4601 = vsub.f32 %v573, %v4600
        %v4602 = vand.u32 %v4601, 4294901760
        %v4603 = vsub.f32 %v4601, %v4602
        %v4604 = vand.u32 %v4603, 4294901760
        %4605 = vmatpush1.msra.mxu0 %v4604
        %v4606 = vand.u32 %v572, 4294901760
        %v4607 = vsub.f32 %v572, %v4606
        %v4608 = vand.u32 %v4607, 4294901760
        %v4609 = vsub.f32 %v4607, %v4608
        %v4610 = vand.u32 %v4609, 4294901760
        %4611 = vmatprep.subr.mxu0 %v4610
        %v4612 = vand.u32 %v571, 4294901760
        %v4613 = vsub.f32 %v571, %v4612
        %v4614 = vand.u32 %v4613, 4294901760
        %v4615 = vsub.f32 %v4613, %v4614
        %v4616 = vand.u32 %v4615, 4294901760
        %4617 = vmatpush1.msra.mxu0 %v4616
        %v4618 = vand.u32 %v570, 4294901760
        %v4619 = vsub.f32 %v570, %v4618
        %v4620 = vand.u32 %v4619, 4294901760
        %v4621 = vsub.f32 %v4619, %v4620
        %v4622 = vand.u32 %v4621, 4294901760
        %4623 = vmatprep.subr.mxu0 %v4622
        %v4624 = vand.u32 %v569, 4294901760
        %v4625 = vsub.f32 %v569, %v4624
        %v4626 = vand.u32 %v4625, 4294901760
        %v4627 = vsub.f32 %v4625, %v4626
        %v4628 = vand.u32 %v4627, 4294901760
        %4629 = vmatpush1.msra.mxu0 %v4628
        %v4630 = vand.u32 %v568, 4294901760
        %v4631 = vsub.f32 %v568, %v4630
        %v4632 = vand.u32 %v4631, 4294901760
        %v4633 = vsub.f32 %v4631, %v4632
        %v4634 = vand.u32 %v4633, 4294901760
        %4635 = vmatprep.subr.mxu0 %v4634
        %v4636 = vand.u32 %v567, 4294901760
        %v4637 = vsub.f32 %v567, %v4636
        %v4638 = vand.u32 %v4637, 4294901760
        %v4639 = vsub.f32 %v4637, %v4638
        %v4640 = vand.u32 %v4639, 4294901760
        %4641 = vmatpush1.msra.mxu0 %v4640
        %v4642 = vand.u32 %v566, 4294901760
        %v4643 = vsub.f32 %v566, %v4642
        %v4644 = vand.u32 %v4643, 4294901760
        %v4645 = vsub.f32 %v4643, %v4644
        %v4646 = vand.u32 %v4645, 4294901760
        %4647 = vmatprep.subr.mxu0 %v4646
        %v4648 = vand.u32 %v565, 4294901760
        %v4649 = vsub.f32 %v565, %v4648
        %v4650 = vand.u32 %v4649, 4294901760
        %v4651 = vsub.f32 %v4649, %v4650
        %v4652 = vand.u32 %v4651, 4294901760
        %4653 = vmatpush1.msra.mxu0 %v4652
        %v4654 = vand.u32 %v564, 4294901760
        %v4655 = vsub.f32 %v564, %v4654
        %v4656 = vand.u32 %v4655, 4294901760
        %v4657 = vsub.f32 %v4655, %v4656
        %v4658 = vand.u32 %v4657, 4294901760
        %4659 = vmatprep.subr.mxu0 %v4658
        %v4660 = vand.u32 %v563, 4294901760
        %v4661 = vsub.f32 %v563, %v4660
        %v4662 = vand.u32 %v4661, 4294901760
        %v4663 = vsub.f32 %v4661, %v4662
        %v4664 = vand.u32 %v4663, 4294901760
        %4665 = vmatpush1.msra.mxu0 %v4664
        %v4666 = vand.u32 %v626, 4294901760
        %v4667 = vsub.f32 %v626, %v4666
        %v4668 = vand.u32 %v4667, 4294901760
        %v4669 = vsub.f32 %v4667, %v4668
        %v4670 = vand.u32 %v4669, 4294901760
        %4671 = vmatprep.subr.mxu0 %v4670
        %v4672 = vand.u32 %v625, 4294901760
        %v4673 = vsub.f32 %v625, %v4672
        %v4674 = vand.u32 %v4673, 4294901760
        %v4675 = vsub.f32 %v4673, %v4674
        %v4676 = vand.u32 %v4675, 4294901760
        %4677 = vmatpush2.msra.mxu0 %v4676
        %v4678 = vand.u32 %v624, 4294901760
        %v4679 = vsub.f32 %v624, %v4678
        %v4680 = vand.u32 %v4679, 4294901760
        %v4681 = vsub.f32 %v4679, %v4680
        %v4682 = vand.u32 %v4681, 4294901760
        %4683 = vmatprep.subr.mxu0 %v4682
        %v4684 = vand.u32 %v623, 4294901760
        %v4685 = vsub.f32 %v623, %v4684
        %v4686 = vand.u32 %v4685, 4294901760
        %v4687 = vsub.f32 %v4685, %v4686
        %v4688 = vand.u32 %v4687, 4294901760
        %4689 = vmatpush2.msra.mxu0 %v4688
        %v4690 = vand.u32 %v622, 4294901760
        %v4691 = vsub.f32 %v622, %v4690
        %v4692 = vand.u32 %v4691, 4294901760
        %v4693 = vsub.f32 %v4691, %v4692
        %v4694 = vand.u32 %v4693, 4294901760
        %4695 = vmatprep.subr.mxu0 %v4694
        %v4696 = vand.u32 %v621, 4294901760
        %v4697 = vsub.f32 %v621, %v4696
        %v4698 = vand.u32 %v4697, 4294901760
        %v4699 = vsub.f32 %v4697, %v4698
        %v4700 = vand.u32 %v4699, 4294901760
        %4701 = vmatpush2.msra.mxu0 %v4700
        %v4702 = vand.u32 %v620, 4294901760
        %v4703 = vsub.f32 %v620, %v4702
        %v4704 = vand.u32 %v4703, 4294901760
        %v4705 = vsub.f32 %v4703, %v4704
        %v4706 = vand.u32 %v4705, 4294901760
        %4707 = vmatprep.subr.mxu0 %v4706
        %v4708 = vand.u32 %v619, 4294901760
        %v4709 = vsub.f32 %v619, %v4708
        %v4710 = vand.u32 %v4709, 4294901760
        %v4711 = vsub.f32 %v4709, %v4710
        %v4712 = vand.u32 %v4711, 4294901760
        %4713 = vmatpush2.msra.mxu0 %v4712
        %v4714 = vand.u32 %v618, 4294901760
        %v4715 = vsub.f32 %v618, %v4714
        %v4716 = vand.u32 %v4715, 4294901760
        %v4717 = vsub.f32 %v4715, %v4716
        %v4718 = vand.u32 %v4717, 4294901760
        %4719 = vmatprep.subr.mxu0 %v4718
        %v4720 = vand.u32 %v617, 4294901760
        %v4721 = vsub.f32 %v617, %v4720
        %v4722 = vand.u32 %v4721, 4294901760
        %v4723 = vsub.f32 %v4721, %v4722
        %v4724 = vand.u32 %v4723, 4294901760
        %4725 = vmatpush2.msra.mxu0 %v4724
        %v4726 = vand.u32 %v616, 4294901760
        %v4727 = vsub.f32 %v616, %v4726
        %v4728 = vand.u32 %v4727, 4294901760
        %v4729 = vsub.f32 %v4727, %v4728
        %v4730 = vand.u32 %v4729, 4294901760
        %4731 = vmatprep.subr.mxu0 %v4730
        %v4732 = vand.u32 %v615, 4294901760
        %v4733 = vsub.f32 %v615, %v4732
        %v4734 = vand.u32 %v4733, 4294901760
        %v4735 = vsub.f32 %v4733, %v4734
        %v4736 = vand.u32 %v4735, 4294901760
        %4737 = vmatpush2.msra.mxu0 %v4736
        %v4738 = vand.u32 %v614, 4294901760
        %v4739 = vsub.f32 %v614, %v4738
        %v4740 = vand.u32 %v4739, 4294901760
        %v4741 = vsub.f32 %v4739, %v4740
        %v4742 = vand.u32 %v4741, 4294901760
        %4743 = vmatprep.subr.mxu0 %v4742
        %v4744 = vand.u32 %v613, 4294901760
        %v4745 = vsub.f32 %v613, %v4744
        %v4746 = vand.u32 %v4745, 4294901760
        %v4747 = vsub.f32 %v4745, %v4746
        %v4748 = vand.u32 %v4747, 4294901760
        %4749 = vmatpush2.msra.mxu0 %v4748
        %v4750 = vand.u32 %v612, 4294901760
        %v4751 = vsub.f32 %v612, %v4750
        %v4752 = vand.u32 %v4751, 4294901760
        %v4753 = vsub.f32 %v4751, %v4752
        %v4754 = vand.u32 %v4753, 4294901760
        %4755 = vmatprep.subr.mxu0 %v4754
        %v4756 = vand.u32 %v611, 4294901760
        %v4757 = vsub.f32 %v611, %v4756
        %v4758 = vand.u32 %v4757, 4294901760
        %v4759 = vsub.f32 %v4757, %v4758
        %v4760 = vand.u32 %v4759, 4294901760
        %4761 = vmatpush2.msra.mxu0 %v4760
        %v4762 = vand.u32 %v610, 4294901760
        %v4763 = vsub.f32 %v610, %v4762
        %v4764 = vand.u32 %v4763, 4294901760
        %v4765 = vsub.f32 %v4763, %v4764
        %v4766 = vand.u32 %v4765, 4294901760
        %4767 = vmatprep.subr.mxu0 %v4766
        %v4768 = vand.u32 %v609, 4294901760
        %v4769 = vsub.f32 %v609, %v4768
        %v4770 = vand.u32 %v4769, 4294901760
        %v4771 = vsub.f32 %v4769, %v4770
        %v4772 = vand.u32 %v4771, 4294901760
        %4773 = vmatpush2.msra.mxu0 %v4772
        %v4774 = vand.u32 %v608, 4294901760
        %v4775 = vsub.f32 %v608, %v4774
        %v4776 = vand.u32 %v4775, 4294901760
        %v4777 = vsub.f32 %v4775, %v4776
        %v4778 = vand.u32 %v4777, 4294901760
        %4779 = vmatprep.subr.mxu0 %v4778
        %v4780 = vand.u32 %v607, 4294901760
        %v4781 = vsub.f32 %v607, %v4780
        %v4782 = vand.u32 %v4781, 4294901760
        %v4783 = vsub.f32 %v4781, %v4782
        %v4784 = vand.u32 %v4783, 4294901760
        %4785 = vmatpush2.msra.mxu0 %v4784
        %v4786 = vand.u32 %v606, 4294901760
        %v4787 = vsub.f32 %v606, %v4786
        %v4788 = vand.u32 %v4787, 4294901760
        %v4789 = vsub.f32 %v4787, %v4788
        %v4790 = vand.u32 %v4789, 4294901760
        %4791 = vmatprep.subr.mxu0 %v4790
        %v4792 = vand.u32 %v605, 4294901760
        %v4793 = vsub.f32 %v605, %v4792
        %v4794 = vand.u32 %v4793, 4294901760
        %v4795 = vsub.f32 %v4793, %v4794
        %v4796 = vand.u32 %v4795, 4294901760
        %4797 = vmatpush2.msra.mxu0 %v4796
        %v4798 = vand.u32 %v604, 4294901760
        %v4799 = vsub.f32 %v604, %v4798
        %v4800 = vand.u32 %v4799, 4294901760
        %v4801 = vsub.f32 %v4799, %v4800
        %v4802 = vand.u32 %v4801, 4294901760
        %4803 = vmatprep.subr.mxu0 %v4802
        %v4804 = vand.u32 %v603, 4294901760
        %v4805 = vsub.f32 %v603, %v4804
        %v4806 = vand.u32 %v4805, 4294901760
        %v4807 = vsub.f32 %v4805, %v4806
        %v4808 = vand.u32 %v4807, 4294901760
        %4809 = vmatpush2.msra.mxu0 %v4808
        %v4810 = vand.u32 %v602, 4294901760
        %v4811 = vsub.f32 %v602, %v4810
        %v4812 = vand.u32 %v4811, 4294901760
        %v4813 = vsub.f32 %v4811, %v4812
        %v4814 = vand.u32 %v4813, 4294901760
        %4815 = vmatprep.subr.mxu0 %v4814
        %v4816 = vand.u32 %v601, 4294901760
        %v4817 = vsub.f32 %v601, %v4816
        %v4818 = vand.u32 %v4817, 4294901760
        %v4819 = vsub.f32 %v4817, %v4818
        %v4820 = vand.u32 %v4819, 4294901760
        %4821 = vmatpush2.msra.mxu0 %v4820
        %v4822 = vand.u32 %v600, 4294901760
        %v4823 = vsub.f32 %v600, %v4822
        %v4824 = vand.u32 %v4823, 4294901760
        %v4825 = vsub.f32 %v4823, %v4824
        %v4826 = vand.u32 %v4825, 4294901760
        %4827 = vmatprep.subr.mxu0 %v4826
        %v4828 = vand.u32 %v599, 4294901760
        %v4829 = vsub.f32 %v599, %v4828
        %v4830 = vand.u32 %v4829, 4294901760
        %v4831 = vsub.f32 %v4829, %v4830
        %v4832 = vand.u32 %v4831, 4294901760
        %4833 = vmatpush2.msra.mxu0 %v4832
        %v4834 = vand.u32 %v598, 4294901760
        %v4835 = vsub.f32 %v598, %v4834
        %v4836 = vand.u32 %v4835, 4294901760
        %v4837 = vsub.f32 %v4835, %v4836
        %v4838 = vand.u32 %v4837, 4294901760
        %4839 = vmatprep.subr.mxu0 %v4838
        %v4840 = vand.u32 %v597, 4294901760
        %v4841 = vsub.f32 %v597, %v4840
        %v4842 = vand.u32 %v4841, 4294901760
        %v4843 = vsub.f32 %v4841, %v4842
        %v4844 = vand.u32 %v4843, 4294901760
        %4845 = vmatpush2.msra.mxu0 %v4844
        %v4846 = vand.u32 %v596, 4294901760
        %v4847 = vsub.f32 %v596, %v4846
        %v4848 = vand.u32 %v4847, 4294901760
        %v4849 = vsub.f32 %v4847, %v4848
        %v4850 = vand.u32 %v4849, 4294901760
        %4851 = vmatprep.subr.mxu0 %v4850
        %v4852 = vand.u32 %v595, 4294901760
        %v4853 = vsub.f32 %v595, %v4852
        %v4854 = vand.u32 %v4853, 4294901760
        %v4855 = vsub.f32 %v4853, %v4854
        %v4856 = vand.u32 %v4855, 4294901760
        %4857 = vmatpush2.msra.mxu0 %v4856
        %v4858 = vand.u32 %v374, 4294901760
        %4859 = vmatprep.mubr.f32.mxu0 %v4858
        %v4860 = vand.u32 %v373, 4294901760
        %4861 = vmatmul.mubr.f32.gmra.mxu0 %v4860
        %v4862 = vpop.f32.mrf.mxu0
        %v4863 = vadd.f32 %v3974, %v4862
        %v4864 = vpop.f32.mrf.mxu0
        %v4865 = vadd.f32 %v3976, %v4864
        %v4866 = vand.u32 %v378, 4294901760
        %4867 = vmatprep.mubr.f32.mxu0 %v4866
        %v4868 = vand.u32 %v377, 4294901760
        %4869 = vmatmul.mubr.f32.gmra.mxu0 %v4868
        %v4870 = vpop.f32.mrf.mxu0
        %v4871 = vadd.f32 %v3990, %v4870
        %v4872 = vpop.f32.mrf.mxu0
        %v4873 = vadd.f32 %v3992, %v4872
        %v4874 = vand.u32 %v382, 4294901760
        %4875 = vmatprep.mubr.f32.mxu0 %v4874
        %v4876 = vand.u32 %v381, 4294901760
        %4877 = vmatmul.mubr.f32.gmra.mxu0 %v4876
        %v4878 = vpop.f32.mrf.mxu0
        %v4879 = vadd.f32 %v4006, %v4878
        %v4880 = vpop.f32.mrf.mxu0
        %v4881 = vadd.f32 %v4008, %v4880
        %v4882 = vand.u32 %v386, 4294901760
        %4883 = vmatprep.mubr.f32.mxu0 %v4882
        %v4884 = vand.u32 %v385, 4294901760
        %4885 = vmatmul.mubr.f32.gmra.mxu0 %v4884
        %v4886 = vpop.f32.mrf.mxu0
        %v4887 = vadd.f32 %v4022, %v4886
        %v4888 = vpop.f32.mrf.mxu0
        %v4889 = vadd.f32 %v4024, %v4888
        %v4890 = vand.u32 %v390, 4294901760
        %4891 = vmatprep.mubr.f32.mxu0 %v4890
        %v4892 = vand.u32 %v389, 4294901760
        %4893 = vmatmul.mubr.f32.gmra.mxu0 %v4892
        %v4894 = vpop.f32.mrf.mxu0
        %v4895 = vadd.f32 %v4038, %v4894
        %v4896 = vpop.f32.mrf.mxu0
        %v4897 = vadd.f32 %v4040, %v4896
        %v4898 = vand.u32 %v394, 4294901760
        %4899 = vmatprep.mubr.f32.mxu0 %v4898
        %v4900 = vand.u32 %v393, 4294901760
        %4901 = vmatmul.mubr.f32.gmra.mxu0 %v4900
        %v4902 = vpop.f32.mrf.mxu0
        %v4903 = vadd.f32 %v4054, %v4902
        %v4904 = vpop.f32.mrf.mxu0
        %v4905 = vadd.f32 %v4056, %v4904
        %v4906 = vand.u32 %v398, 4294901760
        %4907 = vmatprep.mubr.f32.mxu0 %v4906
        %v4908 = vand.u32 %v397, 4294901760
        %4909 = vmatmul.mubr.f32.gmra.mxu0 %v4908
        %v4910 = vpop.f32.mrf.mxu0
        %v4911 = vadd.f32 %v4070, %v4910
        %v4912 = vpop.f32.mrf.mxu0
        %v4913 = vadd.f32 %v4072, %v4912
        %v4914 = vand.u32 %v402, 4294901760
        %4915 = vmatprep.mubr.f32.mxu0 %v4914
        %v4916 = vand.u32 %v401, 4294901760
        %4917 = vmatmul.mubr.f32.gmra.mxu0 %v4916
        %v4918 = vpop.f32.mrf.mxu0
        %v4919 = vadd.f32 %v4086, %v4918
        %v4920 = vpop.f32.mrf.mxu0
        %v4921 = vadd.f32 %v4088, %v4920
        %v4922 = vand.u32 %v406, 4294901760
        %4923 = vmatprep.mubr.f32.mxu0 %v4922
        %v4924 = vand.u32 %v405, 4294901760
        %4925 = vmatmul.mubr.f32.gmra.mxu0 %v4924
        %v4926 = vpop.f32.mrf.mxu0
        %v4927 = vadd.f32 %v4102, %v4926
        %v4928 = vpop.f32.mrf.mxu0
        %v4929 = vadd.f32 %v4104, %v4928
        %v4930 = vand.u32 %v410, 4294901760
        %4931 = vmatprep.mubr.f32.mxu0 %v4930
        %v4932 = vand.u32 %v409, 4294901760
        %4933 = vmatmul.mubr.f32.gmra.mxu0 %v4932
        %v4934 = vpop.f32.mrf.mxu0
        %v4935 = vadd.f32 %v4118, %v4934
        %v4936 = vpop.f32.mrf.mxu0
        %v4937 = vadd.f32 %v4120, %v4936
        %v4938 = vand.u32 %v414, 4294901760
        %4939 = vmatprep.mubr.f32.mxu0 %v4938
        %v4940 = vand.u32 %v413, 4294901760
        %4941 = vmatmul.mubr.f32.gmra.mxu0 %v4940
        %v4942 = vpop.f32.mrf.mxu0
        %v4943 = vadd.f32 %v4134, %v4942
        %v4944 = vpop.f32.mrf.mxu0
        %v4945 = vadd.f32 %v4136, %v4944
        %v4946 = vand.u32 %v418, 4294901760
        %4947 = vmatprep.mubr.f32.mxu0 %v4946
        %v4948 = vand.u32 %v417, 4294901760
        %4949 = vmatmul.mubr.f32.gmra.mxu0 %v4948
        %v4950 = vpop.f32.mrf.mxu0
        %v4951 = vadd.f32 %v4150, %v4950
        %v4952 = vpop.f32.mrf.mxu0
        %v4953 = vadd.f32 %v4152, %v4952
        %v4954 = vand.u32 %v422, 4294901760
        %4955 = vmatprep.mubr.f32.mxu0 %v4954
        %v4956 = vand.u32 %v421, 4294901760
        %4957 = vmatmul.mubr.f32.gmra.mxu0 %v4956
        %v4958 = vpop.f32.mrf.mxu0
        %v4959 = vadd.f32 %v4166, %v4958
        %v4960 = vpop.f32.mrf.mxu0
        %v4961 = vadd.f32 %v4168, %v4960
        %v4962 = vand.u32 %v426, 4294901760
        %4963 = vmatprep.mubr.f32.mxu0 %v4962
        %v4964 = vand.u32 %v425, 4294901760
        %4965 = vmatmul.mubr.f32.gmra.mxu0 %v4964
        %v4966 = vpop.f32.mrf.mxu0
        %v4967 = vadd.f32 %v4182, %v4966
        %v4968 = vpop.f32.mrf.mxu0
        %v4969 = vadd.f32 %v4184, %v4968
        %v4970 = vand.u32 %v430, 4294901760
        %4971 = vmatprep.mubr.f32.mxu0 %v4970
        %v4972 = vand.u32 %v429, 4294901760
        %4973 = vmatmul.mubr.f32.gmra.mxu0 %v4972
        %v4974 = vpop.f32.mrf.mxu0
        %v4975 = vadd.f32 %v4198, %v4974
        %v4976 = vpop.f32.mrf.mxu0
        %v4977 = vadd.f32 %v4200, %v4976
        %v4978 = vand.u32 %v434, 4294901760
        %4979 = vmatprep.mubr.f32.mxu0 %v4978
        %v4980 = vand.u32 %v433, 4294901760
        %4981 = vmatmul.mubr.f32.gmra.mxu0 %v4980
        %v4982 = vpop.f32.mrf.mxu0
        %v4983 = vadd.f32 %v4214, %v4982
        %v4984 = vpop.f32.mrf.mxu0
        %v4985 = vadd.f32 %v4216, %v4984
        %v4986 = vand.u32 %v438, 4294901760
        %4987 = vmatprep.mubr.f32.mxu0 %v4986
        %v4988 = vand.u32 %v437, 4294901760
        %4989 = vmatmul.mubr.f32.gmra.mxu0 %v4988
        %v4990 = vpop.f32.mrf.mxu0
        %v4991 = vadd.f32 %v4230, %v4990
        %v4992 = vpop.f32.mrf.mxu0
        %v4993 = vadd.f32 %v4232, %v4992
        %v4994 = vand.u32 %v442, 4294901760
        %4995 = vmatprep.mubr.f32.mxu0 %v4994
        %v4996 = vand.u32 %v441, 4294901760
        %4997 = vmatmul.mubr.f32.gmra.mxu0 %v4996
        %v4998 = vpop.f32.mrf.mxu0
        %v4999 = vadd.f32 %v4246, %v4998
        %v5000 = vpop.f32.mrf.mxu0
        %v5001 = vadd.f32 %v4248, %v5000
        %v5002 = vand.u32 %v446, 4294901760
        %5003 = vmatprep.mubr.f32.mxu0 %v5002
        %v5004 = vand.u32 %v445, 4294901760
        %5005 = vmatmul.mubr.f32.gmra.mxu0 %v5004
        %v5006 = vpop.f32.mrf.mxu0
        %v5007 = vadd.f32 %v4262, %v5006
        %v5008 = vpop.f32.mrf.mxu0
        %v5009 = vadd.f32 %v4264, %v5008
        %v5010 = vand.u32 %v450, 4294901760
        %5011 = vmatprep.mubr.f32.mxu0 %v5010
        %v5012 = vand.u32 %v449, 4294901760
        %5013 = vmatmul.mubr.f32.gmra.mxu0 %v5012
        %v5014 = vpop.f32.mrf.mxu0
        %v5015 = vadd.f32 %v4278, %v5014
        %v5016 = vpop.f32.mrf.mxu0
        %v5017 = vadd.f32 %v4280, %v5016
        %v5018 = vand.u32 %v454, 4294901760
        %5019 = vmatprep.mubr.f32.mxu0 %v5018
        %v5020 = vand.u32 %v453, 4294901760
        %5021 = vmatmul.mubr.f32.gmra.mxu0 %v5020
        %v5022 = vpop.f32.mrf.mxu0
        %v5023 = vadd.f32 %v4294, %v5022
        %v5024 = vpop.f32.mrf.mxu0
        %v5025 = vadd.f32 %v4296, %v5024
        %v5026 = vand.u32 %v458, 4294901760
        %5027 = vmatprep.mubr.f32.mxu0 %v5026
        %v5028 = vand.u32 %v457, 4294901760
        %5029 = vmatmul.mubr.f32.gmra.mxu0 %v5028
        %v5030 = vpop.f32.mrf.mxu0
        %v5031 = vadd.f32 %v4310, %v5030
        %v5032 = vpop.f32.mrf.mxu0
        %v5033 = vadd.f32 %v4312, %v5032
        %v5034 = vand.u32 %v462, 4294901760
        %5035 = vmatprep.mubr.f32.mxu0 %v5034
        %v5036 = vand.u32 %v461, 4294901760
        %5037 = vmatmul.mubr.f32.gmra.mxu0 %v5036
        %v5038 = vpop.f32.mrf.mxu0
        %v5039 = vadd.f32 %v4326, %v5038
        %v5040 = vpop.f32.mrf.mxu0
        %v5041 = vadd.f32 %v4328, %v5040
        %v5042 = vand.u32 %v466, 4294901760
        %5043 = vmatprep.mubr.f32.mxu0 %v5042
        %v5044 = vand.u32 %v465, 4294901760
        %5045 = vmatmul.mubr.f32.gmra.mxu0 %v5044
        %v5046 = vpop.f32.mrf.mxu0
        %v5047 = vadd.f32 %v4342, %v5046
        %v5048 = vpop.f32.mrf.mxu0
        %v5049 = vadd.f32 %v4344, %v5048
        %v5050 = vand.u32 %v470, 4294901760
        %5051 = vmatprep.mubr.f32.mxu0 %v5050
        %v5052 = vand.u32 %v469, 4294901760
        %5053 = vmatmul.mubr.f32.gmra.mxu0 %v5052
        %v5054 = vpop.f32.mrf.mxu0
        %v5055 = vadd.f32 %v4358, %v5054
        %v5056 = vpop.f32.mrf.mxu0
        %v5057 = vadd.f32 %v4360, %v5056
        %v5058 = vand.u32 %v474, 4294901760
        %5059 = vmatprep.mubr.f32.mxu0 %v5058
        %v5060 = vand.u32 %v473, 4294901760
        %5061 = vmatmul.mubr.f32.gmra.mxu0 %v5060
        %v5062 = vpop.f32.mrf.mxu0
        %v5063 = vadd.f32 %v4374, %v5062
        %v5064 = vpop.f32.mrf.mxu0
        %v5065 = vadd.f32 %v4376, %v5064
        %v5066 = vand.u32 %v478, 4294901760
        %5067 = vmatprep.mubr.f32.mxu0 %v5066
        %v5068 = vand.u32 %v477, 4294901760
        %5069 = vmatmul.mubr.f32.gmra.mxu0 %v5068
        %v5070 = vpop.f32.mrf.mxu0
        %v5071 = vadd.f32 %v4390, %v5070
        %v5072 = vpop.f32.mrf.mxu0
        %v5073 = vadd.f32 %v4392, %v5072
        %v5074 = vand.u32 %v482, 4294901760
        %5075 = vmatprep.mubr.f32.mxu0 %v5074
        %v5076 = vand.u32 %v481, 4294901760
        %5077 = vmatmul.mubr.f32.gmra.mxu0 %v5076
        %v5078 = vpop.f32.mrf.mxu0
        %v5079 = vadd.f32 %v4406, %v5078
        %v5080 = vpop.f32.mrf.mxu0
        %v5081 = vadd.f32 %v4408, %v5080
        %v5082 = vand.u32 %v486, 4294901760
        %5083 = vmatprep.mubr.f32.mxu0 %v5082
        %v5084 = vand.u32 %v485, 4294901760
        %5085 = vmatmul.mubr.f32.gmra.mxu0 %v5084
        %v5086 = vpop.f32.mrf.mxu0
        %v5087 = vadd.f32 %v4422, %v5086
        %v5088 = vpop.f32.mrf.mxu0
        %v5089 = vadd.f32 %v4424, %v5088
        %v5090 = vand.u32 %v490, 4294901760
        %5091 = vmatprep.mubr.f32.mxu0 %v5090
        %v5092 = vand.u32 %v489, 4294901760
        %5093 = vmatmul.mubr.f32.gmra.mxu0 %v5092
        %v5094 = vpop.f32.mrf.mxu0
        %v5095 = vadd.f32 %v4438, %v5094
        %v5096 = vpop.f32.mrf.mxu0
        %v5097 = vadd.f32 %v4440, %v5096
        %v5098 = vand.u32 %v494, 4294901760
        %5099 = vmatprep.mubr.f32.mxu0 %v5098
        %v5100 = vand.u32 %v493, 4294901760
        %5101 = vmatmul.mubr.f32.gmra.mxu0 %v5100
        %v5102 = vpop.f32.mrf.mxu0
        %v5103 = vadd.f32 %v4454, %v5102
        %v5104 = vpop.f32.mrf.mxu0
        %v5105 = vadd.f32 %v4456, %v5104
        %v5106 = vand.u32 %v498, 4294901760
        %5107 = vmatprep.mubr.f32.mxu0 %v5106
        %v5108 = vand.u32 %v497, 4294901760
        %5109 = vmatmul.mubr.f32.gmra.mxu0 %v5108
        %v5110 = vpop.f32.mrf.mxu0
        %v5111 = vadd.f32 %v4470, %v5110
        %v5112 = vpop.f32.mrf.mxu0
        %v5113 = vadd.f32 %v4472, %v5112
        %5114 = vdwg.mxu0
        %v5115 = vand.u32 %v594, 4294901760
        %v5116 = vsub.f32 %v594, %v5115
        %5117 = vmatprep.subr.mxu0 %v5116
        %v5118 = vand.u32 %v593, 4294901760
        %v5119 = vsub.f32 %v593, %v5118
        %5120 = vmatpush1.msra.mxu0 %v5119
        %v5121 = vand.u32 %v592, 4294901760
        %v5122 = vsub.f32 %v592, %v5121
        %5123 = vmatprep.subr.mxu0 %v5122
        %v5124 = vand.u32 %v591, 4294901760
        %v5125 = vsub.f32 %v591, %v5124
        %5126 = vmatpush1.msra.mxu0 %v5125
        %v5127 = vand.u32 %v590, 4294901760
        %v5128 = vsub.f32 %v590, %v5127
        %5129 = vmatprep.subr.mxu0 %v5128
        %v5130 = vand.u32 %v589, 4294901760
        %v5131 = vsub.f32 %v589, %v5130
        %5132 = vmatpush1.msra.mxu0 %v5131
        %v5133 = vand.u32 %v588, 4294901760
        %v5134 = vsub.f32 %v588, %v5133
        %5135 = vmatprep.subr.mxu0 %v5134
        %v5136 = vand.u32 %v587, 4294901760
        %v5137 = vsub.f32 %v587, %v5136
        %5138 = vmatpush1.msra.mxu0 %v5137
        %v5139 = vand.u32 %v586, 4294901760
        %v5140 = vsub.f32 %v586, %v5139
        %5141 = vmatprep.subr.mxu0 %v5140
        %v5142 = vand.u32 %v585, 4294901760
        %v5143 = vsub.f32 %v585, %v5142
        %5144 = vmatpush1.msra.mxu0 %v5143
        %v5145 = vand.u32 %v584, 4294901760
        %v5146 = vsub.f32 %v584, %v5145
        %5147 = vmatprep.subr.mxu0 %v5146
        %v5148 = vand.u32 %v583, 4294901760
        %v5149 = vsub.f32 %v583, %v5148
        %5150 = vmatpush1.msra.mxu0 %v5149
        %v5151 = vand.u32 %v582, 4294901760
        %v5152 = vsub.f32 %v582, %v5151
        %5153 = vmatprep.subr.mxu0 %v5152
        %v5154 = vand.u32 %v581, 4294901760
        %v5155 = vsub.f32 %v581, %v5154
        %5156 = vmatpush1.msra.mxu0 %v5155
        %v5157 = vand.u32 %v580, 4294901760
        %v5158 = vsub.f32 %v580, %v5157
        %5159 = vmatprep.subr.mxu0 %v5158
        %v5160 = vand.u32 %v579, 4294901760
        %v5161 = vsub.f32 %v579, %v5160
        %5162 = vmatpush1.msra.mxu0 %v5161
        %v5163 = vand.u32 %v578, 4294901760
        %v5164 = vsub.f32 %v578, %v5163
        %5165 = vmatprep.subr.mxu0 %v5164
        %v5166 = vand.u32 %v577, 4294901760
        %v5167 = vsub.f32 %v577, %v5166
        %5168 = vmatpush1.msra.mxu0 %v5167
        %v5169 = vand.u32 %v576, 4294901760
        %v5170 = vsub.f32 %v576, %v5169
        %5171 = vmatprep.subr.mxu0 %v5170
        %v5172 = vand.u32 %v575, 4294901760
        %v5173 = vsub.f32 %v575, %v5172
        %5174 = vmatpush1.msra.mxu0 %v5173
        %v5175 = vand.u32 %v574, 4294901760
        %v5176 = vsub.f32 %v574, %v5175
        %5177 = vmatprep.subr.mxu0 %v5176
        %v5178 = vand.u32 %v573, 4294901760
        %v5179 = vsub.f32 %v573, %v5178
        %5180 = vmatpush1.msra.mxu0 %v5179
        %v5181 = vand.u32 %v572, 4294901760
        %v5182 = vsub.f32 %v572, %v5181
        %5183 = vmatprep.subr.mxu0 %v5182
        %v5184 = vand.u32 %v571, 4294901760
        %v5185 = vsub.f32 %v571, %v5184
        %5186 = vmatpush1.msra.mxu0 %v5185
        %v5187 = vand.u32 %v570, 4294901760
        %v5188 = vsub.f32 %v570, %v5187
        %5189 = vmatprep.subr.mxu0 %v5188
        %v5190 = vand.u32 %v569, 4294901760
        %v5191 = vsub.f32 %v569, %v5190
        %5192 = vmatpush1.msra.mxu0 %v5191
        %v5193 = vand.u32 %v568, 4294901760
        %v5194 = vsub.f32 %v568, %v5193
        %5195 = vmatprep.subr.mxu0 %v5194
        %v5196 = vand.u32 %v567, 4294901760
        %v5197 = vsub.f32 %v567, %v5196
        %5198 = vmatpush1.msra.mxu0 %v5197
        %v5199 = vand.u32 %v566, 4294901760
        %v5200 = vsub.f32 %v566, %v5199
        %5201 = vmatprep.subr.mxu0 %v5200
        %v5202 = vand.u32 %v565, 4294901760
        %v5203 = vsub.f32 %v565, %v5202
        %5204 = vmatpush1.msra.mxu0 %v5203
        %v5205 = vand.u32 %v564, 4294901760
        %v5206 = vsub.f32 %v564, %v5205
        %5207 = vmatprep.subr.mxu0 %v5206
        %v5208 = vand.u32 %v563, 4294901760
        %v5209 = vsub.f32 %v563, %v5208
        %5210 = vmatpush1.msra.mxu0 %v5209
        %v5211 = vand.u32 %v626, 4294901760
        %v5212 = vsub.f32 %v626, %v5211
        %5213 = vmatprep.subr.mxu0 %v5212
        %v5214 = vand.u32 %v625, 4294901760
        %v5215 = vsub.f32 %v625, %v5214
        %5216 = vmatpush2.msra.mxu0 %v5215
        %v5217 = vand.u32 %v624, 4294901760
        %v5218 = vsub.f32 %v624, %v5217
        %5219 = vmatprep.subr.mxu0 %v5218
        %v5220 = vand.u32 %v623, 4294901760
        %v5221 = vsub.f32 %v623, %v5220
        %5222 = vmatpush2.msra.mxu0 %v5221
        %v5223 = vand.u32 %v622, 4294901760
        %v5224 = vsub.f32 %v622, %v5223
        %5225 = vmatprep.subr.mxu0 %v5224
        %v5226 = vand.u32 %v621, 4294901760
        %v5227 = vsub.f32 %v621, %v5226
        %5228 = vmatpush2.msra.mxu0 %v5227
        %v5229 = vand.u32 %v620, 4294901760
        %v5230 = vsub.f32 %v620, %v5229
        %5231 = vmatprep.subr.mxu0 %v5230
        %v5232 = vand.u32 %v619, 4294901760
        %v5233 = vsub.f32 %v619, %v5232
        %5234 = vmatpush2.msra.mxu0 %v5233
        %v5235 = vand.u32 %v618, 4294901760
        %v5236 = vsub.f32 %v618, %v5235
        %5237 = vmatprep.subr.mxu0 %v5236
        %v5238 = vand.u32 %v617, 4294901760
        %v5239 = vsub.f32 %v617, %v5238
        %5240 = vmatpush2.msra.mxu0 %v5239
        %v5241 = vand.u32 %v616, 4294901760
        %v5242 = vsub.f32 %v616, %v5241
        %5243 = vmatprep.subr.mxu0 %v5242
        %v5244 = vand.u32 %v615, 4294901760
        %v5245 = vsub.f32 %v615, %v5244
        %5246 = vmatpush2.msra.mxu0 %v5245
        %v5247 = vand.u32 %v614, 4294901760
        %v5248 = vsub.f32 %v614, %v5247
        %5249 = vmatprep.subr.mxu0 %v5248
        %v5250 = vand.u32 %v613, 4294901760
        %v5251 = vsub.f32 %v613, %v5250
        %5252 = vmatpush2.msra.mxu0 %v5251
        %v5253 = vand.u32 %v612, 4294901760
        %v5254 = vsub.f32 %v612, %v5253
        %5255 = vmatprep.subr.mxu0 %v5254
        %v5256 = vand.u32 %v611, 4294901760
        %v5257 = vsub.f32 %v611, %v5256
        %5258 = vmatpush2.msra.mxu0 %v5257
        %v5259 = vand.u32 %v610, 4294901760
        %v5260 = vsub.f32 %v610, %v5259
        %5261 = vmatprep.subr.mxu0 %v5260
        %v5262 = vand.u32 %v609, 4294901760
        %v5263 = vsub.f32 %v609, %v5262
        %5264 = vmatpush2.msra.mxu0 %v5263
        %v5265 = vand.u32 %v608, 4294901760
        %v5266 = vsub.f32 %v608, %v5265
        %5267 = vmatprep.subr.mxu0 %v5266
        %v5268 = vand.u32 %v607, 4294901760
        %v5269 = vsub.f32 %v607, %v5268
        %5270 = vmatpush2.msra.mxu0 %v5269
        %v5271 = vand.u32 %v606, 4294901760
        %v5272 = vsub.f32 %v606, %v5271
        %5273 = vmatprep.subr.mxu0 %v5272
        %v5274 = vand.u32 %v605, 4294901760
        %v5275 = vsub.f32 %v605, %v5274
        %5276 = vmatpush2.msra.mxu0 %v5275
        %v5277 = vand.u32 %v604, 4294901760
        %v5278 = vsub.f32 %v604, %v5277
        %5279 = vmatprep.subr.mxu0 %v5278
        %v5280 = vand.u32 %v603, 4294901760
        %v5281 = vsub.f32 %v603, %v5280
        %5282 = vmatpush2.msra.mxu0 %v5281
        %v5283 = vand.u32 %v602, 4294901760
        %v5284 = vsub.f32 %v602, %v5283
        %5285 = vmatprep.subr.mxu0 %v5284
        %v5286 = vand.u32 %v601, 4294901760
        %v5287 = vsub.f32 %v601, %v5286
        %5288 = vmatpush2.msra.mxu0 %v5287
        %v5289 = vand.u32 %v600, 4294901760
        %v5290 = vsub.f32 %v600, %v5289
        %5291 = vmatprep.subr.mxu0 %v5290
        %v5292 = vand.u32 %v599, 4294901760
        %v5293 = vsub.f32 %v599, %v5292
        %5294 = vmatpush2.msra.mxu0 %v5293
        %v5295 = vand.u32 %v598, 4294901760
        %v5296 = vsub.f32 %v598, %v5295
        %5297 = vmatprep.subr.mxu0 %v5296
        %v5298 = vand.u32 %v597, 4294901760
        %v5299 = vsub.f32 %v597, %v5298
        %5300 = vmatpush2.msra.mxu0 %v5299
        %v5301 = vand.u32 %v596, 4294901760
        %v5302 = vsub.f32 %v596, %v5301
        %5303 = vmatprep.subr.mxu0 %v5302
        %v5304 = vand.u32 %v595, 4294901760
        %v5305 = vsub.f32 %v595, %v5304
        %5306 = vmatpush2.msra.mxu0 %v5305
        %v5307 = vand.u32 %v374, 4294901760
        %v5308 = vsub.f32 %v374, %v5307
        %5309 = vmatprep.mubr.f32.mxu0 %v5308
        %v5310 = vand.u32 %v373, 4294901760
        %v5311 = vsub.f32 %v373, %v5310
        %5312 = vmatmul.mubr.f32.gmra.mxu0 %v5311
        %v5313 = vpop.f32.mrf.mxu0
        %v5314 = vadd.f32 %v4863, %v5313
        %v5315 = vpop.f32.mrf.mxu0
        %v5316 = vadd.f32 %v4865, %v5315
        %v5317 = vand.u32 %v378, 4294901760
        %v5318 = vsub.f32 %v378, %v5317
        %5319 = vmatprep.mubr.f32.mxu0 %v5318
        %v5320 = vand.u32 %v377, 4294901760
        %v5321 = vsub.f32 %v377, %v5320
        %5322 = vmatmul.mubr.f32.gmra.mxu0 %v5321
        %v5323 = vpop.f32.mrf.mxu0
        %v5324 = vadd.f32 %v4871, %v5323
        %v5325 = vpop.f32.mrf.mxu0
        %v5326 = vadd.f32 %v4873, %v5325
        %v5327 = vand.u32 %v382, 4294901760
        %v5328 = vsub.f32 %v382, %v5327
        %5329 = vmatprep.mubr.f32.mxu0 %v5328
        %v5330 = vand.u32 %v381, 4294901760
        %v5331 = vsub.f32 %v381, %v5330
        %5332 = vmatmul.mubr.f32.gmra.mxu0 %v5331
        %v5333 = vpop.f32.mrf.mxu0
        %v5334 = vadd.f32 %v4879, %v5333
        %v5335 = vpop.f32.mrf.mxu0
        %v5336 = vadd.f32 %v4881, %v5335
        %v5337 = vand.u32 %v386, 4294901760
        %v5338 = vsub.f32 %v386, %v5337
        %5339 = vmatprep.mubr.f32.mxu0 %v5338
        %v5340 = vand.u32 %v385, 4294901760
        %v5341 = vsub.f32 %v385, %v5340
        %5342 = vmatmul.mubr.f32.gmra.mxu0 %v5341
        %v5343 = vpop.f32.mrf.mxu0
        %v5344 = vadd.f32 %v4887, %v5343
        %v5345 = vpop.f32.mrf.mxu0
        %v5346 = vadd.f32 %v4889, %v5345
        %v5347 = vand.u32 %v390, 4294901760
        %v5348 = vsub.f32 %v390, %v5347
        %5349 = vmatprep.mubr.f32.mxu0 %v5348
        %v5350 = vand.u32 %v389, 4294901760
        %v5351 = vsub.f32 %v389, %v5350
        %5352 = vmatmul.mubr.f32.gmra.mxu0 %v5351
        %v5353 = vpop.f32.mrf.mxu0
        %v5354 = vadd.f32 %v4895, %v5353
        %v5355 = vpop.f32.mrf.mxu0
        %v5356 = vadd.f32 %v4897, %v5355
        %v5357 = vand.u32 %v394, 4294901760
        %v5358 = vsub.f32 %v394, %v5357
        %5359 = vmatprep.mubr.f32.mxu0 %v5358
        %v5360 = vand.u32 %v393, 4294901760
        %v5361 = vsub.f32 %v393, %v5360
        %5362 = vmatmul.mubr.f32.gmra.mxu0 %v5361
        %v5363 = vpop.f32.mrf.mxu0
        %v5364 = vadd.f32 %v4903, %v5363
        %v5365 = vpop.f32.mrf.mxu0
        %v5366 = vadd.f32 %v4905, %v5365
        %v5367 = vand.u32 %v398, 4294901760
        %v5368 = vsub.f32 %v398, %v5367
        %5369 = vmatprep.mubr.f32.mxu0 %v5368
        %v5370 = vand.u32 %v397, 4294901760
        %v5371 = vsub.f32 %v397, %v5370
        %5372 = vmatmul.mubr.f32.gmra.mxu0 %v5371
        %v5373 = vpop.f32.mrf.mxu0
        %v5374 = vadd.f32 %v4911, %v5373
        %v5375 = vpop.f32.mrf.mxu0
        %v5376 = vadd.f32 %v4913, %v5375
        %v5377 = vand.u32 %v402, 4294901760
        %v5378 = vsub.f32 %v402, %v5377
        %5379 = vmatprep.mubr.f32.mxu0 %v5378
        %v5380 = vand.u32 %v401, 4294901760
        %v5381 = vsub.f32 %v401, %v5380
        %5382 = vmatmul.mubr.f32.gmra.mxu0 %v5381
        %v5383 = vpop.f32.mrf.mxu0
        %v5384 = vadd.f32 %v4919, %v5383
        %v5385 = vpop.f32.mrf.mxu0
        %v5386 = vadd.f32 %v4921, %v5385
        %v5387 = vand.u32 %v406, 4294901760
        %v5388 = vsub.f32 %v406, %v5387
        %5389 = vmatprep.mubr.f32.mxu0 %v5388
        %v5390 = vand.u32 %v405, 4294901760
        %v5391 = vsub.f32 %v405, %v5390
        %5392 = vmatmul.mubr.f32.gmra.mxu0 %v5391
        %v5393 = vpop.f32.mrf.mxu0
        %v5394 = vadd.f32 %v4927, %v5393
        %v5395 = vpop.f32.mrf.mxu0
        %v5396 = vadd.f32 %v4929, %v5395
        %v5397 = vand.u32 %v410, 4294901760
        %v5398 = vsub.f32 %v410, %v5397
        %5399 = vmatprep.mubr.f32.mxu0 %v5398
        %v5400 = vand.u32 %v409, 4294901760
        %v5401 = vsub.f32 %v409, %v5400
        %5402 = vmatmul.mubr.f32.gmra.mxu0 %v5401
        %v5403 = vpop.f32.mrf.mxu0
        %v5404 = vadd.f32 %v4935, %v5403
        %v5405 = vpop.f32.mrf.mxu0
        %v5406 = vadd.f32 %v4937, %v5405
        %v5407 = vand.u32 %v414, 4294901760
        %v5408 = vsub.f32 %v414, %v5407
        %5409 = vmatprep.mubr.f32.mxu0 %v5408
        %v5410 = vand.u32 %v413, 4294901760
        %v5411 = vsub.f32 %v413, %v5410
        %5412 = vmatmul.mubr.f32.gmra.mxu0 %v5411
        %v5413 = vpop.f32.mrf.mxu0
        %v5414 = vadd.f32 %v4943, %v5413
        %v5415 = vpop.f32.mrf.mxu0
        %v5416 = vadd.f32 %v4945, %v5415
        %v5417 = vand.u32 %v418, 4294901760
        %v5418 = vsub.f32 %v418, %v5417
        %5419 = vmatprep.mubr.f32.mxu0 %v5418
        %v5420 = vand.u32 %v417, 4294901760
        %v5421 = vsub.f32 %v417, %v5420
        %5422 = vmatmul.mubr.f32.gmra.mxu0 %v5421
        %v5423 = vpop.f32.mrf.mxu0
        %v5424 = vadd.f32 %v4951, %v5423
        %v5425 = vpop.f32.mrf.mxu0
        %v5426 = vadd.f32 %v4953, %v5425
        %v5427 = vand.u32 %v422, 4294901760
        %v5428 = vsub.f32 %v422, %v5427
        %5429 = vmatprep.mubr.f32.mxu0 %v5428
        %v5430 = vand.u32 %v421, 4294901760
        %v5431 = vsub.f32 %v421, %v5430
        %5432 = vmatmul.mubr.f32.gmra.mxu0 %v5431
        %v5433 = vpop.f32.mrf.mxu0
        %v5434 = vadd.f32 %v4959, %v5433
        %v5435 = vpop.f32.mrf.mxu0
        %v5436 = vadd.f32 %v4961, %v5435
        %v5437 = vand.u32 %v426, 4294901760
        %v5438 = vsub.f32 %v426, %v5437
        %5439 = vmatprep.mubr.f32.mxu0 %v5438
        %v5440 = vand.u32 %v425, 4294901760
        %v5441 = vsub.f32 %v425, %v5440
        %5442 = vmatmul.mubr.f32.gmra.mxu0 %v5441
        %v5443 = vpop.f32.mrf.mxu0
        %v5444 = vadd.f32 %v4967, %v5443
        %v5445 = vpop.f32.mrf.mxu0
        %v5446 = vadd.f32 %v4969, %v5445
        %v5447 = vand.u32 %v430, 4294901760
        %v5448 = vsub.f32 %v430, %v5447
        %5449 = vmatprep.mubr.f32.mxu0 %v5448
        %v5450 = vand.u32 %v429, 4294901760
        %v5451 = vsub.f32 %v429, %v5450
        %5452 = vmatmul.mubr.f32.gmra.mxu0 %v5451
        %v5453 = vpop.f32.mrf.mxu0
        %v5454 = vadd.f32 %v4975, %v5453
        %v5455 = vpop.f32.mrf.mxu0
        %v5456 = vadd.f32 %v4977, %v5455
        %v5457 = vand.u32 %v434, 4294901760
        %v5458 = vsub.f32 %v434, %v5457
        %5459 = vmatprep.mubr.f32.mxu0 %v5458
        %v5460 = vand.u32 %v433, 4294901760
        %v5461 = vsub.f32 %v433, %v5460
        %5462 = vmatmul.mubr.f32.gmra.mxu0 %v5461
        %v5463 = vpop.f32.mrf.mxu0
        %v5464 = vadd.f32 %v4983, %v5463
        %v5465 = vpop.f32.mrf.mxu0
        %v5466 = vadd.f32 %v4985, %v5465
        %v5467 = vand.u32 %v438, 4294901760
        %v5468 = vsub.f32 %v438, %v5467
        %5469 = vmatprep.mubr.f32.mxu0 %v5468
        %v5470 = vand.u32 %v437, 4294901760
        %v5471 = vsub.f32 %v437, %v5470
        %5472 = vmatmul.mubr.f32.gmra.mxu0 %v5471
        %v5473 = vpop.f32.mrf.mxu0
        %v5474 = vadd.f32 %v4991, %v5473
        %v5475 = vpop.f32.mrf.mxu0
        %v5476 = vadd.f32 %v4993, %v5475
        %v5477 = vand.u32 %v442, 4294901760
        %v5478 = vsub.f32 %v442, %v5477
        %5479 = vmatprep.mubr.f32.mxu0 %v5478
        %v5480 = vand.u32 %v441, 4294901760
        %v5481 = vsub.f32 %v441, %v5480
        %5482 = vmatmul.mubr.f32.gmra.mxu0 %v5481
        %v5483 = vpop.f32.mrf.mxu0
        %v5484 = vadd.f32 %v4999, %v5483
        %v5485 = vpop.f32.mrf.mxu0
        %v5486 = vadd.f32 %v5001, %v5485
        %v5487 = vand.u32 %v446, 4294901760
        %v5488 = vsub.f32 %v446, %v5487
        %5489 = vmatprep.mubr.f32.mxu0 %v5488
        %v5490 = vand.u32 %v445, 4294901760
        %v5491 = vsub.f32 %v445, %v5490
        %5492 = vmatmul.mubr.f32.gmra.mxu0 %v5491
        %v5493 = vpop.f32.mrf.mxu0
        %v5494 = vadd.f32 %v5007, %v5493
        %v5495 = vpop.f32.mrf.mxu0
        %v5496 = vadd.f32 %v5009, %v5495
        %v5497 = vand.u32 %v450, 4294901760
        %v5498 = vsub.f32 %v450, %v5497
        %5499 = vmatprep.mubr.f32.mxu0 %v5498
        %v5500 = vand.u32 %v449, 4294901760
        %v5501 = vsub.f32 %v449, %v5500
        %5502 = vmatmul.mubr.f32.gmra.mxu0 %v5501
        %v5503 = vpop.f32.mrf.mxu0
        %v5504 = vadd.f32 %v5015, %v5503
        %v5505 = vpop.f32.mrf.mxu0
        %v5506 = vadd.f32 %v5017, %v5505
        %v5507 = vand.u32 %v454, 4294901760
        %v5508 = vsub.f32 %v454, %v5507
        %5509 = vmatprep.mubr.f32.mxu0 %v5508
        %v5510 = vand.u32 %v453, 4294901760
        %v5511 = vsub.f32 %v453, %v5510
        %5512 = vmatmul.mubr.f32.gmra.mxu0 %v5511
        %v5513 = vpop.f32.mrf.mxu0
        %v5514 = vadd.f32 %v5023, %v5513
        %v5515 = vpop.f32.mrf.mxu0
        %v5516 = vadd.f32 %v5025, %v5515
        %v5517 = vand.u32 %v458, 4294901760
        %v5518 = vsub.f32 %v458, %v5517
        %5519 = vmatprep.mubr.f32.mxu0 %v5518
        %v5520 = vand.u32 %v457, 4294901760
        %v5521 = vsub.f32 %v457, %v5520
        %5522 = vmatmul.mubr.f32.gmra.mxu0 %v5521
        %v5523 = vpop.f32.mrf.mxu0
        %v5524 = vadd.f32 %v5031, %v5523
        %v5525 = vpop.f32.mrf.mxu0
        %v5526 = vadd.f32 %v5033, %v5525
        %v5527 = vand.u32 %v462, 4294901760
        %v5528 = vsub.f32 %v462, %v5527
        %5529 = vmatprep.mubr.f32.mxu0 %v5528
        %v5530 = vand.u32 %v461, 4294901760
        %v5531 = vsub.f32 %v461, %v5530
        %5532 = vmatmul.mubr.f32.gmra.mxu0 %v5531
        %v5533 = vpop.f32.mrf.mxu0
        %v5534 = vadd.f32 %v5039, %v5533
        %v5535 = vpop.f32.mrf.mxu0
        %v5536 = vadd.f32 %v5041, %v5535
        %v5537 = vand.u32 %v466, 4294901760
        %v5538 = vsub.f32 %v466, %v5537
        %5539 = vmatprep.mubr.f32.mxu0 %v5538
        %v5540 = vand.u32 %v465, 4294901760
        %v5541 = vsub.f32 %v465, %v5540
        %5542 = vmatmul.mubr.f32.gmra.mxu0 %v5541
        %v5543 = vpop.f32.mrf.mxu0
        %v5544 = vadd.f32 %v5047, %v5543
        %v5545 = vpop.f32.mrf.mxu0
        %v5546 = vadd.f32 %v5049, %v5545
        %v5547 = vand.u32 %v470, 4294901760
        %v5548 = vsub.f32 %v470, %v5547
        %5549 = vmatprep.mubr.f32.mxu0 %v5548
        %v5550 = vand.u32 %v469, 4294901760
        %v5551 = vsub.f32 %v469, %v5550
        %5552 = vmatmul.mubr.f32.gmra.mxu0 %v5551
        %v5553 = vpop.f32.mrf.mxu0
        %v5554 = vadd.f32 %v5055, %v5553
        %v5555 = vpop.f32.mrf.mxu0
        %v5556 = vadd.f32 %v5057, %v5555
        %v5557 = vand.u32 %v474, 4294901760
        %v5558 = vsub.f32 %v474, %v5557
        %5559 = vmatprep.mubr.f32.mxu0 %v5558
        %v5560 = vand.u32 %v473, 4294901760
        %v5561 = vsub.f32 %v473, %v5560
        %5562 = vmatmul.mubr.f32.gmra.mxu0 %v5561
        %v5563 = vpop.f32.mrf.mxu0
        %v5564 = vadd.f32 %v5063, %v5563
        %v5565 = vpop.f32.mrf.mxu0
        %v5566 = vadd.f32 %v5065, %v5565
        %v5567 = vand.u32 %v478, 4294901760
        %v5568 = vsub.f32 %v478, %v5567
        %5569 = vmatprep.mubr.f32.mxu0 %v5568
        %v5570 = vand.u32 %v477, 4294901760
        %v5571 = vsub.f32 %v477, %v5570
        %5572 = vmatmul.mubr.f32.gmra.mxu0 %v5571
        %v5573 = vpop.f32.mrf.mxu0
        %v5574 = vadd.f32 %v5071, %v5573
        %v5575 = vpop.f32.mrf.mxu0
        %v5576 = vadd.f32 %v5073, %v5575
        %v5577 = vand.u32 %v482, 4294901760
        %v5578 = vsub.f32 %v482, %v5577
        %5579 = vmatprep.mubr.f32.mxu0 %v5578
        %v5580 = vand.u32 %v481, 4294901760
        %v5581 = vsub.f32 %v481, %v5580
        %5582 = vmatmul.mubr.f32.gmra.mxu0 %v5581
        %v5583 = vpop.f32.mrf.mxu0
        %v5584 = vadd.f32 %v5079, %v5583
        %v5585 = vpop.f32.mrf.mxu0
        %v5586 = vadd.f32 %v5081, %v5585
        %v5587 = vand.u32 %v486, 4294901760
        %v5588 = vsub.f32 %v486, %v5587
        %5589 = vmatprep.mubr.f32.mxu0 %v5588
        %v5590 = vand.u32 %v485, 4294901760
        %v5591 = vsub.f32 %v485, %v5590
        %5592 = vmatmul.mubr.f32.gmra.mxu0 %v5591
        %v5593 = vpop.f32.mrf.mxu0
        %v5594 = vadd.f32 %v5087, %v5593
        %v5595 = vpop.f32.mrf.mxu0
        %v5596 = vadd.f32 %v5089, %v5595
        %v5597 = vand.u32 %v490, 4294901760
        %v5598 = vsub.f32 %v490, %v5597
        %5599 = vmatprep.mubr.f32.mxu0 %v5598
        %v5600 = vand.u32 %v489, 4294901760
        %v5601 = vsub.f32 %v489, %v5600
        %5602 = vmatmul.mubr.f32.gmra.mxu0 %v5601
        %v5603 = vpop.f32.mrf.mxu0
        %v5604 = vadd.f32 %v5095, %v5603
        %v5605 = vpop.f32.mrf.mxu0
        %v5606 = vadd.f32 %v5097, %v5605
        %v5607 = vand.u32 %v494, 4294901760
        %v5608 = vsub.f32 %v494, %v5607
        %5609 = vmatprep.mubr.f32.mxu0 %v5608
        %v5610 = vand.u32 %v493, 4294901760
        %v5611 = vsub.f32 %v493, %v5610
        %5612 = vmatmul.mubr.f32.gmra.mxu0 %v5611
        %v5613 = vpop.f32.mrf.mxu0
        %v5614 = vadd.f32 %v5103, %v5613
        %v5615 = vpop.f32.mrf.mxu0
        %v5616 = vadd.f32 %v5105, %v5615
        %v5617 = vand.u32 %v498, 4294901760
        %v5618 = vsub.f32 %v498, %v5617
        %5619 = vmatprep.mubr.f32.mxu0 %v5618
        %v5620 = vand.u32 %v497, 4294901760
        %v5621 = vsub.f32 %v497, %v5620
        %5622 = vmatmul.mubr.f32.gmra.mxu0 %v5621
        %v5623 = vpop.f32.mrf.mxu0
        %v5624 = vadd.f32 %v5111, %v5623
        %v5625 = vpop.f32.mrf.mxu0
        %v5626 = vadd.f32 %v5113, %v5625
        %5627 = vdwg.mxu0
        %v5628 = vand.u32 %v594, 4294901760
        %5629 = vmatprep.subr.mxu0 %v5628
        %v5630 = vand.u32 %v593, 4294901760
        %5631 = vmatpush1.msra.mxu0 %v5630
        %v5632 = vand.u32 %v592, 4294901760
        %5633 = vmatprep.subr.mxu0 %v5632
        %v5634 = vand.u32 %v591, 4294901760
        %5635 = vmatpush1.msra.mxu0 %v5634
        %v5636 = vand.u32 %v590, 4294901760
        %5637 = vmatprep.subr.mxu0 %v5636
        %v5638 = vand.u32 %v589, 4294901760
        %5639 = vmatpush1.msra.mxu0 %v5638
        %v5640 = vand.u32 %v588, 4294901760
        %5641 = vmatprep.subr.mxu0 %v5640
        %v5642 = vand.u32 %v587, 4294901760
        %5643 = vmatpush1.msra.mxu0 %v5642
        %v5644 = vand.u32 %v586, 4294901760
        %5645 = vmatprep.subr.mxu0 %v5644
        %v5646 = vand.u32 %v585, 4294901760
        %5647 = vmatpush1.msra.mxu0 %v5646
        %v5648 = vand.u32 %v584, 4294901760
        %5649 = vmatprep.subr.mxu0 %v5648
        %v5650 = vand.u32 %v583, 4294901760
        %5651 = vmatpush1.msra.mxu0 %v5650
        %v5652 = vand.u32 %v582, 4294901760
        %5653 = vmatprep.subr.mxu0 %v5652
        %v5654 = vand.u32 %v581, 4294901760
        %5655 = vmatpush1.msra.mxu0 %v5654
        %v5656 = vand.u32 %v580, 4294901760
        %5657 = vmatprep.subr.mxu0 %v5656
        %v5658 = vand.u32 %v579, 4294901760
        %5659 = vmatpush1.msra.mxu0 %v5658
        %v5660 = vand.u32 %v578, 4294901760
        %5661 = vmatprep.subr.mxu0 %v5660
        %v5662 = vand.u32 %v577, 4294901760
        %5663 = vmatpush1.msra.mxu0 %v5662
        %v5664 = vand.u32 %v576, 4294901760
        %5665 = vmatprep.subr.mxu0 %v5664
        %v5666 = vand.u32 %v575, 4294901760
        %5667 = vmatpush1.msra.mxu0 %v5666
        %v5668 = vand.u32 %v574, 4294901760
        %5669 = vmatprep.subr.mxu0 %v5668
        %v5670 = vand.u32 %v573, 4294901760
        %5671 = vmatpush1.msra.mxu0 %v5670
        %v5672 = vand.u32 %v572, 4294901760
        %5673 = vmatprep.subr.mxu0 %v5672
        %v5674 = vand.u32 %v571, 4294901760
        %5675 = vmatpush1.msra.mxu0 %v5674
        %v5676 = vand.u32 %v570, 4294901760
        %5677 = vmatprep.subr.mxu0 %v5676
        %v5678 = vand.u32 %v569, 4294901760
        %5679 = vmatpush1.msra.mxu0 %v5678
        %v5680 = vand.u32 %v568, 4294901760
        %5681 = vmatprep.subr.mxu0 %v5680
        %v5682 = vand.u32 %v567, 4294901760
        %5683 = vmatpush1.msra.mxu0 %v5682
        %v5684 = vand.u32 %v566, 4294901760
        %5685 = vmatprep.subr.mxu0 %v5684
        %v5686 = vand.u32 %v565, 4294901760
        %5687 = vmatpush1.msra.mxu0 %v5686
        %v5688 = vand.u32 %v564, 4294901760
        %5689 = vmatprep.subr.mxu0 %v5688
        %v5690 = vand.u32 %v563, 4294901760
        %5691 = vmatpush1.msra.mxu0 %v5690
        %v5692 = vand.u32 %v626, 4294901760
        %5693 = vmatprep.subr.mxu0 %v5692
        %v5694 = vand.u32 %v625, 4294901760
        %5695 = vmatpush2.msra.mxu0 %v5694
        %v5696 = vand.u32 %v624, 4294901760
        %5697 = vmatprep.subr.mxu0 %v5696
        %v5698 = vand.u32 %v623, 4294901760
        %5699 = vmatpush2.msra.mxu0 %v5698
        %v5700 = vand.u32 %v622, 4294901760
        %5701 = vmatprep.subr.mxu0 %v5700
        %v5702 = vand.u32 %v621, 4294901760
        %5703 = vmatpush2.msra.mxu0 %v5702
        %v5704 = vand.u32 %v620, 4294901760
        %5705 = vmatprep.subr.mxu0 %v5704
        %v5706 = vand.u32 %v619, 4294901760
        %5707 = vmatpush2.msra.mxu0 %v5706
        %v5708 = vand.u32 %v618, 4294901760
        %5709 = vmatprep.subr.mxu0 %v5708
        %v5710 = vand.u32 %v617, 4294901760
        %5711 = vmatpush2.msra.mxu0 %v5710
        %v5712 = vand.u32 %v616, 4294901760
        %5713 = vmatprep.subr.mxu0 %v5712
        %v5714 = vand.u32 %v615, 4294901760
        %5715 = vmatpush2.msra.mxu0 %v5714
        %v5716 = vand.u32 %v614, 4294901760
        %5717 = vmatprep.subr.mxu0 %v5716
        %v5718 = vand.u32 %v613, 4294901760
        %5719 = vmatpush2.msra.mxu0 %v5718
        %v5720 = vand.u32 %v612, 4294901760
        %5721 = vmatprep.subr.mxu0 %v5720
        %v5722 = vand.u32 %v611, 4294901760
        %5723 = vmatpush2.msra.mxu0 %v5722
        %v5724 = vand.u32 %v610, 4294901760
        %5725 = vmatprep.subr.mxu0 %v5724
        %v5726 = vand.u32 %v609, 4294901760
        %5727 = vmatpush2.msra.mxu0 %v5726
        %v5728 = vand.u32 %v608, 4294901760
        %5729 = vmatprep.subr.mxu0 %v5728
        %v5730 = vand.u32 %v607, 4294901760
        %5731 = vmatpush2.msra.mxu0 %v5730
        %v5732 = vand.u32 %v606, 4294901760
        %5733 = vmatprep.subr.mxu0 %v5732
        %v5734 = vand.u32 %v605, 4294901760
        %5735 = vmatpush2.msra.mxu0 %v5734
        %v5736 = vand.u32 %v604, 4294901760
        %5737 = vmatprep.subr.mxu0 %v5736
        %v5738 = vand.u32 %v603, 4294901760
        %5739 = vmatpush2.msra.mxu0 %v5738
        %v5740 = vand.u32 %v602, 4294901760
        %5741 = vmatprep.subr.mxu0 %v5740
        %v5742 = vand.u32 %v601, 4294901760
        %5743 = vmatpush2.msra.mxu0 %v5742
        %v5744 = vand.u32 %v600, 4294901760
        %5745 = vmatprep.subr.mxu0 %v5744
        %v5746 = vand.u32 %v599, 4294901760
        %5747 = vmatpush2.msra.mxu0 %v5746
        %v5748 = vand.u32 %v598, 4294901760
        %5749 = vmatprep.subr.mxu0 %v5748
        %v5750 = vand.u32 %v597, 4294901760
        %5751 = vmatpush2.msra.mxu0 %v5750
        %v5752 = vand.u32 %v596, 4294901760
        %5753 = vmatprep.subr.mxu0 %v5752
        %v5754 = vand.u32 %v595, 4294901760
        %5755 = vmatpush2.msra.mxu0 %v5754
        %v5756 = vand.u32 %v374, 4294901760
        %v5757 = vsub.f32 %v374, %v5756
        %v5758 = vand.u32 %v5757, 4294901760
        %5759 = vmatprep.mubr.f32.mxu0 %v5758
        %v5760 = vand.u32 %v373, 4294901760
        %v5761 = vsub.f32 %v373, %v5760
        %v5762 = vand.u32 %v5761, 4294901760
        %5763 = vmatmul.mubr.f32.gmra.mxu0 %v5762
        %v5764 = vpop.f32.mrf.mxu0
        %v5765 = vadd.f32 %v5314, %v5764
        %v5766 = vpop.f32.mrf.mxu0
        %v5767 = vadd.f32 %v5316, %v5766
        %v5768 = vand.u32 %v378, 4294901760
        %v5769 = vsub.f32 %v378, %v5768
        %v5770 = vand.u32 %v5769, 4294901760
        %5771 = vmatprep.mubr.f32.mxu0 %v5770
        %v5772 = vand.u32 %v377, 4294901760
        %v5773 = vsub.f32 %v377, %v5772
        %v5774 = vand.u32 %v5773, 4294901760
        %5775 = vmatmul.mubr.f32.gmra.mxu0 %v5774
        %v5776 = vpop.f32.mrf.mxu0
        %v5777 = vadd.f32 %v5324, %v5776
        %v5778 = vpop.f32.mrf.mxu0
        %v5779 = vadd.f32 %v5326, %v5778
        %v5780 = vand.u32 %v382, 4294901760
        %v5781 = vsub.f32 %v382, %v5780
        %v5782 = vand.u32 %v5781, 4294901760
        %5783 = vmatprep.mubr.f32.mxu0 %v5782
        %v5784 = vand.u32 %v381, 4294901760
        %v5785 = vsub.f32 %v381, %v5784
        %v5786 = vand.u32 %v5785, 4294901760
        %5787 = vmatmul.mubr.f32.gmra.mxu0 %v5786
        %v5788 = vpop.f32.mrf.mxu0
        %v5789 = vadd.f32 %v5334, %v5788
        %v5790 = vpop.f32.mrf.mxu0
        %v5791 = vadd.f32 %v5336, %v5790
        %v5792 = vand.u32 %v386, 4294901760
        %v5793 = vsub.f32 %v386, %v5792
        %v5794 = vand.u32 %v5793, 4294901760
        %5795 = vmatprep.mubr.f32.mxu0 %v5794
        %v5796 = vand.u32 %v385, 4294901760
        %v5797 = vsub.f32 %v385, %v5796
        %v5798 = vand.u32 %v5797, 4294901760
        %5799 = vmatmul.mubr.f32.gmra.mxu0 %v5798
        %v5800 = vpop.f32.mrf.mxu0
        %v5801 = vadd.f32 %v5344, %v5800
        %v5802 = vpop.f32.mrf.mxu0
        %v5803 = vadd.f32 %v5346, %v5802
        %v5804 = vand.u32 %v390, 4294901760
        %v5805 = vsub.f32 %v390, %v5804
        %v5806 = vand.u32 %v5805, 4294901760
        %5807 = vmatprep.mubr.f32.mxu0 %v5806
        %v5808 = vand.u32 %v389, 4294901760
        %v5809 = vsub.f32 %v389, %v5808
        %v5810 = vand.u32 %v5809, 4294901760
        %5811 = vmatmul.mubr.f32.gmra.mxu0 %v5810
        %v5812 = vpop.f32.mrf.mxu0
        %v5813 = vadd.f32 %v5354, %v5812
        %v5814 = vpop.f32.mrf.mxu0
        %v5815 = vadd.f32 %v5356, %v5814
        %v5816 = vand.u32 %v394, 4294901760
        %v5817 = vsub.f32 %v394, %v5816
        %v5818 = vand.u32 %v5817, 4294901760
        %5819 = vmatprep.mubr.f32.mxu0 %v5818
        %v5820 = vand.u32 %v393, 4294901760
        %v5821 = vsub.f32 %v393, %v5820
        %v5822 = vand.u32 %v5821, 4294901760
        %5823 = vmatmul.mubr.f32.gmra.mxu0 %v5822
        %v5824 = vpop.f32.mrf.mxu0
        %v5825 = vadd.f32 %v5364, %v5824
        %v5826 = vpop.f32.mrf.mxu0
        %v5827 = vadd.f32 %v5366, %v5826
        %v5828 = vand.u32 %v398, 4294901760
        %v5829 = vsub.f32 %v398, %v5828
        %v5830 = vand.u32 %v5829, 4294901760
        %5831 = vmatprep.mubr.f32.mxu0 %v5830
        %v5832 = vand.u32 %v397, 4294901760
        %v5833 = vsub.f32 %v397, %v5832
        %v5834 = vand.u32 %v5833, 4294901760
        %5835 = vmatmul.mubr.f32.gmra.mxu0 %v5834
        %v5836 = vpop.f32.mrf.mxu0
        %v5837 = vadd.f32 %v5374, %v5836
        %v5838 = vpop.f32.mrf.mxu0
        %v5839 = vadd.f32 %v5376, %v5838
        %v5840 = vand.u32 %v402, 4294901760
        %v5841 = vsub.f32 %v402, %v5840
        %v5842 = vand.u32 %v5841, 4294901760
        %5843 = vmatprep.mubr.f32.mxu0 %v5842
        %v5844 = vand.u32 %v401, 4294901760
        %v5845 = vsub.f32 %v401, %v5844
        %v5846 = vand.u32 %v5845, 4294901760
        %5847 = vmatmul.mubr.f32.gmra.mxu0 %v5846
        %v5848 = vpop.f32.mrf.mxu0
        %v5849 = vadd.f32 %v5384, %v5848
        %v5850 = vpop.f32.mrf.mxu0
        %v5851 = vadd.f32 %v5386, %v5850
        %v5852 = vand.u32 %v406, 4294901760
        %v5853 = vsub.f32 %v406, %v5852
        %v5854 = vand.u32 %v5853, 4294901760
        %5855 = vmatprep.mubr.f32.mxu0 %v5854
        %v5856 = vand.u32 %v405, 4294901760
        %v5857 = vsub.f32 %v405, %v5856
        %v5858 = vand.u32 %v5857, 4294901760
        %5859 = vmatmul.mubr.f32.gmra.mxu0 %v5858
        %v5860 = vpop.f32.mrf.mxu0
        %v5861 = vadd.f32 %v5394, %v5860
        %v5862 = vpop.f32.mrf.mxu0
        %v5863 = vadd.f32 %v5396, %v5862
        %v5864 = vand.u32 %v410, 4294901760
        %v5865 = vsub.f32 %v410, %v5864
        %v5866 = vand.u32 %v5865, 4294901760
        %5867 = vmatprep.mubr.f32.mxu0 %v5866
        %v5868 = vand.u32 %v409, 4294901760
        %v5869 = vsub.f32 %v409, %v5868
        %v5870 = vand.u32 %v5869, 4294901760
        %5871 = vmatmul.mubr.f32.gmra.mxu0 %v5870
        %v5872 = vpop.f32.mrf.mxu0
        %v5873 = vadd.f32 %v5404, %v5872
        %v5874 = vpop.f32.mrf.mxu0
        %v5875 = vadd.f32 %v5406, %v5874
        %v5876 = vand.u32 %v414, 4294901760
        %v5877 = vsub.f32 %v414, %v5876
        %v5878 = vand.u32 %v5877, 4294901760
        %5879 = vmatprep.mubr.f32.mxu0 %v5878
        %v5880 = vand.u32 %v413, 4294901760
        %v5881 = vsub.f32 %v413, %v5880
        %v5882 = vand.u32 %v5881, 4294901760
        %5883 = vmatmul.mubr.f32.gmra.mxu0 %v5882
        %v5884 = vpop.f32.mrf.mxu0
        %v5885 = vadd.f32 %v5414, %v5884
        %v5886 = vpop.f32.mrf.mxu0
        %v5887 = vadd.f32 %v5416, %v5886
        %v5888 = vand.u32 %v418, 4294901760
        %v5889 = vsub.f32 %v418, %v5888
        %v5890 = vand.u32 %v5889, 4294901760
        %5891 = vmatprep.mubr.f32.mxu0 %v5890
        %v5892 = vand.u32 %v417, 4294901760
        %v5893 = vsub.f32 %v417, %v5892
        %v5894 = vand.u32 %v5893, 4294901760
        %5895 = vmatmul.mubr.f32.gmra.mxu0 %v5894
        %v5896 = vpop.f32.mrf.mxu0
        %v5897 = vadd.f32 %v5424, %v5896
        %v5898 = vpop.f32.mrf.mxu0
        %v5899 = vadd.f32 %v5426, %v5898
        %v5900 = vand.u32 %v422, 4294901760
        %v5901 = vsub.f32 %v422, %v5900
        %v5902 = vand.u32 %v5901, 4294901760
        %5903 = vmatprep.mubr.f32.mxu0 %v5902
        %v5904 = vand.u32 %v421, 4294901760
        %v5905 = vsub.f32 %v421, %v5904
        %v5906 = vand.u32 %v5905, 4294901760
        %5907 = vmatmul.mubr.f32.gmra.mxu0 %v5906
        %v5908 = vpop.f32.mrf.mxu0
        %v5909 = vadd.f32 %v5434, %v5908
        %v5910 = vpop.f32.mrf.mxu0
        %v5911 = vadd.f32 %v5436, %v5910
        %v5912 = vand.u32 %v426, 4294901760
        %v5913 = vsub.f32 %v426, %v5912
        %v5914 = vand.u32 %v5913, 4294901760
        %5915 = vmatprep.mubr.f32.mxu0 %v5914
        %v5916 = vand.u32 %v425, 4294901760
        %v5917 = vsub.f32 %v425, %v5916
        %v5918 = vand.u32 %v5917, 4294901760
        %5919 = vmatmul.mubr.f32.gmra.mxu0 %v5918
        %v5920 = vpop.f32.mrf.mxu0
        %v5921 = vadd.f32 %v5444, %v5920
        %v5922 = vpop.f32.mrf.mxu0
        %v5923 = vadd.f32 %v5446, %v5922
        %v5924 = vand.u32 %v430, 4294901760
        %v5925 = vsub.f32 %v430, %v5924
        %v5926 = vand.u32 %v5925, 4294901760
        %5927 = vmatprep.mubr.f32.mxu0 %v5926
        %v5928 = vand.u32 %v429, 4294901760
        %v5929 = vsub.f32 %v429, %v5928
        %v5930 = vand.u32 %v5929, 4294901760
        %5931 = vmatmul.mubr.f32.gmra.mxu0 %v5930
        %v5932 = vpop.f32.mrf.mxu0
        %v5933 = vadd.f32 %v5454, %v5932
        %v5934 = vpop.f32.mrf.mxu0
        %v5935 = vadd.f32 %v5456, %v5934
        %v5936 = vand.u32 %v434, 4294901760
        %v5937 = vsub.f32 %v434, %v5936
        %v5938 = vand.u32 %v5937, 4294901760
        %5939 = vmatprep.mubr.f32.mxu0 %v5938
        %v5940 = vand.u32 %v433, 4294901760
        %v5941 = vsub.f32 %v433, %v5940
        %v5942 = vand.u32 %v5941, 4294901760
        %5943 = vmatmul.mubr.f32.gmra.mxu0 %v5942
        %v5944 = vpop.f32.mrf.mxu0
        %v5945 = vadd.f32 %v5464, %v5944
        %v5946 = vpop.f32.mrf.mxu0
        %v5947 = vadd.f32 %v5466, %v5946
        %v5948 = vand.u32 %v438, 4294901760
        %v5949 = vsub.f32 %v438, %v5948
        %v5950 = vand.u32 %v5949, 4294901760
        %5951 = vmatprep.mubr.f32.mxu0 %v5950
        %v5952 = vand.u32 %v437, 4294901760
        %v5953 = vsub.f32 %v437, %v5952
        %v5954 = vand.u32 %v5953, 4294901760
        %5955 = vmatmul.mubr.f32.gmra.mxu0 %v5954
        %v5956 = vpop.f32.mrf.mxu0
        %v5957 = vadd.f32 %v5474, %v5956
        %v5958 = vpop.f32.mrf.mxu0
        %v5959 = vadd.f32 %v5476, %v5958
        %v5960 = vand.u32 %v442, 4294901760
        %v5961 = vsub.f32 %v442, %v5960
        %v5962 = vand.u32 %v5961, 4294901760
        %5963 = vmatprep.mubr.f32.mxu0 %v5962
        %v5964 = vand.u32 %v441, 4294901760
        %v5965 = vsub.f32 %v441, %v5964
        %v5966 = vand.u32 %v5965, 4294901760
        %5967 = vmatmul.mubr.f32.gmra.mxu0 %v5966
        %v5968 = vpop.f32.mrf.mxu0
        %v5969 = vadd.f32 %v5484, %v5968
        %v5970 = vpop.f32.mrf.mxu0
        %v5971 = vadd.f32 %v5486, %v5970
        %v5972 = vand.u32 %v446, 4294901760
        %v5973 = vsub.f32 %v446, %v5972
        %v5974 = vand.u32 %v5973, 4294901760
        %5975 = vmatprep.mubr.f32.mxu0 %v5974
        %v5976 = vand.u32 %v445, 4294901760
        %v5977 = vsub.f32 %v445, %v5976
        %v5978 = vand.u32 %v5977, 4294901760
        %5979 = vmatmul.mubr.f32.gmra.mxu0 %v5978
        %v5980 = vpop.f32.mrf.mxu0
        %v5981 = vadd.f32 %v5494, %v5980
        %v5982 = vpop.f32.mrf.mxu0
        %v5983 = vadd.f32 %v5496, %v5982
        %v5984 = vand.u32 %v450, 4294901760
        %v5985 = vsub.f32 %v450, %v5984
        %v5986 = vand.u32 %v5985, 4294901760
        %5987 = vmatprep.mubr.f32.mxu0 %v5986
        %v5988 = vand.u32 %v449, 4294901760
        %v5989 = vsub.f32 %v449, %v5988
        %v5990 = vand.u32 %v5989, 4294901760
        %5991 = vmatmul.mubr.f32.gmra.mxu0 %v5990
        %v5992 = vpop.f32.mrf.mxu0
        %v5993 = vadd.f32 %v5504, %v5992
        %v5994 = vpop.f32.mrf.mxu0
        %v5995 = vadd.f32 %v5506, %v5994
        %v5996 = vand.u32 %v454, 4294901760
        %v5997 = vsub.f32 %v454, %v5996
        %v5998 = vand.u32 %v5997, 4294901760
        %5999 = vmatprep.mubr.f32.mxu0 %v5998
        %v6000 = vand.u32 %v453, 4294901760
        %v6001 = vsub.f32 %v453, %v6000
        %v6002 = vand.u32 %v6001, 4294901760
        %6003 = vmatmul.mubr.f32.gmra.mxu0 %v6002
        %v6004 = vpop.f32.mrf.mxu0
        %v6005 = vadd.f32 %v5514, %v6004
        %v6006 = vpop.f32.mrf.mxu0
        %v6007 = vadd.f32 %v5516, %v6006
        %v6008 = vand.u32 %v458, 4294901760
        %v6009 = vsub.f32 %v458, %v6008
        %v6010 = vand.u32 %v6009, 4294901760
        %6011 = vmatprep.mubr.f32.mxu0 %v6010
        %v6012 = vand.u32 %v457, 4294901760
        %v6013 = vsub.f32 %v457, %v6012
        %v6014 = vand.u32 %v6013, 4294901760
        %6015 = vmatmul.mubr.f32.gmra.mxu0 %v6014
        %v6016 = vpop.f32.mrf.mxu0
        %v6017 = vadd.f32 %v5524, %v6016
        %v6018 = vpop.f32.mrf.mxu0
        %v6019 = vadd.f32 %v5526, %v6018
        %v6020 = vand.u32 %v462, 4294901760
        %v6021 = vsub.f32 %v462, %v6020
        %v6022 = vand.u32 %v6021, 4294901760
        %6023 = vmatprep.mubr.f32.mxu0 %v6022
        %v6024 = vand.u32 %v461, 4294901760
        %v6025 = vsub.f32 %v461, %v6024
        %v6026 = vand.u32 %v6025, 4294901760
        %6027 = vmatmul.mubr.f32.gmra.mxu0 %v6026
        %v6028 = vpop.f32.mrf.mxu0
        %v6029 = vadd.f32 %v5534, %v6028
        %v6030 = vpop.f32.mrf.mxu0
        %v6031 = vadd.f32 %v5536, %v6030
        %v6032 = vand.u32 %v466, 4294901760
        %v6033 = vsub.f32 %v466, %v6032
        %v6034 = vand.u32 %v6033, 4294901760
        %6035 = vmatprep.mubr.f32.mxu0 %v6034
        %v6036 = vand.u32 %v465, 4294901760
        %v6037 = vsub.f32 %v465, %v6036
        %v6038 = vand.u32 %v6037, 4294901760
        %6039 = vmatmul.mubr.f32.gmra.mxu0 %v6038
        %v6040 = vpop.f32.mrf.mxu0
        %v6041 = vadd.f32 %v5544, %v6040
        %v6042 = vpop.f32.mrf.mxu0
        %v6043 = vadd.f32 %v5546, %v6042
        %v6044 = vand.u32 %v470, 4294901760
        %v6045 = vsub.f32 %v470, %v6044
        %v6046 = vand.u32 %v6045, 4294901760
        %6047 = vmatprep.mubr.f32.mxu0 %v6046
        %v6048 = vand.u32 %v469, 4294901760
        %v6049 = vsub.f32 %v469, %v6048
        %v6050 = vand.u32 %v6049, 4294901760
        %6051 = vmatmul.mubr.f32.gmra.mxu0 %v6050
        %v6052 = vpop.f32.mrf.mxu0
        %v6053 = vadd.f32 %v5554, %v6052
        %v6054 = vpop.f32.mrf.mxu0
        %v6055 = vadd.f32 %v5556, %v6054
        %v6056 = vand.u32 %v474, 4294901760
        %v6057 = vsub.f32 %v474, %v6056
        %v6058 = vand.u32 %v6057, 4294901760
        %6059 = vmatprep.mubr.f32.mxu0 %v6058
        %v6060 = vand.u32 %v473, 4294901760
        %v6061 = vsub.f32 %v473, %v6060
        %v6062 = vand.u32 %v6061, 4294901760
        %6063 = vmatmul.mubr.f32.gmra.mxu0 %v6062
        %v6064 = vpop.f32.mrf.mxu0
        %v6065 = vadd.f32 %v5564, %v6064
        %v6066 = vpop.f32.mrf.mxu0
        %v6067 = vadd.f32 %v5566, %v6066
        %v6068 = vand.u32 %v478, 4294901760
        %v6069 = vsub.f32 %v478, %v6068
        %v6070 = vand.u32 %v6069, 4294901760
        %6071 = vmatprep.mubr.f32.mxu0 %v6070
        %v6072 = vand.u32 %v477, 4294901760
        %v6073 = vsub.f32 %v477, %v6072
        %v6074 = vand.u32 %v6073, 4294901760
        %6075 = vmatmul.mubr.f32.gmra.mxu0 %v6074
        %v6076 = vpop.f32.mrf.mxu0
        %v6077 = vadd.f32 %v5574, %v6076
        %v6078 = vpop.f32.mrf.mxu0
        %v6079 = vadd.f32 %v5576, %v6078
        %v6080 = vand.u32 %v482, 4294901760
        %v6081 = vsub.f32 %v482, %v6080
        %v6082 = vand.u32 %v6081, 4294901760
        %6083 = vmatprep.mubr.f32.mxu0 %v6082
        %v6084 = vand.u32 %v481, 4294901760
        %v6085 = vsub.f32 %v481, %v6084
        %v6086 = vand.u32 %v6085, 4294901760
        %6087 = vmatmul.mubr.f32.gmra.mxu0 %v6086
        %v6088 = vpop.f32.mrf.mxu0
        %v6089 = vadd.f32 %v5584, %v6088
        %v6090 = vpop.f32.mrf.mxu0
        %v6091 = vadd.f32 %v5586, %v6090
        %v6092 = vand.u32 %v486, 4294901760
        %v6093 = vsub.f32 %v486, %v6092
        %v6094 = vand.u32 %v6093, 4294901760
        %6095 = vmatprep.mubr.f32.mxu0 %v6094
        %v6096 = vand.u32 %v485, 4294901760
        %v6097 = vsub.f32 %v485, %v6096
        %v6098 = vand.u32 %v6097, 4294901760
        %6099 = vmatmul.mubr.f32.gmra.mxu0 %v6098
        %v6100 = vpop.f32.mrf.mxu0
        %v6101 = vadd.f32 %v5594, %v6100
        %v6102 = vpop.f32.mrf.mxu0
        %v6103 = vadd.f32 %v5596, %v6102
        %v6104 = vand.u32 %v490, 4294901760
        %v6105 = vsub.f32 %v490, %v6104
        %v6106 = vand.u32 %v6105, 4294901760
        %6107 = vmatprep.mubr.f32.mxu0 %v6106
        %v6108 = vand.u32 %v489, 4294901760
        %v6109 = vsub.f32 %v489, %v6108
        %v6110 = vand.u32 %v6109, 4294901760
        %6111 = vmatmul.mubr.f32.gmra.mxu0 %v6110
        %v6112 = vpop.f32.mrf.mxu0
        %v6113 = vadd.f32 %v5604, %v6112
        %v6114 = vpop.f32.mrf.mxu0
        %v6115 = vadd.f32 %v5606, %v6114
        %v6116 = vand.u32 %v494, 4294901760
        %v6117 = vsub.f32 %v494, %v6116
        %v6118 = vand.u32 %v6117, 4294901760
        %6119 = vmatprep.mubr.f32.mxu0 %v6118
        %v6120 = vand.u32 %v493, 4294901760
        %v6121 = vsub.f32 %v493, %v6120
        %v6122 = vand.u32 %v6121, 4294901760
        %6123 = vmatmul.mubr.f32.gmra.mxu0 %v6122
        %v6124 = vpop.f32.mrf.mxu0
        %v6125 = vadd.f32 %v5614, %v6124
        %v6126 = vpop.f32.mrf.mxu0
        %v6127 = vadd.f32 %v5616, %v6126
        %v6128 = vand.u32 %v498, 4294901760
        %v6129 = vsub.f32 %v498, %v6128
        %v6130 = vand.u32 %v6129, 4294901760
        %6131 = vmatprep.mubr.f32.mxu0 %v6130
        %v6132 = vand.u32 %v497, 4294901760
        %v6133 = vsub.f32 %v497, %v6132
        %v6134 = vand.u32 %v6133, 4294901760
        %6135 = vmatmul.mubr.f32.gmra.mxu0 %v6134
        %v6136 = vpop.f32.mrf.mxu0
        %v6137 = vadd.f32 %v5624, %v6136
        %v6138 = vpop.f32.mrf.mxu0
        %v6139 = vadd.f32 %v5626, %v6138
        %6140 = vdwg.mxu0
        %v6141 = vand.u32 %v594, 4294901760
        %v6142 = vsub.f32 %v594, %v6141
        %v6143 = vand.u32 %v6142, 4294901760
        %6144 = vmatprep.subr.mxu0 %v6143
        %v6145 = vand.u32 %v593, 4294901760
        %v6146 = vsub.f32 %v593, %v6145
        %v6147 = vand.u32 %v6146, 4294901760
        %6148 = vmatpush1.msra.mxu0 %v6147
        %v6149 = vand.u32 %v592, 4294901760
        %v6150 = vsub.f32 %v592, %v6149
        %v6151 = vand.u32 %v6150, 4294901760
        %6152 = vmatprep.subr.mxu0 %v6151
        %v6153 = vand.u32 %v591, 4294901760
        %v6154 = vsub.f32 %v591, %v6153
        %v6155 = vand.u32 %v6154, 4294901760
        %6156 = vmatpush1.msra.mxu0 %v6155
        %v6157 = vand.u32 %v590, 4294901760
        %v6158 = vsub.f32 %v590, %v6157
        %v6159 = vand.u32 %v6158, 4294901760
        %6160 = vmatprep.subr.mxu0 %v6159
        %v6161 = vand.u32 %v589, 4294901760
        %v6162 = vsub.f32 %v589, %v6161
        %v6163 = vand.u32 %v6162, 4294901760
        %6164 = vmatpush1.msra.mxu0 %v6163
        %v6165 = vand.u32 %v588, 4294901760
        %v6166 = vsub.f32 %v588, %v6165
        %v6167 = vand.u32 %v6166, 4294901760
        %6168 = vmatprep.subr.mxu0 %v6167
        %v6169 = vand.u32 %v587, 4294901760
        %v6170 = vsub.f32 %v587, %v6169
        %v6171 = vand.u32 %v6170, 4294901760
        %6172 = vmatpush1.msra.mxu0 %v6171
        %v6173 = vand.u32 %v586, 4294901760
        %v6174 = vsub.f32 %v586, %v6173
        %v6175 = vand.u32 %v6174, 4294901760
        %6176 = vmatprep.subr.mxu0 %v6175
        %v6177 = vand.u32 %v585, 4294901760
        %v6178 = vsub.f32 %v585, %v6177
        %v6179 = vand.u32 %v6178, 4294901760
        %6180 = vmatpush1.msra.mxu0 %v6179
        %v6181 = vand.u32 %v584, 4294901760
        %v6182 = vsub.f32 %v584, %v6181
        %v6183 = vand.u32 %v6182, 4294901760
        %6184 = vmatprep.subr.mxu0 %v6183
        %v6185 = vand.u32 %v583, 4294901760
        %v6186 = vsub.f32 %v583, %v6185
        %v6187 = vand.u32 %v6186, 4294901760
        %6188 = vmatpush1.msra.mxu0 %v6187
        %v6189 = vand.u32 %v582, 4294901760
        %v6190 = vsub.f32 %v582, %v6189
        %v6191 = vand.u32 %v6190, 4294901760
        %6192 = vmatprep.subr.mxu0 %v6191
        %v6193 = vand.u32 %v581, 4294901760
        %v6194 = vsub.f32 %v581, %v6193
        %v6195 = vand.u32 %v6194, 4294901760
        %6196 = vmatpush1.msra.mxu0 %v6195
        %v6197 = vand.u32 %v580, 4294901760
        %v6198 = vsub.f32 %v580, %v6197
        %v6199 = vand.u32 %v6198, 4294901760
        %6200 = vmatprep.subr.mxu0 %v6199
        %v6201 = vand.u32 %v579, 4294901760
        %v6202 = vsub.f32 %v579, %v6201
        %v6203 = vand.u32 %v6202, 4294901760
        %6204 = vmatpush1.msra.mxu0 %v6203
        %v6205 = vand.u32 %v578, 4294901760
        %v6206 = vsub.f32 %v578, %v6205
        %v6207 = vand.u32 %v6206, 4294901760
        %6208 = vmatprep.subr.mxu0 %v6207
        %v6209 = vand.u32 %v577, 4294901760
        %v6210 = vsub.f32 %v577, %v6209
        %v6211 = vand.u32 %v6210, 4294901760
        %6212 = vmatpush1.msra.mxu0 %v6211
        %v6213 = vand.u32 %v576, 4294901760
        %v6214 = vsub.f32 %v576, %v6213
        %v6215 = vand.u32 %v6214, 4294901760
        %6216 = vmatprep.subr.mxu0 %v6215
        %v6217 = vand.u32 %v575, 4294901760
        %v6218 = vsub.f32 %v575, %v6217
        %v6219 = vand.u32 %v6218, 4294901760
        %6220 = vmatpush1.msra.mxu0 %v6219
        %v6221 = vand.u32 %v574, 4294901760
        %v6222 = vsub.f32 %v574, %v6221
        %v6223 = vand.u32 %v6222, 4294901760
        %6224 = vmatprep.subr.mxu0 %v6223
        %v6225 = vand.u32 %v573, 4294901760
        %v6226 = vsub.f32 %v573, %v6225
        %v6227 = vand.u32 %v6226, 4294901760
        %6228 = vmatpush1.msra.mxu0 %v6227
        %v6229 = vand.u32 %v572, 4294901760
        %v6230 = vsub.f32 %v572, %v6229
        %v6231 = vand.u32 %v6230, 4294901760
        %6232 = vmatprep.subr.mxu0 %v6231
        %v6233 = vand.u32 %v571, 4294901760
        %v6234 = vsub.f32 %v571, %v6233
        %v6235 = vand.u32 %v6234, 4294901760
        %6236 = vmatpush1.msra.mxu0 %v6235
        %v6237 = vand.u32 %v570, 4294901760
        %v6238 = vsub.f32 %v570, %v6237
        %v6239 = vand.u32 %v6238, 4294901760
        %6240 = vmatprep.subr.mxu0 %v6239
        %v6241 = vand.u32 %v569, 4294901760
        %v6242 = vsub.f32 %v569, %v6241
        %v6243 = vand.u32 %v6242, 4294901760
        %6244 = vmatpush1.msra.mxu0 %v6243
        %v6245 = vand.u32 %v568, 4294901760
        %v6246 = vsub.f32 %v568, %v6245
        %v6247 = vand.u32 %v6246, 4294901760
        %6248 = vmatprep.subr.mxu0 %v6247
        %v6249 = vand.u32 %v567, 4294901760
        %v6250 = vsub.f32 %v567, %v6249
        %v6251 = vand.u32 %v6250, 4294901760
        %6252 = vmatpush1.msra.mxu0 %v6251
        %v6253 = vand.u32 %v566, 4294901760
        %v6254 = vsub.f32 %v566, %v6253
        %v6255 = vand.u32 %v6254, 4294901760
        %6256 = vmatprep.subr.mxu0 %v6255
        %v6257 = vand.u32 %v565, 4294901760
        %v6258 = vsub.f32 %v565, %v6257
        %v6259 = vand.u32 %v6258, 4294901760
        %6260 = vmatpush1.msra.mxu0 %v6259
        %v6261 = vand.u32 %v564, 4294901760
        %v6262 = vsub.f32 %v564, %v6261
        %v6263 = vand.u32 %v6262, 4294901760
        %6264 = vmatprep.subr.mxu0 %v6263
        %v6265 = vand.u32 %v563, 4294901760
        %v6266 = vsub.f32 %v563, %v6265
        %v6267 = vand.u32 %v6266, 4294901760
        %6268 = vmatpush1.msra.mxu0 %v6267
        %v6269 = vand.u32 %v626, 4294901760
        %v6270 = vsub.f32 %v626, %v6269
        %v6271 = vand.u32 %v6270, 4294901760
        %6272 = vmatprep.subr.mxu0 %v6271
        %v6273 = vand.u32 %v625, 4294901760
        %v6274 = vsub.f32 %v625, %v6273
        %v6275 = vand.u32 %v6274, 4294901760
        %6276 = vmatpush2.msra.mxu0 %v6275
        %v6277 = vand.u32 %v624, 4294901760
        %v6278 = vsub.f32 %v624, %v6277
        %v6279 = vand.u32 %v6278, 4294901760
        %6280 = vmatprep.subr.mxu0 %v6279
        %v6281 = vand.u32 %v623, 4294901760
        %v6282 = vsub.f32 %v623, %v6281
        %v6283 = vand.u32 %v6282, 4294901760
        %6284 = vmatpush2.msra.mxu0 %v6283
        %v6285 = vand.u32 %v622, 4294901760
        %v6286 = vsub.f32 %v622, %v6285
        %v6287 = vand.u32 %v6286, 4294901760
        %6288 = vmatprep.subr.mxu0 %v6287
        %v6289 = vand.u32 %v621, 4294901760
        %v6290 = vsub.f32 %v621, %v6289
        %v6291 = vand.u32 %v6290, 4294901760
        %6292 = vmatpush2.msra.mxu0 %v6291
        %v6293 = vand.u32 %v620, 4294901760
        %v6294 = vsub.f32 %v620, %v6293
        %v6295 = vand.u32 %v6294, 4294901760
        %6296 = vmatprep.subr.mxu0 %v6295
        %v6297 = vand.u32 %v619, 4294901760
        %v6298 = vsub.f32 %v619, %v6297
        %v6299 = vand.u32 %v6298, 4294901760
        %6300 = vmatpush2.msra.mxu0 %v6299
        %v6301 = vand.u32 %v618, 4294901760
        %v6302 = vsub.f32 %v618, %v6301
        %v6303 = vand.u32 %v6302, 4294901760
        %6304 = vmatprep.subr.mxu0 %v6303
        %v6305 = vand.u32 %v617, 4294901760
        %v6306 = vsub.f32 %v617, %v6305
        %v6307 = vand.u32 %v6306, 4294901760
        %6308 = vmatpush2.msra.mxu0 %v6307
        %v6309 = vand.u32 %v616, 4294901760
        %v6310 = vsub.f32 %v616, %v6309
        %v6311 = vand.u32 %v6310, 4294901760
        %6312 = vmatprep.subr.mxu0 %v6311
        %v6313 = vand.u32 %v615, 4294901760
        %v6314 = vsub.f32 %v615, %v6313
        %v6315 = vand.u32 %v6314, 4294901760
        %6316 = vmatpush2.msra.mxu0 %v6315
        %v6317 = vand.u32 %v614, 4294901760
        %v6318 = vsub.f32 %v614, %v6317
        %v6319 = vand.u32 %v6318, 4294901760
        %6320 = vmatprep.subr.mxu0 %v6319
        %v6321 = vand.u32 %v613, 4294901760
        %v6322 = vsub.f32 %v613, %v6321
        %v6323 = vand.u32 %v6322, 4294901760
        %6324 = vmatpush2.msra.mxu0 %v6323
        %v6325 = vand.u32 %v612, 4294901760
        %v6326 = vsub.f32 %v612, %v6325
        %v6327 = vand.u32 %v6326, 4294901760
        %6328 = vmatprep.subr.mxu0 %v6327
        %v6329 = vand.u32 %v611, 4294901760
        %v6330 = vsub.f32 %v611, %v6329
        %v6331 = vand.u32 %v6330, 4294901760
        %6332 = vmatpush2.msra.mxu0 %v6331
        %v6333 = vand.u32 %v610, 4294901760
        %v6334 = vsub.f32 %v610, %v6333
        %v6335 = vand.u32 %v6334, 4294901760
        %6336 = vmatprep.subr.mxu0 %v6335
        %v6337 = vand.u32 %v609, 4294901760
        %v6338 = vsub.f32 %v609, %v6337
        %v6339 = vand.u32 %v6338, 4294901760
        %6340 = vmatpush2.msra.mxu0 %v6339
        %v6341 = vand.u32 %v608, 4294901760
        %v6342 = vsub.f32 %v608, %v6341
        %v6343 = vand.u32 %v6342, 4294901760
        %6344 = vmatprep.subr.mxu0 %v6343
        %v6345 = vand.u32 %v607, 4294901760
        %v6346 = vsub.f32 %v607, %v6345
        %v6347 = vand.u32 %v6346, 4294901760
        %6348 = vmatpush2.msra.mxu0 %v6347
        %v6349 = vand.u32 %v606, 4294901760
        %v6350 = vsub.f32 %v606, %v6349
        %v6351 = vand.u32 %v6350, 4294901760
        %6352 = vmatprep.subr.mxu0 %v6351
        %v6353 = vand.u32 %v605, 4294901760
        %v6354 = vsub.f32 %v605, %v6353
        %v6355 = vand.u32 %v6354, 4294901760
        %6356 = vmatpush2.msra.mxu0 %v6355
        %v6357 = vand.u32 %v604, 4294901760
        %v6358 = vsub.f32 %v604, %v6357
        %v6359 = vand.u32 %v6358, 4294901760
        %6360 = vmatprep.subr.mxu0 %v6359
        %v6361 = vand.u32 %v603, 4294901760
        %v6362 = vsub.f32 %v603, %v6361
        %v6363 = vand.u32 %v6362, 4294901760
        %6364 = vmatpush2.msra.mxu0 %v6363
        %v6365 = vand.u32 %v602, 4294901760
        %v6366 = vsub.f32 %v602, %v6365
        %v6367 = vand.u32 %v6366, 4294901760
        %6368 = vmatprep.subr.mxu0 %v6367
        %v6369 = vand.u32 %v601, 4294901760
        %v6370 = vsub.f32 %v601, %v6369
        %v6371 = vand.u32 %v6370, 4294901760
        %6372 = vmatpush2.msra.mxu0 %v6371
        %v6373 = vand.u32 %v600, 4294901760
        %v6374 = vsub.f32 %v600, %v6373
        %v6375 = vand.u32 %v6374, 4294901760
        %6376 = vmatprep.subr.mxu0 %v6375
        %v6377 = vand.u32 %v599, 4294901760
        %v6378 = vsub.f32 %v599, %v6377
        %v6379 = vand.u32 %v6378, 4294901760
        %6380 = vmatpush2.msra.mxu0 %v6379
        %v6381 = vand.u32 %v598, 4294901760
        %v6382 = vsub.f32 %v598, %v6381
        %v6383 = vand.u32 %v6382, 4294901760
        %6384 = vmatprep.subr.mxu0 %v6383
        %v6385 = vand.u32 %v597, 4294901760
        %v6386 = vsub.f32 %v597, %v6385
        %v6387 = vand.u32 %v6386, 4294901760
        %6388 = vmatpush2.msra.mxu0 %v6387
        %v6389 = vand.u32 %v596, 4294901760
        %v6390 = vsub.f32 %v596, %v6389
        %v6391 = vand.u32 %v6390, 4294901760
        %6392 = vmatprep.subr.mxu0 %v6391
        %v6393 = vand.u32 %v595, 4294901760
        %v6394 = vsub.f32 %v595, %v6393
        %v6395 = vand.u32 %v6394, 4294901760
        %6396 = vmatpush2.msra.mxu0 %v6395
        %v6397 = vand.u32 %v374, 4294901760
        %6398 = vmatprep.mubr.f32.mxu0 %v6397
        %v6399 = vand.u32 %v373, 4294901760
        %6400 = vmatmul.mubr.f32.gmra.mxu0 %v6399
        %v6401 = vpop.f32.mrf.mxu0
        %v6402 = vadd.f32 %v5765, %v6401
        %v6403 = vpop.f32.mrf.mxu0
        %v6404 = vadd.f32 %v5767, %v6403
        %v6405 = vand.u32 %v378, 4294901760
        %6406 = vmatprep.mubr.f32.mxu0 %v6405
        %v6407 = vand.u32 %v377, 4294901760
        %6408 = vmatmul.mubr.f32.gmra.mxu0 %v6407
        %v6409 = vpop.f32.mrf.mxu0
        %v6410 = vadd.f32 %v5777, %v6409
        %v6411 = vpop.f32.mrf.mxu0
        %v6412 = vadd.f32 %v5779, %v6411
        %v6413 = vand.u32 %v382, 4294901760
        %6414 = vmatprep.mubr.f32.mxu0 %v6413
        %v6415 = vand.u32 %v381, 4294901760
        %6416 = vmatmul.mubr.f32.gmra.mxu0 %v6415
        %v6417 = vpop.f32.mrf.mxu0
        %v6418 = vadd.f32 %v5789, %v6417
        %v6419 = vpop.f32.mrf.mxu0
        %v6420 = vadd.f32 %v5791, %v6419
        %v6421 = vand.u32 %v386, 4294901760
        %6422 = vmatprep.mubr.f32.mxu0 %v6421
        %v6423 = vand.u32 %v385, 4294901760
        %6424 = vmatmul.mubr.f32.gmra.mxu0 %v6423
        %v6425 = vpop.f32.mrf.mxu0
        %v6426 = vadd.f32 %v5801, %v6425
        %v6427 = vpop.f32.mrf.mxu0
        %v6428 = vadd.f32 %v5803, %v6427
        %v6429 = vand.u32 %v390, 4294901760
        %6430 = vmatprep.mubr.f32.mxu0 %v6429
        %v6431 = vand.u32 %v389, 4294901760
        %6432 = vmatmul.mubr.f32.gmra.mxu0 %v6431
        %v6433 = vpop.f32.mrf.mxu0
        %v6434 = vadd.f32 %v5813, %v6433
        %v6435 = vpop.f32.mrf.mxu0
        %v6436 = vadd.f32 %v5815, %v6435
        %v6437 = vand.u32 %v394, 4294901760
        %6438 = vmatprep.mubr.f32.mxu0 %v6437
        %v6439 = vand.u32 %v393, 4294901760
        %6440 = vmatmul.mubr.f32.gmra.mxu0 %v6439
        %v6441 = vpop.f32.mrf.mxu0
        %v6442 = vadd.f32 %v5825, %v6441
        %v6443 = vpop.f32.mrf.mxu0
        %v6444 = vadd.f32 %v5827, %v6443
        %v6445 = vand.u32 %v398, 4294901760
        %6446 = vmatprep.mubr.f32.mxu0 %v6445
        %v6447 = vand.u32 %v397, 4294901760
        %6448 = vmatmul.mubr.f32.gmra.mxu0 %v6447
        %v6449 = vpop.f32.mrf.mxu0
        %v6450 = vadd.f32 %v5837, %v6449
        %v6451 = vpop.f32.mrf.mxu0
        %v6452 = vadd.f32 %v5839, %v6451
        %v6453 = vand.u32 %v402, 4294901760
        %6454 = vmatprep.mubr.f32.mxu0 %v6453
        %v6455 = vand.u32 %v401, 4294901760
        %6456 = vmatmul.mubr.f32.gmra.mxu0 %v6455
        %v6457 = vpop.f32.mrf.mxu0
        %v6458 = vadd.f32 %v5849, %v6457
        %v6459 = vpop.f32.mrf.mxu0
        %v6460 = vadd.f32 %v5851, %v6459
        %v6461 = vand.u32 %v406, 4294901760
        %6462 = vmatprep.mubr.f32.mxu0 %v6461
        %v6463 = vand.u32 %v405, 4294901760
        %6464 = vmatmul.mubr.f32.gmra.mxu0 %v6463
        %v6465 = vpop.f32.mrf.mxu0
        %v6466 = vadd.f32 %v5861, %v6465
        %v6467 = vpop.f32.mrf.mxu0
        %v6468 = vadd.f32 %v5863, %v6467
        %v6469 = vand.u32 %v410, 4294901760
        %6470 = vmatprep.mubr.f32.mxu0 %v6469
        %v6471 = vand.u32 %v409, 4294901760
        %6472 = vmatmul.mubr.f32.gmra.mxu0 %v6471
        %v6473 = vpop.f32.mrf.mxu0
        %v6474 = vadd.f32 %v5873, %v6473
        %v6475 = vpop.f32.mrf.mxu0
        %v6476 = vadd.f32 %v5875, %v6475
        %v6477 = vand.u32 %v414, 4294901760
        %6478 = vmatprep.mubr.f32.mxu0 %v6477
        %v6479 = vand.u32 %v413, 4294901760
        %6480 = vmatmul.mubr.f32.gmra.mxu0 %v6479
        %v6481 = vpop.f32.mrf.mxu0
        %v6482 = vadd.f32 %v5885, %v6481
        %v6483 = vpop.f32.mrf.mxu0
        %v6484 = vadd.f32 %v5887, %v6483
        %v6485 = vand.u32 %v418, 4294901760
        %6486 = vmatprep.mubr.f32.mxu0 %v6485
        %v6487 = vand.u32 %v417, 4294901760
        %6488 = vmatmul.mubr.f32.gmra.mxu0 %v6487
        %v6489 = vpop.f32.mrf.mxu0
        %v6490 = vadd.f32 %v5897, %v6489
        %v6491 = vpop.f32.mrf.mxu0
        %v6492 = vadd.f32 %v5899, %v6491
        %v6493 = vand.u32 %v422, 4294901760
        %6494 = vmatprep.mubr.f32.mxu0 %v6493
        %v6495 = vand.u32 %v421, 4294901760
        %6496 = vmatmul.mubr.f32.gmra.mxu0 %v6495
        %v6497 = vpop.f32.mrf.mxu0
        %v6498 = vadd.f32 %v5909, %v6497
        %v6499 = vpop.f32.mrf.mxu0
        %v6500 = vadd.f32 %v5911, %v6499
        %v6501 = vand.u32 %v426, 4294901760
        %6502 = vmatprep.mubr.f32.mxu0 %v6501
        %v6503 = vand.u32 %v425, 4294901760
        %6504 = vmatmul.mubr.f32.gmra.mxu0 %v6503
        %v6505 = vpop.f32.mrf.mxu0
        %v6506 = vadd.f32 %v5921, %v6505
        %v6507 = vpop.f32.mrf.mxu0
        %v6508 = vadd.f32 %v5923, %v6507
        %v6509 = vand.u32 %v430, 4294901760
        %6510 = vmatprep.mubr.f32.mxu0 %v6509
        %v6511 = vand.u32 %v429, 4294901760
        %6512 = vmatmul.mubr.f32.gmra.mxu0 %v6511
        %v6513 = vpop.f32.mrf.mxu0
        %v6514 = vadd.f32 %v5933, %v6513
        %v6515 = vpop.f32.mrf.mxu0
        %v6516 = vadd.f32 %v5935, %v6515
        %v6517 = vand.u32 %v434, 4294901760
        %6518 = vmatprep.mubr.f32.mxu0 %v6517
        %v6519 = vand.u32 %v433, 4294901760
        %6520 = vmatmul.mubr.f32.gmra.mxu0 %v6519
        %v6521 = vpop.f32.mrf.mxu0
        %v6522 = vadd.f32 %v5945, %v6521
        %v6523 = vpop.f32.mrf.mxu0
        %v6524 = vadd.f32 %v5947, %v6523
        %v6525 = vand.u32 %v438, 4294901760
        %6526 = vmatprep.mubr.f32.mxu0 %v6525
        %v6527 = vand.u32 %v437, 4294901760
        %6528 = vmatmul.mubr.f32.gmra.mxu0 %v6527
        %v6529 = vpop.f32.mrf.mxu0
        %v6530 = vadd.f32 %v5957, %v6529
        %v6531 = vpop.f32.mrf.mxu0
        %v6532 = vadd.f32 %v5959, %v6531
        %v6533 = vand.u32 %v442, 4294901760
        %6534 = vmatprep.mubr.f32.mxu0 %v6533
        %v6535 = vand.u32 %v441, 4294901760
        %6536 = vmatmul.mubr.f32.gmra.mxu0 %v6535
        %v6537 = vpop.f32.mrf.mxu0
        %v6538 = vadd.f32 %v5969, %v6537
        %v6539 = vpop.f32.mrf.mxu0
        %v6540 = vadd.f32 %v5971, %v6539
        %v6541 = vand.u32 %v446, 4294901760
        %6542 = vmatprep.mubr.f32.mxu0 %v6541
        %v6543 = vand.u32 %v445, 4294901760
        %6544 = vmatmul.mubr.f32.gmra.mxu0 %v6543
        %v6545 = vpop.f32.mrf.mxu0
        %v6546 = vadd.f32 %v5981, %v6545
        %v6547 = vpop.f32.mrf.mxu0
        %v6548 = vadd.f32 %v5983, %v6547
        %v6549 = vand.u32 %v450, 4294901760
        %6550 = vmatprep.mubr.f32.mxu0 %v6549
        %v6551 = vand.u32 %v449, 4294901760
        %6552 = vmatmul.mubr.f32.gmra.mxu0 %v6551
        %v6553 = vpop.f32.mrf.mxu0
        %v6554 = vadd.f32 %v5993, %v6553
        %v6555 = vpop.f32.mrf.mxu0
        %v6556 = vadd.f32 %v5995, %v6555
        %v6557 = vand.u32 %v454, 4294901760
        %6558 = vmatprep.mubr.f32.mxu0 %v6557
        %v6559 = vand.u32 %v453, 4294901760
        %6560 = vmatmul.mubr.f32.gmra.mxu0 %v6559
        %v6561 = vpop.f32.mrf.mxu0
        %v6562 = vadd.f32 %v6005, %v6561
        %v6563 = vpop.f32.mrf.mxu0
        %v6564 = vadd.f32 %v6007, %v6563
        %v6565 = vand.u32 %v458, 4294901760
        %6566 = vmatprep.mubr.f32.mxu0 %v6565
        %v6567 = vand.u32 %v457, 4294901760
        %6568 = vmatmul.mubr.f32.gmra.mxu0 %v6567
        %v6569 = vpop.f32.mrf.mxu0
        %v6570 = vadd.f32 %v6017, %v6569
        %v6571 = vpop.f32.mrf.mxu0
        %v6572 = vadd.f32 %v6019, %v6571
        %v6573 = vand.u32 %v462, 4294901760
        %6574 = vmatprep.mubr.f32.mxu0 %v6573
        %v6575 = vand.u32 %v461, 4294901760
        %6576 = vmatmul.mubr.f32.gmra.mxu0 %v6575
        %v6577 = vpop.f32.mrf.mxu0
        %v6578 = vadd.f32 %v6029, %v6577
        %v6579 = vpop.f32.mrf.mxu0
        %v6580 = vadd.f32 %v6031, %v6579
        %v6581 = vand.u32 %v466, 4294901760
        %6582 = vmatprep.mubr.f32.mxu0 %v6581
        %v6583 = vand.u32 %v465, 4294901760
        %6584 = vmatmul.mubr.f32.gmra.mxu0 %v6583
        %v6585 = vpop.f32.mrf.mxu0
        %v6586 = vadd.f32 %v6041, %v6585
        %v6587 = vpop.f32.mrf.mxu0
        %v6588 = vadd.f32 %v6043, %v6587
        %v6589 = vand.u32 %v470, 4294901760
        %6590 = vmatprep.mubr.f32.mxu0 %v6589
        %v6591 = vand.u32 %v469, 4294901760
        %6592 = vmatmul.mubr.f32.gmra.mxu0 %v6591
        %v6593 = vpop.f32.mrf.mxu0
        %v6594 = vadd.f32 %v6053, %v6593
        %v6595 = vpop.f32.mrf.mxu0
        %v6596 = vadd.f32 %v6055, %v6595
        %v6597 = vand.u32 %v474, 4294901760
        %6598 = vmatprep.mubr.f32.mxu0 %v6597
        %v6599 = vand.u32 %v473, 4294901760
        %6600 = vmatmul.mubr.f32.gmra.mxu0 %v6599
        %v6601 = vpop.f32.mrf.mxu0
        %v6602 = vadd.f32 %v6065, %v6601
        %v6603 = vpop.f32.mrf.mxu0
        %v6604 = vadd.f32 %v6067, %v6603
        %v6605 = vand.u32 %v478, 4294901760
        %6606 = vmatprep.mubr.f32.mxu0 %v6605
        %v6607 = vand.u32 %v477, 4294901760
        %6608 = vmatmul.mubr.f32.gmra.mxu0 %v6607
        %v6609 = vpop.f32.mrf.mxu0
        %v6610 = vadd.f32 %v6077, %v6609
        %v6611 = vpop.f32.mrf.mxu0
        %v6612 = vadd.f32 %v6079, %v6611
        %v6613 = vand.u32 %v482, 4294901760
        %6614 = vmatprep.mubr.f32.mxu0 %v6613
        %v6615 = vand.u32 %v481, 4294901760
        %6616 = vmatmul.mubr.f32.gmra.mxu0 %v6615
        %v6617 = vpop.f32.mrf.mxu0
        %v6618 = vadd.f32 %v6089, %v6617
        %v6619 = vpop.f32.mrf.mxu0
        %v6620 = vadd.f32 %v6091, %v6619
        %v6621 = vand.u32 %v486, 4294901760
        %6622 = vmatprep.mubr.f32.mxu0 %v6621
        %v6623 = vand.u32 %v485, 4294901760
        %6624 = vmatmul.mubr.f32.gmra.mxu0 %v6623
        %v6625 = vpop.f32.mrf.mxu0
        %v6626 = vadd.f32 %v6101, %v6625
        %v6627 = vpop.f32.mrf.mxu0
        %v6628 = vadd.f32 %v6103, %v6627
        %v6629 = vand.u32 %v490, 4294901760
        %6630 = vmatprep.mubr.f32.mxu0 %v6629
        %v6631 = vand.u32 %v489, 4294901760
        %6632 = vmatmul.mubr.f32.gmra.mxu0 %v6631
        %v6633 = vpop.f32.mrf.mxu0
        %v6634 = vadd.f32 %v6113, %v6633
        %v6635 = vpop.f32.mrf.mxu0
        %v6636 = vadd.f32 %v6115, %v6635
        %v6637 = vand.u32 %v494, 4294901760
        %6638 = vmatprep.mubr.f32.mxu0 %v6637
        %v6639 = vand.u32 %v493, 4294901760
        %6640 = vmatmul.mubr.f32.gmra.mxu0 %v6639
        %v6641 = vpop.f32.mrf.mxu0
        %v6642 = vadd.f32 %v6125, %v6641
        %v6643 = vpop.f32.mrf.mxu0
        %v6644 = vadd.f32 %v6127, %v6643
        %v6645 = vand.u32 %v498, 4294901760
        %6646 = vmatprep.mubr.f32.mxu0 %v6645
        %v6647 = vand.u32 %v497, 4294901760
        %6648 = vmatmul.mubr.f32.gmra.mxu0 %v6647
        %v6649 = vpop.f32.mrf.mxu0
        %v6650 = vadd.f32 %v6137, %v6649
        %v6651 = vpop.f32.mrf.mxu0
        %v6652 = vadd.f32 %v6139, %v6651
        %6653 = vdwg.mxu0
        %v6654 = vand.u32 %v594, 4294901760
        %6655 = vmatprep.subr.mxu0 %v6654
        %v6656 = vand.u32 %v593, 4294901760
        %6657 = vmatpush1.msra.mxu0 %v6656
        %v6658 = vand.u32 %v592, 4294901760
        %6659 = vmatprep.subr.mxu0 %v6658
        %v6660 = vand.u32 %v591, 4294901760
        %6661 = vmatpush1.msra.mxu0 %v6660
        %v6662 = vand.u32 %v590, 4294901760
        %6663 = vmatprep.subr.mxu0 %v6662
        %v6664 = vand.u32 %v589, 4294901760
        %6665 = vmatpush1.msra.mxu0 %v6664
        %v6666 = vand.u32 %v588, 4294901760
        %6667 = vmatprep.subr.mxu0 %v6666
        %v6668 = vand.u32 %v587, 4294901760
        %6669 = vmatpush1.msra.mxu0 %v6668
        %v6670 = vand.u32 %v586, 4294901760
        %6671 = vmatprep.subr.mxu0 %v6670
        %v6672 = vand.u32 %v585, 4294901760
        %6673 = vmatpush1.msra.mxu0 %v6672
        %v6674 = vand.u32 %v584, 4294901760
        %6675 = vmatprep.subr.mxu0 %v6674
        %v6676 = vand.u32 %v583, 4294901760
        %6677 = vmatpush1.msra.mxu0 %v6676
        %v6678 = vand.u32 %v582, 4294901760
        %6679 = vmatprep.subr.mxu0 %v6678
        %v6680 = vand.u32 %v581, 4294901760
        %6681 = vmatpush1.msra.mxu0 %v6680
        %v6682 = vand.u32 %v580, 4294901760
        %6683 = vmatprep.subr.mxu0 %v6682
        %v6684 = vand.u32 %v579, 4294901760
        %6685 = vmatpush1.msra.mxu0 %v6684
        %v6686 = vand.u32 %v578, 4294901760
        %6687 = vmatprep.subr.mxu0 %v6686
        %v6688 = vand.u32 %v577, 4294901760
        %6689 = vmatpush1.msra.mxu0 %v6688
        %v6690 = vand.u32 %v576, 4294901760
        %6691 = vmatprep.subr.mxu0 %v6690
        %v6692 = vand.u32 %v575, 4294901760
        %6693 = vmatpush1.msra.mxu0 %v6692
        %v6694 = vand.u32 %v574, 4294901760
        %6695 = vmatprep.subr.mxu0 %v6694
        %v6696 = vand.u32 %v573, 4294901760
        %6697 = vmatpush1.msra.mxu0 %v6696
        %v6698 = vand.u32 %v572, 4294901760
        %6699 = vmatprep.subr.mxu0 %v6698
        %v6700 = vand.u32 %v571, 4294901760
        %6701 = vmatpush1.msra.mxu0 %v6700
        %v6702 = vand.u32 %v570, 4294901760
        %6703 = vmatprep.subr.mxu0 %v6702
        %v6704 = vand.u32 %v569, 4294901760
        %6705 = vmatpush1.msra.mxu0 %v6704
        %v6706 = vand.u32 %v568, 4294901760
        %6707 = vmatprep.subr.mxu0 %v6706
        %v6708 = vand.u32 %v567, 4294901760
        %6709 = vmatpush1.msra.mxu0 %v6708
        %v6710 = vand.u32 %v566, 4294901760
        %6711 = vmatprep.subr.mxu0 %v6710
        %v6712 = vand.u32 %v565, 4294901760
        %6713 = vmatpush1.msra.mxu0 %v6712
        %v6714 = vand.u32 %v564, 4294901760
        %6715 = vmatprep.subr.mxu0 %v6714
        %v6716 = vand.u32 %v563, 4294901760
        %6717 = vmatpush1.msra.mxu0 %v6716
        %v6718 = vand.u32 %v626, 4294901760
        %6719 = vmatprep.subr.mxu0 %v6718
        %v6720 = vand.u32 %v625, 4294901760
        %6721 = vmatpush2.msra.mxu0 %v6720
        %v6722 = vand.u32 %v624, 4294901760
        %6723 = vmatprep.subr.mxu0 %v6722
        %v6724 = vand.u32 %v623, 4294901760
        %6725 = vmatpush2.msra.mxu0 %v6724
        %v6726 = vand.u32 %v622, 4294901760
        %6727 = vmatprep.subr.mxu0 %v6726
        %v6728 = vand.u32 %v621, 4294901760
        %6729 = vmatpush2.msra.mxu0 %v6728
        %v6730 = vand.u32 %v620, 4294901760
        %6731 = vmatprep.subr.mxu0 %v6730
        %v6732 = vand.u32 %v619, 4294901760
        %6733 = vmatpush2.msra.mxu0 %v6732
        %v6734 = vand.u32 %v618, 4294901760
        %6735 = vmatprep.subr.mxu0 %v6734
        %v6736 = vand.u32 %v617, 4294901760
        %6737 = vmatpush2.msra.mxu0 %v6736
        %v6738 = vand.u32 %v616, 4294901760
        %6739 = vmatprep.subr.mxu0 %v6738
        %v6740 = vand.u32 %v615, 4294901760
        %6741 = vmatpush2.msra.mxu0 %v6740
        %v6742 = vand.u32 %v614, 4294901760
        %6743 = vmatprep.subr.mxu0 %v6742
        %v6744 = vand.u32 %v613, 4294901760
        %6745 = vmatpush2.msra.mxu0 %v6744
        %v6746 = vand.u32 %v612, 4294901760
        %6747 = vmatprep.subr.mxu0 %v6746
        %v6748 = vand.u32 %v611, 4294901760
        %6749 = vmatpush2.msra.mxu0 %v6748
        %v6750 = vand.u32 %v610, 4294901760
        %6751 = vmatprep.subr.mxu0 %v6750
        %v6752 = vand.u32 %v609, 4294901760
        %6753 = vmatpush2.msra.mxu0 %v6752
        %v6754 = vand.u32 %v608, 4294901760
        %6755 = vmatprep.subr.mxu0 %v6754
        %v6756 = vand.u32 %v607, 4294901760
        %6757 = vmatpush2.msra.mxu0 %v6756
        %v6758 = vand.u32 %v606, 4294901760
        %6759 = vmatprep.subr.mxu0 %v6758
        %v6760 = vand.u32 %v605, 4294901760
        %6761 = vmatpush2.msra.mxu0 %v6760
        %v6762 = vand.u32 %v604, 4294901760
        %6763 = vmatprep.subr.mxu0 %v6762
        %v6764 = vand.u32 %v603, 4294901760
        %6765 = vmatpush2.msra.mxu0 %v6764
        %v6766 = vand.u32 %v602, 4294901760
        %6767 = vmatprep.subr.mxu0 %v6766
        %v6768 = vand.u32 %v601, 4294901760
        %6769 = vmatpush2.msra.mxu0 %v6768
        %v6770 = vand.u32 %v600, 4294901760
        %6771 = vmatprep.subr.mxu0 %v6770
        %v6772 = vand.u32 %v599, 4294901760
        %6773 = vmatpush2.msra.mxu0 %v6772
        %v6774 = vand.u32 %v598, 4294901760
        %6775 = vmatprep.subr.mxu0 %v6774
        %v6776 = vand.u32 %v597, 4294901760
        %6777 = vmatpush2.msra.mxu0 %v6776
        %v6778 = vand.u32 %v596, 4294901760
        %6779 = vmatprep.subr.mxu0 %v6778
        %v6780 = vand.u32 %v595, 4294901760
        %6781 = vmatpush2.msra.mxu0 %v6780
        %v6782 = vand.u32 %v374, 4294901760
        %6783 = vmatprep.mubr.f32.mxu0 %v6782
        %v6784 = vand.u32 %v373, 4294901760
        %6785 = vmatmul.mubr.f32.gmra.mxu0 %v6784
        %v6786 = vpop.f32.mrf.mxu0
        %v6787 = vadd.f32 %v6402, %v6786
        %v6788 = vpop.f32.mrf.mxu0
        %v6789 = vadd.f32 %v6404, %v6788
        %v6790 = vand.u32 %v378, 4294901760
        %6791 = vmatprep.mubr.f32.mxu0 %v6790
        %v6792 = vand.u32 %v377, 4294901760
        %6793 = vmatmul.mubr.f32.gmra.mxu0 %v6792
        %v6794 = vpop.f32.mrf.mxu0
        %v6795 = vadd.f32 %v6410, %v6794
        %v6796 = vpop.f32.mrf.mxu0
        %v6797 = vadd.f32 %v6412, %v6796
        %v6798 = vand.u32 %v382, 4294901760
        %6799 = vmatprep.mubr.f32.mxu0 %v6798
        %v6800 = vand.u32 %v381, 4294901760
        %6801 = vmatmul.mubr.f32.gmra.mxu0 %v6800
        %v6802 = vpop.f32.mrf.mxu0
        %v6803 = vadd.f32 %v6418, %v6802
        %v6804 = vpop.f32.mrf.mxu0
        %v6805 = vadd.f32 %v6420, %v6804
        %v6806 = vand.u32 %v386, 4294901760
        %6807 = vmatprep.mubr.f32.mxu0 %v6806
        %v6808 = vand.u32 %v385, 4294901760
        %6809 = vmatmul.mubr.f32.gmra.mxu0 %v6808
        %v6810 = vpop.f32.mrf.mxu0
        %v6811 = vadd.f32 %v6426, %v6810
        %v6812 = vpop.f32.mrf.mxu0
        %v6813 = vadd.f32 %v6428, %v6812
        %v6814 = vand.u32 %v390, 4294901760
        %6815 = vmatprep.mubr.f32.mxu0 %v6814
        %v6816 = vand.u32 %v389, 4294901760
        %6817 = vmatmul.mubr.f32.gmra.mxu0 %v6816
        %v6818 = vpop.f32.mrf.mxu0
        %v6819 = vadd.f32 %v6434, %v6818
        %v6820 = vpop.f32.mrf.mxu0
        %v6821 = vadd.f32 %v6436, %v6820
        %v6822 = vand.u32 %v394, 4294901760
        %6823 = vmatprep.mubr.f32.mxu0 %v6822
        %v6824 = vand.u32 %v393, 4294901760
        %6825 = vmatmul.mubr.f32.gmra.mxu0 %v6824
        %v6826 = vpop.f32.mrf.mxu0
        %v6827 = vadd.f32 %v6442, %v6826
        %v6828 = vpop.f32.mrf.mxu0
        %v6829 = vadd.f32 %v6444, %v6828
        %v6830 = vand.u32 %v398, 4294901760
        %6831 = vmatprep.mubr.f32.mxu0 %v6830
        %v6832 = vand.u32 %v397, 4294901760
        %6833 = vmatmul.mubr.f32.gmra.mxu0 %v6832
        %v6834 = vpop.f32.mrf.mxu0
        %v6835 = vadd.f32 %v6450, %v6834
        %v6836 = vpop.f32.mrf.mxu0
        %v6837 = vadd.f32 %v6452, %v6836
        %v6838 = vand.u32 %v402, 4294901760
        %6839 = vmatprep.mubr.f32.mxu0 %v6838
        %v6840 = vand.u32 %v401, 4294901760
        %6841 = vmatmul.mubr.f32.gmra.mxu0 %v6840
        %v6842 = vpop.f32.mrf.mxu0
        %v6843 = vadd.f32 %v6458, %v6842
        %v6844 = vpop.f32.mrf.mxu0
        %v6845 = vadd.f32 %v6460, %v6844
        %v6846 = vand.u32 %v406, 4294901760
        %6847 = vmatprep.mubr.f32.mxu0 %v6846
        %v6848 = vand.u32 %v405, 4294901760
        %6849 = vmatmul.mubr.f32.gmra.mxu0 %v6848
        %v6850 = vpop.f32.mrf.mxu0
        %v6851 = vadd.f32 %v6466, %v6850
        %v6852 = vpop.f32.mrf.mxu0
        %v6853 = vadd.f32 %v6468, %v6852
        %v6854 = vand.u32 %v410, 4294901760
        %6855 = vmatprep.mubr.f32.mxu0 %v6854
        %v6856 = vand.u32 %v409, 4294901760
        %6857 = vmatmul.mubr.f32.gmra.mxu0 %v6856
        %v6858 = vpop.f32.mrf.mxu0
        %v6859 = vadd.f32 %v6474, %v6858
        %v6860 = vpop.f32.mrf.mxu0
        %v6861 = vadd.f32 %v6476, %v6860
        %v6862 = vand.u32 %v414, 4294901760
        %6863 = vmatprep.mubr.f32.mxu0 %v6862
        %v6864 = vand.u32 %v413, 4294901760
        %6865 = vmatmul.mubr.f32.gmra.mxu0 %v6864
        %v6866 = vpop.f32.mrf.mxu0
        %v6867 = vadd.f32 %v6482, %v6866
        %v6868 = vpop.f32.mrf.mxu0
        %v6869 = vadd.f32 %v6484, %v6868
        %v6870 = vand.u32 %v418, 4294901760
        %6871 = vmatprep.mubr.f32.mxu0 %v6870
        %v6872 = vand.u32 %v417, 4294901760
        %6873 = vmatmul.mubr.f32.gmra.mxu0 %v6872
        %v6874 = vpop.f32.mrf.mxu0
        %v6875 = vadd.f32 %v6490, %v6874
        %v6876 = vpop.f32.mrf.mxu0
        %v6877 = vadd.f32 %v6492, %v6876
        %v6878 = vand.u32 %v422, 4294901760
        %6879 = vmatprep.mubr.f32.mxu0 %v6878
        %v6880 = vand.u32 %v421, 4294901760
        %6881 = vmatmul.mubr.f32.gmra.mxu0 %v6880
        %v6882 = vpop.f32.mrf.mxu0
        %v6883 = vadd.f32 %v6498, %v6882
        %v6884 = vpop.f32.mrf.mxu0
        %v6885 = vadd.f32 %v6500, %v6884
        %v6886 = vand.u32 %v426, 4294901760
        %6887 = vmatprep.mubr.f32.mxu0 %v6886
        %v6888 = vand.u32 %v425, 4294901760
        %6889 = vmatmul.mubr.f32.gmra.mxu0 %v6888
        %v6890 = vpop.f32.mrf.mxu0
        %v6891 = vadd.f32 %v6506, %v6890
        %v6892 = vpop.f32.mrf.mxu0
        %v6893 = vadd.f32 %v6508, %v6892
        %v6894 = vand.u32 %v430, 4294901760
        %6895 = vmatprep.mubr.f32.mxu0 %v6894
        %v6896 = vand.u32 %v429, 4294901760
        %6897 = vmatmul.mubr.f32.gmra.mxu0 %v6896
        %v6898 = vpop.f32.mrf.mxu0
        %v6899 = vadd.f32 %v6514, %v6898
        %v6900 = vpop.f32.mrf.mxu0
        %v6901 = vadd.f32 %v6516, %v6900
        %v6902 = vand.u32 %v434, 4294901760
        %6903 = vmatprep.mubr.f32.mxu0 %v6902
        %v6904 = vand.u32 %v433, 4294901760
        %6905 = vmatmul.mubr.f32.gmra.mxu0 %v6904
        %v6906 = vpop.f32.mrf.mxu0
        %v6907 = vadd.f32 %v6522, %v6906
        %v6908 = vpop.f32.mrf.mxu0
        %v6909 = vadd.f32 %v6524, %v6908
        %v6910 = vand.u32 %v438, 4294901760
        %6911 = vmatprep.mubr.f32.mxu0 %v6910
        %v6912 = vand.u32 %v437, 4294901760
        %6913 = vmatmul.mubr.f32.gmra.mxu0 %v6912
        %v6914 = vpop.f32.mrf.mxu0
        %v6915 = vadd.f32 %v6530, %v6914
        %v6916 = vpop.f32.mrf.mxu0
        %v6917 = vadd.f32 %v6532, %v6916
        %v6918 = vand.u32 %v442, 4294901760
        %6919 = vmatprep.mubr.f32.mxu0 %v6918
        %v6920 = vand.u32 %v441, 4294901760
        %6921 = vmatmul.mubr.f32.gmra.mxu0 %v6920
        %v6922 = vpop.f32.mrf.mxu0
        %v6923 = vadd.f32 %v6538, %v6922
        %v6924 = vpop.f32.mrf.mxu0
        %v6925 = vadd.f32 %v6540, %v6924
        %v6926 = vand.u32 %v446, 4294901760
        %6927 = vmatprep.mubr.f32.mxu0 %v6926
        %v6928 = vand.u32 %v445, 4294901760
        %6929 = vmatmul.mubr.f32.gmra.mxu0 %v6928
        %v6930 = vpop.f32.mrf.mxu0
        %v6931 = vadd.f32 %v6546, %v6930
        %v6932 = vpop.f32.mrf.mxu0
        %v6933 = vadd.f32 %v6548, %v6932
        %v6934 = vand.u32 %v450, 4294901760
        %6935 = vmatprep.mubr.f32.mxu0 %v6934
        %v6936 = vand.u32 %v449, 4294901760
        %6937 = vmatmul.mubr.f32.gmra.mxu0 %v6936
        %v6938 = vpop.f32.mrf.mxu0
        %v6939 = vadd.f32 %v6554, %v6938
        %v6940 = vpop.f32.mrf.mxu0
        %v6941 = vadd.f32 %v6556, %v6940
        %v6942 = vand.u32 %v454, 4294901760
        %6943 = vmatprep.mubr.f32.mxu0 %v6942
        %v6944 = vand.u32 %v453, 4294901760
        %6945 = vmatmul.mubr.f32.gmra.mxu0 %v6944
        %v6946 = vpop.f32.mrf.mxu0
        %v6947 = vadd.f32 %v6562, %v6946
        %v6948 = vpop.f32.mrf.mxu0
        %v6949 = vadd.f32 %v6564, %v6948
        %v6950 = vand.u32 %v458, 4294901760
        %6951 = vmatprep.mubr.f32.mxu0 %v6950
        %v6952 = vand.u32 %v457, 4294901760
        %6953 = vmatmul.mubr.f32.gmra.mxu0 %v6952
        %v6954 = vpop.f32.mrf.mxu0
        %v6955 = vadd.f32 %v6570, %v6954
        %v6956 = vpop.f32.mrf.mxu0
        %v6957 = vadd.f32 %v6572, %v6956
        %v6958 = vand.u32 %v462, 4294901760
        %6959 = vmatprep.mubr.f32.mxu0 %v6958
        %v6960 = vand.u32 %v461, 4294901760
        %6961 = vmatmul.mubr.f32.gmra.mxu0 %v6960
        %v6962 = vpop.f32.mrf.mxu0
        %v6963 = vadd.f32 %v6578, %v6962
        %v6964 = vpop.f32.mrf.mxu0
        %v6965 = vadd.f32 %v6580, %v6964
        %v6966 = vand.u32 %v466, 4294901760
        %6967 = vmatprep.mubr.f32.mxu0 %v6966
        %v6968 = vand.u32 %v465, 4294901760
        %6969 = vmatmul.mubr.f32.gmra.mxu0 %v6968
        %v6970 = vpop.f32.mrf.mxu0
        %v6971 = vadd.f32 %v6586, %v6970
        %v6972 = vpop.f32.mrf.mxu0
        %v6973 = vadd.f32 %v6588, %v6972
        %v6974 = vand.u32 %v470, 4294901760
        %6975 = vmatprep.mubr.f32.mxu0 %v6974
        %v6976 = vand.u32 %v469, 4294901760
        %6977 = vmatmul.mubr.f32.gmra.mxu0 %v6976
        %v6978 = vpop.f32.mrf.mxu0
        %v6979 = vadd.f32 %v6594, %v6978
        %v6980 = vpop.f32.mrf.mxu0
        %v6981 = vadd.f32 %v6596, %v6980
        %v6982 = vand.u32 %v474, 4294901760
        %6983 = vmatprep.mubr.f32.mxu0 %v6982
        %v6984 = vand.u32 %v473, 4294901760
        %6985 = vmatmul.mubr.f32.gmra.mxu0 %v6984
        %v6986 = vpop.f32.mrf.mxu0
        %v6987 = vadd.f32 %v6602, %v6986
        %v6988 = vpop.f32.mrf.mxu0
        %v6989 = vadd.f32 %v6604, %v6988
        %v6990 = vand.u32 %v478, 4294901760
        %6991 = vmatprep.mubr.f32.mxu0 %v6990
        %v6992 = vand.u32 %v477, 4294901760
        %6993 = vmatmul.mubr.f32.gmra.mxu0 %v6992
        %v6994 = vpop.f32.mrf.mxu0
        %v6995 = vadd.f32 %v6610, %v6994
        %v6996 = vpop.f32.mrf.mxu0
        %v6997 = vadd.f32 %v6612, %v6996
        %v6998 = vand.u32 %v482, 4294901760
        %6999 = vmatprep.mubr.f32.mxu0 %v6998
        %v7000 = vand.u32 %v481, 4294901760
        %7001 = vmatmul.mubr.f32.gmra.mxu0 %v7000
        %v7002 = vpop.f32.mrf.mxu0
        %v7003 = vadd.f32 %v6618, %v7002
        %v7004 = vpop.f32.mrf.mxu0
        %v7005 = vadd.f32 %v6620, %v7004
        %v7006 = vand.u32 %v486, 4294901760
        %7007 = vmatprep.mubr.f32.mxu0 %v7006
        %v7008 = vand.u32 %v485, 4294901760
        %7009 = vmatmul.mubr.f32.gmra.mxu0 %v7008
        %v7010 = vpop.f32.mrf.mxu0
        %v7011 = vadd.f32 %v6626, %v7010
        %v7012 = vpop.f32.mrf.mxu0
        %v7013 = vadd.f32 %v6628, %v7012
        %v7014 = vand.u32 %v490, 4294901760
        %7015 = vmatprep.mubr.f32.mxu0 %v7014
        %v7016 = vand.u32 %v489, 4294901760
        %7017 = vmatmul.mubr.f32.gmra.mxu0 %v7016
        %v7018 = vpop.f32.mrf.mxu0
        %v7019 = vadd.f32 %v6634, %v7018
        %v7020 = vpop.f32.mrf.mxu0
        %v7021 = vadd.f32 %v6636, %v7020
        %v7022 = vand.u32 %v494, 4294901760
        %7023 = vmatprep.mubr.f32.mxu0 %v7022
        %v7024 = vand.u32 %v493, 4294901760
        %7025 = vmatmul.mubr.f32.gmra.mxu0 %v7024
        %v7026 = vpop.f32.mrf.mxu0
        %v7027 = vadd.f32 %v6642, %v7026
        %v7028 = vpop.f32.mrf.mxu0
        %v7029 = vadd.f32 %v6644, %v7028
        %v7030 = vand.u32 %v498, 4294901760
        %7031 = vmatprep.mubr.f32.mxu0 %v7030
        %v7032 = vand.u32 %v497, 4294901760
        %7033 = vmatmul.mubr.f32.gmra.mxu0 %v7032
        %v7034 = vpop.f32.mrf.mxu0
        %v7035 = vadd.f32 %v6650, %v7034
        %v7036 = vpop.f32.mrf.mxu0
        %v7037 = vadd.f32 %v6652, %v7036
        %7038 = vdwg.mxu0
        %v7039 = vadd.f32 %v307, %v6787
        %v7040 = vadd.f32 %v308, %v6789
        %v7041 = vadd.f32 %v309, %v6795
        %v7042 = vadd.f32 %v310, %v6797
        %v7043 = vadd.f32 %v311, %v6803
        %v7044 = vadd.f32 %v312, %v6805
        %v7045 = vadd.f32 %v313, %v6811
        %v7046 = vadd.f32 %v314, %v6813
        %v7047 = vadd.f32 %v315, %v6819
        %v7048 = vadd.f32 %v316, %v6821
        %v7049 = vadd.f32 %v317, %v6827
        %v7050 = vadd.f32 %v318, %v6829
        %v7051 = vadd.f32 %v319, %v6835
        %v7052 = vadd.f32 %v320, %v6837
        %v7053 = vadd.f32 %v321, %v6843
        %v7054 = vadd.f32 %v322, %v6845
        %v7055 = vadd.f32 %v323, %v6851
        %v7056 = vadd.f32 %v324, %v6853
        %v7057 = vadd.f32 %v325, %v6859
        %v7058 = vadd.f32 %v326, %v6861
        %v7059 = vadd.f32 %v327, %v6867
        %v7060 = vadd.f32 %v328, %v6869
        %v7061 = vadd.f32 %v329, %v6875
        %v7062 = vadd.f32 %v330, %v6877
        %v7063 = vadd.f32 %v331, %v6883
        %v7064 = vadd.f32 %v332, %v6885
        %v7065 = vadd.f32 %v333, %v6891
        %v7066 = vadd.f32 %v334, %v6893
        %v7067 = vadd.f32 %v335, %v6899
        %v7068 = vadd.f32 %v336, %v6901
        %v7069 = vadd.f32 %v337, %v6907
        %v7070 = vadd.f32 %v338, %v6909
        %v7071 = vadd.f32 %v339, %v6915
        %v7072 = vadd.f32 %v340, %v6917
        %v7073 = vadd.f32 %v341, %v6923
        %v7074 = vadd.f32 %v342, %v6925
        %v7075 = vadd.f32 %v343, %v6931
        %v7076 = vadd.f32 %v344, %v6933
        %v7077 = vadd.f32 %v345, %v6939
        %v7078 = vadd.f32 %v346, %v6941
        %v7079 = vadd.f32 %v347, %v6947
        %v7080 = vadd.f32 %v348, %v6949
        %v7081 = vadd.f32 %v349, %v6955
        %v7082 = vadd.f32 %v350, %v6957
        %v7083 = vadd.f32 %v351, %v6963
        %v7084 = vadd.f32 %v352, %v6965
        %v7085 = vadd.f32 %v353, %v6971
        %v7086 = vadd.f32 %v354, %v6973
        %v7087 = vadd.f32 %v355, %v6979
        %v7088 = vadd.f32 %v356, %v6981
        %v7089 = vadd.f32 %v357, %v6987
        %v7090 = vadd.f32 %v358, %v6989
        %v7091 = vadd.f32 %v359, %v6995
        %v7092 = vadd.f32 %v360, %v6997
        %v7093 = vadd.f32 %v361, %v7003
        %v7094 = vadd.f32 %v362, %v7005
        %v7095 = vadd.f32 %v363, %v7011
        %v7096 = vadd.f32 %v364, %v7013
        %v7097 = vadd.f32 %v365, %v7019
        %v7098 = vadd.f32 %v366, %v7021
        %v7099 = vadd.f32 %v367, %v7027
        %v7100 = vadd.f32 %v368, %v7029
        %v7101 = vadd.f32 %v369, %v7035
        %v7102 = vadd.f32 %v370, %v7037
        %7103 = vst [vmem:[#allocation2] sm:$0xff] %v7039
        %7104 = vst [vmem:[#allocation2 + $0x8] sm:$0xff] %v7040
        %7105 = vst [vmem:[#allocation2 + $0x10] sm:$0xff] %v7041
        %7106 = vst [vmem:[#allocation2 + $0x18] sm:$0xff] %v7042
        %7107 = vst [vmem:[#allocation2 + $0x20] sm:$0xff] %v7043
        %7108 = vst [vmem:[#allocation2 + $0x28] sm:$0xff] %v7044
        %7109 = vst [vmem:[#allocation2 + $0x30] sm:$0xff] %v7045
        %7110 = vst [vmem:[#allocation2 + $0x38] sm:$0xff] %v7046
        %7111 = vst [vmem:[#allocation2 + $0x40] sm:$0xff] %v7047
        %7112 = vst [vmem:[#allocation2 + $0x48] sm:$0xff] %v7048
        %7113 = vst [vmem:[#allocation2 + $0x50] sm:$0xff] %v7049
        %7114 = vst [vmem:[#allocation2 + $0x58] sm:$0xff] %v7050
        %7115 = vst [vmem:[#allocation2 + $0x60] sm:$0xff] %v7051
        %7116 = vst [vmem:[#allocation2 + $0x68] sm:$0xff] %v7052
        %7117 = vst [vmem:[#allocation2 + $0x70] sm:$0xff] %v7053
        %7118 = vst [vmem:[#allocation2 + $0x78] sm:$0xff] %v7054
        %7119 = vst [vmem:[#allocation2 + $0x80] sm:$0xff] %v7055
        %7120 = vst [vmem:[#allocation2 + $0x88] sm:$0xff] %v7056
        %7121 = vst [vmem:[#allocation2 + $0x90] sm:$0xff] %v7057
        %7122 = vst [vmem:[#allocation2 + $0x98] sm:$0xff] %v7058
        %7123 = vst [vmem:[#allocation2 + $0xa0] sm:$0xff] %v7059
        %7124 = vst [vmem:[#allocation2 + $0xa8] sm:$0xff] %v7060
        %7125 = vst [vmem:[#allocation2 + $0xb0] sm:$0xff] %v7061
        %7126 = vst [vmem:[#allocation2 + $0xb8] sm:$0xff] %v7062
        %7127 = vst [vmem:[#allocation2 + $0xc0] sm:$0xff] %v7063
        %7128 = vst [vmem:[#allocation2 + $0xc8] sm:$0xff] %v7064
        %7129 = vst [vmem:[#allocation2 + $0xd0] sm:$0xff] %v7065
        %7130 = vst [vmem:[#allocation2 + $0xd8] sm:$0xff] %v7066
        %7131 = vst [vmem:[#allocation2 + $0xe0] sm:$0xff] %v7067
        %7132 = vst [vmem:[#allocation2 + $0xe8] sm:$0xff] %v7068
        %7133 = vst [vmem:[#allocation2 + $0xf0] sm:$0xff] %v7069
        %7134 = vst [vmem:[#allocation2 + $0xf8] sm:$0xff] %v7070
        %7135 = vst [vmem:[#allocation2 + $0x100] sm:$0xff] %v7071
        %7136 = vst [vmem:[#allocation2 + $0x108] sm:$0xff] %v7072
        %7137 = vst [vmem:[#allocation2 + $0x110] sm:$0xff] %v7073
        %7138 = vst [vmem:[#allocation2 + $0x118] sm:$0xff] %v7074
        %7139 = vst [vmem:[#allocation2 + $0x120] sm:$0xff] %v7075
        %7140 = vst [vmem:[#allocation2 + $0x128] sm:$0xff] %v7076
        %7141 = vst [vmem:[#allocation2 + $0x130] sm:$0xff] %v7077
        %7142 = vst [vmem:[#allocation2 + $0x138] sm:$0xff] %v7078
        %7143 = vst [vmem:[#allocation2 + $0x140] sm:$0xff] %v7079
        %7144 = vst [vmem:[#allocation2 + $0x148] sm:$0xff] %v7080
        %7145 = vst [vmem:[#allocation2 + $0x150] sm:$0xff] %v7081
        %7146 = vst [vmem:[#allocation2 + $0x158] sm:$0xff] %v7082
        %7147 = vst [vmem:[#allocation2 + $0x160] sm:$0xff] %v7083
        %7148 = vst [vmem:[#allocation2 + $0x168] sm:$0xff] %v7084
        %7149 = vst [vmem:[#allocation2 + $0x170] sm:$0xff] %v7085
        %7150 = vst [vmem:[#allocation2 + $0x178] sm:$0xff] %v7086
        %7151 = vst [vmem:[#allocation2 + $0x180] sm:$0xff] %v7087
        %7152 = vst [vmem:[#allocation2 + $0x188] sm:$0xff] %v7088
        %7153 = vst [vmem:[#allocation2 + $0x190] sm:$0xff] %v7089
        %7154 = vst [vmem:[#allocation2 + $0x198] sm:$0xff] %v7090
        %7155 = vst [vmem:[#allocation2 + $0x1a0] sm:$0xff] %v7091
        %7156 = vst [vmem:[#allocation2 + $0x1a8] sm:$0xff] %v7092
        %7157 = vst [vmem:[#allocation2 + $0x1b0] sm:$0xff] %v7093
        %7158 = vst [vmem:[#allocation2 + $0x1b8] sm:$0xff] %v7094
        %7159 = vst [vmem:[#allocation2 + $0x1c0] sm:$0xff] %v7095
        %7160 = vst [vmem:[#allocation2 + $0x1c8] sm:$0xff] %v7096
        %7161 = vst [vmem:[#allocation2 + $0x1d0] sm:$0xff] %v7097
        %7162 = vst [vmem:[#allocation2 + $0x1d8] sm:$0xff] %v7098
        %7163 = vst [vmem:[#allocation2 + $0x1e0] sm:$0xff] %v7099
        %7164 = vst [vmem:[#allocation2 + $0x1e8] sm:$0xff] %v7100
        %7165 = vst [vmem:[#allocation2 + $0x1f0] sm:$0xff] %v7101
        %7166 = vst [vmem:[#allocation2 + $0x1f8] sm:$0xff] %v7102
        // Predicated region
        $region41: #{tpu_custom_call.1} parent=27 // pred_check
          %p7167 = pneg %p239
        $region42: #{tpu_custom_call.1} parent=27 // pred_check_branch
          %7169 = sbr.rel (%p7167) target = $region44
        $region43: #{tpu_custom_call.1} parent=27 // pred_region
          %v7170 = vld [vmem:[#allocation2] sm:$0xff]
          %v7171 = vld [vmem:[#allocation2 + $0x8] sm:$0xff]
          %v7172 = vld [vmem:[#allocation2 + $0x10] sm:$0xff]
          %v7173 = vld [vmem:[#allocation2 + $0x18] sm:$0xff]
          %v7174 = vld [vmem:[#allocation2 + $0x20] sm:$0xff]
          %v7175 = vld [vmem:[#allocation2 + $0x28] sm:$0xff]
          %v7176 = vld [vmem:[#allocation2 + $0x30] sm:$0xff]
          %v7177 = vld [vmem:[#allocation2 + $0x38] sm:$0xff]
          %v7178 = vld [vmem:[#allocation2 + $0x40] sm:$0xff]
          %v7179 = vld [vmem:[#allocation2 + $0x48] sm:$0xff]
          %v7180 = vld [vmem:[#allocation2 + $0x50] sm:$0xff]
          %v7181 = vld [vmem:[#allocation2 + $0x58] sm:$0xff]
          %v7182 = vld [vmem:[#allocation2 + $0x60] sm:$0xff]
          %v7183 = vld [vmem:[#allocation2 + $0x68] sm:$0xff]
          %v7184 = vld [vmem:[#allocation2 + $0x70] sm:$0xff]
          %v7185 = vld [vmem:[#allocation2 + $0x78] sm:$0xff]
          %v7186 = vld [vmem:[#allocation2 + $0x80] sm:$0xff]
          %v7187 = vld [vmem:[#allocation2 + $0x88] sm:$0xff]
          %v7188 = vld [vmem:[#allocation2 + $0x90] sm:$0xff]
          %v7189 = vld [vmem:[#allocation2 + $0x98] sm:$0xff]
          %v7190 = vld [vmem:[#allocation2 + $0xa0] sm:$0xff]
          %v7191 = vld [vmem:[#allocation2 + $0xa8] sm:$0xff]
          %v7192 = vld [vmem:[#allocation2 + $0xb0] sm:$0xff]
          %v7193 = vld [vmem:[#allocation2 + $0xb8] sm:$0xff]
          %v7194 = vld [vmem:[#allocation2 + $0xc0] sm:$0xff]
          %v7195 = vld [vmem:[#allocation2 + $0xc8] sm:$0xff]
          %v7196 = vld [vmem:[#allocation2 + $0xd0] sm:$0xff]
          %v7197 = vld [vmem:[#allocation2 + $0xd8] sm:$0xff]
          %v7198 = vld [vmem:[#allocation2 + $0xe0] sm:$0xff]
          %v7199 = vld [vmem:[#allocation2 + $0xe8] sm:$0xff]
          %v7200 = vld [vmem:[#allocation2 + $0xf0] sm:$0xff]
          %v7201 = vld [vmem:[#allocation2 + $0xf8] sm:$0xff]
          %v7202 = vld [vmem:[#allocation2 + $0x100] sm:$0xff]
          %v7203 = vld [vmem:[#allocation2 + $0x108] sm:$0xff]
          %v7204 = vld [vmem:[#allocation2 + $0x110] sm:$0xff]
          %v7205 = vld [vmem:[#allocation2 + $0x118] sm:$0xff]
          %v7206 = vld [vmem:[#allocation2 + $0x120] sm:$0xff]
          %v7207 = vld [vmem:[#allocation2 + $0x128] sm:$0xff]
          %v7208 = vld [vmem:[#allocation2 + $0x130] sm:$0xff]
          %v7209 = vld [vmem:[#allocation2 + $0x138] sm:$0xff]
          %v7210 = vld [vmem:[#allocation2 + $0x140] sm:$0xff]
          %v7211 = vld [vmem:[#allocation2 + $0x148] sm:$0xff]
          %v7212 = vld [vmem:[#allocation2 + $0x150] sm:$0xff]
          %v7213 = vld [vmem:[#allocation2 + $0x158] sm:$0xff]
          %v7214 = vld [vmem:[#allocation2 + $0x160] sm:$0xff]
          %v7215 = vld [vmem:[#allocation2 + $0x168] sm:$0xff]
          %v7216 = vld [vmem:[#allocation2 + $0x170] sm:$0xff]
          %v7217 = vld [vmem:[#allocation2 + $0x178] sm:$0xff]
          %v7218 = vld [vmem:[#allocation2 + $0x180] sm:$0xff]
          %v7219 = vld [vmem:[#allocation2 + $0x188] sm:$0xff]
          %v7220 = vld [vmem:[#allocation2 + $0x190] sm:$0xff]
          %v7221 = vld [vmem:[#allocation2 + $0x198] sm:$0xff]
          %v7222 = vld [vmem:[#allocation2 + $0x1a0] sm:$0xff]
          %v7223 = vld [vmem:[#allocation2 + $0x1a8] sm:$0xff]
          %v7224 = vld [vmem:[#allocation2 + $0x1b0] sm:$0xff]
          %v7225 = vld [vmem:[#allocation2 + $0x1b8] sm:$0xff]
          %v7226 = vld [vmem:[#allocation2 + $0x1c0] sm:$0xff]
          %v7227 = vld [vmem:[#allocation2 + $0x1c8] sm:$0xff]
          %v7228 = vld [vmem:[#allocation2 + $0x1d0] sm:$0xff]
          %v7229 = vld [vmem:[#allocation2 + $0x1d8] sm:$0xff]
          %v7230 = vld [vmem:[#allocation2 + $0x1e0] sm:$0xff]
          %v7231 = vld [vmem:[#allocation2 + $0x1e8] sm:$0xff]
          %v7232 = vld [vmem:[#allocation2 + $0x1f0] sm:$0xff]
          %v7233 = vld [vmem:[#allocation2 + $0x1f8] sm:$0xff]
          %7234 = vst [vmem:[%s232] sm:$0xff] %v7170
          %7235 = vst [vmem:[%s232 + $0x8] sm:$0xff] %v7171
          %7236 = vst [vmem:[%s232 + $0x10] sm:$0xff] %v7172
          %7237 = vst [vmem:[%s232 + $0x18] sm:$0xff] %v7173
          %7238 = vst [vmem:[%s232 + $0x20] sm:$0xff] %v7174
          %7239 = vst [vmem:[%s232 + $0x28] sm:$0xff] %v7175
          %7240 = vst [vmem:[%s232 + $0x30] sm:$0xff] %v7176
          %7241 = vst [vmem:[%s232 + $0x38] sm:$0xff] %v7177
          %7242 = vst [vmem:[%s232 + $0x40] sm:$0xff] %v7178
          %7243 = vst [vmem:[%s232 + $0x48] sm:$0xff] %v7179
          %7244 = vst [vmem:[%s232 + $0x50] sm:$0xff] %v7180
          %7245 = vst [vmem:[%s232 + $0x58] sm:$0xff] %v7181
          %7246 = vst [vmem:[%s232 + $0x60] sm:$0xff] %v7182
          %7247 = vst [vmem:[%s232 + $0x68] sm:$0xff] %v7183
          %7248 = vst [vmem:[%s232 + $0x70] sm:$0xff] %v7184
          %7249 = vst [vmem:[%s232 + $0x78] sm:$0xff] %v7185
          %7250 = vst [vmem:[%s232 + $0x80] sm:$0xff] %v7186
          %7251 = vst [vmem:[%s232 + $0x88] sm:$0xff] %v7187
          %7252 = vst [vmem:[%s232 + $0x90] sm:$0xff] %v7188
          %7253 = vst [vmem:[%s232 + $0x98] sm:$0xff] %v7189
          %7254 = vst [vmem:[%s232 + $0xa0] sm:$0xff] %v7190
          %7255 = vst [vmem:[%s232 + $0xa8] sm:$0xff] %v7191
          %7256 = vst [vmem:[%s232 + $0xb0] sm:$0xff] %v7192
          %7257 = vst [vmem:[%s232 + $0xb8] sm:$0xff] %v7193
          %7258 = vst [vmem:[%s232 + $0xc0] sm:$0xff] %v7194
          %7259 = vst [vmem:[%s232 + $0xc8] sm:$0xff] %v7195
          %7260 = vst [vmem:[%s232 + $0xd0] sm:$0xff] %v7196
          %7261 = vst [vmem:[%s232 + $0xd8] sm:$0xff] %v7197
          %7262 = vst [vmem:[%s232 + $0xe0] sm:$0xff] %v7198
          %7263 = vst [vmem:[%s232 + $0xe8] sm:$0xff] %v7199
          %7264 = vst [vmem:[%s232 + $0xf0] sm:$0xff] %v7200
          %7265 = vst [vmem:[%s232 + $0xf8] sm:$0xff] %v7201
          %7266 = vst [vmem:[%s232 + $0x100] sm:$0xff] %v7202
          %7267 = vst [vmem:[%s232 + $0x108] sm:$0xff] %v7203
          %7268 = vst [vmem:[%s232 + $0x110] sm:$0xff] %v7204
          %7269 = vst [vmem:[%s232 + $0x118] sm:$0xff] %v7205
          %7270 = vst [vmem:[%s232 + $0x120] sm:$0xff] %v7206
          %7271 = vst [vmem:[%s232 + $0x128] sm:$0xff] %v7207
          %7272 = vst [vmem:[%s232 + $0x130] sm:$0xff] %v7208
          %7273 = vst [vmem:[%s232 + $0x138] sm:$0xff] %v7209
          %7274 = vst [vmem:[%s232 + $0x140] sm:$0xff] %v7210
          %7275 = vst [vmem:[%s232 + $0x148] sm:$0xff] %v7211
          %7276 = vst [vmem:[%s232 + $0x150] sm:$0xff] %v7212
          %7277 = vst [vmem:[%s232 + $0x158] sm:$0xff] %v7213
          %7278 = vst [vmem:[%s232 + $0x160] sm:$0xff] %v7214
          %7279 = vst [vmem:[%s232 + $0x168] sm:$0xff] %v7215
          %7280 = vst [vmem:[%s232 + $0x170] sm:$0xff] %v7216
          %7281 = vst [vmem:[%s232 + $0x178] sm:$0xff] %v7217
          %7282 = vst [vmem:[%s232 + $0x180] sm:$0xff] %v7218
          %7283 = vst [vmem:[%s232 + $0x188] sm:$0xff] %v7219
          %7284 = vst [vmem:[%s232 + $0x190] sm:$0xff] %v7220
          %7285 = vst [vmem:[%s232 + $0x198] sm:$0xff] %v7221
          %7286 = vst [vmem:[%s232 + $0x1a0] sm:$0xff] %v7222
          %7287 = vst [vmem:[%s232 + $0x1a8] sm:$0xff] %v7223
          %7288 = vst [vmem:[%s232 + $0x1b0] sm:$0xff] %v7224
          %7289 = vst [vmem:[%s232 + $0x1b8] sm:$0xff] %v7225
          %7290 = vst [vmem:[%s232 + $0x1c0] sm:$0xff] %v7226
          %7291 = vst [vmem:[%s232 + $0x1c8] sm:$0xff] %v7227
          %7292 = vst [vmem:[%s232 + $0x1d0] sm:$0xff] %v7228
          %7293 = vst [vmem:[%s232 + $0x1d8] sm:$0xff] %v7229
          %7294 = vst [vmem:[%s232 + $0x1e0] sm:$0xff] %v7230
          %7295 = vst [vmem:[%s232 + $0x1e8] sm:$0xff] %v7231
          %7296 = vst [vmem:[%s232 + $0x1f0] sm:$0xff] %v7232
          %7297 = vst [vmem:[%s232 + $0x1f8] sm:$0xff] %v7233
        $region44: #{tpu_custom_call.1} parent=27 // pred_fallthru
          _
        %s7298 = sand.u32 %s107, 1
        %s7299 = scalar_lea.sflag [#allocation5], %s7298
        %s7300 = sand.u32 %s107, 1
        %s7301 = smul.addr %s7300, 512
        %s7302 = scalar_lea.vmem [#allocation8], %s7301
        // Predicated region
        $region45: #{tpu_custom_call.1} parent=27 // pred_check
          %p7303 = pneg %p117
        $region46: #{tpu_custom_call.1} parent=27 // pred_check_branch
          %7305 = sbr.rel (%p7303) target = $region48
        $region47: #{tpu_custom_call.1} parent=27 // pred_region
          %s7306 = smul.u32 32, %s27
          %s7307 = smul.u32 2, %s28
          %s7309 = ssub.s32 8192, 8192
          %7310 = vsyncadd %s7299, %s7309
          %s7311 = smul.addr %s7306, 4
          %s7312 = sadd.s32 %s7307, %s7311
          %s7313 = smul.addr %s7312, 128
          %s7314 = scalar_lea.hbm %s2, %s7313
          %s7315 = sshll.u32 %s7302, 4
          %s7316 = int_to_ptr.vmem [resolvable:$true] %s7315
          %7321 = dma.vmem_to_hbm [thread:$0]  %s7316, 8192, %s7314, %s7299, 256, 512, 16
        $region48: #{tpu_custom_call.1} parent=27 // pred_fallthru
          _
      $region28: #{tpu_custom_call.1} parent=5 // pred_fallthru
        _
      %p7322 = scmp.le.s32.totalorder 2, %s17
      // Predicated region
      $region49: #{tpu_custom_call.1} parent=5 // pred_check
        %p7323 = pneg %p7322
      $region50: #{tpu_custom_call.1} parent=5 // pred_check_branch
        %7325 = sbr.rel (%p7323) target = $region52
      $region51: #{tpu_custom_call.1} parent=5 // pred_region
        %s7326 = ssub.s32 %s17, 2
        // Predicated region
        $region53: #{tpu_custom_call.1} parent=51 // pred_check
          %p7327 = pneg %p123
        $region54: #{tpu_custom_call.1} parent=51 // pred_check_branch
          %7329 = sbr.rel (%p7327) target = $region56
        $region55: #{tpu_custom_call.1} parent=51 // pred_region
          %s7330 = sand.u32 %s108, 1
          %s7331 = scalar_lea.sflag [#allocation5], %s7330
          %s7332 = sand.u32 %s108, 1
          %s7333 = smul.addr %s7332, 512
          %s7334 = scalar_lea.vmem [#allocation8], %s7333
          %7335 = dma.done %s7331, 8192
        $region56: #{tpu_custom_call.1} parent=51 // pred_fallthru
          _
      $region52: #{tpu_custom_call.1} parent=5 // pred_fallthru
        _
    $region6: #{tpu_custom_call.1} parent=1 // loop_footer
      %s21 = sadd.s32 1, %s17
    $region7: #{tpu_custom_call.1} parent=1 // loop_footer_branch
      %16 = sbr.rel target = $region3
    $region8: #{tpu_custom_call.1} parent=1 // loop_exit
      _
    %7336 = vsyncpa [#allocation4], 1
    %s7337 = scalar_lea.sflag [#allocation4], 1
    %7338 = vsyncpa %s7337, 1
    %7339 = vsyncpa [#allocation7], 1
    %s7340 = scalar_lea.sflag [#allocation7], 1
    %7341 = vsyncpa %s7340, 1
    %7342 = vsyncpa [#allocation5], 1
    %s7343 = scalar_lea.sflag [#allocation5], 1
    %7344 = vsyncpa %s7343, 1

</llo_original>
